<compile_context>
chip_gen: v7x
topology: tpu7x:2x2x1
jax: 0.10.0
libtpu: 0.0.40
codegen_flags: <defaults>
</compile_context>

<pallas_src>
import functools

import jax
import jax.numpy as jnp
from jax import lax
from jax.experimental import pallas as pl
from jax.experimental.pallas import tpu as pltpu


def _gelu(x):
    # exact (erf-based) GELU, matching torch.nn.GELU(approximate='none')
    # TODO(synk): tanh-approx GELU would run on the EUP (idle slot here), but
    # changes numerics vs torch GELU(approximate='none'); keep erf.
    return 0.5 * x * (1.0 + lax.erf(x / jnp.sqrt(2.0).astype(x.dtype)))


def _round_up(x, m):
    return ((x + m - 1) // m) * m


def residual_stack_kernel(x_ref, w1_ref, w2_ref, out_ref, hp_ref, *,
                          num_layers, tile_rows, real_w, mm_dtype):
    """One batch element per grid step; the whole residual stack inside.

    x_ref  : (1, H, Wp, Cp)      input activations (NHWC, lane/width padded)
    w1_ref : (L*9, Cp, Rp)       3x3 conv weights, one (Cp,Rp) matrix per tap
    w2_ref : (L, Rp, Cp)         1x1 conv weights
    out_ref: (1, H, Wp, Cp)      output; also the running activation (f32)
    hp_ref : (H+2, Wp+2, Cp)     persistent zero-padded gelu(x) buffer (VMEM)
    """
    _, H, Wp, Cp = x_ref.shape
    Rp = w2_ref.shape[1]
    TH = tile_rows
    n_tiles = H // TH
    f32 = jnp.float32

    # --- Border-only zeroing of the padded scratch (interior is rewritten
    # every layer).  Done per grid step so it stays correct under megacore
    # sharding (each core owns its own scratch).
    hp_ref[pl.ds(0, 1), :, :] = jnp.zeros((1, Wp + 2, Cp), f32)
    hp_ref[pl.ds(H + 1, 1), :, :] = jnp.zeros((1, Wp + 2, Cp), f32)
    hp_ref[:, pl.ds(0, 1), :] = jnp.zeros((H + 2, 1, Cp), f32)
    hp_ref[:, pl.ds(Wp + 1, 1), :] = jnp.zeros((H + 2, 1, Cp), f32)

    # Running activation lives in the VMEM-resident output block.
    out_ref[...] = x_ref[...]

    def layer_body(l, carry):
        # gelu(x) into the interior of the padded buffer for the whole image
        # (the row-tiled conv below needs the +/-1-row halo).  The column
        # offset-1 store is a masked sublane store; accepted (once per layer).
        hp_ref[pl.ds(1, H), pl.ds(1, Wp), :] = _gelu(out_ref[0])
        if Wp > real_w:
            # Keep the zero invariant for width-padded image columns: they
            # must not feed back into real columns on the next layer.
            hp_ref[pl.ds(1, H), pl.ds(real_w + 1, Wp - real_w), :] = (
                jnp.zeros((H, Wp - real_w, Cp), f32))

        def tile_body(t, c2):
            r0 = t * TH  # first output row of this tile (leading dim: free)
            acc = jnp.zeros((TH * Wp, Rp), f32)
            # 3 sublane-shifted loads (one per kx tap); ky taps are free
            # leading-dim offsets of each load; 9 accumulating K=Cp dots on
            # the MXU -- no (TH*Wp, 9*Cp) im2col buffer is ever materialised.
            for kx in range(3):
                hs = hp_ref[pl.ds(r0, TH + 2), pl.ds(kx, Wp), :]
                hs = hs.astype(mm_dtype)
                for ky in range(3):
                    tap = hs[ky:ky + TH].reshape(TH * Wp, Cp)
                    acc = acc + jnp.dot(
                        tap, w1_ref[l * 9 + 3 * ky + kx],
                        preferred_element_type=jnp.float32)
            y = jnp.dot(_gelu(acc).astype(mm_dtype), w2_ref[l],
                        preferred_element_type=jnp.float32)     # (TH*Wp, Cp)
            xt = out_ref[0, pl.ds(r0, TH), :, :]
            out_ref[0, pl.ds(r0, TH), :, :] = xt + y.reshape(TH, Wp, Cp)
            return c2

        lax.fori_loop(0, n_tiles, tile_body, 0)
        return carry

    lax.fori_loop(0, num_layers, layer_body, 0)

    out_ref[...] = _gelu(out_ref[...])                          # final F.gelu


def residual_stack(x_nchw, w1_oihw, w2_oihw, *, matmul_dtype=jnp.float32):
    """Wrapper: NCHW in/out (PyTorch convention), NHWC + lane padding inside.

    x_nchw : (B, C, H, W)
    w1_oihw: (L, Cres, C, 3, 3)   3x3 conv weights, PyTorch OIHW per layer
    w2_oihw: (L, C, Cres, 1, 1)   1x1 conv weights, PyTorch OIHW per layer
    """
    x = jnp.transpose(x_nchw, (0, 2, 3, 1)).astype(jnp.float32)   # -> NHWC
    B, H, W, C = x.shape
    L, Cres, Cin = w1_oihw.shape[:3]
    assert Cin == C and w2_oihw.shape[1] == C and w2_oihw.shape[2] == Cres

    LANE, SUB = 128, 8
    Cp = _round_up(C, LANE)       # lane-padded hidden channels
    Rp = _round_up(Cres, LANE)    # lane-padded residual channels
    Wp = _round_up(W, SUB)        # sublane-aligned image width
    # TODO(synk): for C << 128 (like this demo) the 128-lane channel padding
    # inflates work ~(128/C)x; pack spatial columns / extra batch rows into
    # the lane axis for small-channel configs.

    # Activations: zero-pad width and channels (stay zero through the stack).
    xp = jnp.pad(x, ((0, 0), (0, 0), (0, Wp - W), (0, Cp - C)))

    # w1: OIHW (L,Cres,C,3,3) -> (L,kh,kw,Cin,Cout) -> pad -> (L*9, Cp, Rp)
    w1 = jnp.transpose(w1_oihw, (0, 3, 4, 2, 1)).astype(jnp.float32)
    w1 = jnp.pad(w1, ((0, 0), (0, 0), (0, 0), (0, Cp - C), (0, Rp - Cres)))
    w1 = w1.reshape(L * 9, Cp, Rp).astype(matmul_dtype)

    # w2: (L,C,Cres,1,1) -> (L,Cres,C) -> pad -> (L, Rp, Cp)
    w2 = jnp.transpose(w2_oihw[:, :, :, 0, 0], (0, 2, 1)).astype(jnp.float32)
    w2 = jnp.pad(w2, ((0, 0), (0, Rp - Cres), (0, Cp - C))).astype(matmul_dtype)

    # Generation-aware VMEM limit (~85% of physical: ~109 MiB on v5e/v6e,
    # ~54 MiB on v7x), with a conservative fallback.
    try:
        vmem_cap = int(pltpu.get_tpu_info().vmem_capacity_bytes)
    except Exception:
        vmem_cap = 64 * 1024 * 1024
    vmem_limit = max(32 * 1024 * 1024, int(vmem_cap * 0.85))

    # Row-tile height: largest divisor of H keeping TH*Wp matmul rows small
    # (per-tile temporaries a few hundred KiB); smaller cap on 64 MiB parts.
    row_cap = 1024 if vmem_cap <= 96 * 1024 * 1024 else 2048
    TH = max((d for d in range(1, H + 1)
              if H % d == 0 and d * Wp <= row_cap), default=1)

    kernel = functools.partial(residual_stack_kernel, num_layers=L,
                               tile_rows=TH, real_w=W, mm_dtype=matmul_dtype)

    # TODO(synk): for deep stacks / Cp >= 256 where resident weights approach
    # the VMEM budget (v7x: 64 MiB), stream per-layer weights via
    # memory_space=pl.ANY + make_async_copy instead of full-L residency.
    # TODO(synk): for B == 1 on v7x, add a second "parallel" grid axis over
    # row tiles (1-row halo recompute) so both TensorCores are used.
    def build(buffered_weights):
        wmode = ({"pipeline_mode": pl.Buffered(1)} if buffered_weights else {})
        return pl.pallas_call(
            kernel,
            out_shape=jax.ShapeDtypeStruct((B, H, Wp, Cp), jnp.float32),
            grid_spec=pltpu.PrefetchScalarGridSpec(
                num_scalar_prefetch=0,
                grid=(B,),  # one batch element per grid step
                in_specs=[
                    pl.BlockSpec((1, H, Wp, Cp), lambda b: (b, 0, 0, 0)),
                    # Weights: constant index_map -> resident; single-buffer.
                    pl.BlockSpec((L * 9, Cp, Rp), lambda b: (0, 0, 0), **wmode),
                    pl.BlockSpec((L, Rp, Cp), lambda b: (0, 0, 0), **wmode),
                ],
                out_specs=pl.BlockSpec((1, H, Wp, Cp), lambda b: (b, 0, 0, 0)),
                scratch_shapes=[
                    pltpu.VMEM((H + 2, Wp + 2, Cp), jnp.float32),
                ],
            ),
            compiler_params=pltpu.CompilerParams(
                dimension_semantics=("parallel",),   # megacore on v7x
                vmem_limit_bytes=vmem_limit,
            ),
        )

    # Prefer single-buffered weight blocks (halves resident weight VMEM);
    # fall back to default buffering if this JAX build rejects pipeline_mode.
    try:
        out = jax.block_until_ready(build(True)(xp, w1, w2))
    except Exception:
        out = jax.block_until_ready(build(False)(xp, w1, w2))

    out = out[:, :, :W, :C]                                  # drop padding
    return jnp.transpose(out, (0, 3, 1, 2))                  # NHWC -> NCHW


def reference_forward(x_nchw, w1_oihw, w2_oihw):
    """Pure-JAX reference (lax.conv), mirrors the PyTorch module exactly."""
    L = w1_oihw.shape[0]
    dn = ("NCHW", "OIHW", "NCHW")
    x = x_nchw.astype(jnp.float32)
    for l in range(L):
        h = _gelu(x)
        h = lax.conv_general_dilated(h, w1_oihw[l], (1, 1), "SAME",
                                     dimension_numbers=dn)
        h = _gelu(h)
        h = lax.conv_general_dilated(h, w2_oihw[l], (1, 1), "VALID",
                                     dimension_numbers=dn)
        x = x + h
    return _gelu(x)


if __name__ == "__main__":
    # Module hyperparameters (residual add requires in_channels == num_hiddens)
    B = 2
    in_channels = num_hiddens = 8
    num_residual_hiddens = 4
    num_residual_layers = 2
    H = W = 16

    key = jax.random.PRNGKey(0)
    kx, k1, k2 = jax.random.split(key, 3)

    x = jax.random.normal(kx, (B, in_channels, H, W), dtype=jnp.float32)

    # Weights in PyTorch OIHW layout.
    w1_oihw = jax.random.normal(
        k1, (num_residual_layers, num_residual_hiddens, in_channels, 3, 3),
        dtype=jnp.float32) * (1.0 / jnp.sqrt(9.0 * in_channels))
    w2_oihw = jax.random.normal(
        k2, (num_residual_layers, num_hiddens, num_residual_hiddens, 1, 1),
        dtype=jnp.float32) * (1.0 / jnp.sqrt(1.0 * num_residual_hiddens))

    ref = jax.block_until_ready(reference_forward(x, w1_oihw, w2_oihw))

    # Exact-semantics path (f32 matmul operands).
    out = jax.block_until_ready(
        residual_stack(x, w1_oihw, w2_oihw, matmul_dtype=jnp.float32))
    assert out.shape == ref.shape and out.dtype == ref.dtype
    if not jnp.allclose(out, ref, rtol=1e-3, atol=1e-3):
        raise AssertionError("Pallas kernel (f32 matmuls) does not match reference")

    # Fast path (bf16 MXU operands, f32 accumulate): re-validated per review.
    out_bf16 = jax.block_until_ready(
        residual_stack(x, w1_oihw, w2_oihw, matmul_dtype=jnp.bfloat16))
    if not jnp.allclose(out_bf16, ref, rtol=3e-2, atol=3e-2):
        raise AssertionError("Pallas kernel (bf16 matmuls) does not match reference")

    print("KERNEL_OK")
</pallas_src>

<mosaic_0001>
module attributes {stable_mosaic.version = 11 : i64} {
  func.func @residual_stack_kernel(%arg0: i32, %arg1: memref<1x16x16x128xf32, #tpu.memory_space<vmem>>, %arg2: memref<18x128x128xf32, #tpu.memory_space<vmem>>, %arg3: memref<2x128x128xf32, #tpu.memory_space<vmem>>, %arg4: memref<1x16x16x128xf32, #tpu.memory_space<vmem>>, %arg5: memref<18x18x128xf32, #tpu.memory_space<vmem>>) attributes {dimension_semantics = [#tpu.dimension_semantics<parallel>], iteration_bounds = array<i64: 2>, scalar_prefetch = 0 : i64, scratch_operands = 1 : i64, tpu.core_type = #tpu.core_type<tc>, window_params = [{transform_indices = @transform_0, window_bounds = array<i64: 1, 16, 16, 128>}, {pipeline_mode = #tpu.pipeline_mode<synchronous>, transform_indices = @transform_1, window_bounds = array<i64: 18, 128, 128>}, {pipeline_mode = #tpu.pipeline_mode<synchronous>, transform_indices = @transform_2, window_bounds = array<i64: 2, 128, 128>}, {transform_indices = @transform_3, window_bounds = array<i64: 1, 16, 16, 128>}]} {
    %cst = arith.constant 0.000000e+00 : f32
    %0 = vector.broadcast %cst : f32 to vector<1x18x128xf32>
    %c0 = arith.constant 0 : index
    %c0_0 = arith.constant 0 : index
    %c0_1 = arith.constant 0 : index
    %1 = vector.load %arg5[%c0, %c0_0, %c0_1] : memref<18x18x128xf32, #tpu.memory_space<vmem>>, vector<1x18x128xf32>
    tpu.vector_store %arg5[%c0, %c0_0, %c0_1], %0 {strides = array<i32>} : memref<18x18x128xf32, #tpu.memory_space<vmem>>, vector<1x18x128xf32>,
    %cst_2 = arith.constant 0.000000e+00 : f32
    %2 = vector.broadcast %cst_2 : f32 to vector<1x18x128xf32>
    %c17 = arith.constant 17 : index
    %c0_3 = arith.constant 0 : index
    %c0_4 = arith.constant 0 : index
    %3 = vector.load %arg5[%c17, %c0_3, %c0_4] : memref<18x18x128xf32, #tpu.memory_space<vmem>>, vector<1x18x128xf32>
    tpu.vector_store %arg5[%c17, %c0_3, %c0_4], %2 {strides = array<i32>} : memref<18x18x128xf32, #tpu.memory_space<vmem>>, vector<1x18x128xf32>,
    %cst_5 = arith.constant 0.000000e+00 : f32
    %4 = vector.broadcast %cst_5 : f32 to vector<18x1x128xf32>
    %c0_6 = arith.constant 0 : index
    %c0_7 = arith.constant 0 : index
    %c0_8 = arith.constant 0 : index
    %5 = vector.load %arg5[%c0_6, %c0_7, %c0_8] : memref<18x18x128xf32, #tpu.memory_space<vmem>>, vector<18x1x128xf32>
    tpu.vector_store %arg5[%c0_6, %c0_7, %c0_8], %4 {strides = array<i32>} : memref<18x18x128xf32, #tpu.memory_space<vmem>>, vector<18x1x128xf32>,
    %cst_9 = arith.constant 0.000000e+00 : f32
    %6 = vector.broadcast %cst_9 : f32 to vector<18x1x128xf32>
    %c0_10 = arith.constant 0 : index
    %c17_11 = arith.constant 17 : index
    %c0_12 = arith.constant 0 : index
    %7 = vector.load %arg5[%c0_10, %c17_11, %c0_12] : memref<18x18x128xf32, #tpu.memory_space<vmem>>, vector<18x1x128xf32>
    tpu.vector_store %arg5[%c0_10, %c17_11, %c0_12], %6 {strides = array<i32>} : memref<18x18x128xf32, #tpu.memory_space<vmem>>, vector<18x1x128xf32>,
    %c0_13 = arith.constant 0 : index
    %c0_14 = arith.constant 0 : index
    %c0_15 = arith.constant 0 : index
    %c0_16 = arith.constant 0 : index
    %8 = vector.load %arg1[%c0_13, %c0_14, %c0_15, %c0_16] : memref<1x16x16x128xf32, #tpu.memory_space<vmem>>, vector<1x16x16x128xf32>
    %c0_17 = arith.constant 0 : index
    %c0_18 = arith.constant 0 : index
    %c0_19 = arith.constant 0 : index
    %c0_20 = arith.constant 0 : index
    %9 = vector.load %arg4[%c0_17, %c0_18, %c0_19, %c0_20] : memref<1x16x16x128xf32, #tpu.memory_space<vmem>>, vector<1x16x16x128xf32>
    tpu.vector_store %arg4[%c0_17, %c0_18, %c0_19, %c0_20], %8 {strides = array<i32>} : memref<1x16x16x128xf32, #tpu.memory_space<vmem>>, vector<1x16x16x128xf32>,
    %c0_i32 = arith.constant 0 : i32
    %c2_i32 = arith.constant 2 : i32
    %10 = arith.addi %c0_i32, %c2_i32 : i32
    %c1_i32 = arith.constant 1 : i32
    scf.for %arg6 = %c0_i32 to %10 step %c1_i32  : i32 {
      %c0_33 = arith.constant 0 : index
      %c0_34 = arith.constant 0 : index
      %c0_35 = arith.constant 0 : index
      %c0_36 = arith.constant 0 : index
      %22 = vector.load %arg4[%c0_33, %c0_34, %c0_35, %c0_36] : memref<1x16x16x128xf32, #tpu.memory_space<vmem>>, vector<1x16x16x128xf32>
      %23 = vector.shape_cast %22 : vector<1x16x16x128xf32> to vector<16x16x128xf32>
      %cst_37 = arith.constant 5.000000e-01 : f32
      %24 = vector.broadcast %cst_37 : f32 to vector<16x16x128xf32>
      %25 = arith.mulf %24, %23 : vector<16x16x128xf32>
      %cst_38 = arith.constant 2.000000e+00 : f32
      %26 = math.sqrt %cst_38 : f32
      %27 = vector.broadcast %26 : f32 to vector<16x16x128xf32>
      %28 = arith.divf %23, %27 : vector<16x16x128xf32>
      %29 = math.erf %28 : vector<16x16x128xf32>
      %cst_39 = arith.constant 1.000000e+00 : f32
      %30 = vector.broadcast %cst_39 : f32 to vector<16x16x128xf32>
      %31 = arith.addf %30, %29 : vector<16x16x128xf32>
      %32 = arith.mulf %25, %31 : vector<16x16x128xf32>
      %c1 = arith.constant 1 : index
      %c1_40 = arith.constant 1 : index
      %c0_41 = arith.constant 0 : index
      %33 = vector.load %arg5[%c1, %c1_40, %c0_41] : memref<18x18x128xf32, #tpu.memory_space<vmem>>, vector<16x16x128xf32>
      tpu.vector_store %arg5[%c1, %c1_40, %c0_41], %32 {strides = array<i32>} : memref<18x18x128xf32, #tpu.memory_space<vmem>>, vector<16x16x128xf32>,
      %c0_i32_42 = arith.constant 0 : i32
      %c16_i32 = arith.constant 16 : i32
      %34 = arith.muli %c0_i32_42, %c16_i32 : i32
      %cst_43 = arith.constant 0.000000e+00 : f32
      %35 = vector.broadcast %cst_43 : f32 to vector<256x128xf32>
      %36 = arith.index_cast %34 : i32 to index
      %c0_44 = arith.constant 0 : index
      %c0_45 = arith.constant 0 : index
      %37 = vector.load %arg5[%36, %c0_44, %c0_45] : memref<18x18x128xf32, #tpu.memory_space<vmem>>, vector<18x16x128xf32>
      %38 = vector.extract_strided_slice %37 {offsets = [0, 0, 0], sizes = [16, 16, 128], strides = [1, 1, 1]} : vector<18x16x128xf32> to vector<16x16x128xf32>
      %39 = vector.shape_cast %38 : vector<16x16x128xf32> to vector<256x128xf32>
      %c9_i32 = arith.constant 9 : i32
      %40 = arith.muli %arg6, %c9_i32 : i32
      %c0_i32_46 = arith.constant 0 : i32
      %41 = arith.addi %40, %c0_i32_46 : i32
      %c0_i32_47 = arith.constant 0 : i32
      %42 = arith.addi %41, %c0_i32_47 : i32
      %43 = arith.index_cast %42 : i32 to index
      %c0_48 = arith.constant 0 : index
      %c0_49 = arith.constant 0 : index
      %44 = vector.load %arg2[%43, %c0_48, %c0_49] : memref<18x128x128xf32, #tpu.memory_space<vmem>>, vector<1x128x128xf32>
      %45 = vector.shape_cast %44 : vector<1x128x128xf32> to vector<128x128xf32>
      %cst_50 = arith.constant dense<0.000000e+00> : vector<256x128xf32>
      %46 = tpu.matmul %39, %45, %cst_50 {dimension_numbers = #tpu.dot_dimension_numbers<[1], [0], [0], [1], [0, 0, 1, 1], [], []>} : vector<256x128xf32>, vector<128x128xf32>, vector<256x128xf32> -> vector<256x128xf32>
      %47 = arith.addf %35, %46 : vector<256x128xf32>
      %48 = vector.extract_strided_slice %37 {offsets = [1, 0, 0], sizes = [16, 16, 128], strides = [1, 1, 1]} : vector<18x16x128xf32> to vector<16x16x128xf32>
      %49 = vector.shape_cast %48 : vector<16x16x128xf32> to vector<256x128xf32>
      %c9_i32_51 = arith.constant 9 : i32
      %50 = arith.muli %arg6, %c9_i32_51 : i32
      %c3_i32 = arith.constant 3 : i32
      %51 = arith.addi %50, %c3_i32 : i32
      %c0_i32_52 = arith.constant 0 : i32
      %52 = arith.addi %51, %c0_i32_52 : i32
      %53 = arith.index_cast %52 : i32 to index
      %c0_53 = arith.constant 0 : index
      %c0_54 = arith.constant 0 : index
      %54 = vector.load %arg2[%53, %c0_53, %c0_54] : memref<18x128x128xf32, #tpu.memory_space<vmem>>, vector<1x128x128xf32>
      %55 = vector.shape_cast %54 : vector<1x128x128xf32> to vector<128x128xf32>
      %cst_55 = arith.constant dense<0.000000e+00> : vector<256x128xf32>
      %56 = tpu.matmul %49, %55, %cst_55 {dimension_numbers = #tpu.dot_dimension_numbers<[1], [0], [0], [1], [0, 0, 1, 1], [], []>} : vector<256x128xf32>, vector<128x128xf32>, vector<256x128xf32> -> vector<256x128xf32>
      %57 = arith.addf %47, %56 : vector<256x128xf32>
      %58 = vector.extract_strided_slice %37 {offsets = [2, 0, 0], sizes = [16, 16, 128], strides = [1, 1, 1]} : vector<18x16x128xf32> to vector<16x16x128xf32>
      %59 = vector.shape_cast %58 : vector<16x16x128xf32> to vector<256x128xf32>
      %c9_i32_56 = arith.constant 9 : i32
      %60 = arith.muli %arg6, %c9_i32_56 : i32
      %c6_i32 = arith.constant 6 : i32
      %61 = arith.addi %60, %c6_i32 : i32
      %c0_i32_57 = arith.constant 0 : i32
      %62 = arith.addi %61, %c0_i32_57 : i32
      %63 = arith.index_cast %62 : i32 to index
      %c0_58 = arith.constant 0 : index
      %c0_59 = arith.constant 0 : index
      %64 = vector.load %arg2[%63, %c0_58, %c0_59] : memref<18x128x128xf32, #tpu.memory_space<vmem>>, vector<1x128x128xf32>
      %65 = vector.shape_cast %64 : vector<1x128x128xf32> to vector<128x128xf32>
      %cst_60 = arith.constant dense<0.000000e+00> : vector<256x128xf32>
      %66 = tpu.matmul %59, %65, %cst_60 {dimension_numbers = #tpu.dot_dimension_numbers<[1], [0], [0], [1], [0, 0, 1, 1], [], []>} : vector<256x128xf32>, vector<128x128xf32>, vector<256x128xf32> -> vector<256x128xf32>
      %67 = arith.addf %57, %66 : vector<256x128xf32>
      %68 = arith.index_cast %34 : i32 to index
      %c1_61 = arith.constant 1 : index
      %c0_62 = arith.constant 0 : index
      %69 = vector.load %arg5[%68, %c1_61, %c0_62] : memref<18x18x128xf32, #tpu.memory_space<vmem>>, vector<18x16x128xf32>
      %70 = vector.extract_strided_slice %69 {offsets = [0, 0, 0], sizes = [16, 16, 128], strides = [1, 1, 1]} : vector<18x16x128xf32> to vector<16x16x128xf32>
      %71 = vector.shape_cast %70 : vector<16x16x128xf32> to vector<256x128xf32>
      %c9_i32_63 = arith.constant 9 : i32
      %72 = arith.muli %arg6, %c9_i32_63 : i32
      %c0_i32_64 = arith.constant 0 : i32
      %73 = arith.addi %72, %c0_i32_64 : i32
      %c1_i32_65 = arith.constant 1 : i32
      %74 = arith.addi %73, %c1_i32_65 : i32
      %75 = arith.index_cast %74 : i32 to index
      %c0_66 = arith.constant 0 : index
      %c0_67 = arith.constant 0 : index
      %76 = vector.load %arg2[%75, %c0_66, %c0_67] : memref<18x128x128xf32, #tpu.memory_space<vmem>>, vector<1x128x128xf32>
      %77 = vector.shape_cast %76 : vector<1x128x128xf32> to vector<128x128xf32>
      %cst_68 = arith.constant dense<0.000000e+00> : vector<256x128xf32>
      %78 = tpu.matmul %71, %77, %cst_68 {dimension_numbers = #tpu.dot_dimension_numbers<[1], [0], [0], [1], [0, 0, 1, 1], [], []>} : vector<256x128xf32>, vector<128x128xf32>, vector<256x128xf32> -> vector<256x128xf32>
      %79 = arith.addf %67, %78 : vector<256x128xf32>
      %80 = vector.extract_strided_slice %69 {offsets = [1, 0, 0], sizes = [16, 16, 128], strides = [1, 1, 1]} : vector<18x16x128xf32> to vector<16x16x128xf32>
      %81 = vector.shape_cast %80 : vector<16x16x128xf32> to vector<256x128xf32>
      %c9_i32_69 = arith.constant 9 : i32
      %82 = arith.muli %arg6, %c9_i32_69 : i32
      %c3_i32_70 = arith.constant 3 : i32
      %83 = arith.addi %82, %c3_i32_70 : i32
      %c1_i32_71 = arith.constant 1 : i32
      %84 = arith.addi %83, %c1_i32_71 : i32
      %85 = arith.index_cast %84 : i32 to index
      %c0_72 = arith.constant 0 : index
      %c0_73 = arith.constant 0 : index
      %86 = vector.load %arg2[%85, %c0_72, %c0_73] : memref<18x128x128xf32, #tpu.memory_space<vmem>>, vector<1x128x128xf32>
      %87 = vector.shape_cast %86 : vector<1x128x128xf32> to vector<128x128xf32>
      %cst_74 = arith.constant dense<0.000000e+00> : vector<256x128xf32>
      %88 = tpu.matmul %81, %87, %cst_74 {dimension_numbers = #tpu.dot_dimension_numbers<[1], [0], [0], [1], [0, 0, 1, 1], [], []>} : vector<256x128xf32>, vector<128x128xf32>, vector<256x128xf32> -> vector<256x128xf32>
      %89 = arith.addf %79, %88 : vector<256x128xf32>
      %90 = vector.extract_strided_slice %69 {offsets = [2, 0, 0], sizes = [16, 16, 128], strides = [1, 1, 1]} : vector<18x16x128xf32> to vector<16x16x128xf32>
      %91 = vector.shape_cast %90 : vector<16x16x128xf32> to vector<256x128xf32>
      %c9_i32_75 = arith.constant 9 : i32
      %92 = arith.muli %arg6, %c9_i32_75 : i32
      %c6_i32_76 = arith.constant 6 : i32
      %93 = arith.addi %92, %c6_i32_76 : i32
      %c1_i32_77 = arith.constant 1 : i32
      %94 = arith.addi %93, %c1_i32_77 : i32
      %95 = arith.index_cast %94 : i32 to index
      %c0_78 = arith.constant 0 : index
      %c0_79 = arith.constant 0 : index
      %96 = vector.load %arg2[%95, %c0_78, %c0_79] : memref<18x128x128xf32, #tpu.memory_space<vmem>>, vector<1x128x128xf32>
      %97 = vector.shape_cast %96 : vector<1x128x128xf32> to vector<128x128xf32>
      %cst_80 = arith.constant dense<0.000000e+00> : vector<256x128xf32>
      %98 = tpu.matmul %91, %97, %cst_80 {dimension_numbers = #tpu.dot_dimension_numbers<[1], [0], [0], [1], [0, 0, 1, 1], [], []>} : vector<256x128xf32>, vector<128x128xf32>, vector<256x128xf32> -> vector<256x128xf32>
      %99 = arith.addf %89, %98 : vector<256x128xf32>
      %100 = arith.index_cast %34 : i32 to index
      %c2 = arith.constant 2 : index
      %c0_81 = arith.constant 0 : index
      %101 = vector.load %arg5[%100, %c2, %c0_81] : memref<18x18x128xf32, #tpu.memory_space<vmem>>, vector<18x16x128xf32>
      %102 = vector.extract_strided_slice %101 {offsets = [0, 0, 0], sizes = [16, 16, 128], strides = [1, 1, 1]} : vector<18x16x128xf32> to vector<16x16x128xf32>
      %103 = vector.shape_cast %102 : vector<16x16x128xf32> to vector<256x128xf32>
      %c9_i32_82 = arith.constant 9 : i32
      %104 = arith.muli %arg6, %c9_i32_82 : i32
      %c0_i32_83 = arith.constant 0 : i32
      %105 = arith.addi %104, %c0_i32_83 : i32
      %c2_i32_84 = arith.constant 2 : i32
      %106 = arith.addi %105, %c2_i32_84 : i32
      %107 = arith.index_cast %106 : i32 to index
      %c0_85 = arith.constant 0 : index
      %c0_86 = arith.constant 0 : index
      %108 = vector.load %arg2[%107, %c0_85, %c0_86] : memref<18x128x128xf32, #tpu.memory_space<vmem>>, vector<1x128x128xf32>
      %109 = vector.shape_cast %108 : vector<1x128x128xf32> to vector<128x128xf32>
      %cst_87 = arith.constant dense<0.000000e+00> : vector<256x128xf32>
      %110 = tpu.matmul %103, %109, %cst_87 {dimension_numbers = #tpu.dot_dimension_numbers<[1], [0], [0], [1], [0, 0, 1, 1], [], []>} : vector<256x128xf32>, vector<128x128xf32>, vector<256x128xf32> -> vector<256x128xf32>
      %111 = arith.addf %99, %110 : vector<256x128xf32>
      %112 = vector.extract_strided_slice %101 {offsets = [1, 0, 0], sizes = [16, 16, 128], strides = [1, 1, 1]} : vector<18x16x128xf32> to vector<16x16x128xf32>
      %113 = vector.shape_cast %112 : vector<16x16x128xf32> to vector<256x128xf32>
      %c9_i32_88 = arith.constant 9 : i32
      %114 = arith.muli %arg6, %c9_i32_88 : i32
      %c3_i32_89 = arith.constant 3 : i32
      %115 = arith.addi %114, %c3_i32_89 : i32
      %c2_i32_90 = arith.constant 2 : i32
      %116 = arith.addi %115, %c2_i32_90 : i32
      %117 = arith.index_cast %116 : i32 to index
      %c0_91 = arith.constant 0 : index
      %c0_92 = arith.constant 0 : index
      %118 = vector.load %arg2[%117, %c0_91, %c0_92] : memref<18x128x128xf32, #tpu.memory_space<vmem>>, vector<1x128x128xf32>
      %119 = vector.shape_cast %118 : vector<1x128x128xf32> to vector<128x128xf32>
      %cst_93 = arith.constant dense<0.000000e+00> : vector<256x128xf32>
      %120 = tpu.matmul %113, %119, %cst_93 {dimension_numbers = #tpu.dot_dimension_numbers<[1], [0], [0], [1], [0, 0, 1, 1], [], []>} : vector<256x128xf32>, vector<128x128xf32>, vector<256x128xf32> -> vector<256x128xf32>
      %121 = arith.addf %111, %120 : vector<256x128xf32>
      %122 = vector.extract_strided_slice %101 {offsets = [2, 0, 0], sizes = [16, 16, 128], strides = [1, 1, 1]} : vector<18x16x128xf32> to vector<16x16x128xf32>
      %123 = vector.shape_cast %122 : vector<16x16x128xf32> to vector<256x128xf32>
      %c9_i32_94 = arith.constant 9 : i32
      %124 = arith.muli %arg6, %c9_i32_94 : i32
      %c6_i32_95 = arith.constant 6 : i32
      %125 = arith.addi %124, %c6_i32_95 : i32
      %c2_i32_96 = arith.constant 2 : i32
      %126 = arith.addi %125, %c2_i32_96 : i32
      %127 = arith.index_cast %126 : i32 to index
      %c0_97 = arith.constant 0 : index
      %c0_98 = arith.constant 0 : index
      %128 = vector.load %arg2[%127, %c0_97, %c0_98] : memref<18x128x128xf32, #tpu.memory_space<vmem>>, vector<1x128x128xf32>
      %129 = vector.shape_cast %128 : vector<1x128x128xf32> to vector<128x128xf32>
      %cst_99 = arith.constant dense<0.000000e+00> : vector<256x128xf32>
      %130 = tpu.matmul %123, %129, %cst_99 {dimension_numbers = #tpu.dot_dimension_numbers<[1], [0], [0], [1], [0, 0, 1, 1], [], []>} : vector<256x128xf32>, vector<128x128xf32>, vector<256x128xf32> -> vector<256x128xf32>
      %131 = arith.addf %121, %130 : vector<256x128xf32>
      %cst_100 = arith.constant 5.000000e-01 : f32
      %132 = vector.broadcast %cst_100 : f32 to vector<256x128xf32>
      %133 = arith.mulf %132, %131 : vector<256x128xf32>
      %cst_101 = arith.constant 2.000000e+00 : f32
      %134 = math.sqrt %cst_101 : f32
      %135 = vector.broadcast %134 : f32 to vector<256x128xf32>
      %136 = arith.divf %131, %135 : vector<256x128xf32>
      %137 = math.erf %136 : vector<256x128xf32>
      %cst_102 = arith.constant 1.000000e+00 : f32
      %138 = vector.broadcast %cst_102 : f32 to vector<256x128xf32>
      %139 = arith.addf %138, %137 : vector<256x128xf32>
      %140 = arith.mulf %133, %139 : vector<256x128xf32>
      %141 = arith.index_cast %arg6 : i32 to index
      %c0_103 = arith.constant 0 : index
      %c0_104 = arith.constant 0 : index
      %142 = vector.load %arg3[%141, %c0_103, %c0_104] : memref<2x128x128xf32, #tpu.memory_space<vmem>>, vector<1x128x128xf32>
      %143 = vector.shape_cast %142 : vector<1x128x128xf32> to vector<128x128xf32>
      %cst_105 = arith.constant dense<0.000000e+00> : vector<256x128xf32>
      %144 = tpu.matmul %140, %143, %cst_105 {dimension_numbers = #tpu.dot_dimension_numbers<[1], [0], [0], [1], [0, 0, 1, 1], [], []>} : vector<256x128xf32>, vector<128x128xf32>, vector<256x128xf32> -> vector<256x128xf32>
      %c0_106 = arith.constant 0 : index
      %145 = arith.index_cast %34 : i32 to index
      %c0_107 = arith.constant 0 : index
      %c0_108 = arith.constant 0 : index
      %146 = vector.load %arg4[%c0_106, %145, %c0_107, %c0_108] : memref<1x16x16x128xf32, #tpu.memory_space<vmem>>, vector<1x16x16x128xf32>
      %147 = vector.shape_cast %146 : vector<1x16x16x128xf32> to vector<16x16x128xf32>
      %148 = vector.shape_cast %144 : vector<256x128xf32> to vector<16x16x128xf32>
      %149 = arith.addf %147, %148 : vector<16x16x128xf32>
      %c0_109 = arith.constant 0 : index
      %150 = arith.index_cast %34 : i32 to index
      %c0_110 = arith.constant 0 : index
      %c0_111 = arith.constant 0 : index
      %151 = vector.load %arg4[%c0_109, %150, %c0_110, %c0_111] : memref<1x16x16x128xf32, #tpu.memory_space<vmem>>, vector<1x16x16x128xf32>
      %152 = vector.shape_cast %151 : vector<1x16x16x128xf32> to vector<16x16x128xf32>
      %153 = vector.shape_cast %149 : vector<16x16x128xf32> to vector<1x16x16x128xf32>
      tpu.vector_store %arg4[%c0_109, %150, %c0_110, %c0_111], %153 {strides = array<i32>} : memref<1x16x16x128xf32, #tpu.memory_space<vmem>>, vector<1x16x16x128xf32>,
      %c1_i32_112 = arith.constant 1 : i32
    }
    %c2_i32_21 = arith.constant 2 : i32
    %c0_22 = arith.constant 0 : index
    %c0_23 = arith.constant 0 : index
    %c0_24 = arith.constant 0 : index
    %c0_25 = arith.constant 0 : index
    %11 = vector.load %arg4[%c0_22, %c0_23, %c0_24, %c0_25] : memref<1x16x16x128xf32, #tpu.memory_space<vmem>>, vector<1x16x16x128xf32>
    %cst_26 = arith.constant 5.000000e-01 : f32
    %12 = vector.broadcast %cst_26 : f32 to vector<1x16x16x128xf32>
    %13 = arith.mulf %12, %11 : vector<1x16x16x128xf32>
    %cst_27 = arith.constant 2.000000e+00 : f32
    %14 = math.sqrt %cst_27 : f32
    %15 = vector.broadcast %14 : f32 to vector<1x16x16x128xf32>
    %16 = arith.divf %11, %15 : vector<1x16x16x128xf32>
    %17 = math.erf %16 : vector<1x16x16x128xf32>
    %cst_28 = arith.constant 1.000000e+00 : f32
    %18 = vector.broadcast %cst_28 : f32 to vector<1x16x16x128xf32>
    %19 = arith.addf %18, %17 : vector<1x16x16x128xf32>
    %20 = arith.mulf %13, %19 : vector<1x16x16x128xf32>
    %c0_29 = arith.constant 0 : index
    %c0_30 = arith.constant 0 : index
    %c0_31 = arith.constant 0 : index
    %c0_32 = arith.constant 0 : index
    %21 = vector.load %arg4[%c0_29, %c0_30, %c0_31, %c0_32] : memref<1x16x16x128xf32, #tpu.memory_space<vmem>>, vector<1x16x16x128xf32>
    tpu.vector_store %arg4[%c0_29, %c0_30, %c0_31, %c0_32], %20 {strides = array<i32>} : memref<1x16x16x128xf32, #tpu.memory_space<vmem>>, vector<1x16x16x128xf32>,
    return
  }
  func.func @transform_0(%arg0: i32) -> (i32, i32, i32, i32) {
    %c0_i32 = arith.constant 0 : i32
    %c0_i32_0 = arith.constant 0 : i32
    %c0_i32_1 = arith.constant 0 : i32
    %c0_i32_2 = arith.constant 0 : i32
    return %arg0, %c0_i32, %c0_i32_0, %c0_i32_1 : i32, i32, i32, i32
  }
  func.func @transform_1(%arg0: i32) -> (i32, i32, i32) {
    %c0_i32 = arith.constant 0 : i32
    %c0_i32_0 = arith.constant 0 : i32
    %c0_i32_1 = arith.constant 0 : i32
    %c0_i32_2 = arith.constant 0 : i32
    return %c0_i32, %c0_i32_0, %c0_i32_1 : i32, i32, i32
  }
  func.func @transform_2(%arg0: i32) -> (i32, i32, i32) {
    %c0_i32 = arith.constant 0 : i32
    %c0_i32_0 = arith.constant 0 : i32
    %c0_i32_1 = arith.constant 0 : i32
    %c0_i32_2 = arith.constant 0 : i32
    return %c0_i32, %c0_i32_0, %c0_i32_1 : i32, i32, i32
  }
  func.func @transform_3(%arg0: i32) -> (i32, i32, i32, i32) {
    %c0_i32 = arith.constant 0 : i32
    %c0_i32_0 = arith.constant 0 : i32
    %c0_i32_1 = arith.constant 0 : i32
    %c0_i32_2 = arith.constant 0 : i32
    return %arg0, %c0_i32, %c0_i32_0, %c0_i32_1 : i32, i32, i32, i32
  }
}

module attributes {stable_mosaic.version = 11 : i64} {
  func.func @residual_stack_kernel(%arg0: i32, %arg1: memref<1x16x16x128xf32, #tpu.memory_space<vmem>>, %arg2: memref<18x128x128xf32, #tpu.memory_space<vmem>>, %arg3: memref<2x128x128xf32, #tpu.memory_space<vmem>>, %arg4: memref<1x16x16x128xf32, #tpu.memory_space<vmem>>, %arg5: memref<18x18x128xf32, #tpu.memory_space<vmem>>) attributes {dimension_semantics = [#tpu.dimension_semantics<parallel>], iteration_bounds = array<i64: 2>, scalar_prefetch = 0 : i64, scratch_operands = 1 : i64, tpu.core_type = #tpu.core_type<tc>, window_params = [{transform_indices = @transform_0, window_bounds = array<i64: 1, 16, 16, 128>}, {pipeline_mode = #tpu.pipeline_mode<synchronous>, transform_indices = @transform_1, window_bounds = array<i64: 18, 128, 128>}, {pipeline_mode = #tpu.pipeline_mode<synchronous>, transform_indices = @transform_2, window_bounds = array<i64: 2, 128, 128>}, {transform_indices = @transform_3, window_bounds = array<i64: 1, 16, 16, 128>}]} {
    %cst = arith.constant 0.000000e+00 : f32
    %0 = vector.broadcast %cst : f32 to vector<1x18x128xf32>
    %c0 = arith.constant 0 : index
    %c0_0 = arith.constant 0 : index
    %c0_1 = arith.constant 0 : index
    %1 = vector.load %arg5[%c0, %c0_0, %c0_1] : memref<18x18x128xf32, #tpu.memory_space<vmem>>, vector<1x18x128xf32>
    tpu.vector_store %arg5[%c0, %c0_0, %c0_1], %0 {strides = array<i32>} : memref<18x18x128xf32, #tpu.memory_space<vmem>>, vector<1x18x128xf32>,
    %cst_2 = arith.constant 0.000000e+00 : f32
    %2 = vector.broadcast %cst_2 : f32 to vector<1x18x128xf32>
    %c17 = arith.constant 17 : index
    %c0_3 = arith.constant 0 : index
    %c0_4 = arith.constant 0 : index
    %3 = vector.load %arg5[%c17, %c0_3, %c0_4] : memref<18x18x128xf32, #tpu.memory_space<vmem>>, vector<1x18x128xf32>
    tpu.vector_store %arg5[%c17, %c0_3, %c0_4], %2 {strides = array<i32>} : memref<18x18x128xf32, #tpu.memory_space<vmem>>, vector<1x18x128xf32>,
    %cst_5 = arith.constant 0.000000e+00 : f32
    %4 = vector.broadcast %cst_5 : f32 to vector<18x1x128xf32>
    %c0_6 = arith.constant 0 : index
    %c0_7 = arith.constant 0 : index
    %c0_8 = arith.constant 0 : index
    %5 = vector.load %arg5[%c0_6, %c0_7, %c0_8] : memref<18x18x128xf32, #tpu.memory_space<vmem>>, vector<18x1x128xf32>
    tpu.vector_store %arg5[%c0_6, %c0_7, %c0_8], %4 {strides = array<i32>} : memref<18x18x128xf32, #tpu.memory_space<vmem>>, vector<18x1x128xf32>,
    %cst_9 = arith.constant 0.000000e+00 : f32
    %6 = vector.broadcast %cst_9 : f32 to vector<18x1x128xf32>
    %c0_10 = arith.constant 0 : index
    %c17_11 = arith.constant 17 : index
    %c0_12 = arith.constant 0 : index
    %7 = vector.load %arg5[%c0_10, %c17_11, %c0_12] : memref<18x18x128xf32, #tpu.memory_space<vmem>>, vector<18x1x128xf32>
    tpu.vector_store %arg5[%c0_10, %c17_11, %c0_12], %6 {strides = array<i32>} : memref<18x18x128xf32, #tpu.memory_space<vmem>>, vector<18x1x128xf32>,
    %c0_13 = arith.constant 0 : index
    %c0_14 = arith.constant 0 : index
    %c0_15 = arith.constant 0 : index
    %c0_16 = arith.constant 0 : index
    %8 = vector.load %arg1[%c0_13, %c0_14, %c0_15, %c0_16] : memref<1x16x16x128xf32, #tpu.memory_space<vmem>>, vector<1x16x16x128xf32>
    %c0_17 = arith.constant 0 : index
    %c0_18 = arith.constant 0 : index
    %c0_19 = arith.constant 0 : index
    %c0_20 = arith.constant 0 : index
    %9 = vector.load %arg4[%c0_17, %c0_18, %c0_19, %c0_20] : memref<1x16x16x128xf32, #tpu.memory_space<vmem>>, vector<1x16x16x128xf32>
    tpu.vector_store %arg4[%c0_17, %c0_18, %c0_19, %c0_20], %8 {strides = array<i32>} : memref<1x16x16x128xf32, #tpu.memory_space<vmem>>, vector<1x16x16x128xf32>,
    %c0_i32 = arith.constant 0 : i32
    %c2_i32 = arith.constant 2 : i32
    %10 = arith.addi %c0_i32, %c2_i32 : i32
    %c1_i32 = arith.constant 1 : i32
    scf.for %arg6 = %c0_i32 to %10 step %c1_i32  : i32 {
      %c0_33 = arith.constant 0 : index
      %c0_34 = arith.constant 0 : index
      %c0_35 = arith.constant 0 : index
      %c0_36 = arith.constant 0 : index
      %22 = vector.load %arg4[%c0_33, %c0_34, %c0_35, %c0_36] : memref<1x16x16x128xf32, #tpu.memory_space<vmem>>, vector<1x16x16x128xf32>
      %23 = vector.shape_cast %22 : vector<1x16x16x128xf32> to vector<16x16x128xf32>
      %cst_37 = arith.constant 5.000000e-01 : f32
      %24 = vector.broadcast %cst_37 : f32 to vector<16x16x128xf32>
      %25 = arith.mulf %24, %23 : vector<16x16x128xf32>
      %cst_38 = arith.constant 2.000000e+00 : f32
      %26 = math.sqrt %cst_38 : f32
      %27 = vector.broadcast %26 : f32 to vector<16x16x128xf32>
      %28 = arith.divf %23, %27 : vector<16x16x128xf32>
      %29 = math.erf %28 : vector<16x16x128xf32>
      %cst_39 = arith.constant 1.000000e+00 : f32
      %30 = vector.broadcast %cst_39 : f32 to vector<16x16x128xf32>
      %31 = arith.addf %30, %29 : vector<16x16x128xf32>
      %32 = arith.mulf %25, %31 : vector<16x16x128xf32>
      %c1 = arith.constant 1 : index
      %c1_40 = arith.constant 1 : index
      %c0_41 = arith.constant 0 : index
      %33 = vector.load %arg5[%c1, %c1_40, %c0_41] : memref<18x18x128xf32, #tpu.memory_space<vmem>>, vector<16x16x128xf32>
      tpu.vector_store %arg5[%c1, %c1_40, %c0_41], %32 {strides = array<i32>} : memref<18x18x128xf32, #tpu.memory_space<vmem>>, vector<16x16x128xf32>,
      %c0_i32_42 = arith.constant 0 : i32
      %c16_i32 = arith.constant 16 : i32
      %34 = arith.muli %c0_i32_42, %c16_i32 : i32
      %cst_43 = arith.constant 0.000000e+00 : f32
      %35 = vector.broadcast %cst_43 : f32 to vector<256x128xf32>
      %36 = arith.index_cast %34 : i32 to index
      %c0_44 = arith.constant 0 : index
      %c0_45 = arith.constant 0 : index
      %37 = vector.load %arg5[%36, %c0_44, %c0_45] : memref<18x18x128xf32, #tpu.memory_space<vmem>>, vector<18x16x128xf32>
      %38 = vector.extract_strided_slice %37 {offsets = [0, 0, 0], sizes = [16, 16, 128], strides = [1, 1, 1]} : vector<18x16x128xf32> to vector<16x16x128xf32>
      %39 = vector.shape_cast %38 : vector<16x16x128xf32> to vector<256x128xf32>
      %c9_i32 = arith.constant 9 : i32
      %40 = arith.muli %arg6, %c9_i32 : i32
      %c0_i32_46 = arith.constant 0 : i32
      %41 = arith.addi %40, %c0_i32_46 : i32
      %c0_i32_47 = arith.constant 0 : i32
      %42 = arith.addi %41, %c0_i32_47 : i32
      %43 = arith.index_cast %42 : i32 to index
      %c0_48 = arith.constant 0 : index
      %c0_49 = arith.constant 0 : index
      %44 = vector.load %arg2[%43, %c0_48, %c0_49] : memref<18x128x128xf32, #tpu.memory_space<vmem>>, vector<1x128x128xf32>
      %45 = vector.shape_cast %44 : vector<1x128x128xf32> to vector<128x128xf32>
      %cst_50 = arith.constant dense<0.000000e+00> : vector<256x128xf32>
      %46 = tpu.matmul %39, %45, %cst_50 {dimension_numbers = #tpu.dot_dimension_numbers<[1], [0], [0], [1], [0, 0, 1, 1], [], []>} : vector<256x128xf32>, vector<128x128xf32>, vector<256x128xf32> -> vector<256x128xf32>
      %47 = arith.addf %35, %46 : vector<256x128xf32>
      %48 = vector.extract_strided_slice %37 {offsets = [1, 0, 0], sizes = [16, 16, 128], strides = [1, 1, 1]} : vector<18x16x128xf32> to vector<16x16x128xf32>
      %49 = vector.shape_cast %48 : vector<16x16x128xf32> to vector<256x128xf32>
      %c9_i32_51 = arith.constant 9 : i32
      %50 = arith.muli %arg6, %c9_i32_51 : i32
      %c3_i32 = arith.constant 3 : i32
      %51 = arith.addi %50, %c3_i32 : i32
      %c0_i32_52 = arith.constant 0 : i32
      %52 = arith.addi %51, %c0_i32_52 : i32
      %53 = arith.index_cast %52 : i32 to index
      %c0_53 = arith.constant 0 : index
      %c0_54 = arith.constant 0 : index
      %54 = vector.load %arg2[%53, %c0_53, %c0_54] : memref<18x128x128xf32, #tpu.memory_space<vmem>>, vector<1x128x128xf32>
      %55 = vector.shape_cast %54 : vector<1x128x128xf32> to vector<128x128xf32>
      %cst_55 = arith.constant dense<0.000000e+00> : vector<256x128xf32>
      %56 = tpu.matmul %49, %55, %cst_55 {dimension_numbers = #tpu.dot_dimension_numbers<[1], [0], [0], [1], [0, 0, 1, 1], [], []>} : vector<256x128xf32>, vector<128x128xf32>, vector<256x128xf32> -> vector<256x128xf32>
      %57 = arith.addf %47, %56 : vector<256x128xf32>
      %58 = vector.extract_strided_slice %37 {offsets = [2, 0, 0], sizes = [16, 16, 128], strides = [1, 1, 1]} : vector<18x16x128xf32> to vector<16x16x128xf32>
      %59 = vector.shape_cast %58 : vector<16x16x128xf32> to vector<256x128xf32>
      %c9_i32_56 = arith.constant 9 : i32
      %60 = arith.muli %arg6, %c9_i32_56 : i32
      %c6_i32 = arith.constant 6 : i32
      %61 = arith.addi %60, %c6_i32 : i32
      %c0_i32_57 = arith.constant 0 : i32
      %62 = arith.addi %61, %c0_i32_57 : i32
      %63 = arith.index_cast %62 : i32 to index
      %c0_58 = arith.constant 0 : index
      %c0_59 = arith.constant 0 : index
      %64 = vector.load %arg2[%63, %c0_58, %c0_59] : memref<18x128x128xf32, #tpu.memory_space<vmem>>, vector<1x128x128xf32>
      %65 = vector.shape_cast %64 : vector<1x128x128xf32> to vector<128x128xf32>
      %cst_60 = arith.constant dense<0.000000e+00> : vector<256x128xf32>
      %66 = tpu.matmul %59, %65, %cst_60 {dimension_numbers = #tpu.dot_dimension_numbers<[1], [0], [0], [1], [0, 0, 1, 1], [], []>} : vector<256x128xf32>, vector<128x128xf32>, vector<256x128xf32> -> vector<256x128xf32>
      %67 = arith.addf %57, %66 : vector<256x128xf32>
      %68 = arith.index_cast %34 : i32 to index
      %c1_61 = arith.constant 1 : index
      %c0_62 = arith.constant 0 : index
      %69 = vector.load %arg5[%68, %c1_61, %c0_62] : memref<18x18x128xf32, #tpu.memory_space<vmem>>, vector<18x16x128xf32>
      %70 = vector.extract_strided_slice %69 {offsets = [0, 0, 0], sizes = [16, 16, 128], strides = [1, 1, 1]} : vector<18x16x128xf32> to vector<16x16x128xf32>
      %71 = vector.shape_cast %70 : vector<16x16x128xf32> to vector<256x128xf32>
      %c9_i32_63 = arith.constant 9 : i32
      %72 = arith.muli %arg6, %c9_i32_63 : i32
      %c0_i32_64 = arith.constant 0 : i32
      %73 = arith.addi %72, %c0_i32_64 : i32
      %c1_i32_65 = arith.constant 1 : i32
      %74 = arith.addi %73, %c1_i32_65 : i32
      %75 = arith.index_cast %74 : i32 to index
      %c0_66 = arith.constant 0 : index
      %c0_67 = arith.constant 0 : index
      %76 = vector.load %arg2[%75, %c0_66, %c0_67] : memref<18x128x128xf32, #tpu.memory_space<vmem>>, vector<1x128x128xf32>
      %77 = vector.shape_cast %76 : vector<1x128x128xf32> to vector<128x128xf32>
      %cst_68 = arith.constant dense<0.000000e+00> : vector<256x128xf32>
      %78 = tpu.matmul %71, %77, %cst_68 {dimension_numbers = #tpu.dot_dimension_numbers<[1], [0], [0], [1], [0, 0, 1, 1], [], []>} : vector<256x128xf32>, vector<128x128xf32>, vector<256x128xf32> -> vector<256x128xf32>
      %79 = arith.addf %67, %78 : vector<256x128xf32>
      %80 = vector.extract_strided_slice %69 {offsets = [1, 0, 0], sizes = [16, 16, 128], strides = [1, 1, 1]} : vector<18x16x128xf32> to vector<16x16x128xf32>
      %81 = vector.shape_cast %80 : vector<16x16x128xf32> to vector<256x128xf32>
      %c9_i32_69 = arith.constant 9 : i32
      %82 = arith.muli %arg6, %c9_i32_69 : i32
      %c3_i32_70 = arith.constant 3 : i32
      %83 = arith.addi %82, %c3_i32_70 : i32
      %c1_i32_71 = arith.constant 1 : i32
      %84 = arith.addi %83, %c1_i32_71 : i32
      %85 = arith.index_cast %84 : i32 to index
      %c0_72 = arith.constant 0 : index
      %c0_73 = arith.constant 0 : index
      %86 = vector.load %arg2[%85, %c0_72, %c0_73] : memref<18x128x128xf32, #tpu.memory_space<vmem>>, vector<1x128x128xf32>
      %87 = vector.shape_cast %86 : vector<1x128x128xf32> to vector<128x128xf32>
      %cst_74 = arith.constant dense<0.000000e+00> : vector<256x128xf32>
      %88 = tpu.matmul %81, %87, %cst_74 {dimension_numbers = #tpu.dot_dimension_numbers<[1], [0], [0], [1], [0, 0, 1, 1], [], []>} : vector<256x128xf32>, vector<128x128xf32>, vector<256x128xf32> -> vector<256x128xf32>
      %89 = arith.addf %79, %88 : vector<256x128xf32>
      %90 = vector.extract_strided_slice %69 {offsets = [2, 0, 0], sizes = [16, 16, 128], strides = [1, 1, 1]} : vector<18x16x128xf32> to vector<16x16x128xf32>
      %91 = vector.shape_cast %90 : vector<16x16x128xf32> to vector<256x128xf32>
      %c9_i32_75 = arith.constant 9 : i32
      %92 = arith.muli %arg6, %c9_i32_75 : i32
      %c6_i32_76 = arith.constant 6 : i32
      %93 = arith.addi %92, %c6_i32_76 : i32
      %c1_i32_77 = arith.constant 1 : i32
      %94 = arith.addi %93, %c1_i32_77 : i32
      %95 = arith.index_cast %94 : i32 to index
      %c0_78 = arith.constant 0 : index
      %c0_79 = arith.constant 0 : index
      %96 = vector.load %arg2[%95, %c0_78, %c0_79] : memref<18x128x128xf32, #tpu.memory_space<vmem>>, vector<1x128x128xf32>
      %97 = vector.shape_cast %96 : vector<1x128x128xf32> to vector<128x128xf32>
      %cst_80 = arith.constant dense<0.000000e+00> : vector<256x128xf32>
      %98 = tpu.matmul %91, %97, %cst_80 {dimension_numbers = #tpu.dot_dimension_numbers<[1], [0], [0], [1], [0, 0, 1, 1], [], []>} : vector<256x128xf32>, vector<128x128xf32>, vector<256x128xf32> -> vector<256x128xf32>
      %99 = arith.addf %89, %98 : vector<256x128xf32>
      %100 = arith.index_cast %34 : i32 to index
      %c2 = arith.constant 2 : index
      %c0_81 = arith.constant 0 : index
      %101 = vector.load %arg5[%100, %c2, %c0_81] : memref<18x18x128xf32, #tpu.memory_space<vmem>>, vector<18x16x128xf32>
      %102 = vector.extract_strided_slice %101 {offsets = [0, 0, 0], sizes = [16, 16, 128], strides = [1, 1, 1]} : vector<18x16x128xf32> to vector<16x16x128xf32>
      %103 = vector.shape_cast %102 : vector<16x16x128xf32> to vector<256x128xf32>
      %c9_i32_82 = arith.constant 9 : i32
      %104 = arith.muli %arg6, %c9_i32_82 : i32
      %c0_i32_83 = arith.constant 0 : i32
      %105 = arith.addi %104, %c0_i32_83 : i32
      %c2_i32_84 = arith.constant 2 : i32
      %106 = arith.addi %105, %c2_i32_84 : i32
      %107 = arith.index_cast %106 : i32 to index
      %c0_85 = arith.constant 0 : index
      %c0_86 = arith.constant 0 : index
      %108 = vector.load %arg2[%107, %c0_85, %c0_86] : memref<18x128x128xf32, #tpu.memory_space<vmem>>, vector<1x128x128xf32>
      %109 = vector.shape_cast %108 : vector<1x128x128xf32> to vector<128x128xf32>
      %cst_87 = arith.constant dense<0.000000e+00> : vector<256x128xf32>
      %110 = tpu.matmul %103, %109, %cst_87 {dimension_numbers = #tpu.dot_dimension_numbers<[1], [0], [0], [1], [0, 0, 1, 1], [], []>} : vector<256x128xf32>, vector<128x128xf32>, vector<256x128xf32> -> vector<256x128xf32>
      %111 = arith.addf %99, %110 : vector<256x128xf32>
      %112 = vector.extract_strided_slice %101 {offsets = [1, 0, 0], sizes = [16, 16, 128], strides = [1, 1, 1]} : vector<18x16x128xf32> to vector<16x16x128xf32>
      %113 = vector.shape_cast %112 : vector<16x16x128xf32> to vector<256x128xf32>
      %c9_i32_88 = arith.constant 9 : i32
      %114 = arith.muli %arg6, %c9_i32_88 : i32
      %c3_i32_89 = arith.constant 3 : i32
      %115 = arith.addi %114, %c3_i32_89 : i32
      %c2_i32_90 = arith.constant 2 : i32
      %116 = arith.addi %115, %c2_i32_90 : i32
      %117 = arith.index_cast %116 : i32 to index
      %c0_91 = arith.constant 0 : index
      %c0_92 = arith.constant 0 : index
      %118 = vector.load %arg2[%117, %c0_91, %c0_92] : memref<18x128x128xf32, #tpu.memory_space<vmem>>, vector<1x128x128xf32>
      %119 = vector.shape_cast %118 : vector<1x128x128xf32> to vector<128x128xf32>
      %cst_93 = arith.constant dense<0.000000e+00> : vector<256x128xf32>
      %120 = tpu.matmul %113, %119, %cst_93 {dimension_numbers = #tpu.dot_dimension_numbers<[1], [0], [0], [1], [0, 0, 1, 1], [], []>} : vector<256x128xf32>, vector<128x128xf32>, vector<256x128xf32> -> vector<256x128xf32>
      %121 = arith.addf %111, %120 : vector<256x128xf32>
      %122 = vector.extract_strided_slice %101 {offsets = [2, 0, 0], sizes = [16, 16, 128], strides = [1, 1, 1]} : vector<18x16x128xf32> to vector<16x16x128xf32>
      %123 = vector.shape_cast %122 : vector<16x16x128xf32> to vector<256x128xf32>
      %c9_i32_94 = arith.constant 9 : i32
      %124 = arith.muli %arg6, %c9_i32_94 : i32
      %c6_i32_95 = arith.constant 6 : i32
      %125 = arith.addi %124, %c6_i32_95 : i32
      %c2_i32_96 = arith.constant 2 : i32
      %126 = arith.addi %125, %c2_i32_96 : i32
      %127 = arith.index_cast %126 : i32 to index
      %c0_97 = arith.constant 0 : index
      %c0_98 = arith.constant 0 : index
      %128 = vector.load %arg2[%127, %c0_97, %c0_98] : memref<18x128x128xf32, #tpu.memory_space<vmem>>, vector<1x128x128xf32>
      %129 = vector.shape_cast %128 : vector<1x128x128xf32> to vector<128x128xf32>
      %cst_99 = arith.constant dense<0.000000e+00> : vector<256x128xf32>
      %130 = tpu.matmul %123, %129, %cst_99 {dimension_numbers = #tpu.dot_dimension_numbers<[1], [0], [0], [1], [0, 0, 1, 1], [], []>} : vector<256x128xf32>, vector<128x128xf32>, vector<256x128xf32> -> vector<256x128xf32>
      %131 = arith.addf %121, %130 : vector<256x128xf32>
      %cst_100 = arith.constant 5.000000e-01 : f32
      %132 = vector.broadcast %cst_100 : f32 to vector<256x128xf32>
      %133 = arith.mulf %132, %131 : vector<256x128xf32>
      %cst_101 = arith.constant 2.000000e+00 : f32
      %134 = math.sqrt %cst_101 : f32
      %135 = vector.broadcast %134 : f32 to vector<256x128xf32>
      %136 = arith.divf %131, %135 : vector<256x128xf32>
      %137 = math.erf %136 : vector<256x128xf32>
      %cst_102 = arith.constant 1.000000e+00 : f32
      %138 = vector.broadcast %cst_102 : f32 to vector<256x128xf32>
      %139 = arith.addf %138, %137 : vector<256x128xf32>
      %140 = arith.mulf %133, %139 : vector<256x128xf32>
      %141 = arith.index_cast %arg6 : i32 to index
      %c0_103 = arith.constant 0 : index
      %c0_104 = arith.constant 0 : index
      %142 = vector.load %arg3[%141, %c0_103, %c0_104] : memref<2x128x128xf32, #tpu.memory_space<vmem>>, vector<1x128x128xf32>
      %143 = vector.shape_cast %142 : vector<1x128x128xf32> to vector<128x128xf32>
      %cst_105 = arith.constant dense<0.000000e+00> : vector<256x128xf32>
      %144 = tpu.matmul %140, %143, %cst_105 {dimension_numbers = #tpu.dot_dimension_numbers<[1], [0], [0], [1], [0, 0, 1, 1], [], []>} : vector<256x128xf32>, vector<128x128xf32>, vector<256x128xf32> -> vector<256x128xf32>
      %c0_106 = arith.constant 0 : index
      %145 = arith.index_cast %34 : i32 to index
      %c0_107 = arith.constant 0 : index
      %c0_108 = arith.constant 0 : index
      %146 = vector.load %arg4[%c0_106, %145, %c0_107, %c0_108] : memref<1x16x16x128xf32, #tpu.memory_space<vmem>>, vector<1x16x16x128xf32>
      %147 = vector.shape_cast %146 : vector<1x16x16x128xf32> to vector<16x16x128xf32>
      %148 = vector.shape_cast %144 : vector<256x128xf32> to vector<16x16x128xf32>
      %149 = arith.addf %147, %148 : vector<16x16x128xf32>
      %c0_109 = arith.constant 0 : index
      %150 = arith.index_cast %34 : i32 to index
      %c0_110 = arith.constant 0 : index
      %c0_111 = arith.constant 0 : index
      %151 = vector.load %arg4[%c0_109, %150, %c0_110, %c0_111] : memref<1x16x16x128xf32, #tpu.memory_space<vmem>>, vector<1x16x16x128xf32>
      %152 = vector.shape_cast %151 : vector<1x16x16x128xf32> to vector<16x16x128xf32>
      %153 = vector.shape_cast %149 : vector<16x16x128xf32> to vector<1x16x16x128xf32>
      tpu.vector_store %arg4[%c0_109, %150, %c0_110, %c0_111], %153 {strides = array<i32>} : memref<1x16x16x128xf32, #tpu.memory_space<vmem>>, vector<1x16x16x128xf32>,
      %c1_i32_112 = arith.constant 1 : i32
    }
    %c2_i32_21 = arith.constant 2 : i32
    %c0_22 = arith.constant 0 : index
    %c0_23 = arith.constant 0 : index
    %c0_24 = arith.constant 0 : index
    %c0_25 = arith.constant 0 : index
    %11 = vector.load %arg4[%c0_22, %c0_23, %c0_24, %c0_25] : memref<1x16x16x128xf32, #tpu.memory_space<vmem>>, vector<1x16x16x128xf32>
    %cst_26 = arith.constant 5.000000e-01 : f32
    %12 = vector.broadcast %cst_26 : f32 to vector<1x16x16x128xf32>
    %13 = arith.mulf %12, %11 : vector<1x16x16x128xf32>
    %cst_27 = arith.constant 2.000000e+00 : f32
    %14 = math.sqrt %cst_27 : f32
    %15 = vector.broadcast %14 : f32 to vector<1x16x16x128xf32>
    %16 = arith.divf %11, %15 : vector<1x16x16x128xf32>
    %17 = math.erf %16 : vector<1x16x16x128xf32>
    %cst_28 = arith.constant 1.000000e+00 : f32
    %18 = vector.broadcast %cst_28 : f32 to vector<1x16x16x128xf32>
    %19 = arith.addf %18, %17 : vector<1x16x16x128xf32>
    %20 = arith.mulf %13, %19 : vector<1x16x16x128xf32>
    %c0_29 = arith.constant 0 : index
    %c0_30 = arith.constant 0 : index
    %c0_31 = arith.constant 0 : index
    %c0_32 = arith.constant 0 : index
    %21 = vector.load %arg4[%c0_29, %c0_30, %c0_31, %c0_32] : memref<1x16x16x128xf32, #tpu.memory_space<vmem>>, vector<1x16x16x128xf32>
    tpu.vector_store %arg4[%c0_29, %c0_30, %c0_31, %c0_32], %20 {strides = array<i32>} : memref<1x16x16x128xf32, #tpu.memory_space<vmem>>, vector<1x16x16x128xf32>,
    return
  }
  func.func @transform_0(%arg0: i32) -> (i32, i32, i32, i32) {
    %c0_i32 = arith.constant 0 : i32
    %c0_i32_0 = arith.constant 0 : i32
    %c0_i32_1 = arith.constant 0 : i32
    %c0_i32_2 = arith.constant 0 : i32
    return %arg0, %c0_i32, %c0_i32_0, %c0_i32_1 : i32, i32, i32, i32
  }
  func.func @transform_1(%arg0: i32) -> (i32, i32, i32) {
    %c0_i32 = arith.constant 0 : i32
    %c0_i32_0 = arith.constant 0 : i32
    %c0_i32_1 = arith.constant 0 : i32
    %c0_i32_2 = arith.constant 0 : i32
    return %c0_i32, %c0_i32_0, %c0_i32_1 : i32, i32, i32
  }
  func.func @transform_2(%arg0: i32) -> (i32, i32, i32) {
    %c0_i32 = arith.constant 0 : i32
    %c0_i32_0 = arith.constant 0 : i32
    %c0_i32_1 = arith.constant 0 : i32
    %c0_i32_2 = arith.constant 0 : i32
    return %c0_i32, %c0_i32_0, %c0_i32_1 : i32, i32, i32
  }
  func.func @transform_3(%arg0: i32) -> (i32, i32, i32, i32) {
    %c0_i32 = arith.constant 0 : i32
    %c0_i32_0 = arith.constant 0 : i32
    %c0_i32_1 = arith.constant 0 : i32
    %c0_i32_2 = arith.constant 0 : i32
    return %arg0, %c0_i32, %c0_i32_0, %c0_i32_1 : i32, i32, i32, i32
  }
}

</mosaic_0001>

<llo_original>
// kernel: tpu_custom_call.1
$region0: #{tpu_custom_call.1}
  #allocation0 [shape = 'u32[]', space=smem, size = 0x4, offset = 0x4, fixed_abs, tag = 'smem constant byte address 0x4 - core index']
  #allocation1 [shape = 'u32[144,128]{1,0:T(1,128)}', space=vmem, size = 0x12000, scoped, tag = 'internal scratch']
  #allocation2 [shape = 'f32[18,18,128]{2,1,0:T(8,128)}', space=vmem, size = 0x36000, scoped, tag = 'scratch operand']
  %s0 = inlined_call_operand.hbm [shape: f32[2,16,16,128], index: 0, kind: input, shape index: {}]
  %s1 = inlined_call_operand.hbm [shape: f32[18,128,128], index: 1, kind: input, shape index: {}]
  %s2 = inlined_call_operand.hbm [shape: f32[2,128,128], index: 2, kind: input, shape index: {}]
  %s3 = inlined_call_operand.hbm [shape: f32[2,16,16,128], index: 3, kind: output, shape index: {}]
  %s4 = sld [smem:[#allocation0]]
  $region64: #{tpu_custom_call.1} parent=0
    _
  %s6 = ssub.s32 1, %s4
  %s7 = scalar_select 0, %s6, %s4
  $region1: #{tpu_custom_call.1} parent=0
    #allocation3 [shape = 'u8[262144]{0}', space=vmem, size = 0x40000, scoped, tag = 'input window, operand 0']
    #allocation4 [shape = 's32[2]{0}', space=sflag, size = 0x8, scoped, tag = 'scoped memory for tpu_custom_call.1']
    #allocation5 [shape = 's32[2]{0}', space=sflag, size = 0x8, scoped, tag = 'scoped memory for tpu_custom_call.1']
    #allocation6 [shape = 'u8[1179648]{0}', space=vmem, size = 0x120000, scoped, tag = 'input window, operand 1, single buffered']
    #allocation7 [shape = 's32[1]{0}', space=sflag, size = 0x4, scoped, tag = 'scoped memory for tpu_custom_call.1']
    #allocation8 [shape = 'u8[131072]{0}', space=vmem, size = 0x20000, scoped, tag = 'input window, operand 2, single buffered']
    #allocation9 [shape = 'u8[262144]{0}', space=vmem, size = 0x40000, scoped, tag = 'output window, operand 0']
    %8 = vsyncpa [#allocation4], 0
    %s9 = scalar_lea.sflag [#allocation4], 1
    %10 = vsyncpa %s9, 0
    %11 = vsyncpa [#allocation7], 0
    %12 = vsyncpa [#allocation5], 0
    %s13 = scalar_lea.sflag [#allocation5], 1
    %14 = vsyncpa %s13, 0
    loop: start=0, step=1, limit=4
    $region2: #{tpu_custom_call.1} parent=1 // loop_pre_header
      _
    $region3: #{tpu_custom_call.1} parent=1 // loop_header
      %s16 = sphi 0, %s20
      %p17 = scmp.ge.s32.totalorder %s16, 4
      %s26 = sphi 0, %s28
      %s29 = sphi 0, %s26
      %s30 = sphi 0, %s29
      %s46 = sphi 0, %s30
      %s50 = sphi 0, %s50
      %s52 = sphi 0, %s50
      %s53 = sphi 0, %s52
      %s67 = sphi 0, %s53
      %s71 = sphi 0, %s71
      %s73 = sphi 0, %s71
      %s74 = sphi 0, %s73
      %s88 = sphi 0, %s74
      %s94 = sphi 0, %s96
      %s97 = sphi 0, %s94
      %s98 = sphi 0, %s97
      %s114 = sphi 0, %s98
    $region4: #{tpu_custom_call.1} parent=1 // loop_header_branch
      %19 = sbr.rel (%p17) target = $region8
    $region5: #{tpu_custom_call.1} parent=1 // loop_body
      %s21 = ssub.s32 %s16, 1
      %s22 = ssub.s32 %s16, 2
      %s23 = sadd.s32 %s16, 1
      %s24 = ssub.s32 %s16, %s23
      %p25 = scmp.eq.s32.totalorder %s24, 0
      %s27 = sadd.s32 %s26, 1
      %s28 = scalar_select %p25, %s26, %s27
      %p31 = pneg %p25
      %p32 = scmp.eq.s32.totalorder %s16, 1
      %p33 = por %p31, %p32
      %p34 = scmp.ne.s32.totalorder %s26, %s29
      %p35 = scmp.eq.s32.totalorder %s16, 0
      %p36 = por %p34, %p35
      %p37 = scmp.ne.s32.totalorder %s26, %s29
      %p38 = scmp.eq.s32.totalorder %s21, 1
      %p39 = por %p37, %p38
      %p40 = scmp.ne.s32.totalorder %s29, %s30
      %p41 = scmp.eq.s32.totalorder %s21, 0
      %p42 = por %p40, %p41
      %p43 = scmp.ne.s32.totalorder %s29, %s30
      %p44 = scmp.eq.s32.totalorder %s22, 1
      %p45 = por %p43, %p44
      %p47 = scmp.ne.s32.totalorder %s30, %s46
      %p48 = scmp.eq.s32.totalorder %s22, 0
      %p49 = por %p47, %p48
      %s51 = sadd.s32 %s50, 1
      %p54 = scmp.eq.s32.totalorder %s16, 1
      %p55 = scmp.ne.s32.totalorder %s50, %s52
      %p56 = scmp.eq.s32.totalorder %s16, 0
      %p57 = por %p55, %p56
      %p58 = scmp.ne.s32.totalorder %s50, %s52
      %p59 = scmp.eq.s32.totalorder %s21, 1
      %p60 = por %p58, %p59
      %p61 = scmp.ne.s32.totalorder %s52, %s53
      %p62 = scmp.eq.s32.totalorder %s21, 0
      %p63 = por %p61, %p62
      %p64 = scmp.ne.s32.totalorder %s52, %s53
      %p65 = scmp.eq.s32.totalorder %s22, 1
      %p66 = por %p64, %p65
      %p68 = scmp.ne.s32.totalorder %s53, %s67
      %p69 = scmp.eq.s32.totalorder %s22, 0
      %p70 = por %p68, %p69
      %s72 = sadd.s32 %s71, 1
      %p75 = scmp.eq.s32.totalorder %s16, 1
      %p76 = scmp.ne.s32.totalorder %s71, %s73
      %p77 = scmp.eq.s32.totalorder %s16, 0
      %p78 = por %p76, %p77
      %p79 = scmp.ne.s32.totalorder %s71, %s73
      %p80 = scmp.eq.s32.totalorder %s21, 1
      %p81 = por %p79, %p80
      %p82 = scmp.ne.s32.totalorder %s73, %s74
      %p83 = scmp.eq.s32.totalorder %s21, 0
      %p84 = por %p82, %p83
      %p85 = scmp.ne.s32.totalorder %s73, %s74
      %p86 = scmp.eq.s32.totalorder %s22, 1
      %p87 = por %p85, %p86
      %p89 = scmp.ne.s32.totalorder %s74, %s88
      %p90 = scmp.eq.s32.totalorder %s22, 0
      %p91 = por %p89, %p90
      %s92 = ssub.s32 %s16, %s23
      %p93 = scmp.eq.s32.totalorder %s92, 0
      %s95 = sadd.s32 %s94, 1
      %s96 = scalar_select %p93, %s94, %s95
      %p99 = pneg %p93
      %p100 = scmp.eq.s32.totalorder %s16, 1
      %p101 = por %p99, %p100
      %p102 = scmp.ne.s32.totalorder %s94, %s97
      %p103 = scmp.eq.s32.totalorder %s16, 0
      %p104 = por %p102, %p103
      %p105 = scmp.ne.s32.totalorder %s94, %s97
      %p106 = scmp.eq.s32.totalorder %s21, 1
      %p107 = por %p105, %p106
      %p108 = scmp.ne.s32.totalorder %s97, %s98
      %p109 = scmp.eq.s32.totalorder %s21, 0
      %p110 = por %p108, %p109
      %p111 = scmp.ne.s32.totalorder %s97, %s98
      %p112 = scmp.eq.s32.totalorder %s22, 1
      %p113 = por %p111, %p112
      %p115 = scmp.ne.s32.totalorder %s98, %s114
      %p116 = scmp.eq.s32.totalorder %s22, 0
      %p117 = por %p115, %p116
      %p118 = scmp.le.s32.totalorder 1, %s16
      %p119 = scmp.lt.s32.totalorder %s16, 3
      %p120 = pnand %p118, %p119
      %p121 = pneg %p120
      // Predicated region
      $region9: #{tpu_custom_call.1} parent=5 // pred_check
        _
      $region10: #{tpu_custom_call.1} parent=5 // pred_check_branch
        %123 = sbr.rel (%p120) target = $region12
      $region11: #{tpu_custom_call.1} parent=5 // pred_region
        %s124 = ssub.s32 %s16, 1
        // Predicated region
        $region13: #{tpu_custom_call.1} parent=11 // pred_check
          %p125 = pneg %p63
        $region14: #{tpu_custom_call.1} parent=11 // pred_check_branch
          %127 = sbr.rel (%p125) target = $region16
        $region15: #{tpu_custom_call.1} parent=11 // pred_region
          %s129 = ssub.s32 36864, 36864
          %130 = vsyncadd [#allocation7], %s129
          %s131 = sshll.u32 [#allocation6], 4
          %s132 = int_to_ptr.vmem [resolvable:$true] %s131
          %137 = dma.hbm_to_vmem [thread:$0]  %s1, 36864, %s132, [#allocation7], 128, 128, 8
        $region16: #{tpu_custom_call.1} parent=11 // pred_fallthru
          _
        // Predicated region
        $region17: #{tpu_custom_call.1} parent=11 // pred_check
          %p138 = pneg %p84
        $region18: #{tpu_custom_call.1} parent=11 // pred_check_branch
          %140 = sbr.rel (%p138) target = $region20
        $region19: #{tpu_custom_call.1} parent=11 // pred_region
          %s142 = ssub.s32 4096, 4096
          %143 = vsyncadd [#allocation7], %s142
          %s144 = sshll.u32 [#allocation8], 4
          %s145 = int_to_ptr.vmem [resolvable:$true] %s144
          %150 = dma.hbm_to_vmem [thread:$0]  %s2, 4096, %s145, [#allocation7], 128, 128, 8
        $region20: #{tpu_custom_call.1} parent=11 // pred_fallthru
          _
      $region12: #{tpu_custom_call.1} parent=5 // pred_fallthru
        _
      %p151 = scmp.lt.s32.totalorder %s16, 2
      // Predicated region
      $region21: #{tpu_custom_call.1} parent=5 // pred_check
        %p152 = pneg %p151
      $region22: #{tpu_custom_call.1} parent=5 // pred_check_branch
        %154 = sbr.rel (%p152) target = $region24
      $region23: #{tpu_custom_call.1} parent=5 // pred_region
        // Predicated region
        $region25: #{tpu_custom_call.1} parent=23 // pred_check
          %p155 = pneg %p36
        $region26: #{tpu_custom_call.1} parent=23 // pred_check_branch
          %157 = sbr.rel (%p155) target = $region28
        $region27: #{tpu_custom_call.1} parent=23 // pred_region
          %s158 = sand.u32 %s26, 1
          %s159 = scalar_lea.sflag [#allocation4], %s158
          %s160 = sand.u32 %s26, 1
          %s161 = smul.addr %s160, 256
          %s162 = scalar_lea.vmem [#allocation3], %s161
          %s164 = ssub.s32 4096, 4096
          %165 = vsyncadd %s159, %s164
          %s166 = smul.addr %s16, 32
          %s167 = smul.addr %s166, 128
          %s168 = scalar_lea.hbm %s0, %s167
          %s169 = sshll.u32 %s162, 4
          %s170 = int_to_ptr.vmem [resolvable:$true] %s169
          %175 = dma.hbm_to_vmem [thread:$0]  %s168, 4096, %s170, %s159, 128, 128, 8
        $region28: #{tpu_custom_call.1} parent=23 // pred_fallthru
          _
      $region24: #{tpu_custom_call.1} parent=5 // pred_fallthru
        _
      %p176 = scmp.le.s32.totalorder 1, %s16
      %p177 = scmp.lt.s32.totalorder %s16, 3
      %p178 = pnand %p176, %p177
      %p179 = pneg %p178
      // Predicated region
      $region29: #{tpu_custom_call.1} parent=5 // pred_check
        _
      $region30: #{tpu_custom_call.1} parent=5 // pred_check_branch
        %181 = sbr.rel (%p178) target = $region32
      $region31: #{tpu_custom_call.1} parent=5 // pred_region
        %s182 = ssub.s32 %s16, 1
        %s183 = sand.u32 %s29, 1
        %s184 = scalar_lea.sflag [#allocation4], %s183
        %s185 = sand.u32 %s29, 1
        %s186 = smul.addr %s185, 256
        %s187 = scalar_lea.vmem [#allocation3], %s186
        // Predicated region
        $region33: #{tpu_custom_call.1} parent=31 // pred_check
          %p188 = pneg %p42
        $region34: #{tpu_custom_call.1} parent=31 // pred_check_branch
          %190 = sbr.rel (%p188) target = $region36
        $region35: #{tpu_custom_call.1} parent=31 // pred_region
          %191 = dma.done %s184, 4096
        $region36: #{tpu_custom_call.1} parent=31 // pred_fallthru
          _
        // Predicated region
        $region37: #{tpu_custom_call.1} parent=31 // pred_check
          %p192 = pneg %p63
        $region38: #{tpu_custom_call.1} parent=31 // pred_check_branch
          %194 = sbr.rel (%p192) target = $region40
        $region39: #{tpu_custom_call.1} parent=31 // pred_region
          %195 = dma.done [#allocation7], 36864
        $region40: #{tpu_custom_call.1} parent=31 // pred_fallthru
          _
        // Predicated region
        $region41: #{tpu_custom_call.1} parent=31 // pred_check
          %p196 = pneg %p84
        $region42: #{tpu_custom_call.1} parent=31 // pred_check_branch
          %198 = sbr.rel (%p196) target = $region44
        $region43: #{tpu_custom_call.1} parent=31 // pred_region
          %199 = dma.done [#allocation7], 4096
        $region44: #{tpu_custom_call.1} parent=31 // pred_fallthru
          _
        %s200 = sand.u32 %s29, 1
        %s201 = scalar_lea.sflag [#allocation4], %s200
        %s202 = sand.u32 %s29, 1
        %s203 = smul.addr %s202, 256
        %s204 = scalar_lea.vmem [#allocation3], %s203
        %p205 = pneg %p42
        %p206 = pneg %p39
        %p207 = pneg %p63
        %p208 = pneg %p60
        %p209 = pneg %p84
        %p210 = pneg %p81
        %p211 = pneg %p110
        %p212 = pneg %p107
        %s213 = sand.u32 %s97, 1
        %s214 = scalar_lea.sflag [#allocation5], %s213
        %s215 = sand.u32 %s97, 1
        %s216 = smul.addr %s215, 256
        %s217 = scalar_lea.vmem [#allocation9], %s216
        %218 = vst [vmem:[#allocation2] sm:$0xff] 0.0
        %219 = vst [vmem:[#allocation2 + $0x8] sm:$0xff] 0.0
        %220 = vst [vmem:[#allocation2 + $0x10] sm:$0x3] 0.0
        %s221 = scalar_lea.vmem [#allocation2], 408
        %222 = vst [vmem:[%s221] sm:$0xff] 0.0
        %223 = vst [vmem:[%s221 + $0x8] sm:$0xff] 0.0
        %224 = vst [vmem:[%s221 + $0x10] sm:$0x3] 0.0
        %225 = vst [vmem:[#allocation2] sm:$0x1] 0.0
        %226 = vst [vmem:[#allocation2 + $0x18] sm:$0x1] 0.0
        %227 = vst [vmem:[#allocation2 + $0x30] sm:$0x1] 0.0
        %228 = vst [vmem:[#allocation2 + $0x48] sm:$0x1] 0.0
        %229 = vst [vmem:[#allocation2 + $0x60] sm:$0x1] 0.0
        %230 = vst [vmem:[#allocation2 + $0x78] sm:$0x1] 0.0
        %231 = vst [vmem:[#allocation2 + $0x90] sm:$0x1] 0.0
        %232 = vst [vmem:[#allocation2 + $0xa8] sm:$0x1] 0.0
        %233 = vst [vmem:[#allocation2 + $0xc0] sm:$0x1] 0.0
        %234 = vst [vmem:[#allocation2 + $0xd8] sm:$0x1] 0.0
        %235 = vst [vmem:[#allocation2 + $0xf0] sm:$0x1] 0.0
        %236 = vst [vmem:[#allocation2 + $0x108] sm:$0x1] 0.0
        %237 = vst [vmem:[#allocation2 + $0x120] sm:$0x1] 0.0
        %238 = vst [vmem:[#allocation2 + $0x138] sm:$0x1] 0.0
        %239 = vst [vmem:[#allocation2 + $0x150] sm:$0x1] 0.0
        %240 = vst [vmem:[#allocation2 + $0x168] sm:$0x1] 0.0
        %241 = vst [vmem:[#allocation2 + $0x180] sm:$0x1] 0.0
        %242 = vst [vmem:[#allocation2 + $0x198] sm:$0x1] 0.0
        %243 = vst [vmem:[#allocation2 + $0x11] sm:$0x1] 0.0
        %244 = vst [vmem:[#allocation2 + $0x29] sm:$0x1] 0.0
        %245 = vst [vmem:[#allocation2 + $0x41] sm:$0x1] 0.0
        %246 = vst [vmem:[#allocation2 + $0x59] sm:$0x1] 0.0
        %247 = vst [vmem:[#allocation2 + $0x71] sm:$0x1] 0.0
        %248 = vst [vmem:[#allocation2 + $0x89] sm:$0x1] 0.0
        %249 = vst [vmem:[#allocation2 + $0xa1] sm:$0x1] 0.0
        %250 = vst [vmem:[#allocation2 + $0xb9] sm:$0x1] 0.0
        %251 = vst [vmem:[#allocation2 + $0xd1] sm:$0x1] 0.0
        %252 = vst [vmem:[#allocation2 + $0xe9] sm:$0x1] 0.0
        %253 = vst [vmem:[#allocation2 + $0x101] sm:$0x1] 0.0
        %254 = vst [vmem:[#allocation2 + $0x119] sm:$0x1] 0.0
        %255 = vst [vmem:[#allocation2 + $0x131] sm:$0x1] 0.0
        %256 = vst [vmem:[#allocation2 + $0x149] sm:$0x1] 0.0
        %257 = vst [vmem:[#allocation2 + $0x161] sm:$0x1] 0.0
        %258 = vst [vmem:[#allocation2 + $0x179] sm:$0x1] 0.0
        %259 = vst [vmem:[#allocation2 + $0x191] sm:$0x1] 0.0
        %260 = vst [vmem:[#allocation2 + $0x1a9] sm:$0x1] 0.0
        %v261 = vld [vmem:[%s187] sm:$0xff]
        %v262 = vld [vmem:[%s187 + $0x8] sm:$0xff]
        %v263 = vld [vmem:[%s187 + $0x10] sm:$0xff]
        %v264 = vld [vmem:[%s187 + $0x18] sm:$0xff]
        %v265 = vld [vmem:[%s187 + $0x20] sm:$0xff]
        %v266 = vld [vmem:[%s187 + $0x28] sm:$0xff]
        %v267 = vld [vmem:[%s187 + $0x30] sm:$0xff]
        %v268 = vld [vmem:[%s187 + $0x38] sm:$0xff]
        %v269 = vld [vmem:[%s187 + $0x40] sm:$0xff]
        %v270 = vld [vmem:[%s187 + $0x48] sm:$0xff]
        %v271 = vld [vmem:[%s187 + $0x50] sm:$0xff]
        %v272 = vld [vmem:[%s187 + $0x58] sm:$0xff]
        %v273 = vld [vmem:[%s187 + $0x60] sm:$0xff]
        %v274 = vld [vmem:[%s187 + $0x68] sm:$0xff]
        %v275 = vld [vmem:[%s187 + $0x70] sm:$0xff]
        %v276 = vld [vmem:[%s187 + $0x78] sm:$0xff]
        %v277 = vld [vmem:[%s187 + $0x80] sm:$0xff]
        %v278 = vld [vmem:[%s187 + $0x88] sm:$0xff]
        %v279 = vld [vmem:[%s187 + $0x90] sm:$0xff]
        %v280 = vld [vmem:[%s187 + $0x98] sm:$0xff]
        %v281 = vld [vmem:[%s187 + $0xa0] sm:$0xff]
        %v282 = vld [vmem:[%s187 + $0xa8] sm:$0xff]
        %v283 = vld [vmem:[%s187 + $0xb0] sm:$0xff]
        %v284 = vld [vmem:[%s187 + $0xb8] sm:$0xff]
        %v285 = vld [vmem:[%s187 + $0xc0] sm:$0xff]
        %v286 = vld [vmem:[%s187 + $0xc8] sm:$0xff]
        %v287 = vld [vmem:[%s187 + $0xd0] sm:$0xff]
        %v288 = vld [vmem:[%s187 + $0xd8] sm:$0xff]
        %v289 = vld [vmem:[%s187 + $0xe0] sm:$0xff]
        %v290 = vld [vmem:[%s187 + $0xe8] sm:$0xff]
        %v291 = vld [vmem:[%s187 + $0xf0] sm:$0xff]
        %v292 = vld [vmem:[%s187 + $0xf8] sm:$0xff]
        %293 = vst [vmem:[%s217] sm:$0xff] %v261
        %294 = vst [vmem:[%s217 + $0x8] sm:$0xff] %v262
        %295 = vst [vmem:[%s217 + $0x10] sm:$0xff] %v263
        %296 = vst [vmem:[%s217 + $0x18] sm:$0xff] %v264
        %297 = vst [vmem:[%s217 + $0x20] sm:$0xff] %v265
        %298 = vst [vmem:[%s217 + $0x28] sm:$0xff] %v266
        %299 = vst [vmem:[%s217 + $0x30] sm:$0xff] %v267
        %300 = vst [vmem:[%s217 + $0x38] sm:$0xff] %v268
        %301 = vst [vmem:[%s217 + $0x40] sm:$0xff] %v269
        %302 = vst [vmem:[%s217 + $0x48] sm:$0xff] %v270
        %303 = vst [vmem:[%s217 + $0x50] sm:$0xff] %v271
        %304 = vst [vmem:[%s217 + $0x58] sm:$0xff] %v272
        %305 = vst [vmem:[%s217 + $0x60] sm:$0xff] %v273
        %306 = vst [vmem:[%s217 + $0x68] sm:$0xff] %v274
        %307 = vst [vmem:[%s217 + $0x70] sm:$0xff] %v275
        %308 = vst [vmem:[%s217 + $0x78] sm:$0xff] %v276
        %309 = vst [vmem:[%s217 + $0x80] sm:$0xff] %v277
        %310 = vst [vmem:[%s217 + $0x88] sm:$0xff] %v278
        %311 = vst [vmem:[%s217 + $0x90] sm:$0xff] %v279
        %312 = vst [vmem:[%s217 + $0x98] sm:$0xff] %v280
        %313 = vst [vmem:[%s217 + $0xa0] sm:$0xff] %v281
        %314 = vst [vmem:[%s217 + $0xa8] sm:$0xff] %v282
        %315 = vst [vmem:[%s217 + $0xb0] sm:$0xff] %v283
        %316 = vst [vmem:[%s217 + $0xb8] sm:$0xff] %v284
        %317 = vst [vmem:[%s217 + $0xc0] sm:$0xff] %v285
        %318 = vst [vmem:[%s217 + $0xc8] sm:$0xff] %v286
        %319 = vst [vmem:[%s217 + $0xd0] sm:$0xff] %v287
        %320 = vst [vmem:[%s217 + $0xd8] sm:$0xff] %v288
        %321 = vst [vmem:[%s217 + $0xe0] sm:$0xff] %v289
        %322 = vst [vmem:[%s217 + $0xe8] sm:$0xff] %v290
        %323 = vst [vmem:[%s217 + $0xf0] sm:$0xff] %v291
        %324 = vst [vmem:[%s217 + $0xf8] sm:$0xff] %v292
        loop: start=0, step=1, limit=2
        $region45: #{tpu_custom_call.1} parent=31 // loop_pre_header
          _
        $region46: #{tpu_custom_call.1} parent=31 // loop_header
          %s326 = sphi 0, %s330
          %p327 = scmp.ge.s32.totalorder %s326, 2
        $region47: #{tpu_custom_call.1} parent=31 // loop_header_branch
          %329 = sbr.rel (%p327) target = $region51
        $region48: #{tpu_custom_call.1} parent=31 // loop_body
          %v331 = vld [vmem:[%s217] sm:$0xff]
          %v332 = vld [vmem:[%s217 + $0x8] sm:$0xff]
          %v333 = vld [vmem:[%s217 + $0x10] sm:$0xff]
          %v334 = vld [vmem:[%s217 + $0x18] sm:$0xff]
          %v335 = vld [vmem:[%s217 + $0x20] sm:$0xff]
          %v336 = vld [vmem:[%s217 + $0x28] sm:$0xff]
          %v337 = vld [vmem:[%s217 + $0x30] sm:$0xff]
          %v338 = vld [vmem:[%s217 + $0x38] sm:$0xff]
          %v339 = vld [vmem:[%s217 + $0x40] sm:$0xff]
          %v340 = vld [vmem:[%s217 + $0x48] sm:$0xff]
          %v341 = vld [vmem:[%s217 + $0x50] sm:$0xff]
          %v342 = vld [vmem:[%s217 + $0x58] sm:$0xff]
          %v343 = vld [vmem:[%s217 + $0x60] sm:$0xff]
          %v344 = vld [vmem:[%s217 + $0x68] sm:$0xff]
          %v345 = vld [vmem:[%s217 + $0x70] sm:$0xff]
          %v346 = vld [vmem:[%s217 + $0x78] sm:$0xff]
          %v347 = vld [vmem:[%s217 + $0x80] sm:$0xff]
          %v348 = vld [vmem:[%s217 + $0x88] sm:$0xff]
          %v349 = vld [vmem:[%s217 + $0x90] sm:$0xff]
          %v350 = vld [vmem:[%s217 + $0x98] sm:$0xff]
          %v351 = vld [vmem:[%s217 + $0xa0] sm:$0xff]
          %v352 = vld [vmem:[%s217 + $0xa8] sm:$0xff]
          %v353 = vld [vmem:[%s217 + $0xb0] sm:$0xff]
          %v354 = vld [vmem:[%s217 + $0xb8] sm:$0xff]
          %v355 = vld [vmem:[%s217 + $0xc0] sm:$0xff]
          %v356 = vld [vmem:[%s217 + $0xc8] sm:$0xff]
          %v357 = vld [vmem:[%s217 + $0xd0] sm:$0xff]
          %v358 = vld [vmem:[%s217 + $0xd8] sm:$0xff]
          %v359 = vld [vmem:[%s217 + $0xe0] sm:$0xff]
          %v360 = vld [vmem:[%s217 + $0xe8] sm:$0xff]
          %v361 = vld [vmem:[%s217 + $0xf0] sm:$0xff]
          %v362 = vld [vmem:[%s217 + $0xf8] sm:$0xff]
          %v363 = vmul.f32 %v331, 0.5
          %v364 = vmul.f32 %v332, 0.5
          %v365 = vmul.f32 %v333, 0.5
          %v366 = vmul.f32 %v334, 0.5
          %v367 = vmul.f32 %v335, 0.5
          %v368 = vmul.f32 %v336, 0.5
          %v369 = vmul.f32 %v337, 0.5
          %v370 = vmul.f32 %v338, 0.5
          %v371 = vmul.f32 %v339, 0.5
          %v372 = vmul.f32 %v340, 0.5
          %v373 = vmul.f32 %v341, 0.5
          %v374 = vmul.f32 %v342, 0.5
          %v375 = vmul.f32 %v343, 0.5
          %v376 = vmul.f32 %v344, 0.5
          %v377 = vmul.f32 %v345, 0.5
          %v378 = vmul.f32 %v346, 0.5
          %v379 = vmul.f32 %v347, 0.5
          %v380 = vmul.f32 %v348, 0.5
          %v381 = vmul.f32 %v349, 0.5
          %v382 = vmul.f32 %v350, 0.5
          %v383 = vmul.f32 %v351, 0.5
          %v384 = vmul.f32 %v352, 0.5
          %v385 = vmul.f32 %v353, 0.5
          %v386 = vmul.f32 %v354, 0.5
          %v387 = vmul.f32 %v355, 0.5
          %v388 = vmul.f32 %v356, 0.5
          %v389 = vmul.f32 %v357, 0.5
          %v390 = vmul.f32 %v358, 0.5
          %v391 = vmul.f32 %v359, 0.5
          %v392 = vmul.f32 %v360, 0.5
          %v393 = vmul.f32 %v361, 0.5
          %v394 = vmul.f32 %v362, 0.5
          %v395 = vrcp.pop 1.4142135
          %v396 = vmul.f32 %v331, %v395
          %v397 = vmul.f32 %v332, %v395
          %v398 = vmul.f32 %v333, %v395
          %v399 = vmul.f32 %v334, %v395
          %v400 = vmul.f32 %v335, %v395
          %v401 = vmul.f32 %v336, %v395
          %v402 = vmul.f32 %v337, %v395
          %v403 = vmul.f32 %v338, %v395
          %v404 = vmul.f32 %v339, %v395
          %v405 = vmul.f32 %v340, %v395
          %v406 = vmul.f32 %v341, %v395
          %v407 = vmul.f32 %v342, %v395
          %v408 = vmul.f32 %v343, %v395
          %v409 = vmul.f32 %v344, %v395
          %v410 = vmul.f32 %v345, %v395
          %v411 = vmul.f32 %v346, %v395
          %v412 = vmul.f32 %v347, %v395
          %v413 = vmul.f32 %v348, %v395
          %v414 = vmul.f32 %v349, %v395
          %v415 = vmul.f32 %v350, %v395
          %v416 = vmul.f32 %v351, %v395
          %v417 = vmul.f32 %v352, %v395
          %v418 = vmul.f32 %v353, %v395
          %v419 = vmul.f32 %v354, %v395
          %v420 = vmul.f32 %v355, %v395
          %v421 = vmul.f32 %v356, %v395
          %v422 = vmul.f32 %v357, %v395
          %v423 = vmul.f32 %v358, %v395
          %v424 = vmul.f32 %v359, %v395
          %v425 = vmul.f32 %v360, %v395
          %v426 = vmul.f32 %v361, %v395
          %v427 = vmul.f32 %v362, %v395
          %v428 = verf.f32.pop %v396
          %v429 = verf.f32.pop %v397
          %v430 = verf.f32.pop %v398
          %v431 = verf.f32.pop %v399
          %v432 = verf.f32.pop %v400
          %v433 = verf.f32.pop %v401
          %v434 = verf.f32.pop %v402
          %v435 = verf.f32.pop %v403
          %v436 = verf.f32.pop %v404
          %v437 = verf.f32.pop %v405
          %v438 = verf.f32.pop %v406
          %v439 = verf.f32.pop %v407
          %v440 = verf.f32.pop %v408
          %v441 = verf.f32.pop %v409
          %v442 = verf.f32.pop %v410
          %v443 = verf.f32.pop %v411
          %v444 = verf.f32.pop %v412
          %v445 = verf.f32.pop %v413
          %v446 = verf.f32.pop %v414
          %v447 = verf.f32.pop %v415
          %v448 = verf.f32.pop %v416
          %v449 = verf.f32.pop %v417
          %v450 = verf.f32.pop %v418
          %v451 = verf.f32.pop %v419
          %v452 = verf.f32.pop %v420
          %v453 = verf.f32.pop %v421
          %v454 = verf.f32.pop %v422
          %v455 = verf.f32.pop %v423
          %v456 = verf.f32.pop %v424
          %v457 = verf.f32.pop %v425
          %v458 = verf.f32.pop %v426
          %v459 = verf.f32.pop %v427
          %v460 = vadd.f32 %v428, 1.0
          %v461 = vadd.f32 %v429, 1.0
          %v462 = vadd.f32 %v430, 1.0
          %v463 = vadd.f32 %v431, 1.0
          %v464 = vadd.f32 %v432, 1.0
          %v465 = vadd.f32 %v433, 1.0
          %v466 = vadd.f32 %v434, 1.0
          %v467 = vadd.f32 %v435, 1.0
          %v468 = vadd.f32 %v436, 1.0
          %v469 = vadd.f32 %v437, 1.0
          %v470 = vadd.f32 %v438, 1.0
          %v471 = vadd.f32 %v439, 1.0
          %v472 = vadd.f32 %v440, 1.0
          %v473 = vadd.f32 %v441, 1.0
          %v474 = vadd.f32 %v442, 1.0
          %v475 = vadd.f32 %v443, 1.0
          %v476 = vadd.f32 %v444, 1.0
          %v477 = vadd.f32 %v445, 1.0
          %v478 = vadd.f32 %v446, 1.0
          %v479 = vadd.f32 %v447, 1.0
          %v480 = vadd.f32 %v448, 1.0
          %v481 = vadd.f32 %v449, 1.0
          %v482 = vadd.f32 %v450, 1.0
          %v483 = vadd.f32 %v451, 1.0
          %v484 = vadd.f32 %v452, 1.0
          %v485 = vadd.f32 %v453, 1.0
          %v486 = vadd.f32 %v454, 1.0
          %v487 = vadd.f32 %v455, 1.0
          %v488 = vadd.f32 %v456, 1.0
          %v489 = vadd.f32 %v457, 1.0
          %v490 = vadd.f32 %v458, 1.0
          %v491 = vadd.f32 %v459, 1.0
          %v492 = vmul.f32 %v363, %v460
          %v493 = vmul.f32 %v364, %v461
          %v494 = vmul.f32 %v365, %v462
          %v495 = vmul.f32 %v366, %v463
          %v496 = vmul.f32 %v367, %v464
          %v497 = vmul.f32 %v368, %v465
          %v498 = vmul.f32 %v369, %v466
          %v499 = vmul.f32 %v370, %v467
          %v500 = vmul.f32 %v371, %v468
          %v501 = vmul.f32 %v372, %v469
          %v502 = vmul.f32 %v373, %v470
          %v503 = vmul.f32 %v374, %v471
          %v504 = vmul.f32 %v375, %v472
          %v505 = vmul.f32 %v376, %v473
          %v506 = vmul.f32 %v377, %v474
          %v507 = vmul.f32 %v378, %v475
          %v508 = vmul.f32 %v379, %v476
          %v509 = vmul.f32 %v380, %v477
          %v510 = vmul.f32 %v381, %v478
          %v511 = vmul.f32 %v382, %v479
          %v512 = vmul.f32 %v383, %v480
          %v513 = vmul.f32 %v384, %v481
          %v514 = vmul.f32 %v385, %v482
          %v515 = vmul.f32 %v386, %v483
          %v516 = vmul.f32 %v387, %v484
          %v517 = vmul.f32 %v388, %v485
          %v518 = vmul.f32 %v389, %v486
          %v519 = vmul.f32 %v390, %v487
          %v520 = vmul.f32 %v391, %v488
          %v521 = vmul.f32 %v392, %v489
          %v522 = vmul.f32 %v393, %v490
          %v523 = vmul.f32 %v394, %v491
          %s524 = scalar_lea.vmem [#allocation2], 24
          %525 = vst [vmem:[%s524 + $0x1] sm:$0xff] %v492
          %526 = vst [vmem:[%s524 + $0x9] sm:$0xff] %v493
          %527 = vst [vmem:[%s524 + $0x19] sm:$0xff] %v494
          %528 = vst [vmem:[%s524 + $0x21] sm:$0xff] %v495
          %529 = vst [vmem:[%s524 + $0x31] sm:$0xff] %v496
          %530 = vst [vmem:[%s524 + $0x39] sm:$0xff] %v497
          %531 = vst [vmem:[%s524 + $0x49] sm:$0xff] %v498
          %532 = vst [vmem:[%s524 + $0x51] sm:$0xff] %v499
          %533 = vst [vmem:[%s524 + $0x61] sm:$0xff] %v500
          %534 = vst [vmem:[%s524 + $0x69] sm:$0xff] %v501
          %535 = vst [vmem:[%s524 + $0x79] sm:$0xff] %v502
          %536 = vst [vmem:[%s524 + $0x81] sm:$0xff] %v503
          %537 = vst [vmem:[%s524 + $0x91] sm:$0xff] %v504
          %538 = vst [vmem:[%s524 + $0x99] sm:$0xff] %v505
          %539 = vst [vmem:[%s524 + $0xa9] sm:$0xff] %v506
          %540 = vst [vmem:[%s524 + $0xb1] sm:$0xff] %v507
          %541 = vst [vmem:[%s524 + $0xc1] sm:$0xff] %v508
          %542 = vst [vmem:[%s524 + $0xc9] sm:$0xff] %v509
          %543 = vst [vmem:[%s524 + $0xd9] sm:$0xff] %v510
          %544 = vst [vmem:[%s524 + $0xe1] sm:$0xff] %v511
          %545 = vst [vmem:[%s524 + $0xf1] sm:$0xff] %v512
          %546 = vst [vmem:[%s524 + $0xf9] sm:$0xff] %v513
          %547 = vst [vmem:[%s524 + $0x109] sm:$0xff] %v514
          %548 = vst [vmem:[%s524 + $0x111] sm:$0xff] %v515
          %549 = vst [vmem:[%s524 + $0x121] sm:$0xff] %v516
          %550 = vst [vmem:[%s524 + $0x129] sm:$0xff] %v517
          %551 = vst [vmem:[%s524 + $0x139] sm:$0xff] %v518
          %552 = vst [vmem:[%s524 + $0x141] sm:$0xff] %v519
          %553 = vst [vmem:[%s524 + $0x151] sm:$0xff] %v520
          %554 = vst [vmem:[%s524 + $0x159] sm:$0xff] %v521
          %555 = vst [vmem:[%s524 + $0x169] sm:$0xff] %v522
          %556 = vst [vmem:[%s524 + $0x171] sm:$0xff] %v523
          %v557 = vld [vmem:[#allocation2] sm:$0xff]
          %v558 = vld [vmem:[#allocation2 + $0x8] sm:$0xff]
          %v559 = vld [vmem:[#allocation2 + $0x18] sm:$0xff]
          %v560 = vld [vmem:[#allocation2 + $0x20] sm:$0xff]
          %v561 = vld [vmem:[#allocation2 + $0x30] sm:$0xff]
          %v562 = vld [vmem:[#allocation2 + $0x38] sm:$0xff]
          %v563 = vld [vmem:[#allocation2 + $0x48] sm:$0xff]
          %v564 = vld [vmem:[#allocation2 + $0x50] sm:$0xff]
          %v565 = vld [vmem:[#allocation2 + $0x60] sm:$0xff]
          %v566 = vld [vmem:[#allocation2 + $0x68] sm:$0xff]
          %v567 = vld [vmem:[#allocation2 + $0x78] sm:$0xff]
          %v568 = vld [vmem:[#allocation2 + $0x80] sm:$0xff]
          %v569 = vld [vmem:[#allocation2 + $0x90] sm:$0xff]
          %v570 = vld [vmem:[#allocation2 + $0x98] sm:$0xff]
          %v571 = vld [vmem:[#allocation2 + $0xa8] sm:$0xff]
          %v572 = vld [vmem:[#allocation2 + $0xb0] sm:$0xff]
          %v573 = vld [vmem:[#allocation2 + $0xc0] sm:$0xff]
          %v574 = vld [vmem:[#allocation2 + $0xc8] sm:$0xff]
          %v575 = vld [vmem:[#allocation2 + $0xd8] sm:$0xff]
          %v576 = vld [vmem:[#allocation2 + $0xe0] sm:$0xff]
          %v577 = vld [vmem:[#allocation2 + $0xf0] sm:$0xff]
          %v578 = vld [vmem:[#allocation2 + $0xf8] sm:$0xff]
          %v579 = vld [vmem:[#allocation2 + $0x108] sm:$0xff]
          %v580 = vld [vmem:[#allocation2 + $0x110] sm:$0xff]
          %v581 = vld [vmem:[#allocation2 + $0x120] sm:$0xff]
          %v582 = vld [vmem:[#allocation2 + $0x128] sm:$0xff]
          %v583 = vld [vmem:[#allocation2 + $0x138] sm:$0xff]
          %v584 = vld [vmem:[#allocation2 + $0x140] sm:$0xff]
          %v585 = vld [vmem:[#allocation2 + $0x150] sm:$0xff]
          %v586 = vld [vmem:[#allocation2 + $0x158] sm:$0xff]
          %v587 = vld [vmem:[#allocation2 + $0x168] sm:$0xff]
          %v588 = vld [vmem:[#allocation2 + $0x170] sm:$0xff]
          %v589 = vld [vmem:[#allocation2 + $0x180] sm:$0xff]
          %v590 = vld [vmem:[#allocation2 + $0x188] sm:$0xff]
          %v591 = vld [vmem:[#allocation2 + $0x198] sm:$0xff]
          %v592 = vld [vmem:[#allocation2 + $0x1a0] sm:$0xff]
          %s593 = smul.u32 %s326, 9
          %s594 = smul.u32 %s593, 128
          %s595 = scalar_lea.vmem [#allocation6], %s594
          %v596 = vld [vmem:[%s595] sm:$0xff]
          %v597 = vld [vmem:[%s595 + $0x8] sm:$0xff]
          %v598 = vld [vmem:[%s595 + $0x10] sm:$0xff]
          %v599 = vld [vmem:[%s595 + $0x18] sm:$0xff]
          %v600 = vld [vmem:[%s595 + $0x20] sm:$0xff]
          %v601 = vld [vmem:[%s595 + $0x28] sm:$0xff]
          %v602 = vld [vmem:[%s595 + $0x30] sm:$0xff]
          %v603 = vld [vmem:[%s595 + $0x38] sm:$0xff]
          %v604 = vld [vmem:[%s595 + $0x40] sm:$0xff]
          %v605 = vld [vmem:[%s595 + $0x48] sm:$0xff]
          %v606 = vld [vmem:[%s595 + $0x50] sm:$0xff]
          %v607 = vld [vmem:[%s595 + $0x58] sm:$0xff]
          %v608 = vld [vmem:[%s595 + $0x60] sm:$0xff]
          %v609 = vld [vmem:[%s595 + $0x68] sm:$0xff]
          %v610 = vld [vmem:[%s595 + $0x70] sm:$0xff]
          %v611 = vld [vmem:[%s595 + $0x78] sm:$0xff]
          %s612 = sadd.s32 %s593, 3
          %s613 = smul.u32 %s612, 128
          %s614 = scalar_lea.vmem [#allocation6], %s613
          %v615 = vld [vmem:[%s614] sm:$0xff]
          %v616 = vld [vmem:[%s614 + $0x8] sm:$0xff]
          %v617 = vld [vmem:[%s614 + $0x10] sm:$0xff]
          %v618 = vld [vmem:[%s614 + $0x18] sm:$0xff]
          %v619 = vld [vmem:[%s614 + $0x20] sm:$0xff]
          %v620 = vld [vmem:[%s614 + $0x28] sm:$0xff]
          %v621 = vld [vmem:[%s614 + $0x30] sm:$0xff]
          %v622 = vld [vmem:[%s614 + $0x38] sm:$0xff]
          %v623 = vld [vmem:[%s614 + $0x40] sm:$0xff]
          %v624 = vld [vmem:[%s614 + $0x48] sm:$0xff]
          %v625 = vld [vmem:[%s614 + $0x50] sm:$0xff]
          %v626 = vld [vmem:[%s614 + $0x58] sm:$0xff]
          %v627 = vld [vmem:[%s614 + $0x60] sm:$0xff]
          %v628 = vld [vmem:[%s614 + $0x68] sm:$0xff]
          %v629 = vld [vmem:[%s614 + $0x70] sm:$0xff]
          %v630 = vld [vmem:[%s614 + $0x78] sm:$0xff]
          %631 = vmatprep.subr.mxu0 0.0
          %632 = vmatpush1.msra.mxu0 %v615
          %633 = vmatprep.subr.mxu0 0.0
          %634 = vmatpush1.msra.mxu0 %v616
          %635 = vmatprep.subr.mxu0 0.0
          %636 = vmatpush1.msra.mxu0 %v617
          %637 = vmatprep.subr.mxu0 0.0
          %638 = vmatpush1.msra.mxu0 %v618
          %639 = vmatprep.subr.mxu0 0.0
          %640 = vmatpush1.msra.mxu0 %v619
          %641 = vmatprep.subr.mxu0 0.0
          %642 = vmatpush1.msra.mxu0 %v620
          %643 = vmatprep.subr.mxu0 0.0
          %644 = vmatpush1.msra.mxu0 %v621
          %645 = vmatprep.subr.mxu0 0.0
          %646 = vmatpush1.msra.mxu0 %v622
          %647 = vmatprep.subr.mxu0 0.0
          %648 = vmatpush1.msra.mxu0 %v623
          %649 = vmatprep.subr.mxu0 0.0
          %650 = vmatpush1.msra.mxu0 %v624
          %651 = vmatprep.subr.mxu0 0.0
          %652 = vmatpush1.msra.mxu0 %v625
          %653 = vmatprep.subr.mxu0 0.0
          %654 = vmatpush1.msra.mxu0 %v626
          %655 = vmatprep.subr.mxu0 0.0
          %656 = vmatpush1.msra.mxu0 %v627
          %657 = vmatprep.subr.mxu0 0.0
          %658 = vmatpush1.msra.mxu0 %v628
          %659 = vmatprep.subr.mxu0 0.0
          %660 = vmatpush1.msra.mxu0 %v629
          %661 = vmatprep.subr.mxu0 0.0
          %662 = vmatpush1.msra.mxu0 %v630
          %663 = vmatprep.subr.mxu0 0.0
          %664 = vmatpush1.msra.mxu0 0.0
          %665 = vmatprep.subr.mxu0 0.0
          %666 = vmatpush1.msra.mxu0 0.0
          %667 = vmatprep.subr.mxu0 0.0
          %668 = vmatpush1.msra.mxu0 0.0
          %669 = vmatprep.subr.mxu0 0.0
          %670 = vmatpush1.msra.mxu0 0.0
          %671 = vmatprep.subr.mxu0 0.0
          %672 = vmatpush1.msra.mxu0 0.0
          %673 = vmatprep.subr.mxu0 0.0
          %674 = vmatpush1.msra.mxu0 0.0
          %675 = vmatprep.subr.mxu0 0.0
          %676 = vmatpush1.msra.mxu0 0.0
          %677 = vmatprep.subr.mxu0 0.0
          %678 = vmatpush1.msra.mxu0 0.0
          %679 = vmatprep.subr.mxu0 0.0
          %680 = vmatpush1.msra.mxu0 0.0
          %681 = vmatprep.subr.mxu0 0.0
          %682 = vmatpush1.msra.mxu0 0.0
          %683 = vmatprep.subr.mxu0 0.0
          %684 = vmatpush1.msra.mxu0 0.0
          %685 = vmatprep.subr.mxu0 0.0
          %686 = vmatpush1.msra.mxu0 0.0
          %687 = vmatprep.subr.mxu0 0.0
          %688 = vmatpush1.msra.mxu0 0.0
          %689 = vmatprep.subr.mxu0 0.0
          %690 = vmatpush1.msra.mxu0 0.0
          %691 = vmatprep.subr.mxu0 0.0
          %692 = vmatpush1.msra.mxu0 0.0
          %693 = vmatprep.subr.mxu0 0.0
          %694 = vmatpush1.msra.mxu0 0.0
          %695 = vmatprep.mubr.f32.mxu0 0.0
          %696 = vmatmul.mubr.f32.gmra.mrb[0].mxu0 %v559
          %v697 = vpop.f32.mrb[0].mxu0
          %v698 = vadd.f32 0.0, %v697
          %v699 = vpop.f32.mrb[0].mxu0
          %700 = vmatprep.mubr.f32.mxu0 0.0
          %701 = vmatmul.mubr.f32.gmra.mrb[0].mxu0 %v560
          %v702 = vpop.f32.mrb[0].mxu0
          %v703 = vadd.f32 0.0, %v702
          %v704 = vpop.f32.mrb[0].mxu0
          %705 = vmatprep.mubr.f32.mxu0 0.0
          %706 = vmatmul.mubr.f32.gmra.mrb[0].mxu0 %v561
          %v707 = vpop.f32.mrb[0].mxu0
          %v708 = vadd.f32 0.0, %v707
          %v709 = vpop.f32.mrb[0].mxu0
          %710 = vmatprep.mubr.f32.mxu0 0.0
          %711 = vmatmul.mubr.f32.gmra.mrb[0].mxu0 %v562
          %v712 = vpop.f32.mrb[0].mxu0
          %v713 = vadd.f32 0.0, %v712
          %v714 = vpop.f32.mrb[0].mxu0
          %715 = vmatprep.mubr.f32.mxu0 0.0
          %716 = vmatmul.mubr.f32.gmra.mrb[0].mxu0 %v563
          %v717 = vpop.f32.mrb[0].mxu0
          %v718 = vadd.f32 0.0, %v717
          %v719 = vpop.f32.mrb[0].mxu0
          %720 = vmatprep.mubr.f32.mxu0 0.0
          %721 = vmatmul.mubr.f32.gmra.mrb[0].mxu0 %v564
          %v722 = vpop.f32.mrb[0].mxu0
          %v723 = vadd.f32 0.0, %v722
          %v724 = vpop.f32.mrb[0].mxu0
          %725 = vmatprep.mubr.f32.mxu0 0.0
          %726 = vmatmul.mubr.f32.gmra.mrb[0].mxu0 %v565
          %v727 = vpop.f32.mrb[0].mxu0
          %v728 = vadd.f32 0.0, %v727
          %v729 = vpop.f32.mrb[0].mxu0
          %730 = vmatprep.mubr.f32.mxu0 0.0
          %731 = vmatmul.mubr.f32.gmra.mrb[0].mxu0 %v566
          %v732 = vpop.f32.mrb[0].mxu0
          %v733 = vadd.f32 0.0, %v732
          %v734 = vpop.f32.mrb[0].mxu0
          %735 = vmatprep.mubr.f32.mxu0 0.0
          %736 = vmatmul.mubr.f32.gmra.mrb[0].mxu0 %v567
          %v737 = vpop.f32.mrb[0].mxu0
          %v738 = vadd.f32 0.0, %v737
          %v739 = vpop.f32.mrb[0].mxu0
          %740 = vmatprep.mubr.f32.mxu0 0.0
          %741 = vmatmul.mubr.f32.gmra.mrb[0].mxu0 %v568
          %v742 = vpop.f32.mrb[0].mxu0
          %v743 = vadd.f32 0.0, %v742
          %v744 = vpop.f32.mrb[0].mxu0
          %745 = vmatprep.mubr.f32.mxu0 0.0
          %746 = vmatmul.mubr.f32.gmra.mrb[0].mxu0 %v569
          %v747 = vpop.f32.mrb[0].mxu0
          %v748 = vadd.f32 0.0, %v747
          %v749 = vpop.f32.mrb[0].mxu0
          %750 = vmatprep.mubr.f32.mxu0 0.0
          %751 = vmatmul.mubr.f32.gmra.mrb[0].mxu0 %v570
          %v752 = vpop.f32.mrb[0].mxu0
          %v753 = vadd.f32 0.0, %v752
          %v754 = vpop.f32.mrb[0].mxu0
          %755 = vmatprep.mubr.f32.mxu0 0.0
          %756 = vmatmul.mubr.f32.gmra.mrb[0].mxu0 %v571
          %v757 = vpop.f32.mrb[0].mxu0
          %v758 = vadd.f32 0.0, %v757
          %v759 = vpop.f32.mrb[0].mxu0
          %760 = vmatprep.mubr.f32.mxu0 0.0
          %761 = vmatmul.mubr.f32.gmra.mrb[0].mxu0 %v572
          %v762 = vpop.f32.mrb[0].mxu0
          %v763 = vadd.f32 0.0, %v762
          %v764 = vpop.f32.mrb[0].mxu0
          %765 = vmatprep.mubr.f32.mxu0 0.0
          %766 = vmatmul.mubr.f32.gmra.mrb[0].mxu0 %v573
          %v767 = vpop.f32.mrb[0].mxu0
          %v768 = vadd.f32 0.0, %v767
          %v769 = vpop.f32.mrb[0].mxu0
          %770 = vmatprep.mubr.f32.mxu0 0.0
          %771 = vmatmul.mubr.f32.gmra.mrb[0].mxu0 %v574
          %v772 = vpop.f32.mrb[0].mxu0
          %v773 = vadd.f32 0.0, %v772
          %v774 = vpop.f32.mrb[0].mxu0
          %775 = vmatprep.mubr.f32.mxu0 0.0
          %776 = vmatmul.mubr.f32.gmra.mrb[0].mxu0 %v575
          %v777 = vpop.f32.mrb[0].mxu0
          %v778 = vadd.f32 0.0, %v777
          %v779 = vpop.f32.mrb[0].mxu0
          %780 = vmatprep.mubr.f32.mxu0 0.0
          %781 = vmatmul.mubr.f32.gmra.mrb[0].mxu0 %v576
          %v782 = vpop.f32.mrb[0].mxu0
          %v783 = vadd.f32 0.0, %v782
          %v784 = vpop.f32.mrb[0].mxu0
          %785 = vmatprep.mubr.f32.mxu0 0.0
          %786 = vmatmul.mubr.f32.gmra.mrb[0].mxu0 %v577
          %v787 = vpop.f32.mrb[0].mxu0
          %v788 = vadd.f32 0.0, %v787
          %v789 = vpop.f32.mrb[0].mxu0
          %790 = vmatprep.mubr.f32.mxu0 0.0
          %791 = vmatmul.mubr.f32.gmra.mrb[0].mxu0 %v578
          %v792 = vpop.f32.mrb[0].mxu0
          %v793 = vadd.f32 0.0, %v792
          %v794 = vpop.f32.mrb[0].mxu0
          %795 = vmatprep.mubr.f32.mxu0 0.0
          %796 = vmatmul.mubr.f32.gmra.mrb[0].mxu0 %v579
          %v797 = vpop.f32.mrb[0].mxu0
          %v798 = vadd.f32 0.0, %v797
          %v799 = vpop.f32.mrb[0].mxu0
          %800 = vmatprep.mubr.f32.mxu0 0.0
          %801 = vmatmul.mubr.f32.gmra.mrb[0].mxu0 %v580
          %v802 = vpop.f32.mrb[0].mxu0
          %v803 = vadd.f32 0.0, %v802
          %v804 = vpop.f32.mrb[0].mxu0
          %805 = vmatprep.mubr.f32.mxu0 0.0
          %806 = vmatmul.mubr.f32.gmra.mrb[0].mxu0 %v581
          %v807 = vpop.f32.mrb[0].mxu0
          %v808 = vadd.f32 0.0, %v807
          %v809 = vpop.f32.mrb[0].mxu0
          %810 = vmatprep.mubr.f32.mxu0 0.0
          %811 = vmatmul.mubr.f32.gmra.mrb[0].mxu0 %v582
          %v812 = vpop.f32.mrb[0].mxu0
          %v813 = vadd.f32 0.0, %v812
          %v814 = vpop.f32.mrb[0].mxu0
          %815 = vmatprep.mubr.f32.mxu0 0.0
          %816 = vmatmul.mubr.f32.gmra.mrb[0].mxu0 %v583
          %v817 = vpop.f32.mrb[0].mxu0
          %v818 = vadd.f32 0.0, %v817
          %v819 = vpop.f32.mrb[0].mxu0
          %820 = vmatprep.mubr.f32.mxu0 0.0
          %821 = vmatmul.mubr.f32.gmra.mrb[0].mxu0 %v584
          %v822 = vpop.f32.mrb[0].mxu0
          %v823 = vadd.f32 0.0, %v822
          %v824 = vpop.f32.mrb[0].mxu0
          %825 = vmatprep.mubr.f32.mxu0 0.0
          %826 = vmatmul.mubr.f32.gmra.mrb[0].mxu0 %v585
          %v827 = vpop.f32.mrb[0].mxu0
          %v828 = vadd.f32 0.0, %v827
          %v829 = vpop.f32.mrb[0].mxu0
          %830 = vmatprep.mubr.f32.mxu0 0.0
          %831 = vmatmul.mubr.f32.gmra.mrb[0].mxu0 %v586
          %v832 = vpop.f32.mrb[0].mxu0
          %v833 = vadd.f32 0.0, %v832
          %v834 = vpop.f32.mrb[0].mxu0
          %835 = vmatprep.mubr.f32.mxu0 0.0
          %836 = vmatmul.mubr.f32.gmra.mrb[0].mxu0 %v587
          %v837 = vpop.f32.mrb[0].mxu0
          %v838 = vadd.f32 0.0, %v837
          %v839 = vpop.f32.mrb[0].mxu0
          %840 = vmatprep.mubr.f32.mxu0 0.0
          %841 = vmatmul.mubr.f32.gmra.mrb[0].mxu0 %v588
          %v842 = vpop.f32.mrb[0].mxu0
          %v843 = vadd.f32 0.0, %v842
          %v844 = vpop.f32.mrb[0].mxu0
          %845 = vmatprep.mubr.f32.mxu0 0.0
          %846 = vmatmul.mubr.f32.gmra.mrb[0].mxu0 %v589
          %v847 = vpop.f32.mrb[0].mxu0
          %v848 = vadd.f32 0.0, %v847
          %v849 = vpop.f32.mrb[0].mxu0
          %850 = vmatprep.mubr.f32.mxu0 0.0
          %851 = vmatmul.mubr.f32.gmra.mrb[0].mxu0 %v590
          %v852 = vpop.f32.mrb[0].mxu0
          %v853 = vadd.f32 0.0, %v852
          %v854 = vpop.f32.mrb[0].mxu0
          %855 = vdwg.mxu0
          %856 = vmatprep.subr.mxu0 0.0
          %857 = vmatpush1.msra.mxu0 %v596
          %858 = vmatprep.subr.mxu0 0.0
          %859 = vmatpush1.msra.mxu0 %v597
          %860 = vmatprep.subr.mxu0 0.0
          %861 = vmatpush1.msra.mxu0 %v598
          %862 = vmatprep.subr.mxu0 0.0
          %863 = vmatpush1.msra.mxu0 %v599
          %864 = vmatprep.subr.mxu0 0.0
          %865 = vmatpush1.msra.mxu0 %v600
          %866 = vmatprep.subr.mxu0 0.0
          %867 = vmatpush1.msra.mxu0 %v601
          %868 = vmatprep.subr.mxu0 0.0
          %869 = vmatpush1.msra.mxu0 %v602
          %870 = vmatprep.subr.mxu0 0.0
          %871 = vmatpush1.msra.mxu0 %v603
          %872 = vmatprep.subr.mxu0 0.0
          %873 = vmatpush1.msra.mxu0 %v604
          %874 = vmatprep.subr.mxu0 0.0
          %875 = vmatpush1.msra.mxu0 %v605
          %876 = vmatprep.subr.mxu0 0.0
          %877 = vmatpush1.msra.mxu0 %v606
          %878 = vmatprep.subr.mxu0 0.0
          %879 = vmatpush1.msra.mxu0 %v607
          %880 = vmatprep.subr.mxu0 0.0
          %881 = vmatpush1.msra.mxu0 %v608
          %882 = vmatprep.subr.mxu0 0.0
          %883 = vmatpush1.msra.mxu0 %v609
          %884 = vmatprep.subr.mxu0 0.0
          %885 = vmatpush1.msra.mxu0 %v610
          %886 = vmatprep.subr.mxu0 0.0
          %887 = vmatpush1.msra.mxu0 %v611
          %888 = vmatprep.subr.mxu0 0.0
          %889 = vmatpush1.msra.mxu0 0.0
          %890 = vmatprep.subr.mxu0 0.0
          %891 = vmatpush1.msra.mxu0 0.0
          %892 = vmatprep.subr.mxu0 0.0
          %893 = vmatpush1.msra.mxu0 0.0
          %894 = vmatprep.subr.mxu0 0.0
          %895 = vmatpush1.msra.mxu0 0.0
          %896 = vmatprep.subr.mxu0 0.0
          %897 = vmatpush1.msra.mxu0 0.0
          %898 = vmatprep.subr.mxu0 0.0
          %899 = vmatpush1.msra.mxu0 0.0
          %900 = vmatprep.subr.mxu0 0.0
          %901 = vmatpush1.msra.mxu0 0.0
          %902 = vmatprep.subr.mxu0 0.0
          %903 = vmatpush1.msra.mxu0 0.0
          %904 = vmatprep.subr.mxu0 0.0
          %905 = vmatpush1.msra.mxu0 0.0
          %906 = vmatprep.subr.mxu0 0.0
          %907 = vmatpush1.msra.mxu0 0.0
          %908 = vmatprep.subr.mxu0 0.0
          %909 = vmatpush1.msra.mxu0 0.0
          %910 = vmatprep.subr.mxu0 0.0
          %911 = vmatpush1.msra.mxu0 0.0
          %912 = vmatprep.subr.mxu0 0.0
          %913 = vmatpush1.msra.mxu0 0.0
          %914 = vmatprep.subr.mxu0 0.0
          %915 = vmatpush1.msra.mxu0 0.0
          %916 = vmatprep.subr.mxu0 0.0
          %917 = vmatpush1.msra.mxu0 0.0
          %918 = vmatprep.subr.mxu0 0.0
          %919 = vmatpush1.msra.mxu0 0.0
          %920 = vmatprep.mubr.f32.mxu0 0.0
          %921 = vmatmul.mubr.f32.gmra.mrb[0].mxu0 %v557
          %v922 = vpop.f32.mrb[0].mxu0
          %v923 = vadd.f32 %v698, %v922
          %v924 = vpop.f32.mrb[0].mxu0
          %925 = vmatprep.mubr.f32.mxu0 0.0
          %926 = vmatmul.mubr.f32.gmra.mrb[0].mxu0 %v558
          %v927 = vpop.f32.mrb[0].mxu0
          %v928 = vadd.f32 %v703, %v927
          %v929 = vpop.f32.mrb[0].mxu0
          %930 = vmatprep.mubr.f32.mxu0 0.0
          %931 = vmatmul.mubr.f32.gmra.mrb[0].mxu0 %v559
          %v932 = vpop.f32.mrb[0].mxu0
          %v933 = vadd.f32 %v708, %v932
          %v934 = vpop.f32.mrb[0].mxu0
          %935 = vmatprep.mubr.f32.mxu0 0.0
          %936 = vmatmul.mubr.f32.gmra.mrb[0].mxu0 %v560
          %v937 = vpop.f32.mrb[0].mxu0
          %v938 = vadd.f32 %v713, %v937
          %v939 = vpop.f32.mrb[0].mxu0
          %940 = vmatprep.mubr.f32.mxu0 0.0
          %941 = vmatmul.mubr.f32.gmra.mrb[0].mxu0 %v561
          %v942 = vpop.f32.mrb[0].mxu0
          %v943 = vadd.f32 %v718, %v942
          %v944 = vpop.f32.mrb[0].mxu0
          %945 = vmatprep.mubr.f32.mxu0 0.0
          %946 = vmatmul.mubr.f32.gmra.mrb[0].mxu0 %v562
          %v947 = vpop.f32.mrb[0].mxu0
          %v948 = vadd.f32 %v723, %v947
          %v949 = vpop.f32.mrb[0].mxu0
          %950 = vmatprep.mubr.f32.mxu0 0.0
          %951 = vmatmul.mubr.f32.gmra.mrb[0].mxu0 %v563
          %v952 = vpop.f32.mrb[0].mxu0
          %v953 = vadd.f32 %v728, %v952
          %v954 = vpop.f32.mrb[0].mxu0
          %955 = vmatprep.mubr.f32.mxu0 0.0
          %956 = vmatmul.mubr.f32.gmra.mrb[0].mxu0 %v564
          %v957 = vpop.f32.mrb[0].mxu0
          %v958 = vadd.f32 %v733, %v957
          %v959 = vpop.f32.mrb[0].mxu0
          %960 = vmatprep.mubr.f32.mxu0 0.0
          %961 = vmatmul.mubr.f32.gmra.mrb[0].mxu0 %v565
          %v962 = vpop.f32.mrb[0].mxu0
          %v963 = vadd.f32 %v738, %v962
          %v964 = vpop.f32.mrb[0].mxu0
          %965 = vmatprep.mubr.f32.mxu0 0.0
          %966 = vmatmul.mubr.f32.gmra.mrb[0].mxu0 %v566
          %v967 = vpop.f32.mrb[0].mxu0
          %v968 = vadd.f32 %v743, %v967
          %v969 = vpop.f32.mrb[0].mxu0
          %970 = vmatprep.mubr.f32.mxu0 0.0
          %971 = vmatmul.mubr.f32.gmra.mrb[0].mxu0 %v567
          %v972 = vpop.f32.mrb[0].mxu0
          %v973 = vadd.f32 %v748, %v972
          %v974 = vpop.f32.mrb[0].mxu0
          %975 = vmatprep.mubr.f32.mxu0 0.0
          %976 = vmatmul.mubr.f32.gmra.mrb[0].mxu0 %v568
          %v977 = vpop.f32.mrb[0].mxu0
          %v978 = vadd.f32 %v753, %v977
          %v979 = vpop.f32.mrb[0].mxu0
          %980 = vmatprep.mubr.f32.mxu0 0.0
          %981 = vmatmul.mubr.f32.gmra.mrb[0].mxu0 %v569
          %v982 = vpop.f32.mrb[0].mxu0
          %v983 = vadd.f32 %v758, %v982
          %v984 = vpop.f32.mrb[0].mxu0
          %985 = vmatprep.mubr.f32.mxu0 0.0
          %986 = vmatmul.mubr.f32.gmra.mrb[0].mxu0 %v570
          %v987 = vpop.f32.mrb[0].mxu0
          %v988 = vadd.f32 %v763, %v987
          %v989 = vpop.f32.mrb[0].mxu0
          %990 = vmatprep.mubr.f32.mxu0 0.0
          %991 = vmatmul.mubr.f32.gmra.mrb[0].mxu0 %v571
          %v992 = vpop.f32.mrb[0].mxu0
          %v993 = vadd.f32 %v768, %v992
          %v994 = vpop.f32.mrb[0].mxu0
          %995 = vmatprep.mubr.f32.mxu0 0.0
          %996 = vmatmul.mubr.f32.gmra.mrb[0].mxu0 %v572
          %v997 = vpop.f32.mrb[0].mxu0
          %v998 = vadd.f32 %v773, %v997
          %v999 = vpop.f32.mrb[0].mxu0
          %1000 = vmatprep.mubr.f32.mxu0 0.0
          %1001 = vmatmul.mubr.f32.gmra.mrb[0].mxu0 %v573
          %v1002 = vpop.f32.mrb[0].mxu0
          %v1003 = vadd.f32 %v778, %v1002
          %v1004 = vpop.f32.mrb[0].mxu0
          %1005 = vmatprep.mubr.f32.mxu0 0.0
          %1006 = vmatmul.mubr.f32.gmra.mrb[0].mxu0 %v574
          %v1007 = vpop.f32.mrb[0].mxu0
          %v1008 = vadd.f32 %v783, %v1007
          %v1009 = vpop.f32.mrb[0].mxu0
          %1010 = vmatprep.mubr.f32.mxu0 0.0
          %1011 = vmatmul.mubr.f32.gmra.mrb[0].mxu0 %v575
          %v1012 = vpop.f32.mrb[0].mxu0
          %v1013 = vadd.f32 %v788, %v1012
          %v1014 = vpop.f32.mrb[0].mxu0
          %1015 = vmatprep.mubr.f32.mxu0 0.0
          %1016 = vmatmul.mubr.f32.gmra.mrb[0].mxu0 %v576
          %v1017 = vpop.f32.mrb[0].mxu0
          %v1018 = vadd.f32 %v793, %v1017
          %v1019 = vpop.f32.mrb[0].mxu0
          %1020 = vmatprep.mubr.f32.mxu0 0.0
          %1021 = vmatmul.mubr.f32.gmra.mrb[0].mxu0 %v577
          %v1022 = vpop.f32.mrb[0].mxu0
          %v1023 = vadd.f32 %v798, %v1022
          %v1024 = vpop.f32.mrb[0].mxu0
          %1025 = vmatprep.mubr.f32.mxu0 0.0
          %1026 = vmatmul.mubr.f32.gmra.mrb[0].mxu0 %v578
          %v1027 = vpop.f32.mrb[0].mxu0
          %v1028 = vadd.f32 %v803, %v1027
          %v1029 = vpop.f32.mrb[0].mxu0
          %1030 = vmatprep.mubr.f32.mxu0 0.0
          %1031 = vmatmul.mubr.f32.gmra.mrb[0].mxu0 %v579
          %v1032 = vpop.f32.mrb[0].mxu0
          %v1033 = vadd.f32 %v808, %v1032
          %v1034 = vpop.f32.mrb[0].mxu0
          %1035 = vmatprep.mubr.f32.mxu0 0.0
          %1036 = vmatmul.mubr.f32.gmra.mrb[0].mxu0 %v580
          %v1037 = vpop.f32.mrb[0].mxu0
          %v1038 = vadd.f32 %v813, %v1037
          %v1039 = vpop.f32.mrb[0].mxu0
          %1040 = vmatprep.mubr.f32.mxu0 0.0
          %1041 = vmatmul.mubr.f32.gmra.mrb[0].mxu0 %v581
          %v1042 = vpop.f32.mrb[0].mxu0
          %v1043 = vadd.f32 %v818, %v1042
          %v1044 = vpop.f32.mrb[0].mxu0
          %1045 = vmatprep.mubr.f32.mxu0 0.0
          %1046 = vmatmul.mubr.f32.gmra.mrb[0].mxu0 %v582
          %v1047 = vpop.f32.mrb[0].mxu0
          %v1048 = vadd.f32 %v823, %v1047
          %v1049 = vpop.f32.mrb[0].mxu0
          %1050 = vmatprep.mubr.f32.mxu0 0.0
          %1051 = vmatmul.mubr.f32.gmra.mrb[0].mxu0 %v583
          %v1052 = vpop.f32.mrb[0].mxu0
          %v1053 = vadd.f32 %v828, %v1052
          %v1054 = vpop.f32.mrb[0].mxu0
          %1055 = vmatprep.mubr.f32.mxu0 0.0
          %1056 = vmatmul.mubr.f32.gmra.mrb[0].mxu0 %v584
          %v1057 = vpop.f32.mrb[0].mxu0
          %v1058 = vadd.f32 %v833, %v1057
          %v1059 = vpop.f32.mrb[0].mxu0
          %1060 = vmatprep.mubr.f32.mxu0 0.0
          %1061 = vmatmul.mubr.f32.gmra.mrb[0].mxu0 %v585
          %v1062 = vpop.f32.mrb[0].mxu0
          %v1063 = vadd.f32 %v838, %v1062
          %v1064 = vpop.f32.mrb[0].mxu0
          %1065 = vmatprep.mubr.f32.mxu0 0.0
          %1066 = vmatmul.mubr.f32.gmra.mrb[0].mxu0 %v586
          %v1067 = vpop.f32.mrb[0].mxu0
          %v1068 = vadd.f32 %v843, %v1067
          %v1069 = vpop.f32.mrb[0].mxu0
          %1070 = vmatprep.mubr.f32.mxu0 0.0
          %1071 = vmatmul.mubr.f32.gmra.mrb[0].mxu0 %v587
          %v1072 = vpop.f32.mrb[0].mxu0
          %v1073 = vadd.f32 %v848, %v1072
          %v1074 = vpop.f32.mrb[0].mxu0
          %1075 = vmatprep.mubr.f32.mxu0 0.0
          %1076 = vmatmul.mubr.f32.gmra.mrb[0].mxu0 %v588
          %v1077 = vpop.f32.mrb[0].mxu0
          %v1078 = vadd.f32 %v853, %v1077
          %v1079 = vpop.f32.mrb[0].mxu0
          %1080 = vdwg.mxu0
          %s1081 = sadd.s32 %s593, 6
          %s1082 = smul.u32 %s1081, 128
          %s1083 = scalar_lea.vmem [#allocation6], %s1082
          %v1084 = vld [vmem:[%s1083] sm:$0xff]
          %v1085 = vld [vmem:[%s1083 + $0x8] sm:$0xff]
          %v1086 = vld [vmem:[%s1083 + $0x10] sm:$0xff]
          %v1087 = vld [vmem:[%s1083 + $0x18] sm:$0xff]
          %v1088 = vld [vmem:[%s1083 + $0x20] sm:$0xff]
          %v1089 = vld [vmem:[%s1083 + $0x28] sm:$0xff]
          %v1090 = vld [vmem:[%s1083 + $0x30] sm:$0xff]
          %v1091 = vld [vmem:[%s1083 + $0x38] sm:$0xff]
          %v1092 = vld [vmem:[%s1083 + $0x40] sm:$0xff]
          %v1093 = vld [vmem:[%s1083 + $0x48] sm:$0xff]
          %v1094 = vld [vmem:[%s1083 + $0x50] sm:$0xff]
          %v1095 = vld [vmem:[%s1083 + $0x58] sm:$0xff]
          %v1096 = vld [vmem:[%s1083 + $0x60] sm:$0xff]
          %v1097 = vld [vmem:[%s1083 + $0x68] sm:$0xff]
          %v1098 = vld [vmem:[%s1083 + $0x70] sm:$0xff]
          %v1099 = vld [vmem:[%s1083 + $0x78] sm:$0xff]
          %1100 = vmatprep.subr.mxu0 0.0
          %1101 = vmatpush1.msra.mxu0 %v1084
          %1102 = vmatprep.subr.mxu0 0.0
          %1103 = vmatpush1.msra.mxu0 %v1085
          %1104 = vmatprep.subr.mxu0 0.0
          %1105 = vmatpush1.msra.mxu0 %v1086
          %1106 = vmatprep.subr.mxu0 0.0
          %1107 = vmatpush1.msra.mxu0 %v1087
          %1108 = vmatprep.subr.mxu0 0.0
          %1109 = vmatpush1.msra.mxu0 %v1088
          %1110 = vmatprep.subr.mxu0 0.0
          %1111 = vmatpush1.msra.mxu0 %v1089
          %1112 = vmatprep.subr.mxu0 0.0
          %1113 = vmatpush1.msra.mxu0 %v1090
          %1114 = vmatprep.subr.mxu0 0.0
          %1115 = vmatpush1.msra.mxu0 %v1091
          %1116 = vmatprep.subr.mxu0 0.0
          %1117 = vmatpush1.msra.mxu0 %v1092
          %1118 = vmatprep.subr.mxu0 0.0
          %1119 = vmatpush1.msra.mxu0 %v1093
          %1120 = vmatprep.subr.mxu0 0.0
          %1121 = vmatpush1.msra.mxu0 %v1094
          %1122 = vmatprep.subr.mxu0 0.0
          %1123 = vmatpush1.msra.mxu0 %v1095
          %1124 = vmatprep.subr.mxu0 0.0
          %1125 = vmatpush1.msra.mxu0 %v1096
          %1126 = vmatprep.subr.mxu0 0.0
          %1127 = vmatpush1.msra.mxu0 %v1097
          %1128 = vmatprep.subr.mxu0 0.0
          %1129 = vmatpush1.msra.mxu0 %v1098
          %1130 = vmatprep.subr.mxu0 0.0
          %1131 = vmatpush1.msra.mxu0 %v1099
          %1132 = vmatprep.subr.mxu0 0.0
          %1133 = vmatpush1.msra.mxu0 0.0
          %1134 = vmatprep.subr.mxu0 0.0
          %1135 = vmatpush1.msra.mxu0 0.0
          %1136 = vmatprep.subr.mxu0 0.0
          %1137 = vmatpush1.msra.mxu0 0.0
          %1138 = vmatprep.subr.mxu0 0.0
          %1139 = vmatpush1.msra.mxu0 0.0
          %1140 = vmatprep.subr.mxu0 0.0
          %1141 = vmatpush1.msra.mxu0 0.0
          %1142 = vmatprep.subr.mxu0 0.0
          %1143 = vmatpush1.msra.mxu0 0.0
          %1144 = vmatprep.subr.mxu0 0.0
          %1145 = vmatpush1.msra.mxu0 0.0
          %1146 = vmatprep.subr.mxu0 0.0
          %1147 = vmatpush1.msra.mxu0 0.0
          %1148 = vmatprep.subr.mxu0 0.0
          %1149 = vmatpush1.msra.mxu0 0.0
          %1150 = vmatprep.subr.mxu0 0.0
          %1151 = vmatpush1.msra.mxu0 0.0
          %1152 = vmatprep.subr.mxu0 0.0
          %1153 = vmatpush1.msra.mxu0 0.0
          %1154 = vmatprep.subr.mxu0 0.0
          %1155 = vmatpush1.msra.mxu0 0.0
          %1156 = vmatprep.subr.mxu0 0.0
          %1157 = vmatpush1.msra.mxu0 0.0
          %1158 = vmatprep.subr.mxu0 0.0
          %1159 = vmatpush1.msra.mxu0 0.0
          %1160 = vmatprep.subr.mxu0 0.0
          %1161 = vmatpush1.msra.mxu0 0.0
          %1162 = vmatprep.subr.mxu0 0.0
          %1163 = vmatpush1.msra.mxu0 0.0
          %1164 = vmatprep.mubr.f32.mxu0 0.0
          %1165 = vmatmul.mubr.f32.gmra.mrb[0].mxu0 %v561
          %v1166 = vpop.f32.mrb[0].mxu0
          %v1167 = vadd.f32 0.0, %v1166
          %v1168 = vpop.f32.mrb[0].mxu0
          %1169 = vmatprep.mubr.f32.mxu0 0.0
          %1170 = vmatmul.mubr.f32.gmra.mrb[0].mxu0 %v562
          %v1171 = vpop.f32.mrb[0].mxu0
          %v1172 = vadd.f32 0.0, %v1171
          %v1173 = vpop.f32.mrb[0].mxu0
          %1174 = vmatprep.mubr.f32.mxu0 0.0
          %1175 = vmatmul.mubr.f32.gmra.mrb[0].mxu0 %v563
          %v1176 = vpop.f32.mrb[0].mxu0
          %v1177 = vadd.f32 0.0, %v1176
          %v1178 = vpop.f32.mrb[0].mxu0
          %1179 = vmatprep.mubr.f32.mxu0 0.0
          %1180 = vmatmul.mubr.f32.gmra.mrb[0].mxu0 %v564
          %v1181 = vpop.f32.mrb[0].mxu0
          %v1182 = vadd.f32 0.0, %v1181
          %v1183 = vpop.f32.mrb[0].mxu0
          %1184 = vmatprep.mubr.f32.mxu0 0.0
          %1185 = vmatmul.mubr.f32.gmra.mrb[0].mxu0 %v565
          %v1186 = vpop.f32.mrb[0].mxu0
          %v1187 = vadd.f32 0.0, %v1186
          %v1188 = vpop.f32.mrb[0].mxu0
          %1189 = vmatprep.mubr.f32.mxu0 0.0
          %1190 = vmatmul.mubr.f32.gmra.mrb[0].mxu0 %v566
          %v1191 = vpop.f32.mrb[0].mxu0
          %v1192 = vadd.f32 0.0, %v1191
          %v1193 = vpop.f32.mrb[0].mxu0
          %1194 = vmatprep.mubr.f32.mxu0 0.0
          %1195 = vmatmul.mubr.f32.gmra.mrb[0].mxu0 %v567
          %v1196 = vpop.f32.mrb[0].mxu0
          %v1197 = vadd.f32 0.0, %v1196
          %v1198 = vpop.f32.mrb[0].mxu0
          %1199 = vmatprep.mubr.f32.mxu0 0.0
          %1200 = vmatmul.mubr.f32.gmra.mrb[0].mxu0 %v568
          %v1201 = vpop.f32.mrb[0].mxu0
          %v1202 = vadd.f32 0.0, %v1201
          %v1203 = vpop.f32.mrb[0].mxu0
          %1204 = vmatprep.mubr.f32.mxu0 0.0
          %1205 = vmatmul.mubr.f32.gmra.mrb[0].mxu0 %v569
          %v1206 = vpop.f32.mrb[0].mxu0
          %v1207 = vadd.f32 0.0, %v1206
          %v1208 = vpop.f32.mrb[0].mxu0
          %1209 = vmatprep.mubr.f32.mxu0 0.0
          %1210 = vmatmul.mubr.f32.gmra.mrb[0].mxu0 %v570
          %v1211 = vpop.f32.mrb[0].mxu0
          %v1212 = vadd.f32 0.0, %v1211
          %v1213 = vpop.f32.mrb[0].mxu0
          %1214 = vmatprep.mubr.f32.mxu0 0.0
          %1215 = vmatmul.mubr.f32.gmra.mrb[0].mxu0 %v571
          %v1216 = vpop.f32.mrb[0].mxu0
          %v1217 = vadd.f32 0.0, %v1216
          %v1218 = vpop.f32.mrb[0].mxu0
          %1219 = vmatprep.mubr.f32.mxu0 0.0
          %1220 = vmatmul.mubr.f32.gmra.mrb[0].mxu0 %v572
          %v1221 = vpop.f32.mrb[0].mxu0
          %v1222 = vadd.f32 0.0, %v1221
          %v1223 = vpop.f32.mrb[0].mxu0
          %1224 = vmatprep.mubr.f32.mxu0 0.0
          %1225 = vmatmul.mubr.f32.gmra.mrb[0].mxu0 %v573
          %v1226 = vpop.f32.mrb[0].mxu0
          %v1227 = vadd.f32 0.0, %v1226
          %v1228 = vpop.f32.mrb[0].mxu0
          %1229 = vmatprep.mubr.f32.mxu0 0.0
          %1230 = vmatmul.mubr.f32.gmra.mrb[0].mxu0 %v574
          %v1231 = vpop.f32.mrb[0].mxu0
          %v1232 = vadd.f32 0.0, %v1231
          %v1233 = vpop.f32.mrb[0].mxu0
          %1234 = vmatprep.mubr.f32.mxu0 0.0
          %1235 = vmatmul.mubr.f32.gmra.mrb[0].mxu0 %v575
          %v1236 = vpop.f32.mrb[0].mxu0
          %v1237 = vadd.f32 0.0, %v1236
          %v1238 = vpop.f32.mrb[0].mxu0
          %1239 = vmatprep.mubr.f32.mxu0 0.0
          %1240 = vmatmul.mubr.f32.gmra.mrb[0].mxu0 %v576
          %v1241 = vpop.f32.mrb[0].mxu0
          %v1242 = vadd.f32 0.0, %v1241
          %v1243 = vpop.f32.mrb[0].mxu0
          %1244 = vmatprep.mubr.f32.mxu0 0.0
          %1245 = vmatmul.mubr.f32.gmra.mrb[0].mxu0 %v577
          %v1246 = vpop.f32.mrb[0].mxu0
          %v1247 = vadd.f32 0.0, %v1246
          %v1248 = vpop.f32.mrb[0].mxu0
          %1249 = vmatprep.mubr.f32.mxu0 0.0
          %1250 = vmatmul.mubr.f32.gmra.mrb[0].mxu0 %v578
          %v1251 = vpop.f32.mrb[0].mxu0
          %v1252 = vadd.f32 0.0, %v1251
          %v1253 = vpop.f32.mrb[0].mxu0
          %1254 = vmatprep.mubr.f32.mxu0 0.0
          %1255 = vmatmul.mubr.f32.gmra.mrb[0].mxu0 %v579
          %v1256 = vpop.f32.mrb[0].mxu0
          %v1257 = vadd.f32 0.0, %v1256
          %v1258 = vpop.f32.mrb[0].mxu0
          %1259 = vmatprep.mubr.f32.mxu0 0.0
          %1260 = vmatmul.mubr.f32.gmra.mrb[0].mxu0 %v580
          %v1261 = vpop.f32.mrb[0].mxu0
          %v1262 = vadd.f32 0.0, %v1261
          %v1263 = vpop.f32.mrb[0].mxu0
          %1264 = vmatprep.mubr.f32.mxu0 0.0
          %1265 = vmatmul.mubr.f32.gmra.mrb[0].mxu0 %v581
          %v1266 = vpop.f32.mrb[0].mxu0
          %v1267 = vadd.f32 0.0, %v1266
          %v1268 = vpop.f32.mrb[0].mxu0
          %1269 = vmatprep.mubr.f32.mxu0 0.0
          %1270 = vmatmul.mubr.f32.gmra.mrb[0].mxu0 %v582
          %v1271 = vpop.f32.mrb[0].mxu0
          %v1272 = vadd.f32 0.0, %v1271
          %v1273 = vpop.f32.mrb[0].mxu0
          %1274 = vmatprep.mubr.f32.mxu0 0.0
          %1275 = vmatmul.mubr.f32.gmra.mrb[0].mxu0 %v583
          %v1276 = vpop.f32.mrb[0].mxu0
          %v1277 = vadd.f32 0.0, %v1276
          %v1278 = vpop.f32.mrb[0].mxu0
          %1279 = vmatprep.mubr.f32.mxu0 0.0
          %1280 = vmatmul.mubr.f32.gmra.mrb[0].mxu0 %v584
          %v1281 = vpop.f32.mrb[0].mxu0
          %v1282 = vadd.f32 0.0, %v1281
          %v1283 = vpop.f32.mrb[0].mxu0
          %1284 = vmatprep.mubr.f32.mxu0 0.0
          %1285 = vmatmul.mubr.f32.gmra.mrb[0].mxu0 %v585
          %v1286 = vpop.f32.mrb[0].mxu0
          %v1287 = vadd.f32 0.0, %v1286
          %v1288 = vpop.f32.mrb[0].mxu0
          %1289 = vmatprep.mubr.f32.mxu0 0.0
          %1290 = vmatmul.mubr.f32.gmra.mrb[0].mxu0 %v586
          %v1291 = vpop.f32.mrb[0].mxu0
          %v1292 = vadd.f32 0.0, %v1291
          %v1293 = vpop.f32.mrb[0].mxu0
          %1294 = vmatprep.mubr.f32.mxu0 0.0
          %1295 = vmatmul.mubr.f32.gmra.mrb[0].mxu0 %v587
          %v1296 = vpop.f32.mrb[0].mxu0
          %v1297 = vadd.f32 0.0, %v1296
          %v1298 = vpop.f32.mrb[0].mxu0
          %1299 = vmatprep.mubr.f32.mxu0 0.0
          %1300 = vmatmul.mubr.f32.gmra.mrb[0].mxu0 %v588
          %v1301 = vpop.f32.mrb[0].mxu0
          %v1302 = vadd.f32 0.0, %v1301
          %v1303 = vpop.f32.mrb[0].mxu0
          %1304 = vmatprep.mubr.f32.mxu0 0.0
          %1305 = vmatmul.mubr.f32.gmra.mrb[0].mxu0 %v589
          %v1306 = vpop.f32.mrb[0].mxu0
          %v1307 = vadd.f32 0.0, %v1306
          %v1308 = vpop.f32.mrb[0].mxu0
          %1309 = vmatprep.mubr.f32.mxu0 0.0
          %1310 = vmatmul.mubr.f32.gmra.mrb[0].mxu0 %v590
          %v1311 = vpop.f32.mrb[0].mxu0
          %v1312 = vadd.f32 0.0, %v1311
          %v1313 = vpop.f32.mrb[0].mxu0
          %1314 = vmatprep.mubr.f32.mxu0 0.0
          %1315 = vmatmul.mubr.f32.gmra.mrb[0].mxu0 %v591
          %v1316 = vpop.f32.mrb[0].mxu0
          %v1317 = vadd.f32 0.0, %v1316
          %v1318 = vpop.f32.mrb[0].mxu0
          %1319 = vmatprep.mubr.f32.mxu0 0.0
          %1320 = vmatmul.mubr.f32.gmra.mrb[0].mxu0 %v592
          %v1321 = vpop.f32.mrb[0].mxu0
          %v1322 = vadd.f32 0.0, %v1321
          %v1323 = vpop.f32.mrb[0].mxu0
          %1324 = vdwg.mxu0
          %v1325 = vadd.f32 %v923, %v1167
          %v1326 = vadd.f32 %v928, %v1172
          %v1327 = vadd.f32 %v933, %v1177
          %v1328 = vadd.f32 %v938, %v1182
          %v1329 = vadd.f32 %v943, %v1187
          %v1330 = vadd.f32 %v948, %v1192
          %v1331 = vadd.f32 %v953, %v1197
          %v1332 = vadd.f32 %v958, %v1202
          %v1333 = vadd.f32 %v963, %v1207
          %v1334 = vadd.f32 %v968, %v1212
          %v1335 = vadd.f32 %v973, %v1217
          %v1336 = vadd.f32 %v978, %v1222
          %v1337 = vadd.f32 %v983, %v1227
          %v1338 = vadd.f32 %v988, %v1232
          %v1339 = vadd.f32 %v993, %v1237
          %v1340 = vadd.f32 %v998, %v1242
          %v1341 = vadd.f32 %v1003, %v1247
          %v1342 = vadd.f32 %v1008, %v1252
          %v1343 = vadd.f32 %v1013, %v1257
          %v1344 = vadd.f32 %v1018, %v1262
          %v1345 = vadd.f32 %v1023, %v1267
          %v1346 = vadd.f32 %v1028, %v1272
          %v1347 = vadd.f32 %v1033, %v1277
          %v1348 = vadd.f32 %v1038, %v1282
          %v1349 = vadd.f32 %v1043, %v1287
          %v1350 = vadd.f32 %v1048, %v1292
          %v1351 = vadd.f32 %v1053, %v1297
          %v1352 = vadd.f32 %v1058, %v1302
          %v1353 = vadd.f32 %v1063, %v1307
          %v1354 = vadd.f32 %v1068, %v1312
          %v1355 = vadd.f32 %v1073, %v1317
          %v1356 = vadd.f32 %v1078, %v1322
          %v1357 = vld [vmem:[#allocation2 + $0x1] sm:$0xff]
          %v1358 = vld [vmem:[#allocation2 + $0x9] sm:$0xff]
          %v1359 = vld [vmem:[#allocation2 + $0x19] sm:$0xff]
          %v1360 = vld [vmem:[#allocation2 + $0x21] sm:$0xff]
          %v1361 = vld [vmem:[#allocation2 + $0x31] sm:$0xff]
          %v1362 = vld [vmem:[#allocation2 + $0x39] sm:$0xff]
          %v1363 = vld [vmem:[#allocation2 + $0x49] sm:$0xff]
          %v1364 = vld [vmem:[#allocation2 + $0x51] sm:$0xff]
          %v1365 = vld [vmem:[#allocation2 + $0x61] sm:$0xff]
          %v1366 = vld [vmem:[#allocation2 + $0x69] sm:$0xff]
          %v1367 = vld [vmem:[#allocation2 + $0x79] sm:$0xff]
          %v1368 = vld [vmem:[#allocation2 + $0x81] sm:$0xff]
          %v1369 = vld [vmem:[#allocation2 + $0x91] sm:$0xff]
          %v1370 = vld [vmem:[#allocation2 + $0x99] sm:$0xff]
          %v1371 = vld [vmem:[#allocation2 + $0xa9] sm:$0xff]
          %v1372 = vld [vmem:[#allocation2 + $0xb1] sm:$0xff]
          %v1373 = vld [vmem:[#allocation2 + $0xc1] sm:$0xff]
          %v1374 = vld [vmem:[#allocation2 + $0xc9] sm:$0xff]
          %v1375 = vld [vmem:[#allocation2 + $0xd9] sm:$0xff]
          %v1376 = vld [vmem:[#allocation2 + $0xe1] sm:$0xff]
          %v1377 = vld [vmem:[#allocation2 + $0xf1] sm:$0xff]
          %v1378 = vld [vmem:[#allocation2 + $0xf9] sm:$0xff]
          %v1379 = vld [vmem:[#allocation2 + $0x109] sm:$0xff]
          %v1380 = vld [vmem:[#allocation2 + $0x111] sm:$0xff]
          %v1381 = vld [vmem:[#allocation2 + $0x121] sm:$0xff]
          %v1382 = vld [vmem:[#allocation2 + $0x129] sm:$0xff]
          %v1383 = vld [vmem:[#allocation2 + $0x139] sm:$0xff]
          %v1384 = vld [vmem:[#allocation2 + $0x141] sm:$0xff]
          %v1385 = vld [vmem:[#allocation2 + $0x151] sm:$0xff]
          %v1386 = vld [vmem:[#allocation2 + $0x159] sm:$0xff]
          %v1387 = vld [vmem:[#allocation2 + $0x169] sm:$0xff]
          %v1388 = vld [vmem:[#allocation2 + $0x171] sm:$0xff]
          %v1389 = vld [vmem:[#allocation2 + $0x181] sm:$0xff]
          %v1390 = vld [vmem:[#allocation2 + $0x189] sm:$0xff]
          %v1391 = vld [vmem:[#allocation2 + $0x199] sm:$0xff]
          %v1392 = vld [vmem:[#allocation2 + $0x1a1] sm:$0xff]
          %s1393 = sadd.s32 %s593, 1
          %s1394 = smul.u32 %s1393, 128
          %s1395 = scalar_lea.vmem [#allocation6], %s1394
          %v1396 = vld [vmem:[%s1395] sm:$0xff]
          %v1397 = vld [vmem:[%s1395 + $0x8] sm:$0xff]
          %v1398 = vld [vmem:[%s1395 + $0x10] sm:$0xff]
          %v1399 = vld [vmem:[%s1395 + $0x18] sm:$0xff]
          %v1400 = vld [vmem:[%s1395 + $0x20] sm:$0xff]
          %v1401 = vld [vmem:[%s1395 + $0x28] sm:$0xff]
          %v1402 = vld [vmem:[%s1395 + $0x30] sm:$0xff]
          %v1403 = vld [vmem:[%s1395 + $0x38] sm:$0xff]
          %v1404 = vld [vmem:[%s1395 + $0x40] sm:$0xff]
          %v1405 = vld [vmem:[%s1395 + $0x48] sm:$0xff]
          %v1406 = vld [vmem:[%s1395 + $0x50] sm:$0xff]
          %v1407 = vld [vmem:[%s1395 + $0x58] sm:$0xff]
          %v1408 = vld [vmem:[%s1395 + $0x60] sm:$0xff]
          %v1409 = vld [vmem:[%s1395 + $0x68] sm:$0xff]
          %v1410 = vld [vmem:[%s1395 + $0x70] sm:$0xff]
          %v1411 = vld [vmem:[%s1395 + $0x78] sm:$0xff]
          %1412 = vmatprep.subr.mxu0 0.0
          %1413 = vmatpush1.msra.mxu0 %v1396
          %1414 = vmatprep.subr.mxu0 0.0
          %1415 = vmatpush1.msra.mxu0 %v1397
          %1416 = vmatprep.subr.mxu0 0.0
          %1417 = vmatpush1.msra.mxu0 %v1398
          %1418 = vmatprep.subr.mxu0 0.0
          %1419 = vmatpush1.msra.mxu0 %v1399
          %1420 = vmatprep.subr.mxu0 0.0
          %1421 = vmatpush1.msra.mxu0 %v1400
          %1422 = vmatprep.subr.mxu0 0.0
          %1423 = vmatpush1.msra.mxu0 %v1401
          %1424 = vmatprep.subr.mxu0 0.0
          %1425 = vmatpush1.msra.mxu0 %v1402
          %1426 = vmatprep.subr.mxu0 0.0
          %1427 = vmatpush1.msra.mxu0 %v1403
          %1428 = vmatprep.subr.mxu0 0.0
          %1429 = vmatpush1.msra.mxu0 %v1404
          %1430 = vmatprep.subr.mxu0 0.0
          %1431 = vmatpush1.msra.mxu0 %v1405
          %1432 = vmatprep.subr.mxu0 0.0
          %1433 = vmatpush1.msra.mxu0 %v1406
          %1434 = vmatprep.subr.mxu0 0.0
          %1435 = vmatpush1.msra.mxu0 %v1407
          %1436 = vmatprep.subr.mxu0 0.0
          %1437 = vmatpush1.msra.mxu0 %v1408
          %1438 = vmatprep.subr.mxu0 0.0
          %1439 = vmatpush1.msra.mxu0 %v1409
          %1440 = vmatprep.subr.mxu0 0.0
          %1441 = vmatpush1.msra.mxu0 %v1410
          %1442 = vmatprep.subr.mxu0 0.0
          %1443 = vmatpush1.msra.mxu0 %v1411
          %1444 = vmatprep.subr.mxu0 0.0
          %1445 = vmatpush1.msra.mxu0 0.0
          %1446 = vmatprep.subr.mxu0 0.0
          %1447 = vmatpush1.msra.mxu0 0.0
          %1448 = vmatprep.subr.mxu0 0.0
          %1449 = vmatpush1.msra.mxu0 0.0
          %1450 = vmatprep.subr.mxu0 0.0
          %1451 = vmatpush1.msra.mxu0 0.0
          %1452 = vmatprep.subr.mxu0 0.0
          %1453 = vmatpush1.msra.mxu0 0.0
          %1454 = vmatprep.subr.mxu0 0.0
          %1455 = vmatpush1.msra.mxu0 0.0
          %1456 = vmatprep.subr.mxu0 0.0
          %1457 = vmatpush1.msra.mxu0 0.0
          %1458 = vmatprep.subr.mxu0 0.0
          %1459 = vmatpush1.msra.mxu0 0.0
          %1460 = vmatprep.subr.mxu0 0.0
          %1461 = vmatpush1.msra.mxu0 0.0
          %1462 = vmatprep.subr.mxu0 0.0
          %1463 = vmatpush1.msra.mxu0 0.0
          %1464 = vmatprep.subr.mxu0 0.0
          %1465 = vmatpush1.msra.mxu0 0.0
          %1466 = vmatprep.subr.mxu0 0.0
          %1467 = vmatpush1.msra.mxu0 0.0
          %1468 = vmatprep.subr.mxu0 0.0
          %1469 = vmatpush1.msra.mxu0 0.0
          %1470 = vmatprep.subr.mxu0 0.0
          %1471 = vmatpush1.msra.mxu0 0.0
          %1472 = vmatprep.subr.mxu0 0.0
          %1473 = vmatpush1.msra.mxu0 0.0
          %1474 = vmatprep.subr.mxu0 0.0
          %1475 = vmatpush1.msra.mxu0 0.0
          %1476 = vmatprep.mubr.f32.mxu0 0.0
          %1477 = vmatmul.mubr.f32.gmra.mrb[0].mxu0 %v1357
          %v1478 = vpop.f32.mrb[0].mxu0
          %v1479 = vadd.f32 0.0, %v1478
          %v1480 = vpop.f32.mrb[0].mxu0
          %1481 = vmatprep.mubr.f32.mxu0 0.0
          %1482 = vmatmul.mubr.f32.gmra.mrb[0].mxu0 %v1358
          %v1483 = vpop.f32.mrb[0].mxu0
          %v1484 = vadd.f32 0.0, %v1483
          %v1485 = vpop.f32.mrb[0].mxu0
          %1486 = vmatprep.mubr.f32.mxu0 0.0
          %1487 = vmatmul.mubr.f32.gmra.mrb[0].mxu0 %v1359
          %v1488 = vpop.f32.mrb[0].mxu0
          %v1489 = vadd.f32 0.0, %v1488
          %v1490 = vpop.f32.mrb[0].mxu0
          %1491 = vmatprep.mubr.f32.mxu0 0.0
          %1492 = vmatmul.mubr.f32.gmra.mrb[0].mxu0 %v1360
          %v1493 = vpop.f32.mrb[0].mxu0
          %v1494 = vadd.f32 0.0, %v1493
          %v1495 = vpop.f32.mrb[0].mxu0
          %1496 = vmatprep.mubr.f32.mxu0 0.0
          %1497 = vmatmul.mubr.f32.gmra.mrb[0].mxu0 %v1361
          %v1498 = vpop.f32.mrb[0].mxu0
          %v1499 = vadd.f32 0.0, %v1498
          %v1500 = vpop.f32.mrb[0].mxu0
          %1501 = vmatprep.mubr.f32.mxu0 0.0
          %1502 = vmatmul.mubr.f32.gmra.mrb[0].mxu0 %v1362
          %v1503 = vpop.f32.mrb[0].mxu0
          %v1504 = vadd.f32 0.0, %v1503
          %v1505 = vpop.f32.mrb[0].mxu0
          %1506 = vmatprep.mubr.f32.mxu0 0.0
          %1507 = vmatmul.mubr.f32.gmra.mrb[0].mxu0 %v1363
          %v1508 = vpop.f32.mrb[0].mxu0
          %v1509 = vadd.f32 0.0, %v1508
          %v1510 = vpop.f32.mrb[0].mxu0
          %1511 = vmatprep.mubr.f32.mxu0 0.0
          %1512 = vmatmul.mubr.f32.gmra.mrb[0].mxu0 %v1364
          %v1513 = vpop.f32.mrb[0].mxu0
          %v1514 = vadd.f32 0.0, %v1513
          %v1515 = vpop.f32.mrb[0].mxu0
          %1516 = vmatprep.mubr.f32.mxu0 0.0
          %1517 = vmatmul.mubr.f32.gmra.mrb[0].mxu0 %v1365
          %v1518 = vpop.f32.mrb[0].mxu0
          %v1519 = vadd.f32 0.0, %v1518
          %v1520 = vpop.f32.mrb[0].mxu0
          %1521 = vmatprep.mubr.f32.mxu0 0.0
          %1522 = vmatmul.mubr.f32.gmra.mrb[0].mxu0 %v1366
          %v1523 = vpop.f32.mrb[0].mxu0
          %v1524 = vadd.f32 0.0, %v1523
          %v1525 = vpop.f32.mrb[0].mxu0
          %1526 = vmatprep.mubr.f32.mxu0 0.0
          %1527 = vmatmul.mubr.f32.gmra.mrb[0].mxu0 %v1367
          %v1528 = vpop.f32.mrb[0].mxu0
          %v1529 = vadd.f32 0.0, %v1528
          %v1530 = vpop.f32.mrb[0].mxu0
          %1531 = vmatprep.mubr.f32.mxu0 0.0
          %1532 = vmatmul.mubr.f32.gmra.mrb[0].mxu0 %v1368
          %v1533 = vpop.f32.mrb[0].mxu0
          %v1534 = vadd.f32 0.0, %v1533
          %v1535 = vpop.f32.mrb[0].mxu0
          %1536 = vmatprep.mubr.f32.mxu0 0.0
          %1537 = vmatmul.mubr.f32.gmra.mrb[0].mxu0 %v1369
          %v1538 = vpop.f32.mrb[0].mxu0
          %v1539 = vadd.f32 0.0, %v1538
          %v1540 = vpop.f32.mrb[0].mxu0
          %1541 = vmatprep.mubr.f32.mxu0 0.0
          %1542 = vmatmul.mubr.f32.gmra.mrb[0].mxu0 %v1370
          %v1543 = vpop.f32.mrb[0].mxu0
          %v1544 = vadd.f32 0.0, %v1543
          %v1545 = vpop.f32.mrb[0].mxu0
          %1546 = vmatprep.mubr.f32.mxu0 0.0
          %1547 = vmatmul.mubr.f32.gmra.mrb[0].mxu0 %v1371
          %v1548 = vpop.f32.mrb[0].mxu0
          %v1549 = vadd.f32 0.0, %v1548
          %v1550 = vpop.f32.mrb[0].mxu0
          %1551 = vmatprep.mubr.f32.mxu0 0.0
          %1552 = vmatmul.mubr.f32.gmra.mrb[0].mxu0 %v1372
          %v1553 = vpop.f32.mrb[0].mxu0
          %v1554 = vadd.f32 0.0, %v1553
          %v1555 = vpop.f32.mrb[0].mxu0
          %1556 = vmatprep.mubr.f32.mxu0 0.0
          %1557 = vmatmul.mubr.f32.gmra.mrb[0].mxu0 %v1373
          %v1558 = vpop.f32.mrb[0].mxu0
          %v1559 = vadd.f32 0.0, %v1558
          %v1560 = vpop.f32.mrb[0].mxu0
          %1561 = vmatprep.mubr.f32.mxu0 0.0
          %1562 = vmatmul.mubr.f32.gmra.mrb[0].mxu0 %v1374
          %v1563 = vpop.f32.mrb[0].mxu0
          %v1564 = vadd.f32 0.0, %v1563
          %v1565 = vpop.f32.mrb[0].mxu0
          %1566 = vmatprep.mubr.f32.mxu0 0.0
          %1567 = vmatmul.mubr.f32.gmra.mrb[0].mxu0 %v1375
          %v1568 = vpop.f32.mrb[0].mxu0
          %v1569 = vadd.f32 0.0, %v1568
          %v1570 = vpop.f32.mrb[0].mxu0
          %1571 = vmatprep.mubr.f32.mxu0 0.0
          %1572 = vmatmul.mubr.f32.gmra.mrb[0].mxu0 %v1376
          %v1573 = vpop.f32.mrb[0].mxu0
          %v1574 = vadd.f32 0.0, %v1573
          %v1575 = vpop.f32.mrb[0].mxu0
          %1576 = vmatprep.mubr.f32.mxu0 0.0
          %1577 = vmatmul.mubr.f32.gmra.mrb[0].mxu0 %v1377
          %v1578 = vpop.f32.mrb[0].mxu0
          %v1579 = vadd.f32 0.0, %v1578
          %v1580 = vpop.f32.mrb[0].mxu0
          %1581 = vmatprep.mubr.f32.mxu0 0.0
          %1582 = vmatmul.mubr.f32.gmra.mrb[0].mxu0 %v1378
          %v1583 = vpop.f32.mrb[0].mxu0
          %v1584 = vadd.f32 0.0, %v1583
          %v1585 = vpop.f32.mrb[0].mxu0
          %1586 = vmatprep.mubr.f32.mxu0 0.0
          %1587 = vmatmul.mubr.f32.gmra.mrb[0].mxu0 %v1379
          %v1588 = vpop.f32.mrb[0].mxu0
          %v1589 = vadd.f32 0.0, %v1588
          %v1590 = vpop.f32.mrb[0].mxu0
          %1591 = vmatprep.mubr.f32.mxu0 0.0
          %1592 = vmatmul.mubr.f32.gmra.mrb[0].mxu0 %v1380
          %v1593 = vpop.f32.mrb[0].mxu0
          %v1594 = vadd.f32 0.0, %v1593
          %v1595 = vpop.f32.mrb[0].mxu0
          %1596 = vmatprep.mubr.f32.mxu0 0.0
          %1597 = vmatmul.mubr.f32.gmra.mrb[0].mxu0 %v1381
          %v1598 = vpop.f32.mrb[0].mxu0
          %v1599 = vadd.f32 0.0, %v1598
          %v1600 = vpop.f32.mrb[0].mxu0
          %1601 = vmatprep.mubr.f32.mxu0 0.0
          %1602 = vmatmul.mubr.f32.gmra.mrb[0].mxu0 %v1382
          %v1603 = vpop.f32.mrb[0].mxu0
          %v1604 = vadd.f32 0.0, %v1603
          %v1605 = vpop.f32.mrb[0].mxu0
          %1606 = vmatprep.mubr.f32.mxu0 0.0
          %1607 = vmatmul.mubr.f32.gmra.mrb[0].mxu0 %v1383
          %v1608 = vpop.f32.mrb[0].mxu0
          %v1609 = vadd.f32 0.0, %v1608
          %v1610 = vpop.f32.mrb[0].mxu0
          %1611 = vmatprep.mubr.f32.mxu0 0.0
          %1612 = vmatmul.mubr.f32.gmra.mrb[0].mxu0 %v1384
          %v1613 = vpop.f32.mrb[0].mxu0
          %v1614 = vadd.f32 0.0, %v1613
          %v1615 = vpop.f32.mrb[0].mxu0
          %1616 = vmatprep.mubr.f32.mxu0 0.0
          %1617 = vmatmul.mubr.f32.gmra.mrb[0].mxu0 %v1385
          %v1618 = vpop.f32.mrb[0].mxu0
          %v1619 = vadd.f32 0.0, %v1618
          %v1620 = vpop.f32.mrb[0].mxu0
          %1621 = vmatprep.mubr.f32.mxu0 0.0
          %1622 = vmatmul.mubr.f32.gmra.mrb[0].mxu0 %v1386
          %v1623 = vpop.f32.mrb[0].mxu0
          %v1624 = vadd.f32 0.0, %v1623
          %v1625 = vpop.f32.mrb[0].mxu0
          %1626 = vmatprep.mubr.f32.mxu0 0.0
          %1627 = vmatmul.mubr.f32.gmra.mrb[0].mxu0 %v1387
          %v1628 = vpop.f32.mrb[0].mxu0
          %v1629 = vadd.f32 0.0, %v1628
          %v1630 = vpop.f32.mrb[0].mxu0
          %1631 = vmatprep.mubr.f32.mxu0 0.0
          %1632 = vmatmul.mubr.f32.gmra.mrb[0].mxu0 %v1388
          %v1633 = vpop.f32.mrb[0].mxu0
          %v1634 = vadd.f32 0.0, %v1633
          %v1635 = vpop.f32.mrb[0].mxu0
          %1636 = vdwg.mxu0
          %v1637 = vadd.f32 %v1325, %v1479
          %v1638 = vadd.f32 %v1326, %v1484
          %v1639 = vadd.f32 %v1327, %v1489
          %v1640 = vadd.f32 %v1328, %v1494
          %v1641 = vadd.f32 %v1329, %v1499
          %v1642 = vadd.f32 %v1330, %v1504
          %v1643 = vadd.f32 %v1331, %v1509
          %v1644 = vadd.f32 %v1332, %v1514
          %v1645 = vadd.f32 %v1333, %v1519
          %v1646 = vadd.f32 %v1334, %v1524
          %v1647 = vadd.f32 %v1335, %v1529
          %v1648 = vadd.f32 %v1336, %v1534
          %v1649 = vadd.f32 %v1337, %v1539
          %v1650 = vadd.f32 %v1338, %v1544
          %v1651 = vadd.f32 %v1339, %v1549
          %v1652 = vadd.f32 %v1340, %v1554
          %v1653 = vadd.f32 %v1341, %v1559
          %v1654 = vadd.f32 %v1342, %v1564
          %v1655 = vadd.f32 %v1343, %v1569
          %v1656 = vadd.f32 %v1344, %v1574
          %v1657 = vadd.f32 %v1345, %v1579
          %v1658 = vadd.f32 %v1346, %v1584
          %v1659 = vadd.f32 %v1347, %v1589
          %v1660 = vadd.f32 %v1348, %v1594
          %v1661 = vadd.f32 %v1349, %v1599
          %v1662 = vadd.f32 %v1350, %v1604
          %v1663 = vadd.f32 %v1351, %v1609
          %v1664 = vadd.f32 %v1352, %v1614
          %v1665 = vadd.f32 %v1353, %v1619
          %v1666 = vadd.f32 %v1354, %v1624
          %v1667 = vadd.f32 %v1355, %v1629
          %v1668 = vadd.f32 %v1356, %v1634
          %s1669 = sadd.s32 %s593, 4
          %s1670 = smul.u32 %s1669, 128
          %s1671 = scalar_lea.vmem [#allocation6], %s1670
          %v1672 = vld [vmem:[%s1671] sm:$0xff]
          %v1673 = vld [vmem:[%s1671 + $0x8] sm:$0xff]
          %v1674 = vld [vmem:[%s1671 + $0x10] sm:$0xff]
          %v1675 = vld [vmem:[%s1671 + $0x18] sm:$0xff]
          %v1676 = vld [vmem:[%s1671 + $0x20] sm:$0xff]
          %v1677 = vld [vmem:[%s1671 + $0x28] sm:$0xff]
          %v1678 = vld [vmem:[%s1671 + $0x30] sm:$0xff]
          %v1679 = vld [vmem:[%s1671 + $0x38] sm:$0xff]
          %v1680 = vld [vmem:[%s1671 + $0x40] sm:$0xff]
          %v1681 = vld [vmem:[%s1671 + $0x48] sm:$0xff]
          %v1682 = vld [vmem:[%s1671 + $0x50] sm:$0xff]
          %v1683 = vld [vmem:[%s1671 + $0x58] sm:$0xff]
          %v1684 = vld [vmem:[%s1671 + $0x60] sm:$0xff]
          %v1685 = vld [vmem:[%s1671 + $0x68] sm:$0xff]
          %v1686 = vld [vmem:[%s1671 + $0x70] sm:$0xff]
          %v1687 = vld [vmem:[%s1671 + $0x78] sm:$0xff]
          %1688 = vmatprep.subr.mxu0 0.0
          %1689 = vmatpush1.msra.mxu0 %v1672
          %1690 = vmatprep.subr.mxu0 0.0
          %1691 = vmatpush1.msra.mxu0 %v1673
          %1692 = vmatprep.subr.mxu0 0.0
          %1693 = vmatpush1.msra.mxu0 %v1674
          %1694 = vmatprep.subr.mxu0 0.0
          %1695 = vmatpush1.msra.mxu0 %v1675
          %1696 = vmatprep.subr.mxu0 0.0
          %1697 = vmatpush1.msra.mxu0 %v1676
          %1698 = vmatprep.subr.mxu0 0.0
          %1699 = vmatpush1.msra.mxu0 %v1677
          %1700 = vmatprep.subr.mxu0 0.0
          %1701 = vmatpush1.msra.mxu0 %v1678
          %1702 = vmatprep.subr.mxu0 0.0
          %1703 = vmatpush1.msra.mxu0 %v1679
          %1704 = vmatprep.subr.mxu0 0.0
          %1705 = vmatpush1.msra.mxu0 %v1680
          %1706 = vmatprep.subr.mxu0 0.0
          %1707 = vmatpush1.msra.mxu0 %v1681
          %1708 = vmatprep.subr.mxu0 0.0
          %1709 = vmatpush1.msra.mxu0 %v1682
          %1710 = vmatprep.subr.mxu0 0.0
          %1711 = vmatpush1.msra.mxu0 %v1683
          %1712 = vmatprep.subr.mxu0 0.0
          %1713 = vmatpush1.msra.mxu0 %v1684
          %1714 = vmatprep.subr.mxu0 0.0
          %1715 = vmatpush1.msra.mxu0 %v1685
          %1716 = vmatprep.subr.mxu0 0.0
          %1717 = vmatpush1.msra.mxu0 %v1686
          %1718 = vmatprep.subr.mxu0 0.0
          %1719 = vmatpush1.msra.mxu0 %v1687
          %1720 = vmatprep.subr.mxu0 0.0
          %1721 = vmatpush1.msra.mxu0 0.0
          %1722 = vmatprep.subr.mxu0 0.0
          %1723 = vmatpush1.msra.mxu0 0.0
          %1724 = vmatprep.subr.mxu0 0.0
          %1725 = vmatpush1.msra.mxu0 0.0
          %1726 = vmatprep.subr.mxu0 0.0
          %1727 = vmatpush1.msra.mxu0 0.0
          %1728 = vmatprep.subr.mxu0 0.0
          %1729 = vmatpush1.msra.mxu0 0.0
          %1730 = vmatprep.subr.mxu0 0.0
          %1731 = vmatpush1.msra.mxu0 0.0
          %1732 = vmatprep.subr.mxu0 0.0
          %1733 = vmatpush1.msra.mxu0 0.0
          %1734 = vmatprep.subr.mxu0 0.0
          %1735 = vmatpush1.msra.mxu0 0.0
          %1736 = vmatprep.subr.mxu0 0.0
          %1737 = vmatpush1.msra.mxu0 0.0
          %1738 = vmatprep.subr.mxu0 0.0
          %1739 = vmatpush1.msra.mxu0 0.0
          %1740 = vmatprep.subr.mxu0 0.0
          %1741 = vmatpush1.msra.mxu0 0.0
          %1742 = vmatprep.subr.mxu0 0.0
          %1743 = vmatpush1.msra.mxu0 0.0
          %1744 = vmatprep.subr.mxu0 0.0
          %1745 = vmatpush1.msra.mxu0 0.0
          %1746 = vmatprep.subr.mxu0 0.0
          %1747 = vmatpush1.msra.mxu0 0.0
          %1748 = vmatprep.subr.mxu0 0.0
          %1749 = vmatpush1.msra.mxu0 0.0
          %1750 = vmatprep.subr.mxu0 0.0
          %1751 = vmatpush1.msra.mxu0 0.0
          %1752 = vmatprep.mubr.f32.mxu0 0.0
          %1753 = vmatmul.mubr.f32.gmra.mrb[0].mxu0 %v1359
          %v1754 = vpop.f32.mrb[0].mxu0
          %v1755 = vadd.f32 0.0, %v1754
          %v1756 = vpop.f32.mrb[0].mxu0
          %1757 = vmatprep.mubr.f32.mxu0 0.0
          %1758 = vmatmul.mubr.f32.gmra.mrb[0].mxu0 %v1360
          %v1759 = vpop.f32.mrb[0].mxu0
          %v1760 = vadd.f32 0.0, %v1759
          %v1761 = vpop.f32.mrb[0].mxu0
          %1762 = vmatprep.mubr.f32.mxu0 0.0
          %1763 = vmatmul.mubr.f32.gmra.mrb[0].mxu0 %v1361
          %v1764 = vpop.f32.mrb[0].mxu0
          %v1765 = vadd.f32 0.0, %v1764
          %v1766 = vpop.f32.mrb[0].mxu0
          %1767 = vmatprep.mubr.f32.mxu0 0.0
          %1768 = vmatmul.mubr.f32.gmra.mrb[0].mxu0 %v1362
          %v1769 = vpop.f32.mrb[0].mxu0
          %v1770 = vadd.f32 0.0, %v1769
          %v1771 = vpop.f32.mrb[0].mxu0
          %1772 = vmatprep.mubr.f32.mxu0 0.0
          %1773 = vmatmul.mubr.f32.gmra.mrb[0].mxu0 %v1363
          %v1774 = vpop.f32.mrb[0].mxu0
          %v1775 = vadd.f32 0.0, %v1774
          %v1776 = vpop.f32.mrb[0].mxu0
          %1777 = vmatprep.mubr.f32.mxu0 0.0
          %1778 = vmatmul.mubr.f32.gmra.mrb[0].mxu0 %v1364
          %v1779 = vpop.f32.mrb[0].mxu0
          %v1780 = vadd.f32 0.0, %v1779
          %v1781 = vpop.f32.mrb[0].mxu0
          %1782 = vmatprep.mubr.f32.mxu0 0.0
          %1783 = vmatmul.mubr.f32.gmra.mrb[0].mxu0 %v1365
          %v1784 = vpop.f32.mrb[0].mxu0
          %v1785 = vadd.f32 0.0, %v1784
          %v1786 = vpop.f32.mrb[0].mxu0
          %1787 = vmatprep.mubr.f32.mxu0 0.0
          %1788 = vmatmul.mubr.f32.gmra.mrb[0].mxu0 %v1366
          %v1789 = vpop.f32.mrb[0].mxu0
          %v1790 = vadd.f32 0.0, %v1789
          %v1791 = vpop.f32.mrb[0].mxu0
          %1792 = vmatprep.mubr.f32.mxu0 0.0
          %1793 = vmatmul.mubr.f32.gmra.mrb[0].mxu0 %v1367
          %v1794 = vpop.f32.mrb[0].mxu0
          %v1795 = vadd.f32 0.0, %v1794
          %v1796 = vpop.f32.mrb[0].mxu0
          %1797 = vmatprep.mubr.f32.mxu0 0.0
          %1798 = vmatmul.mubr.f32.gmra.mrb[0].mxu0 %v1368
          %v1799 = vpop.f32.mrb[0].mxu0
          %v1800 = vadd.f32 0.0, %v1799
          %v1801 = vpop.f32.mrb[0].mxu0
          %1802 = vmatprep.mubr.f32.mxu0 0.0
          %1803 = vmatmul.mubr.f32.gmra.mrb[0].mxu0 %v1369
          %v1804 = vpop.f32.mrb[0].mxu0
          %v1805 = vadd.f32 0.0, %v1804
          %v1806 = vpop.f32.mrb[0].mxu0
          %1807 = vmatprep.mubr.f32.mxu0 0.0
          %1808 = vmatmul.mubr.f32.gmra.mrb[0].mxu0 %v1370
          %v1809 = vpop.f32.mrb[0].mxu0
          %v1810 = vadd.f32 0.0, %v1809
          %v1811 = vpop.f32.mrb[0].mxu0
          %1812 = vmatprep.mubr.f32.mxu0 0.0
          %1813 = vmatmul.mubr.f32.gmra.mrb[0].mxu0 %v1371
          %v1814 = vpop.f32.mrb[0].mxu0
          %v1815 = vadd.f32 0.0, %v1814
          %v1816 = vpop.f32.mrb[0].mxu0
          %1817 = vmatprep.mubr.f32.mxu0 0.0
          %1818 = vmatmul.mubr.f32.gmra.mrb[0].mxu0 %v1372
          %v1819 = vpop.f32.mrb[0].mxu0
          %v1820 = vadd.f32 0.0, %v1819
          %v1821 = vpop.f32.mrb[0].mxu0
          %1822 = vmatprep.mubr.f32.mxu0 0.0
          %1823 = vmatmul.mubr.f32.gmra.mrb[0].mxu0 %v1373
          %v1824 = vpop.f32.mrb[0].mxu0
          %v1825 = vadd.f32 0.0, %v1824
          %v1826 = vpop.f32.mrb[0].mxu0
          %1827 = vmatprep.mubr.f32.mxu0 0.0
          %1828 = vmatmul.mubr.f32.gmra.mrb[0].mxu0 %v1374
          %v1829 = vpop.f32.mrb[0].mxu0
          %v1830 = vadd.f32 0.0, %v1829
          %v1831 = vpop.f32.mrb[0].mxu0
          %1832 = vmatprep.mubr.f32.mxu0 0.0
          %1833 = vmatmul.mubr.f32.gmra.mrb[0].mxu0 %v1375
          %v1834 = vpop.f32.mrb[0].mxu0
          %v1835 = vadd.f32 0.0, %v1834
          %v1836 = vpop.f32.mrb[0].mxu0
          %1837 = vmatprep.mubr.f32.mxu0 0.0
          %1838 = vmatmul.mubr.f32.gmra.mrb[0].mxu0 %v1376
          %v1839 = vpop.f32.mrb[0].mxu0
          %v1840 = vadd.f32 0.0, %v1839
          %v1841 = vpop.f32.mrb[0].mxu0
          %1842 = vmatprep.mubr.f32.mxu0 0.0
          %1843 = vmatmul.mubr.f32.gmra.mrb[0].mxu0 %v1377
          %v1844 = vpop.f32.mrb[0].mxu0
          %v1845 = vadd.f32 0.0, %v1844
          %v1846 = vpop.f32.mrb[0].mxu0
          %1847 = vmatprep.mubr.f32.mxu0 0.0
          %1848 = vmatmul.mubr.f32.gmra.mrb[0].mxu0 %v1378
          %v1849 = vpop.f32.mrb[0].mxu0
          %v1850 = vadd.f32 0.0, %v1849
          %v1851 = vpop.f32.mrb[0].mxu0
          %1852 = vmatprep.mubr.f32.mxu0 0.0
          %1853 = vmatmul.mubr.f32.gmra.mrb[0].mxu0 %v1379
          %v1854 = vpop.f32.mrb[0].mxu0
          %v1855 = vadd.f32 0.0, %v1854
          %v1856 = vpop.f32.mrb[0].mxu0
          %1857 = vmatprep.mubr.f32.mxu0 0.0
          %1858 = vmatmul.mubr.f32.gmra.mrb[0].mxu0 %v1380
          %v1859 = vpop.f32.mrb[0].mxu0
          %v1860 = vadd.f32 0.0, %v1859
          %v1861 = vpop.f32.mrb[0].mxu0
          %1862 = vmatprep.mubr.f32.mxu0 0.0
          %1863 = vmatmul.mubr.f32.gmra.mrb[0].mxu0 %v1381
          %v1864 = vpop.f32.mrb[0].mxu0
          %v1865 = vadd.f32 0.0, %v1864
          %v1866 = vpop.f32.mrb[0].mxu0
          %1867 = vmatprep.mubr.f32.mxu0 0.0
          %1868 = vmatmul.mubr.f32.gmra.mrb[0].mxu0 %v1382
          %v1869 = vpop.f32.mrb[0].mxu0
          %v1870 = vadd.f32 0.0, %v1869
          %v1871 = vpop.f32.mrb[0].mxu0
          %1872 = vmatprep.mubr.f32.mxu0 0.0
          %1873 = vmatmul.mubr.f32.gmra.mrb[0].mxu0 %v1383
          %v1874 = vpop.f32.mrb[0].mxu0
          %v1875 = vadd.f32 0.0, %v1874
          %v1876 = vpop.f32.mrb[0].mxu0
          %1877 = vmatprep.mubr.f32.mxu0 0.0
          %1878 = vmatmul.mubr.f32.gmra.mrb[0].mxu0 %v1384
          %v1879 = vpop.f32.mrb[0].mxu0
          %v1880 = vadd.f32 0.0, %v1879
          %v1881 = vpop.f32.mrb[0].mxu0
          %1882 = vmatprep.mubr.f32.mxu0 0.0
          %1883 = vmatmul.mubr.f32.gmra.mrb[0].mxu0 %v1385
          %v1884 = vpop.f32.mrb[0].mxu0
          %v1885 = vadd.f32 0.0, %v1884
          %v1886 = vpop.f32.mrb[0].mxu0
          %1887 = vmatprep.mubr.f32.mxu0 0.0
          %1888 = vmatmul.mubr.f32.gmra.mrb[0].mxu0 %v1386
          %v1889 = vpop.f32.mrb[0].mxu0
          %v1890 = vadd.f32 0.0, %v1889
          %v1891 = vpop.f32.mrb[0].mxu0
          %1892 = vmatprep.mubr.f32.mxu0 0.0
          %1893 = vmatmul.mubr.f32.gmra.mrb[0].mxu0 %v1387
          %v1894 = vpop.f32.mrb[0].mxu0
          %v1895 = vadd.f32 0.0, %v1894
          %v1896 = vpop.f32.mrb[0].mxu0
          %1897 = vmatprep.mubr.f32.mxu0 0.0
          %1898 = vmatmul.mubr.f32.gmra.mrb[0].mxu0 %v1388
          %v1899 = vpop.f32.mrb[0].mxu0
          %v1900 = vadd.f32 0.0, %v1899
          %v1901 = vpop.f32.mrb[0].mxu0
          %1902 = vmatprep.mubr.f32.mxu0 0.0
          %1903 = vmatmul.mubr.f32.gmra.mrb[0].mxu0 %v1389
          %v1904 = vpop.f32.mrb[0].mxu0
          %v1905 = vadd.f32 0.0, %v1904
          %v1906 = vpop.f32.mrb[0].mxu0
          %1907 = vmatprep.mubr.f32.mxu0 0.0
          %1908 = vmatmul.mubr.f32.gmra.mrb[0].mxu0 %v1390
          %v1909 = vpop.f32.mrb[0].mxu0
          %v1910 = vadd.f32 0.0, %v1909
          %v1911 = vpop.f32.mrb[0].mxu0
          %1912 = vdwg.mxu0
          %v1913 = vadd.f32 %v1637, %v1755
          %v1914 = vadd.f32 %v1638, %v1760
          %v1915 = vadd.f32 %v1639, %v1765
          %v1916 = vadd.f32 %v1640, %v1770
          %v1917 = vadd.f32 %v1641, %v1775
          %v1918 = vadd.f32 %v1642, %v1780
          %v1919 = vadd.f32 %v1643, %v1785
          %v1920 = vadd.f32 %v1644, %v1790
          %v1921 = vadd.f32 %v1645, %v1795
          %v1922 = vadd.f32 %v1646, %v1800
          %v1923 = vadd.f32 %v1647, %v1805
          %v1924 = vadd.f32 %v1648, %v1810
          %v1925 = vadd.f32 %v1649, %v1815
          %v1926 = vadd.f32 %v1650, %v1820
          %v1927 = vadd.f32 %v1651, %v1825
          %v1928 = vadd.f32 %v1652, %v1830
          %v1929 = vadd.f32 %v1653, %v1835
          %v1930 = vadd.f32 %v1654, %v1840
          %v1931 = vadd.f32 %v1655, %v1845
          %v1932 = vadd.f32 %v1656, %v1850
          %v1933 = vadd.f32 %v1657, %v1855
          %v1934 = vadd.f32 %v1658, %v1860
          %v1935 = vadd.f32 %v1659, %v1865
          %v1936 = vadd.f32 %v1660, %v1870
          %v1937 = vadd.f32 %v1661, %v1875
          %v1938 = vadd.f32 %v1662, %v1880
          %v1939 = vadd.f32 %v1663, %v1885
          %v1940 = vadd.f32 %v1664, %v1890
          %v1941 = vadd.f32 %v1665, %v1895
          %v1942 = vadd.f32 %v1666, %v1900
          %v1943 = vadd.f32 %v1667, %v1905
          %v1944 = vadd.f32 %v1668, %v1910
          %s1945 = sadd.s32 %s593, 7
          %s1946 = smul.u32 %s1945, 128
          %s1947 = scalar_lea.vmem [#allocation6], %s1946
          %v1948 = vld [vmem:[%s1947] sm:$0xff]
          %v1949 = vld [vmem:[%s1947 + $0x8] sm:$0xff]
          %v1950 = vld [vmem:[%s1947 + $0x10] sm:$0xff]
          %v1951 = vld [vmem:[%s1947 + $0x18] sm:$0xff]
          %v1952 = vld [vmem:[%s1947 + $0x20] sm:$0xff]
          %v1953 = vld [vmem:[%s1947 + $0x28] sm:$0xff]
          %v1954 = vld [vmem:[%s1947 + $0x30] sm:$0xff]
          %v1955 = vld [vmem:[%s1947 + $0x38] sm:$0xff]
          %v1956 = vld [vmem:[%s1947 + $0x40] sm:$0xff]
          %v1957 = vld [vmem:[%s1947 + $0x48] sm:$0xff]
          %v1958 = vld [vmem:[%s1947 + $0x50] sm:$0xff]
          %v1959 = vld [vmem:[%s1947 + $0x58] sm:$0xff]
          %v1960 = vld [vmem:[%s1947 + $0x60] sm:$0xff]
          %v1961 = vld [vmem:[%s1947 + $0x68] sm:$0xff]
          %v1962 = vld [vmem:[%s1947 + $0x70] sm:$0xff]
          %v1963 = vld [vmem:[%s1947 + $0x78] sm:$0xff]
          %1964 = vmatprep.subr.mxu0 0.0
          %1965 = vmatpush1.msra.mxu0 %v1948
          %1966 = vmatprep.subr.mxu0 0.0
          %1967 = vmatpush1.msra.mxu0 %v1949
          %1968 = vmatprep.subr.mxu0 0.0
          %1969 = vmatpush1.msra.mxu0 %v1950
          %1970 = vmatprep.subr.mxu0 0.0
          %1971 = vmatpush1.msra.mxu0 %v1951
          %1972 = vmatprep.subr.mxu0 0.0
          %1973 = vmatpush1.msra.mxu0 %v1952
          %1974 = vmatprep.subr.mxu0 0.0
          %1975 = vmatpush1.msra.mxu0 %v1953
          %1976 = vmatprep.subr.mxu0 0.0
          %1977 = vmatpush1.msra.mxu0 %v1954
          %1978 = vmatprep.subr.mxu0 0.0
          %1979 = vmatpush1.msra.mxu0 %v1955
          %1980 = vmatprep.subr.mxu0 0.0
          %1981 = vmatpush1.msra.mxu0 %v1956
          %1982 = vmatprep.subr.mxu0 0.0
          %1983 = vmatpush1.msra.mxu0 %v1957
          %1984 = vmatprep.subr.mxu0 0.0
          %1985 = vmatpush1.msra.mxu0 %v1958
          %1986 = vmatprep.subr.mxu0 0.0
          %1987 = vmatpush1.msra.mxu0 %v1959
          %1988 = vmatprep.subr.mxu0 0.0
          %1989 = vmatpush1.msra.mxu0 %v1960
          %1990 = vmatprep.subr.mxu0 0.0
          %1991 = vmatpush1.msra.mxu0 %v1961
          %1992 = vmatprep.subr.mxu0 0.0
          %1993 = vmatpush1.msra.mxu0 %v1962
          %1994 = vmatprep.subr.mxu0 0.0
          %1995 = vmatpush1.msra.mxu0 %v1963
          %1996 = vmatprep.subr.mxu0 0.0
          %1997 = vmatpush1.msra.mxu0 0.0
          %1998 = vmatprep.subr.mxu0 0.0
          %1999 = vmatpush1.msra.mxu0 0.0
          %2000 = vmatprep.subr.mxu0 0.0
          %2001 = vmatpush1.msra.mxu0 0.0
          %2002 = vmatprep.subr.mxu0 0.0
          %2003 = vmatpush1.msra.mxu0 0.0
          %2004 = vmatprep.subr.mxu0 0.0
          %2005 = vmatpush1.msra.mxu0 0.0
          %2006 = vmatprep.subr.mxu0 0.0
          %2007 = vmatpush1.msra.mxu0 0.0
          %2008 = vmatprep.subr.mxu0 0.0
          %2009 = vmatpush1.msra.mxu0 0.0
          %2010 = vmatprep.subr.mxu0 0.0
          %2011 = vmatpush1.msra.mxu0 0.0
          %2012 = vmatprep.subr.mxu0 0.0
          %2013 = vmatpush1.msra.mxu0 0.0
          %2014 = vmatprep.subr.mxu0 0.0
          %2015 = vmatpush1.msra.mxu0 0.0
          %2016 = vmatprep.subr.mxu0 0.0
          %2017 = vmatpush1.msra.mxu0 0.0
          %2018 = vmatprep.subr.mxu0 0.0
          %2019 = vmatpush1.msra.mxu0 0.0
          %2020 = vmatprep.subr.mxu0 0.0
          %2021 = vmatpush1.msra.mxu0 0.0
          %2022 = vmatprep.subr.mxu0 0.0
          %2023 = vmatpush1.msra.mxu0 0.0
          %2024 = vmatprep.subr.mxu0 0.0
          %2025 = vmatpush1.msra.mxu0 0.0
          %2026 = vmatprep.subr.mxu0 0.0
          %2027 = vmatpush1.msra.mxu0 0.0
          %2028 = vmatprep.mubr.f32.mxu0 0.0
          %2029 = vmatmul.mubr.f32.gmra.mrb[0].mxu0 %v1361
          %v2030 = vpop.f32.mrb[0].mxu0
          %v2031 = vadd.f32 0.0, %v2030
          %v2032 = vpop.f32.mrb[0].mxu0
          %2033 = vmatprep.mubr.f32.mxu0 0.0
          %2034 = vmatmul.mubr.f32.gmra.mrb[0].mxu0 %v1362
          %v2035 = vpop.f32.mrb[0].mxu0
          %v2036 = vadd.f32 0.0, %v2035
          %v2037 = vpop.f32.mrb[0].mxu0
          %2038 = vmatprep.mubr.f32.mxu0 0.0
          %2039 = vmatmul.mubr.f32.gmra.mrb[0].mxu0 %v1363
          %v2040 = vpop.f32.mrb[0].mxu0
          %v2041 = vadd.f32 0.0, %v2040
          %v2042 = vpop.f32.mrb[0].mxu0
          %2043 = vmatprep.mubr.f32.mxu0 0.0
          %2044 = vmatmul.mubr.f32.gmra.mrb[0].mxu0 %v1364
          %v2045 = vpop.f32.mrb[0].mxu0
          %v2046 = vadd.f32 0.0, %v2045
          %v2047 = vpop.f32.mrb[0].mxu0
          %2048 = vmatprep.mubr.f32.mxu0 0.0
          %2049 = vmatmul.mubr.f32.gmra.mrb[0].mxu0 %v1365
          %v2050 = vpop.f32.mrb[0].mxu0
          %v2051 = vadd.f32 0.0, %v2050
          %v2052 = vpop.f32.mrb[0].mxu0
          %2053 = vmatprep.mubr.f32.mxu0 0.0
          %2054 = vmatmul.mubr.f32.gmra.mrb[0].mxu0 %v1366
          %v2055 = vpop.f32.mrb[0].mxu0
          %v2056 = vadd.f32 0.0, %v2055
          %v2057 = vpop.f32.mrb[0].mxu0
          %2058 = vmatprep.mubr.f32.mxu0 0.0
          %2059 = vmatmul.mubr.f32.gmra.mrb[0].mxu0 %v1367
          %v2060 = vpop.f32.mrb[0].mxu0
          %v2061 = vadd.f32 0.0, %v2060
          %v2062 = vpop.f32.mrb[0].mxu0
          %2063 = vmatprep.mubr.f32.mxu0 0.0
          %2064 = vmatmul.mubr.f32.gmra.mrb[0].mxu0 %v1368
          %v2065 = vpop.f32.mrb[0].mxu0
          %v2066 = vadd.f32 0.0, %v2065
          %v2067 = vpop.f32.mrb[0].mxu0
          %2068 = vmatprep.mubr.f32.mxu0 0.0
          %2069 = vmatmul.mubr.f32.gmra.mrb[0].mxu0 %v1369
          %v2070 = vpop.f32.mrb[0].mxu0
          %v2071 = vadd.f32 0.0, %v2070
          %v2072 = vpop.f32.mrb[0].mxu0
          %2073 = vmatprep.mubr.f32.mxu0 0.0
          %2074 = vmatmul.mubr.f32.gmra.mrb[0].mxu0 %v1370
          %v2075 = vpop.f32.mrb[0].mxu0
          %v2076 = vadd.f32 0.0, %v2075
          %v2077 = vpop.f32.mrb[0].mxu0
          %2078 = vmatprep.mubr.f32.mxu0 0.0
          %2079 = vmatmul.mubr.f32.gmra.mrb[0].mxu0 %v1371
          %v2080 = vpop.f32.mrb[0].mxu0
          %v2081 = vadd.f32 0.0, %v2080
          %v2082 = vpop.f32.mrb[0].mxu0
          %2083 = vmatprep.mubr.f32.mxu0 0.0
          %2084 = vmatmul.mubr.f32.gmra.mrb[0].mxu0 %v1372
          %v2085 = vpop.f32.mrb[0].mxu0
          %v2086 = vadd.f32 0.0, %v2085
          %v2087 = vpop.f32.mrb[0].mxu0
          %2088 = vmatprep.mubr.f32.mxu0 0.0
          %2089 = vmatmul.mubr.f32.gmra.mrb[0].mxu0 %v1373
          %v2090 = vpop.f32.mrb[0].mxu0
          %v2091 = vadd.f32 0.0, %v2090
          %v2092 = vpop.f32.mrb[0].mxu0
          %2093 = vmatprep.mubr.f32.mxu0 0.0
          %2094 = vmatmul.mubr.f32.gmra.mrb[0].mxu0 %v1374
          %v2095 = vpop.f32.mrb[0].mxu0
          %v2096 = vadd.f32 0.0, %v2095
          %v2097 = vpop.f32.mrb[0].mxu0
          %2098 = vmatprep.mubr.f32.mxu0 0.0
          %2099 = vmatmul.mubr.f32.gmra.mrb[0].mxu0 %v1375
          %v2100 = vpop.f32.mrb[0].mxu0
          %v2101 = vadd.f32 0.0, %v2100
          %v2102 = vpop.f32.mrb[0].mxu0
          %2103 = vmatprep.mubr.f32.mxu0 0.0
          %2104 = vmatmul.mubr.f32.gmra.mrb[0].mxu0 %v1376
          %v2105 = vpop.f32.mrb[0].mxu0
          %v2106 = vadd.f32 0.0, %v2105
          %v2107 = vpop.f32.mrb[0].mxu0
          %2108 = vmatprep.mubr.f32.mxu0 0.0
          %2109 = vmatmul.mubr.f32.gmra.mrb[0].mxu0 %v1377
          %v2110 = vpop.f32.mrb[0].mxu0
          %v2111 = vadd.f32 0.0, %v2110
          %v2112 = vpop.f32.mrb[0].mxu0
          %2113 = vmatprep.mubr.f32.mxu0 0.0
          %2114 = vmatmul.mubr.f32.gmra.mrb[0].mxu0 %v1378
          %v2115 = vpop.f32.mrb[0].mxu0
          %v2116 = vadd.f32 0.0, %v2115
          %v2117 = vpop.f32.mrb[0].mxu0
          %2118 = vmatprep.mubr.f32.mxu0 0.0
          %2119 = vmatmul.mubr.f32.gmra.mrb[0].mxu0 %v1379
          %v2120 = vpop.f32.mrb[0].mxu0
          %v2121 = vadd.f32 0.0, %v2120
          %v2122 = vpop.f32.mrb[0].mxu0
          %2123 = vmatprep.mubr.f32.mxu0 0.0
          %2124 = vmatmul.mubr.f32.gmra.mrb[0].mxu0 %v1380
          %v2125 = vpop.f32.mrb[0].mxu0
          %v2126 = vadd.f32 0.0, %v2125
          %v2127 = vpop.f32.mrb[0].mxu0
          %2128 = vmatprep.mubr.f32.mxu0 0.0
          %2129 = vmatmul.mubr.f32.gmra.mrb[0].mxu0 %v1381
          %v2130 = vpop.f32.mrb[0].mxu0
          %v2131 = vadd.f32 0.0, %v2130
          %v2132 = vpop.f32.mrb[0].mxu0
          %2133 = vmatprep.mubr.f32.mxu0 0.0
          %2134 = vmatmul.mubr.f32.gmra.mrb[0].mxu0 %v1382
          %v2135 = vpop.f32.mrb[0].mxu0
          %v2136 = vadd.f32 0.0, %v2135
          %v2137 = vpop.f32.mrb[0].mxu0
          %2138 = vmatprep.mubr.f32.mxu0 0.0
          %2139 = vmatmul.mubr.f32.gmra.mrb[0].mxu0 %v1383
          %v2140 = vpop.f32.mrb[0].mxu0
          %v2141 = vadd.f32 0.0, %v2140
          %v2142 = vpop.f32.mrb[0].mxu0
          %2143 = vmatprep.mubr.f32.mxu0 0.0
          %2144 = vmatmul.mubr.f32.gmra.mrb[0].mxu0 %v1384
          %v2145 = vpop.f32.mrb[0].mxu0
          %v2146 = vadd.f32 0.0, %v2145
          %v2147 = vpop.f32.mrb[0].mxu0
          %2148 = vmatprep.mubr.f32.mxu0 0.0
          %2149 = vmatmul.mubr.f32.gmra.mrb[0].mxu0 %v1385
          %v2150 = vpop.f32.mrb[0].mxu0
          %v2151 = vadd.f32 0.0, %v2150
          %v2152 = vpop.f32.mrb[0].mxu0
          %2153 = vmatprep.mubr.f32.mxu0 0.0
          %2154 = vmatmul.mubr.f32.gmra.mrb[0].mxu0 %v1386
          %v2155 = vpop.f32.mrb[0].mxu0
          %v2156 = vadd.f32 0.0, %v2155
          %v2157 = vpop.f32.mrb[0].mxu0
          %2158 = vmatprep.mubr.f32.mxu0 0.0
          %2159 = vmatmul.mubr.f32.gmra.mrb[0].mxu0 %v1387
          %v2160 = vpop.f32.mrb[0].mxu0
          %v2161 = vadd.f32 0.0, %v2160
          %v2162 = vpop.f32.mrb[0].mxu0
          %2163 = vmatprep.mubr.f32.mxu0 0.0
          %2164 = vmatmul.mubr.f32.gmra.mrb[0].mxu0 %v1388
          %v2165 = vpop.f32.mrb[0].mxu0
          %v2166 = vadd.f32 0.0, %v2165
          %v2167 = vpop.f32.mrb[0].mxu0
          %2168 = vmatprep.mubr.f32.mxu0 0.0
          %2169 = vmatmul.mubr.f32.gmra.mrb[0].mxu0 %v1389
          %v2170 = vpop.f32.mrb[0].mxu0
          %v2171 = vadd.f32 0.0, %v2170
          %v2172 = vpop.f32.mrb[0].mxu0
          %2173 = vmatprep.mubr.f32.mxu0 0.0
          %2174 = vmatmul.mubr.f32.gmra.mrb[0].mxu0 %v1390
          %v2175 = vpop.f32.mrb[0].mxu0
          %v2176 = vadd.f32 0.0, %v2175
          %v2177 = vpop.f32.mrb[0].mxu0
          %2178 = vmatprep.mubr.f32.mxu0 0.0
          %2179 = vmatmul.mubr.f32.gmra.mrb[0].mxu0 %v1391
          %v2180 = vpop.f32.mrb[0].mxu0
          %v2181 = vadd.f32 0.0, %v2180
          %v2182 = vpop.f32.mrb[0].mxu0
          %2183 = vmatprep.mubr.f32.mxu0 0.0
          %2184 = vmatmul.mubr.f32.gmra.mrb[0].mxu0 %v1392
          %v2185 = vpop.f32.mrb[0].mxu0
          %v2186 = vadd.f32 0.0, %v2185
          %v2187 = vpop.f32.mrb[0].mxu0
          %2188 = vdwg.mxu0
          %v2189 = vadd.f32 %v1913, %v2031
          %v2190 = vadd.f32 %v1914, %v2036
          %v2191 = vadd.f32 %v1915, %v2041
          %v2192 = vadd.f32 %v1916, %v2046
          %v2193 = vadd.f32 %v1917, %v2051
          %v2194 = vadd.f32 %v1918, %v2056
          %v2195 = vadd.f32 %v1919, %v2061
          %v2196 = vadd.f32 %v1920, %v2066
          %v2197 = vadd.f32 %v1921, %v2071
          %v2198 = vadd.f32 %v1922, %v2076
          %v2199 = vadd.f32 %v1923, %v2081
          %v2200 = vadd.f32 %v1924, %v2086
          %v2201 = vadd.f32 %v1925, %v2091
          %v2202 = vadd.f32 %v1926, %v2096
          %v2203 = vadd.f32 %v1927, %v2101
          %v2204 = vadd.f32 %v1928, %v2106
          %v2205 = vadd.f32 %v1929, %v2111
          %v2206 = vadd.f32 %v1930, %v2116
          %v2207 = vadd.f32 %v1931, %v2121
          %v2208 = vadd.f32 %v1932, %v2126
          %v2209 = vadd.f32 %v1933, %v2131
          %v2210 = vadd.f32 %v1934, %v2136
          %v2211 = vadd.f32 %v1935, %v2141
          %v2212 = vadd.f32 %v1936, %v2146
          %v2213 = vadd.f32 %v1937, %v2151
          %v2214 = vadd.f32 %v1938, %v2156
          %v2215 = vadd.f32 %v1939, %v2161
          %v2216 = vadd.f32 %v1940, %v2166
          %v2217 = vadd.f32 %v1941, %v2171
          %v2218 = vadd.f32 %v1942, %v2176
          %v2219 = vadd.f32 %v1943, %v2181
          %v2220 = vadd.f32 %v1944, %v2186
          %v2221 = vld [vmem:[#allocation2 + $0x2] sm:$0xff]
          %v2222 = vld [vmem:[#allocation2 + $0xa] sm:$0xff]
          %v2223 = vld [vmem:[#allocation2 + $0x1a] sm:$0xff]
          %v2224 = vld [vmem:[#allocation2 + $0x22] sm:$0xff]
          %v2225 = vld [vmem:[#allocation2 + $0x32] sm:$0xff]
          %v2226 = vld [vmem:[#allocation2 + $0x3a] sm:$0xff]
          %v2227 = vld [vmem:[#allocation2 + $0x4a] sm:$0xff]
          %v2228 = vld [vmem:[#allocation2 + $0x52] sm:$0xff]
          %v2229 = vld [vmem:[#allocation2 + $0x62] sm:$0xff]
          %v2230 = vld [vmem:[#allocation2 + $0x6a] sm:$0xff]
          %v2231 = vld [vmem:[#allocation2 + $0x7a] sm:$0xff]
          %v2232 = vld [vmem:[#allocation2 + $0x82] sm:$0xff]
          %v2233 = vld [vmem:[#allocation2 + $0x92] sm:$0xff]
          %v2234 = vld [vmem:[#allocation2 + $0x9a] sm:$0xff]
          %v2235 = vld [vmem:[#allocation2 + $0xaa] sm:$0xff]
          %v2236 = vld [vmem:[#allocation2 + $0xb2] sm:$0xff]
          %v2237 = vld [vmem:[#allocation2 + $0xc2] sm:$0xff]
          %v2238 = vld [vmem:[#allocation2 + $0xca] sm:$0xff]
          %v2239 = vld [vmem:[#allocation2 + $0xda] sm:$0xff]
          %v2240 = vld [vmem:[#allocation2 + $0xe2] sm:$0xff]
          %v2241 = vld [vmem:[#allocation2 + $0xf2] sm:$0xff]
          %v2242 = vld [vmem:[#allocation2 + $0xfa] sm:$0xff]
          %v2243 = vld [vmem:[#allocation2 + $0x10a] sm:$0xff]
          %v2244 = vld [vmem:[#allocation2 + $0x112] sm:$0xff]
          %v2245 = vld [vmem:[#allocation2 + $0x122] sm:$0xff]
          %v2246 = vld [vmem:[#allocation2 + $0x12a] sm:$0xff]
          %v2247 = vld [vmem:[#allocation2 + $0x13a] sm:$0xff]
          %v2248 = vld [vmem:[#allocation2 + $0x142] sm:$0xff]
          %v2249 = vld [vmem:[#allocation2 + $0x152] sm:$0xff]
          %v2250 = vld [vmem:[#allocation2 + $0x15a] sm:$0xff]
          %v2251 = vld [vmem:[#allocation2 + $0x16a] sm:$0xff]
          %v2252 = vld [vmem:[#allocation2 + $0x172] sm:$0xff]
          %v2253 = vld [vmem:[#allocation2 + $0x182] sm:$0xff]
          %v2254 = vld [vmem:[#allocation2 + $0x18a] sm:$0xff]
          %v2255 = vld [vmem:[#allocation2 + $0x19a] sm:$0xff]
          %v2256 = vld [vmem:[#allocation2 + $0x1a2] sm:$0xff]
          %s2257 = sadd.s32 %s593, 2
          %s2258 = smul.u32 %s2257, 128
          %s2259 = scalar_lea.vmem [#allocation6], %s2258
          %v2260 = vld [vmem:[%s2259] sm:$0xff]
          %v2261 = vld [vmem:[%s2259 + $0x8] sm:$0xff]
          %v2262 = vld [vmem:[%s2259 + $0x10] sm:$0xff]
          %v2263 = vld [vmem:[%s2259 + $0x18] sm:$0xff]
          %v2264 = vld [vmem:[%s2259 + $0x20] sm:$0xff]
          %v2265 = vld [vmem:[%s2259 + $0x28] sm:$0xff]
          %v2266 = vld [vmem:[%s2259 + $0x30] sm:$0xff]
          %v2267 = vld [vmem:[%s2259 + $0x38] sm:$0xff]
          %v2268 = vld [vmem:[%s2259 + $0x40] sm:$0xff]
          %v2269 = vld [vmem:[%s2259 + $0x48] sm:$0xff]
          %v2270 = vld [vmem:[%s2259 + $0x50] sm:$0xff]
          %v2271 = vld [vmem:[%s2259 + $0x58] sm:$0xff]
          %v2272 = vld [vmem:[%s2259 + $0x60] sm:$0xff]
          %v2273 = vld [vmem:[%s2259 + $0x68] sm:$0xff]
          %v2274 = vld [vmem:[%s2259 + $0x70] sm:$0xff]
          %v2275 = vld [vmem:[%s2259 + $0x78] sm:$0xff]
          %2276 = vmatprep.subr.mxu0 0.0
          %2277 = vmatpush1.msra.mxu0 %v2260
          %2278 = vmatprep.subr.mxu0 0.0
          %2279 = vmatpush1.msra.mxu0 %v2261
          %2280 = vmatprep.subr.mxu0 0.0
          %2281 = vmatpush1.msra.mxu0 %v2262
          %2282 = vmatprep.subr.mxu0 0.0
          %2283 = vmatpush1.msra.mxu0 %v2263
          %2284 = vmatprep.subr.mxu0 0.0
          %2285 = vmatpush1.msra.mxu0 %v2264
          %2286 = vmatprep.subr.mxu0 0.0
          %2287 = vmatpush1.msra.mxu0 %v2265
          %2288 = vmatprep.subr.mxu0 0.0
          %2289 = vmatpush1.msra.mxu0 %v2266
          %2290 = vmatprep.subr.mxu0 0.0
          %2291 = vmatpush1.msra.mxu0 %v2267
          %2292 = vmatprep.subr.mxu0 0.0
          %2293 = vmatpush1.msra.mxu0 %v2268
          %2294 = vmatprep.subr.mxu0 0.0
          %2295 = vmatpush1.msra.mxu0 %v2269
          %2296 = vmatprep.subr.mxu0 0.0
          %2297 = vmatpush1.msra.mxu0 %v2270
          %2298 = vmatprep.subr.mxu0 0.0
          %2299 = vmatpush1.msra.mxu0 %v2271
          %2300 = vmatprep.subr.mxu0 0.0
          %2301 = vmatpush1.msra.mxu0 %v2272
          %2302 = vmatprep.subr.mxu0 0.0
          %2303 = vmatpush1.msra.mxu0 %v2273
          %2304 = vmatprep.subr.mxu0 0.0
          %2305 = vmatpush1.msra.mxu0 %v2274
          %2306 = vmatprep.subr.mxu0 0.0
          %2307 = vmatpush1.msra.mxu0 %v2275
          %2308 = vmatprep.subr.mxu0 0.0
          %2309 = vmatpush1.msra.mxu0 0.0
          %2310 = vmatprep.subr.mxu0 0.0
          %2311 = vmatpush1.msra.mxu0 0.0
          %2312 = vmatprep.subr.mxu0 0.0
          %2313 = vmatpush1.msra.mxu0 0.0
          %2314 = vmatprep.subr.mxu0 0.0
          %2315 = vmatpush1.msra.mxu0 0.0
          %2316 = vmatprep.subr.mxu0 0.0
          %2317 = vmatpush1.msra.mxu0 0.0
          %2318 = vmatprep.subr.mxu0 0.0
          %2319 = vmatpush1.msra.mxu0 0.0
          %2320 = vmatprep.subr.mxu0 0.0
          %2321 = vmatpush1.msra.mxu0 0.0
          %2322 = vmatprep.subr.mxu0 0.0
          %2323 = vmatpush1.msra.mxu0 0.0
          %2324 = vmatprep.subr.mxu0 0.0
          %2325 = vmatpush1.msra.mxu0 0.0
          %2326 = vmatprep.subr.mxu0 0.0
          %2327 = vmatpush1.msra.mxu0 0.0
          %2328 = vmatprep.subr.mxu0 0.0
          %2329 = vmatpush1.msra.mxu0 0.0
          %2330 = vmatprep.subr.mxu0 0.0
          %2331 = vmatpush1.msra.mxu0 0.0
          %2332 = vmatprep.subr.mxu0 0.0
          %2333 = vmatpush1.msra.mxu0 0.0
          %2334 = vmatprep.subr.mxu0 0.0
          %2335 = vmatpush1.msra.mxu0 0.0
          %2336 = vmatprep.subr.mxu0 0.0
          %2337 = vmatpush1.msra.mxu0 0.0
          %2338 = vmatprep.subr.mxu0 0.0
          %2339 = vmatpush1.msra.mxu0 0.0
          %2340 = vmatprep.mubr.f32.mxu0 0.0
          %2341 = vmatmul.mubr.f32.gmra.mrb[0].mxu0 %v2221
          %v2342 = vpop.f32.mrb[0].mxu0
          %v2343 = vadd.f32 0.0, %v2342
          %v2344 = vpop.f32.mrb[0].mxu0
          %2345 = vmatprep.mubr.f32.mxu0 0.0
          %2346 = vmatmul.mubr.f32.gmra.mrb[0].mxu0 %v2222
          %v2347 = vpop.f32.mrb[0].mxu0
          %v2348 = vadd.f32 0.0, %v2347
          %v2349 = vpop.f32.mrb[0].mxu0
          %2350 = vmatprep.mubr.f32.mxu0 0.0
          %2351 = vmatmul.mubr.f32.gmra.mrb[0].mxu0 %v2223
          %v2352 = vpop.f32.mrb[0].mxu0
          %v2353 = vadd.f32 0.0, %v2352
          %v2354 = vpop.f32.mrb[0].mxu0
          %2355 = vmatprep.mubr.f32.mxu0 0.0
          %2356 = vmatmul.mubr.f32.gmra.mrb[0].mxu0 %v2224
          %v2357 = vpop.f32.mrb[0].mxu0
          %v2358 = vadd.f32 0.0, %v2357
          %v2359 = vpop.f32.mrb[0].mxu0
          %2360 = vmatprep.mubr.f32.mxu0 0.0
          %2361 = vmatmul.mubr.f32.gmra.mrb[0].mxu0 %v2225
          %v2362 = vpop.f32.mrb[0].mxu0
          %v2363 = vadd.f32 0.0, %v2362
          %v2364 = vpop.f32.mrb[0].mxu0
          %2365 = vmatprep.mubr.f32.mxu0 0.0
          %2366 = vmatmul.mubr.f32.gmra.mrb[0].mxu0 %v2226
          %v2367 = vpop.f32.mrb[0].mxu0
          %v2368 = vadd.f32 0.0, %v2367
          %v2369 = vpop.f32.mrb[0].mxu0
          %2370 = vmatprep.mubr.f32.mxu0 0.0
          %2371 = vmatmul.mubr.f32.gmra.mrb[0].mxu0 %v2227
          %v2372 = vpop.f32.mrb[0].mxu0
          %v2373 = vadd.f32 0.0, %v2372
          %v2374 = vpop.f32.mrb[0].mxu0
          %2375 = vmatprep.mubr.f32.mxu0 0.0
          %2376 = vmatmul.mubr.f32.gmra.mrb[0].mxu0 %v2228
          %v2377 = vpop.f32.mrb[0].mxu0
          %v2378 = vadd.f32 0.0, %v2377
          %v2379 = vpop.f32.mrb[0].mxu0
          %2380 = vmatprep.mubr.f32.mxu0 0.0
          %2381 = vmatmul.mubr.f32.gmra.mrb[0].mxu0 %v2229
          %v2382 = vpop.f32.mrb[0].mxu0
          %v2383 = vadd.f32 0.0, %v2382
          %v2384 = vpop.f32.mrb[0].mxu0
          %2385 = vmatprep.mubr.f32.mxu0 0.0
          %2386 = vmatmul.mubr.f32.gmra.mrb[0].mxu0 %v2230
          %v2387 = vpop.f32.mrb[0].mxu0
          %v2388 = vadd.f32 0.0, %v2387
          %v2389 = vpop.f32.mrb[0].mxu0
          %2390 = vmatprep.mubr.f32.mxu0 0.0
          %2391 = vmatmul.mubr.f32.gmra.mrb[0].mxu0 %v2231
          %v2392 = vpop.f32.mrb[0].mxu0
          %v2393 = vadd.f32 0.0, %v2392
          %v2394 = vpop.f32.mrb[0].mxu0
          %2395 = vmatprep.mubr.f32.mxu0 0.0
          %2396 = vmatmul.mubr.f32.gmra.mrb[0].mxu0 %v2232
          %v2397 = vpop.f32.mrb[0].mxu0
          %v2398 = vadd.f32 0.0, %v2397
          %v2399 = vpop.f32.mrb[0].mxu0
          %2400 = vmatprep.mubr.f32.mxu0 0.0
          %2401 = vmatmul.mubr.f32.gmra.mrb[0].mxu0 %v2233
          %v2402 = vpop.f32.mrb[0].mxu0
          %v2403 = vadd.f32 0.0, %v2402
          %v2404 = vpop.f32.mrb[0].mxu0
          %2405 = vmatprep.mubr.f32.mxu0 0.0
          %2406 = vmatmul.mubr.f32.gmra.mrb[0].mxu0 %v2234
          %v2407 = vpop.f32.mrb[0].mxu0
          %v2408 = vadd.f32 0.0, %v2407
          %v2409 = vpop.f32.mrb[0].mxu0
          %2410 = vmatprep.mubr.f32.mxu0 0.0
          %2411 = vmatmul.mubr.f32.gmra.mrb[0].mxu0 %v2235
          %v2412 = vpop.f32.mrb[0].mxu0
          %v2413 = vadd.f32 0.0, %v2412
          %v2414 = vpop.f32.mrb[0].mxu0
          %2415 = vmatprep.mubr.f32.mxu0 0.0
          %2416 = vmatmul.mubr.f32.gmra.mrb[0].mxu0 %v2236
          %v2417 = vpop.f32.mrb[0].mxu0
          %v2418 = vadd.f32 0.0, %v2417
          %v2419 = vpop.f32.mrb[0].mxu0
          %2420 = vmatprep.mubr.f32.mxu0 0.0
          %2421 = vmatmul.mubr.f32.gmra.mrb[0].mxu0 %v2237
          %v2422 = vpop.f32.mrb[0].mxu0
          %v2423 = vadd.f32 0.0, %v2422
          %v2424 = vpop.f32.mrb[0].mxu0
          %2425 = vmatprep.mubr.f32.mxu0 0.0
          %2426 = vmatmul.mubr.f32.gmra.mrb[0].mxu0 %v2238
          %v2427 = vpop.f32.mrb[0].mxu0
          %v2428 = vadd.f32 0.0, %v2427
          %v2429 = vpop.f32.mrb[0].mxu0
          %2430 = vmatprep.mubr.f32.mxu0 0.0
          %2431 = vmatmul.mubr.f32.gmra.mrb[0].mxu0 %v2239
          %v2432 = vpop.f32.mrb[0].mxu0
          %v2433 = vadd.f32 0.0, %v2432
          %v2434 = vpop.f32.mrb[0].mxu0
          %2435 = vmatprep.mubr.f32.mxu0 0.0
          %2436 = vmatmul.mubr.f32.gmra.mrb[0].mxu0 %v2240
          %v2437 = vpop.f32.mrb[0].mxu0
          %v2438 = vadd.f32 0.0, %v2437
          %v2439 = vpop.f32.mrb[0].mxu0
          %2440 = vmatprep.mubr.f32.mxu0 0.0
          %2441 = vmatmul.mubr.f32.gmra.mrb[0].mxu0 %v2241
          %v2442 = vpop.f32.mrb[0].mxu0
          %v2443 = vadd.f32 0.0, %v2442
          %v2444 = vpop.f32.mrb[0].mxu0
          %2445 = vmatprep.mubr.f32.mxu0 0.0
          %2446 = vmatmul.mubr.f32.gmra.mrb[0].mxu0 %v2242
          %v2447 = vpop.f32.mrb[0].mxu0
          %v2448 = vadd.f32 0.0, %v2447
          %v2449 = vpop.f32.mrb[0].mxu0
          %2450 = vmatprep.mubr.f32.mxu0 0.0
          %2451 = vmatmul.mubr.f32.gmra.mrb[0].mxu0 %v2243
          %v2452 = vpop.f32.mrb[0].mxu0
          %v2453 = vadd.f32 0.0, %v2452
          %v2454 = vpop.f32.mrb[0].mxu0
          %2455 = vmatprep.mubr.f32.mxu0 0.0
          %2456 = vmatmul.mubr.f32.gmra.mrb[0].mxu0 %v2244
          %v2457 = vpop.f32.mrb[0].mxu0
          %v2458 = vadd.f32 0.0, %v2457
          %v2459 = vpop.f32.mrb[0].mxu0
          %2460 = vmatprep.mubr.f32.mxu0 0.0
          %2461 = vmatmul.mubr.f32.gmra.mrb[0].mxu0 %v2245
          %v2462 = vpop.f32.mrb[0].mxu0
          %v2463 = vadd.f32 0.0, %v2462
          %v2464 = vpop.f32.mrb[0].mxu0
          %2465 = vmatprep.mubr.f32.mxu0 0.0
          %2466 = vmatmul.mubr.f32.gmra.mrb[0].mxu0 %v2246
          %v2467 = vpop.f32.mrb[0].mxu0
          %v2468 = vadd.f32 0.0, %v2467
          %v2469 = vpop.f32.mrb[0].mxu0
          %2470 = vmatprep.mubr.f32.mxu0 0.0
          %2471 = vmatmul.mubr.f32.gmra.mrb[0].mxu0 %v2247
          %v2472 = vpop.f32.mrb[0].mxu0
          %v2473 = vadd.f32 0.0, %v2472
          %v2474 = vpop.f32.mrb[0].mxu0
          %2475 = vmatprep.mubr.f32.mxu0 0.0
          %2476 = vmatmul.mubr.f32.gmra.mrb[0].mxu0 %v2248
          %v2477 = vpop.f32.mrb[0].mxu0
          %v2478 = vadd.f32 0.0, %v2477
          %v2479 = vpop.f32.mrb[0].mxu0
          %2480 = vmatprep.mubr.f32.mxu0 0.0
          %2481 = vmatmul.mubr.f32.gmra.mrb[0].mxu0 %v2249
          %v2482 = vpop.f32.mrb[0].mxu0
          %v2483 = vadd.f32 0.0, %v2482
          %v2484 = vpop.f32.mrb[0].mxu0
          %2485 = vmatprep.mubr.f32.mxu0 0.0
          %2486 = vmatmul.mubr.f32.gmra.mrb[0].mxu0 %v2250
          %v2487 = vpop.f32.mrb[0].mxu0
          %v2488 = vadd.f32 0.0, %v2487
          %v2489 = vpop.f32.mrb[0].mxu0
          %2490 = vmatprep.mubr.f32.mxu0 0.0
          %2491 = vmatmul.mubr.f32.gmra.mrb[0].mxu0 %v2251
          %v2492 = vpop.f32.mrb[0].mxu0
          %v2493 = vadd.f32 0.0, %v2492
          %v2494 = vpop.f32.mrb[0].mxu0
          %2495 = vmatprep.mubr.f32.mxu0 0.0
          %2496 = vmatmul.mubr.f32.gmra.mrb[0].mxu0 %v2252
          %v2497 = vpop.f32.mrb[0].mxu0
          %v2498 = vadd.f32 0.0, %v2497
          %v2499 = vpop.f32.mrb[0].mxu0
          %2500 = vdwg.mxu0
          %v2501 = vadd.f32 %v2189, %v2343
          %v2502 = vadd.f32 %v2190, %v2348
          %v2503 = vadd.f32 %v2191, %v2353
          %v2504 = vadd.f32 %v2192, %v2358
          %v2505 = vadd.f32 %v2193, %v2363
          %v2506 = vadd.f32 %v2194, %v2368
          %v2507 = vadd.f32 %v2195, %v2373
          %v2508 = vadd.f32 %v2196, %v2378
          %v2509 = vadd.f32 %v2197, %v2383
          %v2510 = vadd.f32 %v2198, %v2388
          %v2511 = vadd.f32 %v2199, %v2393
          %v2512 = vadd.f32 %v2200, %v2398
          %v2513 = vadd.f32 %v2201, %v2403
          %v2514 = vadd.f32 %v2202, %v2408
          %v2515 = vadd.f32 %v2203, %v2413
          %v2516 = vadd.f32 %v2204, %v2418
          %v2517 = vadd.f32 %v2205, %v2423
          %v2518 = vadd.f32 %v2206, %v2428
          %v2519 = vadd.f32 %v2207, %v2433
          %v2520 = vadd.f32 %v2208, %v2438
          %v2521 = vadd.f32 %v2209, %v2443
          %v2522 = vadd.f32 %v2210, %v2448
          %v2523 = vadd.f32 %v2211, %v2453
          %v2524 = vadd.f32 %v2212, %v2458
          %v2525 = vadd.f32 %v2213, %v2463
          %v2526 = vadd.f32 %v2214, %v2468
          %v2527 = vadd.f32 %v2215, %v2473
          %v2528 = vadd.f32 %v2216, %v2478
          %v2529 = vadd.f32 %v2217, %v2483
          %v2530 = vadd.f32 %v2218, %v2488
          %v2531 = vadd.f32 %v2219, %v2493
          %v2532 = vadd.f32 %v2220, %v2498
          %s2533 = sadd.s32 %s593, 5
          %s2534 = smul.u32 %s2533, 128
          %s2535 = scalar_lea.vmem [#allocation6], %s2534
          %v2536 = vld [vmem:[%s2535] sm:$0xff]
          %v2537 = vld [vmem:[%s2535 + $0x8] sm:$0xff]
          %v2538 = vld [vmem:[%s2535 + $0x10] sm:$0xff]
          %v2539 = vld [vmem:[%s2535 + $0x18] sm:$0xff]
          %v2540 = vld [vmem:[%s2535 + $0x20] sm:$0xff]
          %v2541 = vld [vmem:[%s2535 + $0x28] sm:$0xff]
          %v2542 = vld [vmem:[%s2535 + $0x30] sm:$0xff]
          %v2543 = vld [vmem:[%s2535 + $0x38] sm:$0xff]
          %v2544 = vld [vmem:[%s2535 + $0x40] sm:$0xff]
          %v2545 = vld [vmem:[%s2535 + $0x48] sm:$0xff]
          %v2546 = vld [vmem:[%s2535 + $0x50] sm:$0xff]
          %v2547 = vld [vmem:[%s2535 + $0x58] sm:$0xff]
          %v2548 = vld [vmem:[%s2535 + $0x60] sm:$0xff]
          %v2549 = vld [vmem:[%s2535 + $0x68] sm:$0xff]
          %v2550 = vld [vmem:[%s2535 + $0x70] sm:$0xff]
          %v2551 = vld [vmem:[%s2535 + $0x78] sm:$0xff]
          %2552 = vmatprep.subr.mxu0 0.0
          %2553 = vmatpush1.msra.mxu0 %v2536
          %2554 = vmatprep.subr.mxu0 0.0
          %2555 = vmatpush1.msra.mxu0 %v2537
          %2556 = vmatprep.subr.mxu0 0.0
          %2557 = vmatpush1.msra.mxu0 %v2538
          %2558 = vmatprep.subr.mxu0 0.0
          %2559 = vmatpush1.msra.mxu0 %v2539
          %2560 = vmatprep.subr.mxu0 0.0
          %2561 = vmatpush1.msra.mxu0 %v2540
          %2562 = vmatprep.subr.mxu0 0.0
          %2563 = vmatpush1.msra.mxu0 %v2541
          %2564 = vmatprep.subr.mxu0 0.0
          %2565 = vmatpush1.msra.mxu0 %v2542
          %2566 = vmatprep.subr.mxu0 0.0
          %2567 = vmatpush1.msra.mxu0 %v2543
          %2568 = vmatprep.subr.mxu0 0.0
          %2569 = vmatpush1.msra.mxu0 %v2544
          %2570 = vmatprep.subr.mxu0 0.0
          %2571 = vmatpush1.msra.mxu0 %v2545
          %2572 = vmatprep.subr.mxu0 0.0
          %2573 = vmatpush1.msra.mxu0 %v2546
          %2574 = vmatprep.subr.mxu0 0.0
          %2575 = vmatpush1.msra.mxu0 %v2547
          %2576 = vmatprep.subr.mxu0 0.0
          %2577 = vmatpush1.msra.mxu0 %v2548
          %2578 = vmatprep.subr.mxu0 0.0
          %2579 = vmatpush1.msra.mxu0 %v2549
          %2580 = vmatprep.subr.mxu0 0.0
          %2581 = vmatpush1.msra.mxu0 %v2550
          %2582 = vmatprep.subr.mxu0 0.0
          %2583 = vmatpush1.msra.mxu0 %v2551
          %2584 = vmatprep.subr.mxu0 0.0
          %2585 = vmatpush1.msra.mxu0 0.0
          %2586 = vmatprep.subr.mxu0 0.0
          %2587 = vmatpush1.msra.mxu0 0.0
          %2588 = vmatprep.subr.mxu0 0.0
          %2589 = vmatpush1.msra.mxu0 0.0
          %2590 = vmatprep.subr.mxu0 0.0
          %2591 = vmatpush1.msra.mxu0 0.0
          %2592 = vmatprep.subr.mxu0 0.0
          %2593 = vmatpush1.msra.mxu0 0.0
          %2594 = vmatprep.subr.mxu0 0.0
          %2595 = vmatpush1.msra.mxu0 0.0
          %2596 = vmatprep.subr.mxu0 0.0
          %2597 = vmatpush1.msra.mxu0 0.0
          %2598 = vmatprep.subr.mxu0 0.0
          %2599 = vmatpush1.msra.mxu0 0.0
          %2600 = vmatprep.subr.mxu0 0.0
          %2601 = vmatpush1.msra.mxu0 0.0
          %2602 = vmatprep.subr.mxu0 0.0
          %2603 = vmatpush1.msra.mxu0 0.0
          %2604 = vmatprep.subr.mxu0 0.0
          %2605 = vmatpush1.msra.mxu0 0.0
          %2606 = vmatprep.subr.mxu0 0.0
          %2607 = vmatpush1.msra.mxu0 0.0
          %2608 = vmatprep.subr.mxu0 0.0
          %2609 = vmatpush1.msra.mxu0 0.0
          %2610 = vmatprep.subr.mxu0 0.0
          %2611 = vmatpush1.msra.mxu0 0.0
          %2612 = vmatprep.subr.mxu0 0.0
          %2613 = vmatpush1.msra.mxu0 0.0
          %2614 = vmatprep.subr.mxu0 0.0
          %2615 = vmatpush1.msra.mxu0 0.0
          %2616 = vmatprep.mubr.f32.mxu0 0.0
          %2617 = vmatmul.mubr.f32.gmra.mrb[0].mxu0 %v2223
          %v2618 = vpop.f32.mrb[0].mxu0
          %v2619 = vadd.f32 0.0, %v2618
          %v2620 = vpop.f32.mrb[0].mxu0
          %2621 = vmatprep.mubr.f32.mxu0 0.0
          %2622 = vmatmul.mubr.f32.gmra.mrb[0].mxu0 %v2224
          %v2623 = vpop.f32.mrb[0].mxu0
          %v2624 = vadd.f32 0.0, %v2623
          %v2625 = vpop.f32.mrb[0].mxu0
          %2626 = vmatprep.mubr.f32.mxu0 0.0
          %2627 = vmatmul.mubr.f32.gmra.mrb[0].mxu0 %v2225
          %v2628 = vpop.f32.mrb[0].mxu0
          %v2629 = vadd.f32 0.0, %v2628
          %v2630 = vpop.f32.mrb[0].mxu0
          %2631 = vmatprep.mubr.f32.mxu0 0.0
          %2632 = vmatmul.mubr.f32.gmra.mrb[0].mxu0 %v2226
          %v2633 = vpop.f32.mrb[0].mxu0
          %v2634 = vadd.f32 0.0, %v2633
          %v2635 = vpop.f32.mrb[0].mxu0
          %2636 = vmatprep.mubr.f32.mxu0 0.0
          %2637 = vmatmul.mubr.f32.gmra.mrb[0].mxu0 %v2227
          %v2638 = vpop.f32.mrb[0].mxu0
          %v2639 = vadd.f32 0.0, %v2638
          %v2640 = vpop.f32.mrb[0].mxu0
          %2641 = vmatprep.mubr.f32.mxu0 0.0
          %2642 = vmatmul.mubr.f32.gmra.mrb[0].mxu0 %v2228
          %v2643 = vpop.f32.mrb[0].mxu0
          %v2644 = vadd.f32 0.0, %v2643
          %v2645 = vpop.f32.mrb[0].mxu0
          %2646 = vmatprep.mubr.f32.mxu0 0.0
          %2647 = vmatmul.mubr.f32.gmra.mrb[0].mxu0 %v2229
          %v2648 = vpop.f32.mrb[0].mxu0
          %v2649 = vadd.f32 0.0, %v2648
          %v2650 = vpop.f32.mrb[0].mxu0
          %2651 = vmatprep.mubr.f32.mxu0 0.0
          %2652 = vmatmul.mubr.f32.gmra.mrb[0].mxu0 %v2230
          %v2653 = vpop.f32.mrb[0].mxu0
          %v2654 = vadd.f32 0.0, %v2653
          %v2655 = vpop.f32.mrb[0].mxu0
          %2656 = vmatprep.mubr.f32.mxu0 0.0
          %2657 = vmatmul.mubr.f32.gmra.mrb[0].mxu0 %v2231
          %v2658 = vpop.f32.mrb[0].mxu0
          %v2659 = vadd.f32 0.0, %v2658
          %v2660 = vpop.f32.mrb[0].mxu0
          %2661 = vmatprep.mubr.f32.mxu0 0.0
          %2662 = vmatmul.mubr.f32.gmra.mrb[0].mxu0 %v2232
          %v2663 = vpop.f32.mrb[0].mxu0
          %v2664 = vadd.f32 0.0, %v2663
          %v2665 = vpop.f32.mrb[0].mxu0
          %2666 = vmatprep.mubr.f32.mxu0 0.0
          %2667 = vmatmul.mubr.f32.gmra.mrb[0].mxu0 %v2233
          %v2668 = vpop.f32.mrb[0].mxu0
          %v2669 = vadd.f32 0.0, %v2668
          %v2670 = vpop.f32.mrb[0].mxu0
          %2671 = vmatprep.mubr.f32.mxu0 0.0
          %2672 = vmatmul.mubr.f32.gmra.mrb[0].mxu0 %v2234
          %v2673 = vpop.f32.mrb[0].mxu0
          %v2674 = vadd.f32 0.0, %v2673
          %v2675 = vpop.f32.mrb[0].mxu0
          %2676 = vmatprep.mubr.f32.mxu0 0.0
          %2677 = vmatmul.mubr.f32.gmra.mrb[0].mxu0 %v2235
          %v2678 = vpop.f32.mrb[0].mxu0
          %v2679 = vadd.f32 0.0, %v2678
          %v2680 = vpop.f32.mrb[0].mxu0
          %2681 = vmatprep.mubr.f32.mxu0 0.0
          %2682 = vmatmul.mubr.f32.gmra.mrb[0].mxu0 %v2236
          %v2683 = vpop.f32.mrb[0].mxu0
          %v2684 = vadd.f32 0.0, %v2683
          %v2685 = vpop.f32.mrb[0].mxu0
          %2686 = vmatprep.mubr.f32.mxu0 0.0
          %2687 = vmatmul.mubr.f32.gmra.mrb[0].mxu0 %v2237
          %v2688 = vpop.f32.mrb[0].mxu0
          %v2689 = vadd.f32 0.0, %v2688
          %v2690 = vpop.f32.mrb[0].mxu0
          %2691 = vmatprep.mubr.f32.mxu0 0.0
          %2692 = vmatmul.mubr.f32.gmra.mrb[0].mxu0 %v2238
          %v2693 = vpop.f32.mrb[0].mxu0
          %v2694 = vadd.f32 0.0, %v2693
          %v2695 = vpop.f32.mrb[0].mxu0
          %2696 = vmatprep.mubr.f32.mxu0 0.0
          %2697 = vmatmul.mubr.f32.gmra.mrb[0].mxu0 %v2239
          %v2698 = vpop.f32.mrb[0].mxu0
          %v2699 = vadd.f32 0.0, %v2698
          %v2700 = vpop.f32.mrb[0].mxu0
          %2701 = vmatprep.mubr.f32.mxu0 0.0
          %2702 = vmatmul.mubr.f32.gmra.mrb[0].mxu0 %v2240
          %v2703 = vpop.f32.mrb[0].mxu0
          %v2704 = vadd.f32 0.0, %v2703
          %v2705 = vpop.f32.mrb[0].mxu0
          %2706 = vmatprep.mubr.f32.mxu0 0.0
          %2707 = vmatmul.mubr.f32.gmra.mrb[0].mxu0 %v2241
          %v2708 = vpop.f32.mrb[0].mxu0
          %v2709 = vadd.f32 0.0, %v2708
          %v2710 = vpop.f32.mrb[0].mxu0
          %2711 = vmatprep.mubr.f32.mxu0 0.0
          %2712 = vmatmul.mubr.f32.gmra.mrb[0].mxu0 %v2242
          %v2713 = vpop.f32.mrb[0].mxu0
          %v2714 = vadd.f32 0.0, %v2713
          %v2715 = vpop.f32.mrb[0].mxu0
          %2716 = vmatprep.mubr.f32.mxu0 0.0
          %2717 = vmatmul.mubr.f32.gmra.mrb[0].mxu0 %v2243
          %v2718 = vpop.f32.mrb[0].mxu0
          %v2719 = vadd.f32 0.0, %v2718
          %v2720 = vpop.f32.mrb[0].mxu0
          %2721 = vmatprep.mubr.f32.mxu0 0.0
          %2722 = vmatmul.mubr.f32.gmra.mrb[0].mxu0 %v2244
          %v2723 = vpop.f32.mrb[0].mxu0
          %v2724 = vadd.f32 0.0, %v2723
          %v2725 = vpop.f32.mrb[0].mxu0
          %2726 = vmatprep.mubr.f32.mxu0 0.0
          %2727 = vmatmul.mubr.f32.gmra.mrb[0].mxu0 %v2245
          %v2728 = vpop.f32.mrb[0].mxu0
          %v2729 = vadd.f32 0.0, %v2728
          %v2730 = vpop.f32.mrb[0].mxu0
          %2731 = vmatprep.mubr.f32.mxu0 0.0
          %2732 = vmatmul.mubr.f32.gmra.mrb[0].mxu0 %v2246
          %v2733 = vpop.f32.mrb[0].mxu0
          %v2734 = vadd.f32 0.0, %v2733
          %v2735 = vpop.f32.mrb[0].mxu0
          %2736 = vmatprep.mubr.f32.mxu0 0.0
          %2737 = vmatmul.mubr.f32.gmra.mrb[0].mxu0 %v2247
          %v2738 = vpop.f32.mrb[0].mxu0
          %v2739 = vadd.f32 0.0, %v2738
          %v2740 = vpop.f32.mrb[0].mxu0
          %2741 = vmatprep.mubr.f32.mxu0 0.0
          %2742 = vmatmul.mubr.f32.gmra.mrb[0].mxu0 %v2248
          %v2743 = vpop.f32.mrb[0].mxu0
          %v2744 = vadd.f32 0.0, %v2743
          %v2745 = vpop.f32.mrb[0].mxu0
          %2746 = vmatprep.mubr.f32.mxu0 0.0
          %2747 = vmatmul.mubr.f32.gmra.mrb[0].mxu0 %v2249
          %v2748 = vpop.f32.mrb[0].mxu0
          %v2749 = vadd.f32 0.0, %v2748
          %v2750 = vpop.f32.mrb[0].mxu0
          %2751 = vmatprep.mubr.f32.mxu0 0.0
          %2752 = vmatmul.mubr.f32.gmra.mrb[0].mxu0 %v2250
          %v2753 = vpop.f32.mrb[0].mxu0
          %v2754 = vadd.f32 0.0, %v2753
          %v2755 = vpop.f32.mrb[0].mxu0
          %2756 = vmatprep.mubr.f32.mxu0 0.0
          %2757 = vmatmul.mubr.f32.gmra.mrb[0].mxu0 %v2251
          %v2758 = vpop.f32.mrb[0].mxu0
          %v2759 = vadd.f32 0.0, %v2758
          %v2760 = vpop.f32.mrb[0].mxu0
          %2761 = vmatprep.mubr.f32.mxu0 0.0
          %2762 = vmatmul.mubr.f32.gmra.mrb[0].mxu0 %v2252
          %v2763 = vpop.f32.mrb[0].mxu0
          %v2764 = vadd.f32 0.0, %v2763
          %v2765 = vpop.f32.mrb[0].mxu0
          %2766 = vmatprep.mubr.f32.mxu0 0.0
          %2767 = vmatmul.mubr.f32.gmra.mrb[0].mxu0 %v2253
          %v2768 = vpop.f32.mrb[0].mxu0
          %v2769 = vadd.f32 0.0, %v2768
          %v2770 = vpop.f32.mrb[0].mxu0
          %2771 = vmatprep.mubr.f32.mxu0 0.0
          %2772 = vmatmul.mubr.f32.gmra.mrb[0].mxu0 %v2254
          %v2773 = vpop.f32.mrb[0].mxu0
          %v2774 = vadd.f32 0.0, %v2773
          %v2775 = vpop.f32.mrb[0].mxu0
          %2776 = vdwg.mxu0
          %v2777 = vadd.f32 %v2501, %v2619
          %v2778 = vadd.f32 %v2502, %v2624
          %v2779 = vadd.f32 %v2503, %v2629
          %v2780 = vadd.f32 %v2504, %v2634
          %v2781 = vadd.f32 %v2505, %v2639
          %v2782 = vadd.f32 %v2506, %v2644
          %v2783 = vadd.f32 %v2507, %v2649
          %v2784 = vadd.f32 %v2508, %v2654
          %v2785 = vadd.f32 %v2509, %v2659
          %v2786 = vadd.f32 %v2510, %v2664
          %v2787 = vadd.f32 %v2511, %v2669
          %v2788 = vadd.f32 %v2512, %v2674
          %v2789 = vadd.f32 %v2513, %v2679
          %v2790 = vadd.f32 %v2514, %v2684
          %v2791 = vadd.f32 %v2515, %v2689
          %v2792 = vadd.f32 %v2516, %v2694
          %v2793 = vadd.f32 %v2517, %v2699
          %v2794 = vadd.f32 %v2518, %v2704
          %v2795 = vadd.f32 %v2519, %v2709
          %v2796 = vadd.f32 %v2520, %v2714
          %v2797 = vadd.f32 %v2521, %v2719
          %v2798 = vadd.f32 %v2522, %v2724
          %v2799 = vadd.f32 %v2523, %v2729
          %v2800 = vadd.f32 %v2524, %v2734
          %v2801 = vadd.f32 %v2525, %v2739
          %v2802 = vadd.f32 %v2526, %v2744
          %v2803 = vadd.f32 %v2527, %v2749
          %v2804 = vadd.f32 %v2528, %v2754
          %v2805 = vadd.f32 %v2529, %v2759
          %v2806 = vadd.f32 %v2530, %v2764
          %v2807 = vadd.f32 %v2531, %v2769
          %v2808 = vadd.f32 %v2532, %v2774
          %s2809 = sadd.s32 %s593, 8
          %s2810 = smul.u32 %s2809, 128
          %s2811 = scalar_lea.vmem [#allocation6], %s2810
          %v2812 = vld [vmem:[%s2811] sm:$0xff]
          %v2813 = vld [vmem:[%s2811 + $0x8] sm:$0xff]
          %v2814 = vld [vmem:[%s2811 + $0x10] sm:$0xff]
          %v2815 = vld [vmem:[%s2811 + $0x18] sm:$0xff]
          %v2816 = vld [vmem:[%s2811 + $0x20] sm:$0xff]
          %v2817 = vld [vmem:[%s2811 + $0x28] sm:$0xff]
          %v2818 = vld [vmem:[%s2811 + $0x30] sm:$0xff]
          %v2819 = vld [vmem:[%s2811 + $0x38] sm:$0xff]
          %v2820 = vld [vmem:[%s2811 + $0x40] sm:$0xff]
          %v2821 = vld [vmem:[%s2811 + $0x48] sm:$0xff]
          %v2822 = vld [vmem:[%s2811 + $0x50] sm:$0xff]
          %v2823 = vld [vmem:[%s2811 + $0x58] sm:$0xff]
          %v2824 = vld [vmem:[%s2811 + $0x60] sm:$0xff]
          %v2825 = vld [vmem:[%s2811 + $0x68] sm:$0xff]
          %v2826 = vld [vmem:[%s2811 + $0x70] sm:$0xff]
          %v2827 = vld [vmem:[%s2811 + $0x78] sm:$0xff]
          %2828 = vmatprep.subr.mxu0 0.0
          %2829 = vmatpush1.msra.mxu0 %v2812
          %2830 = vmatprep.subr.mxu0 0.0
          %2831 = vmatpush1.msra.mxu0 %v2813
          %2832 = vmatprep.subr.mxu0 0.0
          %2833 = vmatpush1.msra.mxu0 %v2814
          %2834 = vmatprep.subr.mxu0 0.0
          %2835 = vmatpush1.msra.mxu0 %v2815
          %2836 = vmatprep.subr.mxu0 0.0
          %2837 = vmatpush1.msra.mxu0 %v2816
          %2838 = vmatprep.subr.mxu0 0.0
          %2839 = vmatpush1.msra.mxu0 %v2817
          %2840 = vmatprep.subr.mxu0 0.0
          %2841 = vmatpush1.msra.mxu0 %v2818
          %2842 = vmatprep.subr.mxu0 0.0
          %2843 = vmatpush1.msra.mxu0 %v2819
          %2844 = vmatprep.subr.mxu0 0.0
          %2845 = vmatpush1.msra.mxu0 %v2820
          %2846 = vmatprep.subr.mxu0 0.0
          %2847 = vmatpush1.msra.mxu0 %v2821
          %2848 = vmatprep.subr.mxu0 0.0
          %2849 = vmatpush1.msra.mxu0 %v2822
          %2850 = vmatprep.subr.mxu0 0.0
          %2851 = vmatpush1.msra.mxu0 %v2823
          %2852 = vmatprep.subr.mxu0 0.0
          %2853 = vmatpush1.msra.mxu0 %v2824
          %2854 = vmatprep.subr.mxu0 0.0
          %2855 = vmatpush1.msra.mxu0 %v2825
          %2856 = vmatprep.subr.mxu0 0.0
          %2857 = vmatpush1.msra.mxu0 %v2826
          %2858 = vmatprep.subr.mxu0 0.0
          %2859 = vmatpush1.msra.mxu0 %v2827
          %2860 = vmatprep.subr.mxu0 0.0
          %2861 = vmatpush1.msra.mxu0 0.0
          %2862 = vmatprep.subr.mxu0 0.0
          %2863 = vmatpush1.msra.mxu0 0.0
          %2864 = vmatprep.subr.mxu0 0.0
          %2865 = vmatpush1.msra.mxu0 0.0
          %2866 = vmatprep.subr.mxu0 0.0
          %2867 = vmatpush1.msra.mxu0 0.0
          %2868 = vmatprep.subr.mxu0 0.0
          %2869 = vmatpush1.msra.mxu0 0.0
          %2870 = vmatprep.subr.mxu0 0.0
          %2871 = vmatpush1.msra.mxu0 0.0
          %2872 = vmatprep.subr.mxu0 0.0
          %2873 = vmatpush1.msra.mxu0 0.0
          %2874 = vmatprep.subr.mxu0 0.0
          %2875 = vmatpush1.msra.mxu0 0.0
          %2876 = vmatprep.subr.mxu0 0.0
          %2877 = vmatpush1.msra.mxu0 0.0
          %2878 = vmatprep.subr.mxu0 0.0
          %2879 = vmatpush1.msra.mxu0 0.0
          %2880 = vmatprep.subr.mxu0 0.0
          %2881 = vmatpush1.msra.mxu0 0.0
          %2882 = vmatprep.subr.mxu0 0.0
          %2883 = vmatpush1.msra.mxu0 0.0
          %2884 = vmatprep.subr.mxu0 0.0
          %2885 = vmatpush1.msra.mxu0 0.0
          %2886 = vmatprep.subr.mxu0 0.0
          %2887 = vmatpush1.msra.mxu0 0.0
          %2888 = vmatprep.subr.mxu0 0.0
          %2889 = vmatpush1.msra.mxu0 0.0
          %2890 = vmatprep.subr.mxu0 0.0
          %2891 = vmatpush1.msra.mxu0 0.0
          %2892 = vmatprep.mubr.f32.mxu0 0.0
          %2893 = vmatmul.mubr.f32.gmra.mrb[0].mxu0 %v2225
          %v2894 = vpop.f32.mrb[0].mxu0
          %v2895 = vadd.f32 0.0, %v2894
          %v2896 = vpop.f32.mrb[0].mxu0
          %2897 = vmatprep.mubr.f32.mxu0 0.0
          %2898 = vmatmul.mubr.f32.gmra.mrb[0].mxu0 %v2226
          %v2899 = vpop.f32.mrb[0].mxu0
          %v2900 = vadd.f32 0.0, %v2899
          %v2901 = vpop.f32.mrb[0].mxu0
          %2902 = vmatprep.mubr.f32.mxu0 0.0
          %2903 = vmatmul.mubr.f32.gmra.mrb[0].mxu0 %v2227
          %v2904 = vpop.f32.mrb[0].mxu0
          %v2905 = vadd.f32 0.0, %v2904
          %v2906 = vpop.f32.mrb[0].mxu0
          %2907 = vmatprep.mubr.f32.mxu0 0.0
          %2908 = vmatmul.mubr.f32.gmra.mrb[0].mxu0 %v2228
          %v2909 = vpop.f32.mrb[0].mxu0
          %v2910 = vadd.f32 0.0, %v2909
          %v2911 = vpop.f32.mrb[0].mxu0
          %2912 = vmatprep.mubr.f32.mxu0 0.0
          %2913 = vmatmul.mubr.f32.gmra.mrb[0].mxu0 %v2229
          %v2914 = vpop.f32.mrb[0].mxu0
          %v2915 = vadd.f32 0.0, %v2914
          %v2916 = vpop.f32.mrb[0].mxu0
          %2917 = vmatprep.mubr.f32.mxu0 0.0
          %2918 = vmatmul.mubr.f32.gmra.mrb[0].mxu0 %v2230
          %v2919 = vpop.f32.mrb[0].mxu0
          %v2920 = vadd.f32 0.0, %v2919
          %v2921 = vpop.f32.mrb[0].mxu0
          %2922 = vmatprep.mubr.f32.mxu0 0.0
          %2923 = vmatmul.mubr.f32.gmra.mrb[0].mxu0 %v2231
          %v2924 = vpop.f32.mrb[0].mxu0
          %v2925 = vadd.f32 0.0, %v2924
          %v2926 = vpop.f32.mrb[0].mxu0
          %2927 = vmatprep.mubr.f32.mxu0 0.0
          %2928 = vmatmul.mubr.f32.gmra.mrb[0].mxu0 %v2232
          %v2929 = vpop.f32.mrb[0].mxu0
          %v2930 = vadd.f32 0.0, %v2929
          %v2931 = vpop.f32.mrb[0].mxu0
          %2932 = vmatprep.mubr.f32.mxu0 0.0
          %2933 = vmatmul.mubr.f32.gmra.mrb[0].mxu0 %v2233
          %v2934 = vpop.f32.mrb[0].mxu0
          %v2935 = vadd.f32 0.0, %v2934
          %v2936 = vpop.f32.mrb[0].mxu0
          %2937 = vmatprep.mubr.f32.mxu0 0.0
          %2938 = vmatmul.mubr.f32.gmra.mrb[0].mxu0 %v2234
          %v2939 = vpop.f32.mrb[0].mxu0
          %v2940 = vadd.f32 0.0, %v2939
          %v2941 = vpop.f32.mrb[0].mxu0
          %2942 = vmatprep.mubr.f32.mxu0 0.0
          %2943 = vmatmul.mubr.f32.gmra.mrb[0].mxu0 %v2235
          %v2944 = vpop.f32.mrb[0].mxu0
          %v2945 = vadd.f32 0.0, %v2944
          %v2946 = vpop.f32.mrb[0].mxu0
          %2947 = vmatprep.mubr.f32.mxu0 0.0
          %2948 = vmatmul.mubr.f32.gmra.mrb[0].mxu0 %v2236
          %v2949 = vpop.f32.mrb[0].mxu0
          %v2950 = vadd.f32 0.0, %v2949
          %v2951 = vpop.f32.mrb[0].mxu0
          %2952 = vmatprep.mubr.f32.mxu0 0.0
          %2953 = vmatmul.mubr.f32.gmra.mrb[0].mxu0 %v2237
          %v2954 = vpop.f32.mrb[0].mxu0
          %v2955 = vadd.f32 0.0, %v2954
          %v2956 = vpop.f32.mrb[0].mxu0
          %2957 = vmatprep.mubr.f32.mxu0 0.0
          %2958 = vmatmul.mubr.f32.gmra.mrb[0].mxu0 %v2238
          %v2959 = vpop.f32.mrb[0].mxu0
          %v2960 = vadd.f32 0.0, %v2959
          %v2961 = vpop.f32.mrb[0].mxu0
          %2962 = vmatprep.mubr.f32.mxu0 0.0
          %2963 = vmatmul.mubr.f32.gmra.mrb[0].mxu0 %v2239
          %v2964 = vpop.f32.mrb[0].mxu0
          %v2965 = vadd.f32 0.0, %v2964
          %v2966 = vpop.f32.mrb[0].mxu0
          %2967 = vmatprep.mubr.f32.mxu0 0.0
          %2968 = vmatmul.mubr.f32.gmra.mrb[0].mxu0 %v2240
          %v2969 = vpop.f32.mrb[0].mxu0
          %v2970 = vadd.f32 0.0, %v2969
          %v2971 = vpop.f32.mrb[0].mxu0
          %2972 = vmatprep.mubr.f32.mxu0 0.0
          %2973 = vmatmul.mubr.f32.gmra.mrb[0].mxu0 %v2241
          %v2974 = vpop.f32.mrb[0].mxu0
          %v2975 = vadd.f32 0.0, %v2974
          %v2976 = vpop.f32.mrb[0].mxu0
          %2977 = vmatprep.mubr.f32.mxu0 0.0
          %2978 = vmatmul.mubr.f32.gmra.mrb[0].mxu0 %v2242
          %v2979 = vpop.f32.mrb[0].mxu0
          %v2980 = vadd.f32 0.0, %v2979
          %v2981 = vpop.f32.mrb[0].mxu0
          %2982 = vmatprep.mubr.f32.mxu0 0.0
          %2983 = vmatmul.mubr.f32.gmra.mrb[0].mxu0 %v2243
          %v2984 = vpop.f32.mrb[0].mxu0
          %v2985 = vadd.f32 0.0, %v2984
          %v2986 = vpop.f32.mrb[0].mxu0
          %2987 = vmatprep.mubr.f32.mxu0 0.0
          %2988 = vmatmul.mubr.f32.gmra.mrb[0].mxu0 %v2244
          %v2989 = vpop.f32.mrb[0].mxu0
          %v2990 = vadd.f32 0.0, %v2989
          %v2991 = vpop.f32.mrb[0].mxu0
          %2992 = vmatprep.mubr.f32.mxu0 0.0
          %2993 = vmatmul.mubr.f32.gmra.mrb[0].mxu0 %v2245
          %v2994 = vpop.f32.mrb[0].mxu0
          %v2995 = vadd.f32 0.0, %v2994
          %v2996 = vpop.f32.mrb[0].mxu0
          %2997 = vmatprep.mubr.f32.mxu0 0.0
          %2998 = vmatmul.mubr.f32.gmra.mrb[0].mxu0 %v2246
          %v2999 = vpop.f32.mrb[0].mxu0
          %v3000 = vadd.f32 0.0, %v2999
          %v3001 = vpop.f32.mrb[0].mxu0
          %3002 = vmatprep.mubr.f32.mxu0 0.0
          %3003 = vmatmul.mubr.f32.gmra.mrb[0].mxu0 %v2247
          %v3004 = vpop.f32.mrb[0].mxu0
          %v3005 = vadd.f32 0.0, %v3004
          %v3006 = vpop.f32.mrb[0].mxu0
          %3007 = vmatprep.mubr.f32.mxu0 0.0
          %3008 = vmatmul.mubr.f32.gmra.mrb[0].mxu0 %v2248
          %v3009 = vpop.f32.mrb[0].mxu0
          %v3010 = vadd.f32 0.0, %v3009
          %v3011 = vpop.f32.mrb[0].mxu0
          %3012 = vmatprep.mubr.f32.mxu0 0.0
          %3013 = vmatmul.mubr.f32.gmra.mrb[0].mxu0 %v2249
          %v3014 = vpop.f32.mrb[0].mxu0
          %v3015 = vadd.f32 0.0, %v3014
          %v3016 = vpop.f32.mrb[0].mxu0
          %3017 = vmatprep.mubr.f32.mxu0 0.0
          %3018 = vmatmul.mubr.f32.gmra.mrb[0].mxu0 %v2250
          %v3019 = vpop.f32.mrb[0].mxu0
          %v3020 = vadd.f32 0.0, %v3019
          %v3021 = vpop.f32.mrb[0].mxu0
          %3022 = vmatprep.mubr.f32.mxu0 0.0
          %3023 = vmatmul.mubr.f32.gmra.mrb[0].mxu0 %v2251
          %v3024 = vpop.f32.mrb[0].mxu0
          %v3025 = vadd.f32 0.0, %v3024
          %v3026 = vpop.f32.mrb[0].mxu0
          %3027 = vmatprep.mubr.f32.mxu0 0.0
          %3028 = vmatmul.mubr.f32.gmra.mrb[0].mxu0 %v2252
          %v3029 = vpop.f32.mrb[0].mxu0
          %v3030 = vadd.f32 0.0, %v3029
          %v3031 = vpop.f32.mrb[0].mxu0
          %3032 = vmatprep.mubr.f32.mxu0 0.0
          %3033 = vmatmul.mubr.f32.gmra.mrb[0].mxu0 %v2253
          %v3034 = vpop.f32.mrb[0].mxu0
          %v3035 = vadd.f32 0.0, %v3034
          %v3036 = vpop.f32.mrb[0].mxu0
          %3037 = vmatprep.mubr.f32.mxu0 0.0
          %3038 = vmatmul.mubr.f32.gmra.mrb[0].mxu0 %v2254
          %v3039 = vpop.f32.mrb[0].mxu0
          %v3040 = vadd.f32 0.0, %v3039
          %v3041 = vpop.f32.mrb[0].mxu0
          %3042 = vmatprep.mubr.f32.mxu0 0.0
          %3043 = vmatmul.mubr.f32.gmra.mrb[0].mxu0 %v2255
          %v3044 = vpop.f32.mrb[0].mxu0
          %v3045 = vadd.f32 0.0, %v3044
          %v3046 = vpop.f32.mrb[0].mxu0
          %3047 = vmatprep.mubr.f32.mxu0 0.0
          %3048 = vmatmul.mubr.f32.gmra.mrb[0].mxu0 %v2256
          %v3049 = vpop.f32.mrb[0].mxu0
          %v3050 = vadd.f32 0.0, %v3049
          %v3051 = vpop.f32.mrb[0].mxu0
          %3052 = vdwg.mxu0
          %v3053 = vadd.f32 %v2777, %v2895
          %v3054 = vadd.f32 %v2778, %v2900
          %v3055 = vadd.f32 %v2779, %v2905
          %v3056 = vadd.f32 %v2780, %v2910
          %v3057 = vadd.f32 %v2781, %v2915
          %v3058 = vadd.f32 %v2782, %v2920
          %v3059 = vadd.f32 %v2783, %v2925
          %v3060 = vadd.f32 %v2784, %v2930
          %v3061 = vadd.f32 %v2785, %v2935
          %v3062 = vadd.f32 %v2786, %v2940
          %v3063 = vadd.f32 %v2787, %v2945
          %v3064 = vadd.f32 %v2788, %v2950
          %v3065 = vadd.f32 %v2789, %v2955
          %v3066 = vadd.f32 %v2790, %v2960
          %v3067 = vadd.f32 %v2791, %v2965
          %v3068 = vadd.f32 %v2792, %v2970
          %v3069 = vadd.f32 %v2793, %v2975
          %v3070 = vadd.f32 %v2794, %v2980
          %v3071 = vadd.f32 %v2795, %v2985
          %v3072 = vadd.f32 %v2796, %v2990
          %v3073 = vadd.f32 %v2797, %v2995
          %v3074 = vadd.f32 %v2798, %v3000
          %v3075 = vadd.f32 %v2799, %v3005
          %v3076 = vadd.f32 %v2800, %v3010
          %v3077 = vadd.f32 %v2801, %v3015
          %v3078 = vadd.f32 %v2802, %v3020
          %v3079 = vadd.f32 %v2803, %v3025
          %v3080 = vadd.f32 %v2804, %v3030
          %v3081 = vadd.f32 %v2805, %v3035
          %v3082 = vadd.f32 %v2806, %v3040
          %v3083 = vadd.f32 %v2807, %v3045
          %v3084 = vadd.f32 %v2808, %v3050
          %v3085 = vmul.f32 %v3053, 0.5
          %v3086 = vmul.f32 %v3054, 0.5
          %v3087 = vmul.f32 %v3055, 0.5
          %v3088 = vmul.f32 %v3056, 0.5
          %v3089 = vmul.f32 %v3057, 0.5
          %v3090 = vmul.f32 %v3058, 0.5
          %v3091 = vmul.f32 %v3059, 0.5
          %v3092 = vmul.f32 %v3060, 0.5
          %v3093 = vmul.f32 %v3061, 0.5
          %v3094 = vmul.f32 %v3062, 0.5
          %v3095 = vmul.f32 %v3063, 0.5
          %v3096 = vmul.f32 %v3064, 0.5
          %v3097 = vmul.f32 %v3065, 0.5
          %v3098 = vmul.f32 %v3066, 0.5
          %v3099 = vmul.f32 %v3067, 0.5
          %v3100 = vmul.f32 %v3068, 0.5
          %v3101 = vmul.f32 %v3069, 0.5
          %v3102 = vmul.f32 %v3070, 0.5
          %v3103 = vmul.f32 %v3071, 0.5
          %v3104 = vmul.f32 %v3072, 0.5
          %v3105 = vmul.f32 %v3073, 0.5
          %v3106 = vmul.f32 %v3074, 0.5
          %v3107 = vmul.f32 %v3075, 0.5
          %v3108 = vmul.f32 %v3076, 0.5
          %v3109 = vmul.f32 %v3077, 0.5
          %v3110 = vmul.f32 %v3078, 0.5
          %v3111 = vmul.f32 %v3079, 0.5
          %v3112 = vmul.f32 %v3080, 0.5
          %v3113 = vmul.f32 %v3081, 0.5
          %v3114 = vmul.f32 %v3082, 0.5
          %v3115 = vmul.f32 %v3083, 0.5
          %v3116 = vmul.f32 %v3084, 0.5
          %v3117 = vmul.f32 %v3053, %v395
          %v3118 = vmul.f32 %v3054, %v395
          %v3119 = vmul.f32 %v3055, %v395
          %v3120 = vmul.f32 %v3056, %v395
          %v3121 = vmul.f32 %v3057, %v395
          %v3122 = vmul.f32 %v3058, %v395
          %v3123 = vmul.f32 %v3059, %v395
          %v3124 = vmul.f32 %v3060, %v395
          %v3125 = vmul.f32 %v3061, %v395
          %v3126 = vmul.f32 %v3062, %v395
          %v3127 = vmul.f32 %v3063, %v395
          %v3128 = vmul.f32 %v3064, %v395
          %v3129 = vmul.f32 %v3065, %v395
          %v3130 = vmul.f32 %v3066, %v395
          %v3131 = vmul.f32 %v3067, %v395
          %v3132 = vmul.f32 %v3068, %v395
          %v3133 = vmul.f32 %v3069, %v395
          %v3134 = vmul.f32 %v3070, %v395
          %v3135 = vmul.f32 %v3071, %v395
          %v3136 = vmul.f32 %v3072, %v395
          %v3137 = vmul.f32 %v3073, %v395
          %v3138 = vmul.f32 %v3074, %v395
          %v3139 = vmul.f32 %v3075, %v395
          %v3140 = vmul.f32 %v3076, %v395
          %v3141 = vmul.f32 %v3077, %v395
          %v3142 = vmul.f32 %v3078, %v395
          %v3143 = vmul.f32 %v3079, %v395
          %v3144 = vmul.f32 %v3080, %v395
          %v3145 = vmul.f32 %v3081, %v395
          %v3146 = vmul.f32 %v3082, %v395
          %v3147 = vmul.f32 %v3083, %v395
          %v3148 = vmul.f32 %v3084, %v395
          %v3149 = verf.f32.pop %v3117
          %v3150 = verf.f32.pop %v3118
          %v3151 = verf.f32.pop %v3119
          %v3152 = verf.f32.pop %v3120
          %v3153 = verf.f32.pop %v3121
          %v3154 = verf.f32.pop %v3122
          %v3155 = verf.f32.pop %v3123
          %v3156 = verf.f32.pop %v3124
          %v3157 = verf.f32.pop %v3125
          %v3158 = verf.f32.pop %v3126
          %v3159 = verf.f32.pop %v3127
          %v3160 = verf.f32.pop %v3128
          %v3161 = verf.f32.pop %v3129
          %v3162 = verf.f32.pop %v3130
          %v3163 = verf.f32.pop %v3131
          %v3164 = verf.f32.pop %v3132
          %v3165 = verf.f32.pop %v3133
          %v3166 = verf.f32.pop %v3134
          %v3167 = verf.f32.pop %v3135
          %v3168 = verf.f32.pop %v3136
          %v3169 = verf.f32.pop %v3137
          %v3170 = verf.f32.pop %v3138
          %v3171 = verf.f32.pop %v3139
          %v3172 = verf.f32.pop %v3140
          %v3173 = verf.f32.pop %v3141
          %v3174 = verf.f32.pop %v3142
          %v3175 = verf.f32.pop %v3143
          %v3176 = verf.f32.pop %v3144
          %v3177 = verf.f32.pop %v3145
          %v3178 = verf.f32.pop %v3146
          %v3179 = verf.f32.pop %v3147
          %v3180 = verf.f32.pop %v3148
          %v3181 = vadd.f32 %v3149, 1.0
          %v3182 = vadd.f32 %v3150, 1.0
          %v3183 = vadd.f32 %v3151, 1.0
          %v3184 = vadd.f32 %v3152, 1.0
          %v3185 = vadd.f32 %v3153, 1.0
          %v3186 = vadd.f32 %v3154, 1.0
          %v3187 = vadd.f32 %v3155, 1.0
          %v3188 = vadd.f32 %v3156, 1.0
          %v3189 = vadd.f32 %v3157, 1.0
          %v3190 = vadd.f32 %v3158, 1.0
          %v3191 = vadd.f32 %v3159, 1.0
          %v3192 = vadd.f32 %v3160, 1.0
          %v3193 = vadd.f32 %v3161, 1.0
          %v3194 = vadd.f32 %v3162, 1.0
          %v3195 = vadd.f32 %v3163, 1.0
          %v3196 = vadd.f32 %v3164, 1.0
          %v3197 = vadd.f32 %v3165, 1.0
          %v3198 = vadd.f32 %v3166, 1.0
          %v3199 = vadd.f32 %v3167, 1.0
          %v3200 = vadd.f32 %v3168, 1.0
          %v3201 = vadd.f32 %v3169, 1.0
          %v3202 = vadd.f32 %v3170, 1.0
          %v3203 = vadd.f32 %v3171, 1.0
          %v3204 = vadd.f32 %v3172, 1.0
          %v3205 = vadd.f32 %v3173, 1.0
          %v3206 = vadd.f32 %v3174, 1.0
          %v3207 = vadd.f32 %v3175, 1.0
          %v3208 = vadd.f32 %v3176, 1.0
          %v3209 = vadd.f32 %v3177, 1.0
          %v3210 = vadd.f32 %v3178, 1.0
          %v3211 = vadd.f32 %v3179, 1.0
          %v3212 = vadd.f32 %v3180, 1.0
          %v3213 = vmul.f32 %v3085, %v3181
          %v3214 = vmul.f32 %v3086, %v3182
          %v3215 = vmul.f32 %v3087, %v3183
          %v3216 = vmul.f32 %v3088, %v3184
          %v3217 = vmul.f32 %v3089, %v3185
          %v3218 = vmul.f32 %v3090, %v3186
          %v3219 = vmul.f32 %v3091, %v3187
          %v3220 = vmul.f32 %v3092, %v3188
          %v3221 = vmul.f32 %v3093, %v3189
          %v3222 = vmul.f32 %v3094, %v3190
          %v3223 = vmul.f32 %v3095, %v3191
          %v3224 = vmul.f32 %v3096, %v3192
          %v3225 = vmul.f32 %v3097, %v3193
          %v3226 = vmul.f32 %v3098, %v3194
          %v3227 = vmul.f32 %v3099, %v3195
          %v3228 = vmul.f32 %v3100, %v3196
          %v3229 = vmul.f32 %v3101, %v3197
          %v3230 = vmul.f32 %v3102, %v3198
          %v3231 = vmul.f32 %v3103, %v3199
          %v3232 = vmul.f32 %v3104, %v3200
          %v3233 = vmul.f32 %v3105, %v3201
          %v3234 = vmul.f32 %v3106, %v3202
          %v3235 = vmul.f32 %v3107, %v3203
          %v3236 = vmul.f32 %v3108, %v3204
          %v3237 = vmul.f32 %v3109, %v3205
          %v3238 = vmul.f32 %v3110, %v3206
          %v3239 = vmul.f32 %v3111, %v3207
          %v3240 = vmul.f32 %v3112, %v3208
          %v3241 = vmul.f32 %v3113, %v3209
          %v3242 = vmul.f32 %v3114, %v3210
          %v3243 = vmul.f32 %v3115, %v3211
          %v3244 = vmul.f32 %v3116, %v3212
          %s3245 = smul.u32 %s326, 128
          %s3246 = scalar_lea.vmem [#allocation8], %s3245
          %v3247 = vld [vmem:[%s3246] sm:$0xff]
          %v3248 = vld [vmem:[%s3246 + $0x8] sm:$0xff]
          %v3249 = vld [vmem:[%s3246 + $0x10] sm:$0xff]
          %v3250 = vld [vmem:[%s3246 + $0x18] sm:$0xff]
          %v3251 = vld [vmem:[%s3246 + $0x20] sm:$0xff]
          %v3252 = vld [vmem:[%s3246 + $0x28] sm:$0xff]
          %v3253 = vld [vmem:[%s3246 + $0x30] sm:$0xff]
          %v3254 = vld [vmem:[%s3246 + $0x38] sm:$0xff]
          %v3255 = vld [vmem:[%s3246 + $0x40] sm:$0xff]
          %v3256 = vld [vmem:[%s3246 + $0x48] sm:$0xff]
          %v3257 = vld [vmem:[%s3246 + $0x50] sm:$0xff]
          %v3258 = vld [vmem:[%s3246 + $0x58] sm:$0xff]
          %v3259 = vld [vmem:[%s3246 + $0x60] sm:$0xff]
          %v3260 = vld [vmem:[%s3246 + $0x68] sm:$0xff]
          %v3261 = vld [vmem:[%s3246 + $0x70] sm:$0xff]
          %v3262 = vld [vmem:[%s3246 + $0x78] sm:$0xff]
          %3263 = vmatprep.subr.mxu0 0.0
          %3264 = vmatpush1.msra.mxu0 %v3247
          %3265 = vmatprep.subr.mxu0 0.0
          %3266 = vmatpush1.msra.mxu0 %v3248
          %3267 = vmatprep.subr.mxu0 0.0
          %3268 = vmatpush1.msra.mxu0 %v3249
          %3269 = vmatprep.subr.mxu0 0.0
          %3270 = vmatpush1.msra.mxu0 %v3250
          %3271 = vmatprep.subr.mxu0 0.0
          %3272 = vmatpush1.msra.mxu0 %v3251
          %3273 = vmatprep.subr.mxu0 0.0
          %3274 = vmatpush1.msra.mxu0 %v3252
          %3275 = vmatprep.subr.mxu0 0.0
          %3276 = vmatpush1.msra.mxu0 %v3253
          %3277 = vmatprep.subr.mxu0 0.0
          %3278 = vmatpush1.msra.mxu0 %v3254
          %3279 = vmatprep.subr.mxu0 0.0
          %3280 = vmatpush1.msra.mxu0 %v3255
          %3281 = vmatprep.subr.mxu0 0.0
          %3282 = vmatpush1.msra.mxu0 %v3256
          %3283 = vmatprep.subr.mxu0 0.0
          %3284 = vmatpush1.msra.mxu0 %v3257
          %3285 = vmatprep.subr.mxu0 0.0
          %3286 = vmatpush1.msra.mxu0 %v3258
          %3287 = vmatprep.subr.mxu0 0.0
          %3288 = vmatpush1.msra.mxu0 %v3259
          %3289 = vmatprep.subr.mxu0 0.0
          %3290 = vmatpush1.msra.mxu0 %v3260
          %3291 = vmatprep.subr.mxu0 0.0
          %3292 = vmatpush1.msra.mxu0 %v3261
          %3293 = vmatprep.subr.mxu0 0.0
          %3294 = vmatpush1.msra.mxu0 %v3262
          %3295 = vmatprep.subr.mxu0 0.0
          %3296 = vmatpush1.msra.mxu0 0.0
          %3297 = vmatprep.subr.mxu0 0.0
          %3298 = vmatpush1.msra.mxu0 0.0
          %3299 = vmatprep.subr.mxu0 0.0
          %3300 = vmatpush1.msra.mxu0 0.0
          %3301 = vmatprep.subr.mxu0 0.0
          %3302 = vmatpush1.msra.mxu0 0.0
          %3303 = vmatprep.subr.mxu0 0.0
          %3304 = vmatpush1.msra.mxu0 0.0
          %3305 = vmatprep.subr.mxu0 0.0
          %3306 = vmatpush1.msra.mxu0 0.0
          %3307 = vmatprep.subr.mxu0 0.0
          %3308 = vmatpush1.msra.mxu0 0.0
          %3309 = vmatprep.subr.mxu0 0.0
          %3310 = vmatpush1.msra.mxu0 0.0
          %3311 = vmatprep.subr.mxu0 0.0
          %3312 = vmatpush1.msra.mxu0 0.0
          %3313 = vmatprep.subr.mxu0 0.0
          %3314 = vmatpush1.msra.mxu0 0.0
          %3315 = vmatprep.subr.mxu0 0.0
          %3316 = vmatpush1.msra.mxu0 0.0
          %3317 = vmatprep.subr.mxu0 0.0
          %3318 = vmatpush1.msra.mxu0 0.0
          %3319 = vmatprep.subr.mxu0 0.0
          %3320 = vmatpush1.msra.mxu0 0.0
          %3321 = vmatprep.subr.mxu0 0.0
          %3322 = vmatpush1.msra.mxu0 0.0
          %3323 = vmatprep.subr.mxu0 0.0
          %3324 = vmatpush1.msra.mxu0 0.0
          %3325 = vmatprep.subr.mxu0 0.0
          %3326 = vmatpush1.msra.mxu0 0.0
          %3327 = vmatprep.mubr.f32.mxu0 0.0
          %3328 = vmatmul.mubr.f32.gmra.mrb[0].mxu0 %v3213
          %v3329 = vpop.f32.mrb[0].mxu0
          %v3330 = vadd.f32 0.0, %v3329
          %v3331 = vpop.f32.mrb[0].mxu0
          %3332 = vmatprep.mubr.f32.mxu0 0.0
          %3333 = vmatmul.mubr.f32.gmra.mrb[0].mxu0 %v3214
          %v3334 = vpop.f32.mrb[0].mxu0
          %v3335 = vadd.f32 0.0, %v3334
          %v3336 = vpop.f32.mrb[0].mxu0
          %3337 = vmatprep.mubr.f32.mxu0 0.0
          %3338 = vmatmul.mubr.f32.gmra.mrb[0].mxu0 %v3215
          %v3339 = vpop.f32.mrb[0].mxu0
          %v3340 = vadd.f32 0.0, %v3339
          %v3341 = vpop.f32.mrb[0].mxu0
          %3342 = vmatprep.mubr.f32.mxu0 0.0
          %3343 = vmatmul.mubr.f32.gmra.mrb[0].mxu0 %v3216
          %v3344 = vpop.f32.mrb[0].mxu0
          %v3345 = vadd.f32 0.0, %v3344
          %v3346 = vpop.f32.mrb[0].mxu0
          %3347 = vmatprep.mubr.f32.mxu0 0.0
          %3348 = vmatmul.mubr.f32.gmra.mrb[0].mxu0 %v3217
          %v3349 = vpop.f32.mrb[0].mxu0
          %v3350 = vadd.f32 0.0, %v3349
          %v3351 = vpop.f32.mrb[0].mxu0
          %3352 = vmatprep.mubr.f32.mxu0 0.0
          %3353 = vmatmul.mubr.f32.gmra.mrb[0].mxu0 %v3218
          %v3354 = vpop.f32.mrb[0].mxu0
          %v3355 = vadd.f32 0.0, %v3354
          %v3356 = vpop.f32.mrb[0].mxu0
          %3357 = vmatprep.mubr.f32.mxu0 0.0
          %3358 = vmatmul.mubr.f32.gmra.mrb[0].mxu0 %v3219
          %v3359 = vpop.f32.mrb[0].mxu0
          %v3360 = vadd.f32 0.0, %v3359
          %v3361 = vpop.f32.mrb[0].mxu0
          %3362 = vmatprep.mubr.f32.mxu0 0.0
          %3363 = vmatmul.mubr.f32.gmra.mrb[0].mxu0 %v3220
          %v3364 = vpop.f32.mrb[0].mxu0
          %v3365 = vadd.f32 0.0, %v3364
          %v3366 = vpop.f32.mrb[0].mxu0
          %3367 = vmatprep.mubr.f32.mxu0 0.0
          %3368 = vmatmul.mubr.f32.gmra.mrb[0].mxu0 %v3221
          %v3369 = vpop.f32.mrb[0].mxu0
          %v3370 = vadd.f32 0.0, %v3369
          %v3371 = vpop.f32.mrb[0].mxu0
          %3372 = vmatprep.mubr.f32.mxu0 0.0
          %3373 = vmatmul.mubr.f32.gmra.mrb[0].mxu0 %v3222
          %v3374 = vpop.f32.mrb[0].mxu0
          %v3375 = vadd.f32 0.0, %v3374
          %v3376 = vpop.f32.mrb[0].mxu0
          %3377 = vmatprep.mubr.f32.mxu0 0.0
          %3378 = vmatmul.mubr.f32.gmra.mrb[0].mxu0 %v3223
          %v3379 = vpop.f32.mrb[0].mxu0
          %v3380 = vadd.f32 0.0, %v3379
          %v3381 = vpop.f32.mrb[0].mxu0
          %3382 = vmatprep.mubr.f32.mxu0 0.0
          %3383 = vmatmul.mubr.f32.gmra.mrb[0].mxu0 %v3224
          %v3384 = vpop.f32.mrb[0].mxu0
          %v3385 = vadd.f32 0.0, %v3384
          %v3386 = vpop.f32.mrb[0].mxu0
          %3387 = vmatprep.mubr.f32.mxu0 0.0
          %3388 = vmatmul.mubr.f32.gmra.mrb[0].mxu0 %v3225
          %v3389 = vpop.f32.mrb[0].mxu0
          %v3390 = vadd.f32 0.0, %v3389
          %v3391 = vpop.f32.mrb[0].mxu0
          %3392 = vmatprep.mubr.f32.mxu0 0.0
          %3393 = vmatmul.mubr.f32.gmra.mrb[0].mxu0 %v3226
          %v3394 = vpop.f32.mrb[0].mxu0
          %v3395 = vadd.f32 0.0, %v3394
          %v3396 = vpop.f32.mrb[0].mxu0
          %3397 = vmatprep.mubr.f32.mxu0 0.0
          %3398 = vmatmul.mubr.f32.gmra.mrb[0].mxu0 %v3227
          %v3399 = vpop.f32.mrb[0].mxu0
          %v3400 = vadd.f32 0.0, %v3399
          %v3401 = vpop.f32.mrb[0].mxu0
          %3402 = vmatprep.mubr.f32.mxu0 0.0
          %3403 = vmatmul.mubr.f32.gmra.mrb[0].mxu0 %v3228
          %v3404 = vpop.f32.mrb[0].mxu0
          %v3405 = vadd.f32 0.0, %v3404
          %v3406 = vpop.f32.mrb[0].mxu0
          %3407 = vmatprep.mubr.f32.mxu0 0.0
          %3408 = vmatmul.mubr.f32.gmra.mrb[0].mxu0 %v3229
          %v3409 = vpop.f32.mrb[0].mxu0
          %v3410 = vadd.f32 0.0, %v3409
          %v3411 = vpop.f32.mrb[0].mxu0
          %3412 = vmatprep.mubr.f32.mxu0 0.0
          %3413 = vmatmul.mubr.f32.gmra.mrb[0].mxu0 %v3230
          %v3414 = vpop.f32.mrb[0].mxu0
          %v3415 = vadd.f32 0.0, %v3414
          %v3416 = vpop.f32.mrb[0].mxu0
          %3417 = vmatprep.mubr.f32.mxu0 0.0
          %3418 = vmatmul.mubr.f32.gmra.mrb[0].mxu0 %v3231
          %v3419 = vpop.f32.mrb[0].mxu0
          %v3420 = vadd.f32 0.0, %v3419
          %v3421 = vpop.f32.mrb[0].mxu0
          %3422 = vmatprep.mubr.f32.mxu0 0.0
          %3423 = vmatmul.mubr.f32.gmra.mrb[0].mxu0 %v3232
          %v3424 = vpop.f32.mrb[0].mxu0
          %v3425 = vadd.f32 0.0, %v3424
          %v3426 = vpop.f32.mrb[0].mxu0
          %3427 = vmatprep.mubr.f32.mxu0 0.0
          %3428 = vmatmul.mubr.f32.gmra.mrb[0].mxu0 %v3233
          %v3429 = vpop.f32.mrb[0].mxu0
          %v3430 = vadd.f32 0.0, %v3429
          %v3431 = vpop.f32.mrb[0].mxu0
          %3432 = vmatprep.mubr.f32.mxu0 0.0
          %3433 = vmatmul.mubr.f32.gmra.mrb[0].mxu0 %v3234
          %v3434 = vpop.f32.mrb[0].mxu0
          %v3435 = vadd.f32 0.0, %v3434
          %v3436 = vpop.f32.mrb[0].mxu0
          %3437 = vmatprep.mubr.f32.mxu0 0.0
          %3438 = vmatmul.mubr.f32.gmra.mrb[0].mxu0 %v3235
          %v3439 = vpop.f32.mrb[0].mxu0
          %v3440 = vadd.f32 0.0, %v3439
          %v3441 = vpop.f32.mrb[0].mxu0
          %3442 = vmatprep.mubr.f32.mxu0 0.0
          %3443 = vmatmul.mubr.f32.gmra.mrb[0].mxu0 %v3236
          %v3444 = vpop.f32.mrb[0].mxu0
          %v3445 = vadd.f32 0.0, %v3444
          %v3446 = vpop.f32.mrb[0].mxu0
          %3447 = vmatprep.mubr.f32.mxu0 0.0
          %3448 = vmatmul.mubr.f32.gmra.mrb[0].mxu0 %v3237
          %v3449 = vpop.f32.mrb[0].mxu0
          %v3450 = vadd.f32 0.0, %v3449
          %v3451 = vpop.f32.mrb[0].mxu0
          %3452 = vmatprep.mubr.f32.mxu0 0.0
          %3453 = vmatmul.mubr.f32.gmra.mrb[0].mxu0 %v3238
          %v3454 = vpop.f32.mrb[0].mxu0
          %v3455 = vadd.f32 0.0, %v3454
          %v3456 = vpop.f32.mrb[0].mxu0
          %3457 = vmatprep.mubr.f32.mxu0 0.0
          %3458 = vmatmul.mubr.f32.gmra.mrb[0].mxu0 %v3239
          %v3459 = vpop.f32.mrb[0].mxu0
          %v3460 = vadd.f32 0.0, %v3459
          %v3461 = vpop.f32.mrb[0].mxu0
          %3462 = vmatprep.mubr.f32.mxu0 0.0
          %3463 = vmatmul.mubr.f32.gmra.mrb[0].mxu0 %v3240
          %v3464 = vpop.f32.mrb[0].mxu0
          %v3465 = vadd.f32 0.0, %v3464
          %v3466 = vpop.f32.mrb[0].mxu0
          %3467 = vmatprep.mubr.f32.mxu0 0.0
          %3468 = vmatmul.mubr.f32.gmra.mrb[0].mxu0 %v3241
          %v3469 = vpop.f32.mrb[0].mxu0
          %v3470 = vadd.f32 0.0, %v3469
          %v3471 = vpop.f32.mrb[0].mxu0
          %3472 = vmatprep.mubr.f32.mxu0 0.0
          %3473 = vmatmul.mubr.f32.gmra.mrb[0].mxu0 %v3242
          %v3474 = vpop.f32.mrb[0].mxu0
          %v3475 = vadd.f32 0.0, %v3474
          %v3476 = vpop.f32.mrb[0].mxu0
          %3477 = vmatprep.mubr.f32.mxu0 0.0
          %3478 = vmatmul.mubr.f32.gmra.mrb[0].mxu0 %v3243
          %v3479 = vpop.f32.mrb[0].mxu0
          %v3480 = vadd.f32 0.0, %v3479
          %v3481 = vpop.f32.mrb[0].mxu0
          %3482 = vmatprep.mubr.f32.mxu0 0.0
          %3483 = vmatmul.mubr.f32.gmra.mrb[0].mxu0 %v3244
          %v3484 = vpop.f32.mrb[0].mxu0
          %v3485 = vadd.f32 0.0, %v3484
          %v3486 = vpop.f32.mrb[0].mxu0
          %3487 = vdwg.mxu0
          %v3488 = vld [vmem:[%s217] sm:$0xff]
          %v3489 = vld [vmem:[%s217 + $0x8] sm:$0xff]
          %v3490 = vld [vmem:[%s217 + $0x10] sm:$0xff]
          %v3491 = vld [vmem:[%s217 + $0x18] sm:$0xff]
          %v3492 = vld [vmem:[%s217 + $0x20] sm:$0xff]
          %v3493 = vld [vmem:[%s217 + $0x28] sm:$0xff]
          %v3494 = vld [vmem:[%s217 + $0x30] sm:$0xff]
          %v3495 = vld [vmem:[%s217 + $0x38] sm:$0xff]
          %v3496 = vld [vmem:[%s217 + $0x40] sm:$0xff]
          %v3497 = vld [vmem:[%s217 + $0x48] sm:$0xff]
          %v3498 = vld [vmem:[%s217 + $0x50] sm:$0xff]
          %v3499 = vld [vmem:[%s217 + $0x58] sm:$0xff]
          %v3500 = vld [vmem:[%s217 + $0x60] sm:$0xff]
          %v3501 = vld [vmem:[%s217 + $0x68] sm:$0xff]
          %v3502 = vld [vmem:[%s217 + $0x70] sm:$0xff]
          %v3503 = vld [vmem:[%s217 + $0x78] sm:$0xff]
          %v3504 = vld [vmem:[%s217 + $0x80] sm:$0xff]
          %v3505 = vld [vmem:[%s217 + $0x88] sm:$0xff]
          %v3506 = vld [vmem:[%s217 + $0x90] sm:$0xff]
          %v3507 = vld [vmem:[%s217 + $0x98] sm:$0xff]
          %v3508 = vld [vmem:[%s217 + $0xa0] sm:$0xff]
          %v3509 = vld [vmem:[%s217 + $0xa8] sm:$0xff]
          %v3510 = vld [vmem:[%s217 + $0xb0] sm:$0xff]
          %v3511 = vld [vmem:[%s217 + $0xb8] sm:$0xff]
          %v3512 = vld [vmem:[%s217 + $0xc0] sm:$0xff]
          %v3513 = vld [vmem:[%s217 + $0xc8] sm:$0xff]
          %v3514 = vld [vmem:[%s217 + $0xd0] sm:$0xff]
          %v3515 = vld [vmem:[%s217 + $0xd8] sm:$0xff]
          %v3516 = vld [vmem:[%s217 + $0xe0] sm:$0xff]
          %v3517 = vld [vmem:[%s217 + $0xe8] sm:$0xff]
          %v3518 = vld [vmem:[%s217 + $0xf0] sm:$0xff]
          %v3519 = vld [vmem:[%s217 + $0xf8] sm:$0xff]
          %v3520 = vadd.f32 %v3488, %v3330
          %v3521 = vadd.f32 %v3489, %v3335
          %v3522 = vadd.f32 %v3490, %v3340
          %v3523 = vadd.f32 %v3491, %v3345
          %v3524 = vadd.f32 %v3492, %v3350
          %v3525 = vadd.f32 %v3493, %v3355
          %v3526 = vadd.f32 %v3494, %v3360
          %v3527 = vadd.f32 %v3495, %v3365
          %v3528 = vadd.f32 %v3496, %v3370
          %v3529 = vadd.f32 %v3497, %v3375
          %v3530 = vadd.f32 %v3498, %v3380
          %v3531 = vadd.f32 %v3499, %v3385
          %v3532 = vadd.f32 %v3500, %v3390
          %v3533 = vadd.f32 %v3501, %v3395
          %v3534 = vadd.f32 %v3502, %v3400
          %v3535 = vadd.f32 %v3503, %v3405
          %v3536 = vadd.f32 %v3504, %v3410
          %v3537 = vadd.f32 %v3505, %v3415
          %v3538 = vadd.f32 %v3506, %v3420
          %v3539 = vadd.f32 %v3507, %v3425
          %v3540 = vadd.f32 %v3508, %v3430
          %v3541 = vadd.f32 %v3509, %v3435
          %v3542 = vadd.f32 %v3510, %v3440
          %v3543 = vadd.f32 %v3511, %v3445
          %v3544 = vadd.f32 %v3512, %v3450
          %v3545 = vadd.f32 %v3513, %v3455
          %v3546 = vadd.f32 %v3514, %v3460
          %v3547 = vadd.f32 %v3515, %v3465
          %v3548 = vadd.f32 %v3516, %v3470
          %v3549 = vadd.f32 %v3517, %v3475
          %v3550 = vadd.f32 %v3518, %v3480
          %v3551 = vadd.f32 %v3519, %v3485
          %3552 = vst [vmem:[%s217] sm:$0xff] %v3520
          %3553 = vst [vmem:[%s217 + $0x8] sm:$0xff] %v3521
          %3554 = vst [vmem:[%s217 + $0x10] sm:$0xff] %v3522
          %3555 = vst [vmem:[%s217 + $0x18] sm:$0xff] %v3523
          %3556 = vst [vmem:[%s217 + $0x20] sm:$0xff] %v3524
          %3557 = vst [vmem:[%s217 + $0x28] sm:$0xff] %v3525
          %3558 = vst [vmem:[%s217 + $0x30] sm:$0xff] %v3526
          %3559 = vst [vmem:[%s217 + $0x38] sm:$0xff] %v3527
          %3560 = vst [vmem:[%s217 + $0x40] sm:$0xff] %v3528
          %3561 = vst [vmem:[%s217 + $0x48] sm:$0xff] %v3529
          %3562 = vst [vmem:[%s217 + $0x50] sm:$0xff] %v3530
          %3563 = vst [vmem:[%s217 + $0x58] sm:$0xff] %v3531
          %3564 = vst [vmem:[%s217 + $0x60] sm:$0xff] %v3532
          %3565 = vst [vmem:[%s217 + $0x68] sm:$0xff] %v3533
          %3566 = vst [vmem:[%s217 + $0x70] sm:$0xff] %v3534
          %3567 = vst [vmem:[%s217 + $0x78] sm:$0xff] %v3535
          %3568 = vst [vmem:[%s217 + $0x80] sm:$0xff] %v3536
          %3569 = vst [vmem:[%s217 + $0x88] sm:$0xff] %v3537
          %3570 = vst [vmem:[%s217 + $0x90] sm:$0xff] %v3538
          %3571 = vst [vmem:[%s217 + $0x98] sm:$0xff] %v3539
          %3572 = vst [vmem:[%s217 + $0xa0] sm:$0xff] %v3540
          %3573 = vst [vmem:[%s217 + $0xa8] sm:$0xff] %v3541
          %3574 = vst [vmem:[%s217 + $0xb0] sm:$0xff] %v3542
          %3575 = vst [vmem:[%s217 + $0xb8] sm:$0xff] %v3543
          %3576 = vst [vmem:[%s217 + $0xc0] sm:$0xff] %v3544
          %3577 = vst [vmem:[%s217 + $0xc8] sm:$0xff] %v3545
          %3578 = vst [vmem:[%s217 + $0xd0] sm:$0xff] %v3546
          %3579 = vst [vmem:[%s217 + $0xd8] sm:$0xff] %v3547
          %3580 = vst [vmem:[%s217 + $0xe0] sm:$0xff] %v3548
          %3581 = vst [vmem:[%s217 + $0xe8] sm:$0xff] %v3549
          %3582 = vst [vmem:[%s217 + $0xf0] sm:$0xff] %v3550
          %3583 = vst [vmem:[%s217 + $0xf8] sm:$0xff] %v3551
        $region49: #{tpu_custom_call.1} parent=31 // loop_footer
          %s330 = sadd.s32 1, %s326
        $region50: #{tpu_custom_call.1} parent=31 // loop_footer_branch
          %325 = sbr.rel target = $region46
        $region51: #{tpu_custom_call.1} parent=31 // loop_exit
          _
        %v3584 = vld [vmem:[%s217] sm:$0xff]
        %v3585 = vld [vmem:[%s217 + $0x8] sm:$0xff]
        %v3586 = vld [vmem:[%s217 + $0x10] sm:$0xff]
        %v3587 = vld [vmem:[%s217 + $0x18] sm:$0xff]
        %v3588 = vld [vmem:[%s217 + $0x20] sm:$0xff]
        %v3589 = vld [vmem:[%s217 + $0x28] sm:$0xff]
        %v3590 = vld [vmem:[%s217 + $0x30] sm:$0xff]
        %v3591 = vld [vmem:[%s217 + $0x38] sm:$0xff]
        %v3592 = vld [vmem:[%s217 + $0x40] sm:$0xff]
        %v3593 = vld [vmem:[%s217 + $0x48] sm:$0xff]
        %v3594 = vld [vmem:[%s217 + $0x50] sm:$0xff]
        %v3595 = vld [vmem:[%s217 + $0x58] sm:$0xff]
        %v3596 = vld [vmem:[%s217 + $0x60] sm:$0xff]
        %v3597 = vld [vmem:[%s217 + $0x68] sm:$0xff]
        %v3598 = vld [vmem:[%s217 + $0x70] sm:$0xff]
        %v3599 = vld [vmem:[%s217 + $0x78] sm:$0xff]
        %v3600 = vld [vmem:[%s217 + $0x80] sm:$0xff]
        %v3601 = vld [vmem:[%s217 + $0x88] sm:$0xff]
        %v3602 = vld [vmem:[%s217 + $0x90] sm:$0xff]
        %v3603 = vld [vmem:[%s217 + $0x98] sm:$0xff]
        %v3604 = vld [vmem:[%s217 + $0xa0] sm:$0xff]
        %v3605 = vld [vmem:[%s217 + $0xa8] sm:$0xff]
        %v3606 = vld [vmem:[%s217 + $0xb0] sm:$0xff]
        %v3607 = vld [vmem:[%s217 + $0xb8] sm:$0xff]
        %v3608 = vld [vmem:[%s217 + $0xc0] sm:$0xff]
        %v3609 = vld [vmem:[%s217 + $0xc8] sm:$0xff]
        %v3610 = vld [vmem:[%s217 + $0xd0] sm:$0xff]
        %v3611 = vld [vmem:[%s217 + $0xd8] sm:$0xff]
        %v3612 = vld [vmem:[%s217 + $0xe0] sm:$0xff]
        %v3613 = vld [vmem:[%s217 + $0xe8] sm:$0xff]
        %v3614 = vld [vmem:[%s217 + $0xf0] sm:$0xff]
        %v3615 = vld [vmem:[%s217 + $0xf8] sm:$0xff]
        %v3616 = vmul.f32 %v3584, 0.5
        %v3617 = vmul.f32 %v3585, 0.5
        %v3618 = vmul.f32 %v3586, 0.5
        %v3619 = vmul.f32 %v3587, 0.5
        %v3620 = vmul.f32 %v3588, 0.5
        %v3621 = vmul.f32 %v3589, 0.5
        %v3622 = vmul.f32 %v3590, 0.5
        %v3623 = vmul.f32 %v3591, 0.5
        %v3624 = vmul.f32 %v3592, 0.5
        %v3625 = vmul.f32 %v3593, 0.5
        %v3626 = vmul.f32 %v3594, 0.5
        %v3627 = vmul.f32 %v3595, 0.5
        %v3628 = vmul.f32 %v3596, 0.5
        %v3629 = vmul.f32 %v3597, 0.5
        %v3630 = vmul.f32 %v3598, 0.5
        %v3631 = vmul.f32 %v3599, 0.5
        %v3632 = vmul.f32 %v3600, 0.5
        %v3633 = vmul.f32 %v3601, 0.5
        %v3634 = vmul.f32 %v3602, 0.5
        %v3635 = vmul.f32 %v3603, 0.5
        %v3636 = vmul.f32 %v3604, 0.5
        %v3637 = vmul.f32 %v3605, 0.5
        %v3638 = vmul.f32 %v3606, 0.5
        %v3639 = vmul.f32 %v3607, 0.5
        %v3640 = vmul.f32 %v3608, 0.5
        %v3641 = vmul.f32 %v3609, 0.5
        %v3642 = vmul.f32 %v3610, 0.5
        %v3643 = vmul.f32 %v3611, 0.5
        %v3644 = vmul.f32 %v3612, 0.5
        %v3645 = vmul.f32 %v3613, 0.5
        %v3646 = vmul.f32 %v3614, 0.5
        %v3647 = vmul.f32 %v3615, 0.5
        %v3648 = vrcp.pop 1.4142135
        %v3649 = vmul.f32 %v3584, %v3648
        %v3650 = vmul.f32 %v3585, %v3648
        %v3651 = vmul.f32 %v3586, %v3648
        %v3652 = vmul.f32 %v3587, %v3648
        %v3653 = vmul.f32 %v3588, %v3648
        %v3654 = vmul.f32 %v3589, %v3648
        %v3655 = vmul.f32 %v3590, %v3648
        %v3656 = vmul.f32 %v3591, %v3648
        %v3657 = vmul.f32 %v3592, %v3648
        %v3658 = vmul.f32 %v3593, %v3648
        %v3659 = vmul.f32 %v3594, %v3648
        %v3660 = vmul.f32 %v3595, %v3648
        %v3661 = vmul.f32 %v3596, %v3648
        %v3662 = vmul.f32 %v3597, %v3648
        %v3663 = vmul.f32 %v3598, %v3648
        %v3664 = vmul.f32 %v3599, %v3648
        %v3665 = vmul.f32 %v3600, %v3648
        %v3666 = vmul.f32 %v3601, %v3648
        %v3667 = vmul.f32 %v3602, %v3648
        %v3668 = vmul.f32 %v3603, %v3648
        %v3669 = vmul.f32 %v3604, %v3648
        %v3670 = vmul.f32 %v3605, %v3648
        %v3671 = vmul.f32 %v3606, %v3648
        %v3672 = vmul.f32 %v3607, %v3648
        %v3673 = vmul.f32 %v3608, %v3648
        %v3674 = vmul.f32 %v3609, %v3648
        %v3675 = vmul.f32 %v3610, %v3648
        %v3676 = vmul.f32 %v3611, %v3648
        %v3677 = vmul.f32 %v3612, %v3648
        %v3678 = vmul.f32 %v3613, %v3648
        %v3679 = vmul.f32 %v3614, %v3648
        %v3680 = vmul.f32 %v3615, %v3648
        %v3681 = verf.f32.pop %v3649
        %v3682 = verf.f32.pop %v3650
        %v3683 = verf.f32.pop %v3651
        %v3684 = verf.f32.pop %v3652
        %v3685 = verf.f32.pop %v3653
        %v3686 = verf.f32.pop %v3654
        %v3687 = verf.f32.pop %v3655
        %v3688 = verf.f32.pop %v3656
        %v3689 = verf.f32.pop %v3657
        %v3690 = verf.f32.pop %v3658
        %v3691 = verf.f32.pop %v3659
        %v3692 = verf.f32.pop %v3660
        %v3693 = verf.f32.pop %v3661
        %v3694 = verf.f32.pop %v3662
        %v3695 = verf.f32.pop %v3663
        %v3696 = verf.f32.pop %v3664
        %v3697 = verf.f32.pop %v3665
        %v3698 = verf.f32.pop %v3666
        %v3699 = verf.f32.pop %v3667
        %v3700 = verf.f32.pop %v3668
        %v3701 = verf.f32.pop %v3669
        %v3702 = verf.f32.pop %v3670
        %v3703 = verf.f32.pop %v3671
        %v3704 = verf.f32.pop %v3672
        %v3705 = verf.f32.pop %v3673
        %v3706 = verf.f32.pop %v3674
        %v3707 = verf.f32.pop %v3675
        %v3708 = verf.f32.pop %v3676
        %v3709 = verf.f32.pop %v3677
        %v3710 = verf.f32.pop %v3678
        %v3711 = verf.f32.pop %v3679
        %v3712 = verf.f32.pop %v3680
        %v3713 = vadd.f32 %v3681, 1.0
        %v3714 = vadd.f32 %v3682, 1.0
        %v3715 = vadd.f32 %v3683, 1.0
        %v3716 = vadd.f32 %v3684, 1.0
        %v3717 = vadd.f32 %v3685, 1.0
        %v3718 = vadd.f32 %v3686, 1.0
        %v3719 = vadd.f32 %v3687, 1.0
        %v3720 = vadd.f32 %v3688, 1.0
        %v3721 = vadd.f32 %v3689, 1.0
        %v3722 = vadd.f32 %v3690, 1.0
        %v3723 = vadd.f32 %v3691, 1.0
        %v3724 = vadd.f32 %v3692, 1.0
        %v3725 = vadd.f32 %v3693, 1.0
        %v3726 = vadd.f32 %v3694, 1.0
        %v3727 = vadd.f32 %v3695, 1.0
        %v3728 = vadd.f32 %v3696, 1.0
        %v3729 = vadd.f32 %v3697, 1.0
        %v3730 = vadd.f32 %v3698, 1.0
        %v3731 = vadd.f32 %v3699, 1.0
        %v3732 = vadd.f32 %v3700, 1.0
        %v3733 = vadd.f32 %v3701, 1.0
        %v3734 = vadd.f32 %v3702, 1.0
        %v3735 = vadd.f32 %v3703, 1.0
        %v3736 = vadd.f32 %v3704, 1.0
        %v3737 = vadd.f32 %v3705, 1.0
        %v3738 = vadd.f32 %v3706, 1.0
        %v3739 = vadd.f32 %v3707, 1.0
        %v3740 = vadd.f32 %v3708, 1.0
        %v3741 = vadd.f32 %v3709, 1.0
        %v3742 = vadd.f32 %v3710, 1.0
        %v3743 = vadd.f32 %v3711, 1.0
        %v3744 = vadd.f32 %v3712, 1.0
        %v3745 = vmul.f32 %v3616, %v3713
        %v3746 = vmul.f32 %v3617, %v3714
        %v3747 = vmul.f32 %v3618, %v3715
        %v3748 = vmul.f32 %v3619, %v3716
        %v3749 = vmul.f32 %v3620, %v3717
        %v3750 = vmul.f32 %v3621, %v3718
        %v3751 = vmul.f32 %v3622, %v3719
        %v3752 = vmul.f32 %v3623, %v3720
        %v3753 = vmul.f32 %v3624, %v3721
        %v3754 = vmul.f32 %v3625, %v3722
        %v3755 = vmul.f32 %v3626, %v3723
        %v3756 = vmul.f32 %v3627, %v3724
        %v3757 = vmul.f32 %v3628, %v3725
        %v3758 = vmul.f32 %v3629, %v3726
        %v3759 = vmul.f32 %v3630, %v3727
        %v3760 = vmul.f32 %v3631, %v3728
        %v3761 = vmul.f32 %v3632, %v3729
        %v3762 = vmul.f32 %v3633, %v3730
        %v3763 = vmul.f32 %v3634, %v3731
        %v3764 = vmul.f32 %v3635, %v3732
        %v3765 = vmul.f32 %v3636, %v3733
        %v3766 = vmul.f32 %v3637, %v3734
        %v3767 = vmul.f32 %v3638, %v3735
        %v3768 = vmul.f32 %v3639, %v3736
        %v3769 = vmul.f32 %v3640, %v3737
        %v3770 = vmul.f32 %v3641, %v3738
        %v3771 = vmul.f32 %v3642, %v3739
        %v3772 = vmul.f32 %v3643, %v3740
        %v3773 = vmul.f32 %v3644, %v3741
        %v3774 = vmul.f32 %v3645, %v3742
        %v3775 = vmul.f32 %v3646, %v3743
        %v3776 = vmul.f32 %v3647, %v3744
        %3777 = vst [vmem:[%s217] sm:$0xff] %v3745
        %3778 = vst [vmem:[%s217 + $0x8] sm:$0xff] %v3746
        %3779 = vst [vmem:[%s217 + $0x10] sm:$0xff] %v3747
        %3780 = vst [vmem:[%s217 + $0x18] sm:$0xff] %v3748
        %3781 = vst [vmem:[%s217 + $0x20] sm:$0xff] %v3749
        %3782 = vst [vmem:[%s217 + $0x28] sm:$0xff] %v3750
        %3783 = vst [vmem:[%s217 + $0x30] sm:$0xff] %v3751
        %3784 = vst [vmem:[%s217 + $0x38] sm:$0xff] %v3752
        %3785 = vst [vmem:[%s217 + $0x40] sm:$0xff] %v3753
        %3786 = vst [vmem:[%s217 + $0x48] sm:$0xff] %v3754
        %3787 = vst [vmem:[%s217 + $0x50] sm:$0xff] %v3755
        %3788 = vst [vmem:[%s217 + $0x58] sm:$0xff] %v3756
        %3789 = vst [vmem:[%s217 + $0x60] sm:$0xff] %v3757
        %3790 = vst [vmem:[%s217 + $0x68] sm:$0xff] %v3758
        %3791 = vst [vmem:[%s217 + $0x70] sm:$0xff] %v3759
        %3792 = vst [vmem:[%s217 + $0x78] sm:$0xff] %v3760
        %3793 = vst [vmem:[%s217 + $0x80] sm:$0xff] %v3761
        %3794 = vst [vmem:[%s217 + $0x88] sm:$0xff] %v3762
        %3795 = vst [vmem:[%s217 + $0x90] sm:$0xff] %v3763
        %3796 = vst [vmem:[%s217 + $0x98] sm:$0xff] %v3764
        %3797 = vst [vmem:[%s217 + $0xa0] sm:$0xff] %v3765
        %3798 = vst [vmem:[%s217 + $0xa8] sm:$0xff] %v3766
        %3799 = vst [vmem:[%s217 + $0xb0] sm:$0xff] %v3767
        %3800 = vst [vmem:[%s217 + $0xb8] sm:$0xff] %v3768
        %3801 = vst [vmem:[%s217 + $0xc0] sm:$0xff] %v3769
        %3802 = vst [vmem:[%s217 + $0xc8] sm:$0xff] %v3770
        %3803 = vst [vmem:[%s217 + $0xd0] sm:$0xff] %v3771
        %3804 = vst [vmem:[%s217 + $0xd8] sm:$0xff] %v3772
        %3805 = vst [vmem:[%s217 + $0xe0] sm:$0xff] %v3773
        %3806 = vst [vmem:[%s217 + $0xe8] sm:$0xff] %v3774
        %3807 = vst [vmem:[%s217 + $0xf0] sm:$0xff] %v3775
        %3808 = vst [vmem:[%s217 + $0xf8] sm:$0xff] %v3776
        %s3809 = sand.u32 %s97, 1
        %s3810 = scalar_lea.sflag [#allocation5], %s3809
        %s3811 = sand.u32 %s97, 1
        %s3812 = smul.addr %s3811, 256
        %s3813 = scalar_lea.vmem [#allocation9], %s3812
        // Predicated region
        $region52: #{tpu_custom_call.1} parent=31 // pred_check
          %p3814 = pneg %p107
        $region53: #{tpu_custom_call.1} parent=31 // pred_check_branch
          %3816 = sbr.rel (%p3814) target = $region55
        $region54: #{tpu_custom_call.1} parent=31 // pred_region
          %s3818 = ssub.s32 4096, 4096
          %3819 = vsyncadd %s3810, %s3818
          %s3820 = smul.addr %s21, 32
          %s3821 = smul.addr %s3820, 128
          %s3822 = scalar_lea.hbm %s3, %s3821
          %s3823 = sshll.u32 %s3813, 4
          %s3824 = int_to_ptr.vmem [resolvable:$true] %s3823
          %3829 = dma.vmem_to_hbm [thread:$0]  %s3824, 4096, %s3822, %s3810, 128, 128, 8
        $region55: #{tpu_custom_call.1} parent=31 // pred_fallthru
          _
      $region32: #{tpu_custom_call.1} parent=5 // pred_fallthru
        _
      %p3830 = scmp.le.s32.totalorder 2, %s16
      // Predicated region
      $region56: #{tpu_custom_call.1} parent=5 // pred_check
        %p3831 = pneg %p3830
      $region57: #{tpu_custom_call.1} parent=5 // pred_check_branch
        %3833 = sbr.rel (%p3831) target = $region59
      $region58: #{tpu_custom_call.1} parent=5 // pred_region
        %s3834 = ssub.s32 %s16, 2
        // Predicated region
        $region60: #{tpu_custom_call.1} parent=58 // pred_check
          %p3835 = pneg %p113
        $region61: #{tpu_custom_call.1} parent=58 // pred_check_branch
          %3837 = sbr.rel (%p3835) target = $region63
        $region62: #{tpu_custom_call.1} parent=58 // pred_region
          %s3838 = sand.u32 %s98, 1
          %s3839 = scalar_lea.sflag [#allocation5], %s3838
          %s3840 = sand.u32 %s98, 1
          %s3841 = smul.addr %s3840, 256
          %s3842 = scalar_lea.vmem [#allocation9], %s3841
          %3843 = dma.done %s3839, 4096
        $region63: #{tpu_custom_call.1} parent=58 // pred_fallthru
          _
      $region59: #{tpu_custom_call.1} parent=5 // pred_fallthru
        _
    $region6: #{tpu_custom_call.1} parent=1 // loop_footer
      %s20 = sadd.s32 1, %s16
    $region7: #{tpu_custom_call.1} parent=1 // loop_footer_branch
      %15 = sbr.rel target = $region3
    $region8: #{tpu_custom_call.1} parent=1 // loop_exit
      _
    %3844 = vsyncpa [#allocation4], 1
    %s3845 = scalar_lea.sflag [#allocation4], 1
    %3846 = vsyncpa %s3845, 1
    %3847 = vsyncpa [#allocation7], 1
    %3848 = vsyncpa [#allocation5], 1
    %s3849 = scalar_lea.sflag [#allocation5], 1
    %3850 = vsyncpa %s3849, 1

// kernel: tpu_custom_call.1
$region0: #{tpu_custom_call.1}
  #allocation0 [shape = 'u32[]', space=smem, size = 0x4, offset = 0x4, fixed_abs, tag = 'smem constant byte address 0x4 - core index']
  #allocation1 [shape = 'u32[144,128]{1,0:T(1,128)}', space=vmem, size = 0x12000, scoped, tag = 'internal scratch']
  #allocation2 [shape = 'f32[18,18,128]{2,1,0:T(8,128)}', space=vmem, size = 0x36000, scoped, tag = 'scratch operand']
  %s0 = inlined_call_operand.hbm [shape: f32[2,16,16,128], index: 0, kind: input, shape index: {}]
  %s1 = inlined_call_operand.hbm [shape: f32[18,128,128], index: 1, kind: input, shape index: {}]
  %s2 = inlined_call_operand.hbm [shape: f32[2,128,128], index: 2, kind: input, shape index: {}]
  %s3 = inlined_call_operand.hbm [shape: f32[2,16,16,128], index: 3, kind: output, shape index: {}]
  %s4 = sld [smem:[#allocation0]]
  $region64: #{tpu_custom_call.1} parent=0
    _
  %s6 = ssub.s32 1, %s4
  %s7 = scalar_select 0, %s6, %s4
  $region1: #{tpu_custom_call.1} parent=0
    #allocation3 [shape = 'u8[262144]{0}', space=vmem, size = 0x40000, scoped, tag = 'input window, operand 0']
    #allocation4 [shape = 's32[2]{0}', space=sflag, size = 0x8, scoped, tag = 'scoped memory for tpu_custom_call.1']
    #allocation5 [shape = 's32[2]{0}', space=sflag, size = 0x8, scoped, tag = 'scoped memory for tpu_custom_call.1']
    #allocation6 [shape = 'u8[1179648]{0}', space=vmem, size = 0x120000, scoped, tag = 'input window, operand 1, single buffered']
    #allocation7 [shape = 's32[1]{0}', space=sflag, size = 0x4, scoped, tag = 'scoped memory for tpu_custom_call.1']
    #allocation8 [shape = 'u8[131072]{0}', space=vmem, size = 0x20000, scoped, tag = 'input window, operand 2, single buffered']
    #allocation9 [shape = 'u8[262144]{0}', space=vmem, size = 0x40000, scoped, tag = 'output window, operand 0']
    %8 = vsyncpa [#allocation4], 0
    %s9 = scalar_lea.sflag [#allocation4], 1
    %10 = vsyncpa %s9, 0
    %11 = vsyncpa [#allocation7], 0
    %12 = vsyncpa [#allocation5], 0
    %s13 = scalar_lea.sflag [#allocation5], 1
    %14 = vsyncpa %s13, 0
    loop: start=0, step=1, limit=4
    $region2: #{tpu_custom_call.1} parent=1 // loop_pre_header
      _
    $region3: #{tpu_custom_call.1} parent=1 // loop_header
      %s16 = sphi 0, %s20
      %p17 = scmp.ge.s32.totalorder %s16, 4
      %s26 = sphi 0, %s28
      %s29 = sphi 0, %s26
      %s30 = sphi 0, %s29
      %s46 = sphi 0, %s30
      %s50 = sphi 0, %s50
      %s52 = sphi 0, %s50
      %s53 = sphi 0, %s52
      %s67 = sphi 0, %s53
      %s71 = sphi 0, %s71
      %s73 = sphi 0, %s71
      %s74 = sphi 0, %s73
      %s88 = sphi 0, %s74
      %s94 = sphi 0, %s96
      %s97 = sphi 0, %s94
      %s98 = sphi 0, %s97
      %s114 = sphi 0, %s98
    $region4: #{tpu_custom_call.1} parent=1 // loop_header_branch
      %19 = sbr.rel (%p17) target = $region8
    $region5: #{tpu_custom_call.1} parent=1 // loop_body
      %s21 = ssub.s32 %s16, 1
      %s22 = ssub.s32 %s16, 2
      %s23 = sadd.s32 %s16, 1
      %s24 = ssub.s32 %s16, %s23
      %p25 = scmp.eq.s32.totalorder %s24, 0
      %s27 = sadd.s32 %s26, 1
      %s28 = scalar_select %p25, %s26, %s27
      %p31 = pneg %p25
      %p32 = scmp.eq.s32.totalorder %s16, 1
      %p33 = por %p31, %p32
      %p34 = scmp.ne.s32.totalorder %s26, %s29
      %p35 = scmp.eq.s32.totalorder %s16, 0
      %p36 = por %p34, %p35
      %p37 = scmp.ne.s32.totalorder %s26, %s29
      %p38 = scmp.eq.s32.totalorder %s21, 1
      %p39 = por %p37, %p38
      %p40 = scmp.ne.s32.totalorder %s29, %s30
      %p41 = scmp.eq.s32.totalorder %s21, 0
      %p42 = por %p40, %p41
      %p43 = scmp.ne.s32.totalorder %s29, %s30
      %p44 = scmp.eq.s32.totalorder %s22, 1
      %p45 = por %p43, %p44
      %p47 = scmp.ne.s32.totalorder %s30, %s46
      %p48 = scmp.eq.s32.totalorder %s22, 0
      %p49 = por %p47, %p48
      %s51 = sadd.s32 %s50, 1
      %p54 = scmp.eq.s32.totalorder %s16, 1
      %p55 = scmp.ne.s32.totalorder %s50, %s52
      %p56 = scmp.eq.s32.totalorder %s16, 0
      %p57 = por %p55, %p56
      %p58 = scmp.ne.s32.totalorder %s50, %s52
      %p59 = scmp.eq.s32.totalorder %s21, 1
      %p60 = por %p58, %p59
      %p61 = scmp.ne.s32.totalorder %s52, %s53
      %p62 = scmp.eq.s32.totalorder %s21, 0
      %p63 = por %p61, %p62
      %p64 = scmp.ne.s32.totalorder %s52, %s53
      %p65 = scmp.eq.s32.totalorder %s22, 1
      %p66 = por %p64, %p65
      %p68 = scmp.ne.s32.totalorder %s53, %s67
      %p69 = scmp.eq.s32.totalorder %s22, 0
      %p70 = por %p68, %p69
      %s72 = sadd.s32 %s71, 1
      %p75 = scmp.eq.s32.totalorder %s16, 1
      %p76 = scmp.ne.s32.totalorder %s71, %s73
      %p77 = scmp.eq.s32.totalorder %s16, 0
      %p78 = por %p76, %p77
      %p79 = scmp.ne.s32.totalorder %s71, %s73
      %p80 = scmp.eq.s32.totalorder %s21, 1
      %p81 = por %p79, %p80
      %p82 = scmp.ne.s32.totalorder %s73, %s74
      %p83 = scmp.eq.s32.totalorder %s21, 0
      %p84 = por %p82, %p83
      %p85 = scmp.ne.s32.totalorder %s73, %s74
      %p86 = scmp.eq.s32.totalorder %s22, 1
      %p87 = por %p85, %p86
      %p89 = scmp.ne.s32.totalorder %s74, %s88
      %p90 = scmp.eq.s32.totalorder %s22, 0
      %p91 = por %p89, %p90
      %s92 = ssub.s32 %s16, %s23
      %p93 = scmp.eq.s32.totalorder %s92, 0
      %s95 = sadd.s32 %s94, 1
      %s96 = scalar_select %p93, %s94, %s95
      %p99 = pneg %p93
      %p100 = scmp.eq.s32.totalorder %s16, 1
      %p101 = por %p99, %p100
      %p102 = scmp.ne.s32.totalorder %s94, %s97
      %p103 = scmp.eq.s32.totalorder %s16, 0
      %p104 = por %p102, %p103
      %p105 = scmp.ne.s32.totalorder %s94, %s97
      %p106 = scmp.eq.s32.totalorder %s21, 1
      %p107 = por %p105, %p106
      %p108 = scmp.ne.s32.totalorder %s97, %s98
      %p109 = scmp.eq.s32.totalorder %s21, 0
      %p110 = por %p108, %p109
      %p111 = scmp.ne.s32.totalorder %s97, %s98
      %p112 = scmp.eq.s32.totalorder %s22, 1
      %p113 = por %p111, %p112
      %p115 = scmp.ne.s32.totalorder %s98, %s114
      %p116 = scmp.eq.s32.totalorder %s22, 0
      %p117 = por %p115, %p116
      %p118 = scmp.le.s32.totalorder 1, %s16
      %p119 = scmp.lt.s32.totalorder %s16, 3
      %p120 = pnand %p118, %p119
      %p121 = pneg %p120
      // Predicated region
      $region9: #{tpu_custom_call.1} parent=5 // pred_check
        _
      $region10: #{tpu_custom_call.1} parent=5 // pred_check_branch
        %123 = sbr.rel (%p120) target = $region12
      $region11: #{tpu_custom_call.1} parent=5 // pred_region
        %s124 = ssub.s32 %s16, 1
        // Predicated region
        $region13: #{tpu_custom_call.1} parent=11 // pred_check
          %p125 = pneg %p63
        $region14: #{tpu_custom_call.1} parent=11 // pred_check_branch
          %127 = sbr.rel (%p125) target = $region16
        $region15: #{tpu_custom_call.1} parent=11 // pred_region
          %s129 = ssub.s32 36864, 36864
          %130 = vsyncadd [#allocation7], %s129
          %s131 = sshll.u32 [#allocation6], 4
          %s132 = int_to_ptr.vmem [resolvable:$true] %s131
          %137 = dma.hbm_to_vmem [thread:$0]  %s1, 36864, %s132, [#allocation7], 128, 128, 8
        $region16: #{tpu_custom_call.1} parent=11 // pred_fallthru
          _
        // Predicated region
        $region17: #{tpu_custom_call.1} parent=11 // pred_check
          %p138 = pneg %p84
        $region18: #{tpu_custom_call.1} parent=11 // pred_check_branch
          %140 = sbr.rel (%p138) target = $region20
        $region19: #{tpu_custom_call.1} parent=11 // pred_region
          %s142 = ssub.s32 4096, 4096
          %143 = vsyncadd [#allocation7], %s142
          %s144 = sshll.u32 [#allocation8], 4
          %s145 = int_to_ptr.vmem [resolvable:$true] %s144
          %150 = dma.hbm_to_vmem [thread:$0]  %s2, 4096, %s145, [#allocation7], 128, 128, 8
        $region20: #{tpu_custom_call.1} parent=11 // pred_fallthru
          _
      $region12: #{tpu_custom_call.1} parent=5 // pred_fallthru
        _
      %p151 = scmp.lt.s32.totalorder %s16, 2
      // Predicated region
      $region21: #{tpu_custom_call.1} parent=5 // pred_check
        %p152 = pneg %p151
      $region22: #{tpu_custom_call.1} parent=5 // pred_check_branch
        %154 = sbr.rel (%p152) target = $region24
      $region23: #{tpu_custom_call.1} parent=5 // pred_region
        // Predicated region
        $region25: #{tpu_custom_call.1} parent=23 // pred_check
          %p155 = pneg %p36
        $region26: #{tpu_custom_call.1} parent=23 // pred_check_branch
          %157 = sbr.rel (%p155) target = $region28
        $region27: #{tpu_custom_call.1} parent=23 // pred_region
          %s158 = sand.u32 %s26, 1
          %s159 = scalar_lea.sflag [#allocation4], %s158
          %s160 = sand.u32 %s26, 1
          %s161 = smul.addr %s160, 256
          %s162 = scalar_lea.vmem [#allocation3], %s161
          %s164 = ssub.s32 4096, 4096
          %165 = vsyncadd %s159, %s164
          %s166 = smul.addr %s16, 32
          %s167 = smul.addr %s166, 128
          %s168 = scalar_lea.hbm %s0, %s167
          %s169 = sshll.u32 %s162, 4
          %s170 = int_to_ptr.vmem [resolvable:$true] %s169
          %175 = dma.hbm_to_vmem [thread:$0]  %s168, 4096, %s170, %s159, 128, 128, 8
        $region28: #{tpu_custom_call.1} parent=23 // pred_fallthru
          _
      $region24: #{tpu_custom_call.1} parent=5 // pred_fallthru
        _
      %p176 = scmp.le.s32.totalorder 1, %s16
      %p177 = scmp.lt.s32.totalorder %s16, 3
      %p178 = pnand %p176, %p177
      %p179 = pneg %p178
      // Predicated region
      $region29: #{tpu_custom_call.1} parent=5 // pred_check
        _
      $region30: #{tpu_custom_call.1} parent=5 // pred_check_branch
        %181 = sbr.rel (%p178) target = $region32
      $region31: #{tpu_custom_call.1} parent=5 // pred_region
        %s182 = ssub.s32 %s16, 1
        %s183 = sand.u32 %s29, 1
        %s184 = scalar_lea.sflag [#allocation4], %s183
        %s185 = sand.u32 %s29, 1
        %s186 = smul.addr %s185, 256
        %s187 = scalar_lea.vmem [#allocation3], %s186
        // Predicated region
        $region33: #{tpu_custom_call.1} parent=31 // pred_check
          %p188 = pneg %p42
        $region34: #{tpu_custom_call.1} parent=31 // pred_check_branch
          %190 = sbr.rel (%p188) target = $region36
        $region35: #{tpu_custom_call.1} parent=31 // pred_region
          %191 = dma.done %s184, 4096
        $region36: #{tpu_custom_call.1} parent=31 // pred_fallthru
          _
        // Predicated region
        $region37: #{tpu_custom_call.1} parent=31 // pred_check
          %p192 = pneg %p63
        $region38: #{tpu_custom_call.1} parent=31 // pred_check_branch
          %194 = sbr.rel (%p192) target = $region40
        $region39: #{tpu_custom_call.1} parent=31 // pred_region
          %195 = dma.done [#allocation7], 36864
        $region40: #{tpu_custom_call.1} parent=31 // pred_fallthru
          _
        // Predicated region
        $region41: #{tpu_custom_call.1} parent=31 // pred_check
          %p196 = pneg %p84
        $region42: #{tpu_custom_call.1} parent=31 // pred_check_branch
          %198 = sbr.rel (%p196) target = $region44
        $region43: #{tpu_custom_call.1} parent=31 // pred_region
          %199 = dma.done [#allocation7], 4096
        $region44: #{tpu_custom_call.1} parent=31 // pred_fallthru
          _
        %s200 = sand.u32 %s29, 1
        %s201 = scalar_lea.sflag [#allocation4], %s200
        %s202 = sand.u32 %s29, 1
        %s203 = smul.addr %s202, 256
        %s204 = scalar_lea.vmem [#allocation3], %s203
        %p205 = pneg %p42
        %p206 = pneg %p39
        %p207 = pneg %p63
        %p208 = pneg %p60
        %p209 = pneg %p84
        %p210 = pneg %p81
        %p211 = pneg %p110
        %p212 = pneg %p107
        %s213 = sand.u32 %s97, 1
        %s214 = scalar_lea.sflag [#allocation5], %s213
        %s215 = sand.u32 %s97, 1
        %s216 = smul.addr %s215, 256
        %s217 = scalar_lea.vmem [#allocation9], %s216
        %218 = vst [vmem:[#allocation2] sm:$0xff] 0.0
        %219 = vst [vmem:[#allocation2 + $0x8] sm:$0xff] 0.0
        %220 = vst [vmem:[#allocation2 + $0x10] sm:$0x3] 0.0
        %s221 = scalar_lea.vmem [#allocation2], 408
        %222 = vst [vmem:[%s221] sm:$0xff] 0.0
        %223 = vst [vmem:[%s221 + $0x8] sm:$0xff] 0.0
        %224 = vst [vmem:[%s221 + $0x10] sm:$0x3] 0.0
        %225 = vst [vmem:[#allocation2] sm:$0x1] 0.0
        %226 = vst [vmem:[#allocation2 + $0x18] sm:$0x1] 0.0
        %227 = vst [vmem:[#allocation2 + $0x30] sm:$0x1] 0.0
        %228 = vst [vmem:[#allocation2 + $0x48] sm:$0x1] 0.0
        %229 = vst [vmem:[#allocation2 + $0x60] sm:$0x1] 0.0
        %230 = vst [vmem:[#allocation2 + $0x78] sm:$0x1] 0.0
        %231 = vst [vmem:[#allocation2 + $0x90] sm:$0x1] 0.0
        %232 = vst [vmem:[#allocation2 + $0xa8] sm:$0x1] 0.0
        %233 = vst [vmem:[#allocation2 + $0xc0] sm:$0x1] 0.0
        %234 = vst [vmem:[#allocation2 + $0xd8] sm:$0x1] 0.0
        %235 = vst [vmem:[#allocation2 + $0xf0] sm:$0x1] 0.0
        %236 = vst [vmem:[#allocation2 + $0x108] sm:$0x1] 0.0
        %237 = vst [vmem:[#allocation2 + $0x120] sm:$0x1] 0.0
        %238 = vst [vmem:[#allocation2 + $0x138] sm:$0x1] 0.0
        %239 = vst [vmem:[#allocation2 + $0x150] sm:$0x1] 0.0
        %240 = vst [vmem:[#allocation2 + $0x168] sm:$0x1] 0.0
        %241 = vst [vmem:[#allocation2 + $0x180] sm:$0x1] 0.0
        %242 = vst [vmem:[#allocation2 + $0x198] sm:$0x1] 0.0
        %243 = vst [vmem:[#allocation2 + $0x11] sm:$0x1] 0.0
        %244 = vst [vmem:[#allocation2 + $0x29] sm:$0x1] 0.0
        %245 = vst [vmem:[#allocation2 + $0x41] sm:$0x1] 0.0
        %246 = vst [vmem:[#allocation2 + $0x59] sm:$0x1] 0.0
        %247 = vst [vmem:[#allocation2 + $0x71] sm:$0x1] 0.0
        %248 = vst [vmem:[#allocation2 + $0x89] sm:$0x1] 0.0
        %249 = vst [vmem:[#allocation2 + $0xa1] sm:$0x1] 0.0
        %250 = vst [vmem:[#allocation2 + $0xb9] sm:$0x1] 0.0
        %251 = vst [vmem:[#allocation2 + $0xd1] sm:$0x1] 0.0
        %252 = vst [vmem:[#allocation2 + $0xe9] sm:$0x1] 0.0
        %253 = vst [vmem:[#allocation2 + $0x101] sm:$0x1] 0.0
        %254 = vst [vmem:[#allocation2 + $0x119] sm:$0x1] 0.0
        %255 = vst [vmem:[#allocation2 + $0x131] sm:$0x1] 0.0
        %256 = vst [vmem:[#allocation2 + $0x149] sm:$0x1] 0.0
        %257 = vst [vmem:[#allocation2 + $0x161] sm:$0x1] 0.0
        %258 = vst [vmem:[#allocation2 + $0x179] sm:$0x1] 0.0
        %259 = vst [vmem:[#allocation2 + $0x191] sm:$0x1] 0.0
        %260 = vst [vmem:[#allocation2 + $0x1a9] sm:$0x1] 0.0
        %v261 = vld [vmem:[%s187] sm:$0xff]
        %v262 = vld [vmem:[%s187 + $0x8] sm:$0xff]
        %v263 = vld [vmem:[%s187 + $0x10] sm:$0xff]
        %v264 = vld [vmem:[%s187 + $0x18] sm:$0xff]
        %v265 = vld [vmem:[%s187 + $0x20] sm:$0xff]
        %v266 = vld [vmem:[%s187 + $0x28] sm:$0xff]
        %v267 = vld [vmem:[%s187 + $0x30] sm:$0xff]
        %v268 = vld [vmem:[%s187 + $0x38] sm:$0xff]
        %v269 = vld [vmem:[%s187 + $0x40] sm:$0xff]
        %v270 = vld [vmem:[%s187 + $0x48] sm:$0xff]
        %v271 = vld [vmem:[%s187 + $0x50] sm:$0xff]
        %v272 = vld [vmem:[%s187 + $0x58] sm:$0xff]
        %v273 = vld [vmem:[%s187 + $0x60] sm:$0xff]
        %v274 = vld [vmem:[%s187 + $0x68] sm:$0xff]
        %v275 = vld [vmem:[%s187 + $0x70] sm:$0xff]
        %v276 = vld [vmem:[%s187 + $0x78] sm:$0xff]
        %v277 = vld [vmem:[%s187 + $0x80] sm:$0xff]
        %v278 = vld [vmem:[%s187 + $0x88] sm:$0xff]
        %v279 = vld [vmem:[%s187 + $0x90] sm:$0xff]
        %v280 = vld [vmem:[%s187 + $0x98] sm:$0xff]
        %v281 = vld [vmem:[%s187 + $0xa0] sm:$0xff]
        %v282 = vld [vmem:[%s187 + $0xa8] sm:$0xff]
        %v283 = vld [vmem:[%s187 + $0xb0] sm:$0xff]
        %v284 = vld [vmem:[%s187 + $0xb8] sm:$0xff]
        %v285 = vld [vmem:[%s187 + $0xc0] sm:$0xff]
        %v286 = vld [vmem:[%s187 + $0xc8] sm:$0xff]
        %v287 = vld [vmem:[%s187 + $0xd0] sm:$0xff]
        %v288 = vld [vmem:[%s187 + $0xd8] sm:$0xff]
        %v289 = vld [vmem:[%s187 + $0xe0] sm:$0xff]
        %v290 = vld [vmem:[%s187 + $0xe8] sm:$0xff]
        %v291 = vld [vmem:[%s187 + $0xf0] sm:$0xff]
        %v292 = vld [vmem:[%s187 + $0xf8] sm:$0xff]
        %293 = vst [vmem:[%s217] sm:$0xff] %v261
        %294 = vst [vmem:[%s217 + $0x8] sm:$0xff] %v262
        %295 = vst [vmem:[%s217 + $0x10] sm:$0xff] %v263
        %296 = vst [vmem:[%s217 + $0x18] sm:$0xff] %v264
        %297 = vst [vmem:[%s217 + $0x20] sm:$0xff] %v265
        %298 = vst [vmem:[%s217 + $0x28] sm:$0xff] %v266
        %299 = vst [vmem:[%s217 + $0x30] sm:$0xff] %v267
        %300 = vst [vmem:[%s217 + $0x38] sm:$0xff] %v268
        %301 = vst [vmem:[%s217 + $0x40] sm:$0xff] %v269
        %302 = vst [vmem:[%s217 + $0x48] sm:$0xff] %v270
        %303 = vst [vmem:[%s217 + $0x50] sm:$0xff] %v271
        %304 = vst [vmem:[%s217 + $0x58] sm:$0xff] %v272
        %305 = vst [vmem:[%s217 + $0x60] sm:$0xff] %v273
        %306 = vst [vmem:[%s217 + $0x68] sm:$0xff] %v274
        %307 = vst [vmem:[%s217 + $0x70] sm:$0xff] %v275
        %308 = vst [vmem:[%s217 + $0x78] sm:$0xff] %v276
        %309 = vst [vmem:[%s217 + $0x80] sm:$0xff] %v277
        %310 = vst [vmem:[%s217 + $0x88] sm:$0xff] %v278
        %311 = vst [vmem:[%s217 + $0x90] sm:$0xff] %v279
        %312 = vst [vmem:[%s217 + $0x98] sm:$0xff] %v280
        %313 = vst [vmem:[%s217 + $0xa0] sm:$0xff] %v281
        %314 = vst [vmem:[%s217 + $0xa8] sm:$0xff] %v282
        %315 = vst [vmem:[%s217 + $0xb0] sm:$0xff] %v283
        %316 = vst [vmem:[%s217 + $0xb8] sm:$0xff] %v284
        %317 = vst [vmem:[%s217 + $0xc0] sm:$0xff] %v285
        %318 = vst [vmem:[%s217 + $0xc8] sm:$0xff] %v286
        %319 = vst [vmem:[%s217 + $0xd0] sm:$0xff] %v287
        %320 = vst [vmem:[%s217 + $0xd8] sm:$0xff] %v288
        %321 = vst [vmem:[%s217 + $0xe0] sm:$0xff] %v289
        %322 = vst [vmem:[%s217 + $0xe8] sm:$0xff] %v290
        %323 = vst [vmem:[%s217 + $0xf0] sm:$0xff] %v291
        %324 = vst [vmem:[%s217 + $0xf8] sm:$0xff] %v292
        loop: start=0, step=1, limit=2
        $region45: #{tpu_custom_call.1} parent=31 // loop_pre_header
          _
        $region46: #{tpu_custom_call.1} parent=31 // loop_header
          %s326 = sphi 0, %s330
          %p327 = scmp.ge.s32.totalorder %s326, 2
        $region47: #{tpu_custom_call.1} parent=31 // loop_header_branch
          %329 = sbr.rel (%p327) target = $region51
        $region48: #{tpu_custom_call.1} parent=31 // loop_body
          %v331 = vld [vmem:[%s217] sm:$0xff]
          %v332 = vld [vmem:[%s217 + $0x8] sm:$0xff]
          %v333 = vld [vmem:[%s217 + $0x10] sm:$0xff]
          %v334 = vld [vmem:[%s217 + $0x18] sm:$0xff]
          %v335 = vld [vmem:[%s217 + $0x20] sm:$0xff]
          %v336 = vld [vmem:[%s217 + $0x28] sm:$0xff]
          %v337 = vld [vmem:[%s217 + $0x30] sm:$0xff]
          %v338 = vld [vmem:[%s217 + $0x38] sm:$0xff]
          %v339 = vld [vmem:[%s217 + $0x40] sm:$0xff]
          %v340 = vld [vmem:[%s217 + $0x48] sm:$0xff]
          %v341 = vld [vmem:[%s217 + $0x50] sm:$0xff]
          %v342 = vld [vmem:[%s217 + $0x58] sm:$0xff]
          %v343 = vld [vmem:[%s217 + $0x60] sm:$0xff]
          %v344 = vld [vmem:[%s217 + $0x68] sm:$0xff]
          %v345 = vld [vmem:[%s217 + $0x70] sm:$0xff]
          %v346 = vld [vmem:[%s217 + $0x78] sm:$0xff]
          %v347 = vld [vmem:[%s217 + $0x80] sm:$0xff]
          %v348 = vld [vmem:[%s217 + $0x88] sm:$0xff]
          %v349 = vld [vmem:[%s217 + $0x90] sm:$0xff]
          %v350 = vld [vmem:[%s217 + $0x98] sm:$0xff]
          %v351 = vld [vmem:[%s217 + $0xa0] sm:$0xff]
          %v352 = vld [vmem:[%s217 + $0xa8] sm:$0xff]
          %v353 = vld [vmem:[%s217 + $0xb0] sm:$0xff]
          %v354 = vld [vmem:[%s217 + $0xb8] sm:$0xff]
          %v355 = vld [vmem:[%s217 + $0xc0] sm:$0xff]
          %v356 = vld [vmem:[%s217 + $0xc8] sm:$0xff]
          %v357 = vld [vmem:[%s217 + $0xd0] sm:$0xff]
          %v358 = vld [vmem:[%s217 + $0xd8] sm:$0xff]
          %v359 = vld [vmem:[%s217 + $0xe0] sm:$0xff]
          %v360 = vld [vmem:[%s217 + $0xe8] sm:$0xff]
          %v361 = vld [vmem:[%s217 + $0xf0] sm:$0xff]
          %v362 = vld [vmem:[%s217 + $0xf8] sm:$0xff]
          %v363 = vmul.f32 %v331, 0.5
          %v364 = vmul.f32 %v332, 0.5
          %v365 = vmul.f32 %v333, 0.5
          %v366 = vmul.f32 %v334, 0.5
          %v367 = vmul.f32 %v335, 0.5
          %v368 = vmul.f32 %v336, 0.5
          %v369 = vmul.f32 %v337, 0.5
          %v370 = vmul.f32 %v338, 0.5
          %v371 = vmul.f32 %v339, 0.5
          %v372 = vmul.f32 %v340, 0.5
          %v373 = vmul.f32 %v341, 0.5
          %v374 = vmul.f32 %v342, 0.5
          %v375 = vmul.f32 %v343, 0.5
          %v376 = vmul.f32 %v344, 0.5
          %v377 = vmul.f32 %v345, 0.5
          %v378 = vmul.f32 %v346, 0.5
          %v379 = vmul.f32 %v347, 0.5
          %v380 = vmul.f32 %v348, 0.5
          %v381 = vmul.f32 %v349, 0.5
          %v382 = vmul.f32 %v350, 0.5
          %v383 = vmul.f32 %v351, 0.5
          %v384 = vmul.f32 %v352, 0.5
          %v385 = vmul.f32 %v353, 0.5
          %v386 = vmul.f32 %v354, 0.5
          %v387 = vmul.f32 %v355, 0.5
          %v388 = vmul.f32 %v356, 0.5
          %v389 = vmul.f32 %v357, 0.5
          %v390 = vmul.f32 %v358, 0.5
          %v391 = vmul.f32 %v359, 0.5
          %v392 = vmul.f32 %v360, 0.5
          %v393 = vmul.f32 %v361, 0.5
          %v394 = vmul.f32 %v362, 0.5
          %v395 = vrcp.pop 1.4142135
          %v396 = vmul.f32 %v331, %v395
          %v397 = vmul.f32 %v332, %v395
          %v398 = vmul.f32 %v333, %v395
          %v399 = vmul.f32 %v334, %v395
          %v400 = vmul.f32 %v335, %v395
          %v401 = vmul.f32 %v336, %v395
          %v402 = vmul.f32 %v337, %v395
          %v403 = vmul.f32 %v338, %v395
          %v404 = vmul.f32 %v339, %v395
          %v405 = vmul.f32 %v340, %v395
          %v406 = vmul.f32 %v341, %v395
          %v407 = vmul.f32 %v342, %v395
          %v408 = vmul.f32 %v343, %v395
          %v409 = vmul.f32 %v344, %v395
          %v410 = vmul.f32 %v345, %v395
          %v411 = vmul.f32 %v346, %v395
          %v412 = vmul.f32 %v347, %v395
          %v413 = vmul.f32 %v348, %v395
          %v414 = vmul.f32 %v349, %v395
          %v415 = vmul.f32 %v350, %v395
          %v416 = vmul.f32 %v351, %v395
          %v417 = vmul.f32 %v352, %v395
          %v418 = vmul.f32 %v353, %v395
          %v419 = vmul.f32 %v354, %v395
          %v420 = vmul.f32 %v355, %v395
          %v421 = vmul.f32 %v356, %v395
          %v422 = vmul.f32 %v357, %v395
          %v423 = vmul.f32 %v358, %v395
          %v424 = vmul.f32 %v359, %v395
          %v425 = vmul.f32 %v360, %v395
          %v426 = vmul.f32 %v361, %v395
          %v427 = vmul.f32 %v362, %v395
          %v428 = verf.f32.pop %v396
          %v429 = verf.f32.pop %v397
          %v430 = verf.f32.pop %v398
          %v431 = verf.f32.pop %v399
          %v432 = verf.f32.pop %v400
          %v433 = verf.f32.pop %v401
          %v434 = verf.f32.pop %v402
          %v435 = verf.f32.pop %v403
          %v436 = verf.f32.pop %v404
          %v437 = verf.f32.pop %v405
          %v438 = verf.f32.pop %v406
          %v439 = verf.f32.pop %v407
          %v440 = verf.f32.pop %v408
          %v441 = verf.f32.pop %v409
          %v442 = verf.f32.pop %v410
          %v443 = verf.f32.pop %v411
          %v444 = verf.f32.pop %v412
          %v445 = verf.f32.pop %v413
          %v446 = verf.f32.pop %v414
          %v447 = verf.f32.pop %v415
          %v448 = verf.f32.pop %v416
          %v449 = verf.f32.pop %v417
          %v450 = verf.f32.pop %v418
          %v451 = verf.f32.pop %v419
          %v452 = verf.f32.pop %v420
          %v453 = verf.f32.pop %v421
          %v454 = verf.f32.pop %v422
          %v455 = verf.f32.pop %v423
          %v456 = verf.f32.pop %v424
          %v457 = verf.f32.pop %v425
          %v458 = verf.f32.pop %v426
          %v459 = verf.f32.pop %v427
          %v460 = vadd.f32 %v428, 1.0
          %v461 = vadd.f32 %v429, 1.0
          %v462 = vadd.f32 %v430, 1.0
          %v463 = vadd.f32 %v431, 1.0
          %v464 = vadd.f32 %v432, 1.0
          %v465 = vadd.f32 %v433, 1.0
          %v466 = vadd.f32 %v434, 1.0
          %v467 = vadd.f32 %v435, 1.0
          %v468 = vadd.f32 %v436, 1.0
          %v469 = vadd.f32 %v437, 1.0
          %v470 = vadd.f32 %v438, 1.0
          %v471 = vadd.f32 %v439, 1.0
          %v472 = vadd.f32 %v440, 1.0
          %v473 = vadd.f32 %v441, 1.0
          %v474 = vadd.f32 %v442, 1.0
          %v475 = vadd.f32 %v443, 1.0
          %v476 = vadd.f32 %v444, 1.0
          %v477 = vadd.f32 %v445, 1.0
          %v478 = vadd.f32 %v446, 1.0
          %v479 = vadd.f32 %v447, 1.0
          %v480 = vadd.f32 %v448, 1.0
          %v481 = vadd.f32 %v449, 1.0
          %v482 = vadd.f32 %v450, 1.0
          %v483 = vadd.f32 %v451, 1.0
          %v484 = vadd.f32 %v452, 1.0
          %v485 = vadd.f32 %v453, 1.0
          %v486 = vadd.f32 %v454, 1.0
          %v487 = vadd.f32 %v455, 1.0
          %v488 = vadd.f32 %v456, 1.0
          %v489 = vadd.f32 %v457, 1.0
          %v490 = vadd.f32 %v458, 1.0
          %v491 = vadd.f32 %v459, 1.0
          %v492 = vmul.f32 %v363, %v460
          %v493 = vmul.f32 %v364, %v461
          %v494 = vmul.f32 %v365, %v462
          %v495 = vmul.f32 %v366, %v463
          %v496 = vmul.f32 %v367, %v464
          %v497 = vmul.f32 %v368, %v465
          %v498 = vmul.f32 %v369, %v466
          %v499 = vmul.f32 %v370, %v467
          %v500 = vmul.f32 %v371, %v468
          %v501 = vmul.f32 %v372, %v469
          %v502 = vmul.f32 %v373, %v470
          %v503 = vmul.f32 %v374, %v471
          %v504 = vmul.f32 %v375, %v472
          %v505 = vmul.f32 %v376, %v473
          %v506 = vmul.f32 %v377, %v474
          %v507 = vmul.f32 %v378, %v475
          %v508 = vmul.f32 %v379, %v476
          %v509 = vmul.f32 %v380, %v477
          %v510 = vmul.f32 %v381, %v478
          %v511 = vmul.f32 %v382, %v479
          %v512 = vmul.f32 %v383, %v480
          %v513 = vmul.f32 %v384, %v481
          %v514 = vmul.f32 %v385, %v482
          %v515 = vmul.f32 %v386, %v483
          %v516 = vmul.f32 %v387, %v484
          %v517 = vmul.f32 %v388, %v485
          %v518 = vmul.f32 %v389, %v486
          %v519 = vmul.f32 %v390, %v487
          %v520 = vmul.f32 %v391, %v488
          %v521 = vmul.f32 %v392, %v489
          %v522 = vmul.f32 %v393, %v490
          %v523 = vmul.f32 %v394, %v491
          %s524 = scalar_lea.vmem [#allocation2], 24
          %525 = vst [vmem:[%s524 + $0x1] sm:$0xff] %v492
          %526 = vst [vmem:[%s524 + $0x9] sm:$0xff] %v493
          %527 = vst [vmem:[%s524 + $0x19] sm:$0xff] %v494
          %528 = vst [vmem:[%s524 + $0x21] sm:$0xff] %v495
          %529 = vst [vmem:[%s524 + $0x31] sm:$0xff] %v496
          %530 = vst [vmem:[%s524 + $0x39] sm:$0xff] %v497
          %531 = vst [vmem:[%s524 + $0x49] sm:$0xff] %v498
          %532 = vst [vmem:[%s524 + $0x51] sm:$0xff] %v499
          %533 = vst [vmem:[%s524 + $0x61] sm:$0xff] %v500
          %534 = vst [vmem:[%s524 + $0x69] sm:$0xff] %v501
          %535 = vst [vmem:[%s524 + $0x79] sm:$0xff] %v502
          %536 = vst [vmem:[%s524 + $0x81] sm:$0xff] %v503
          %537 = vst [vmem:[%s524 + $0x91] sm:$0xff] %v504
          %538 = vst [vmem:[%s524 + $0x99] sm:$0xff] %v505
          %539 = vst [vmem:[%s524 + $0xa9] sm:$0xff] %v506
          %540 = vst [vmem:[%s524 + $0xb1] sm:$0xff] %v507
          %541 = vst [vmem:[%s524 + $0xc1] sm:$0xff] %v508
          %542 = vst [vmem:[%s524 + $0xc9] sm:$0xff] %v509
          %543 = vst [vmem:[%s524 + $0xd9] sm:$0xff] %v510
          %544 = vst [vmem:[%s524 + $0xe1] sm:$0xff] %v511
          %545 = vst [vmem:[%s524 + $0xf1] sm:$0xff] %v512
          %546 = vst [vmem:[%s524 + $0xf9] sm:$0xff] %v513
          %547 = vst [vmem:[%s524 + $0x109] sm:$0xff] %v514
          %548 = vst [vmem:[%s524 + $0x111] sm:$0xff] %v515
          %549 = vst [vmem:[%s524 + $0x121] sm:$0xff] %v516
          %550 = vst [vmem:[%s524 + $0x129] sm:$0xff] %v517
          %551 = vst [vmem:[%s524 + $0x139] sm:$0xff] %v518
          %552 = vst [vmem:[%s524 + $0x141] sm:$0xff] %v519
          %553 = vst [vmem:[%s524 + $0x151] sm:$0xff] %v520
          %554 = vst [vmem:[%s524 + $0x159] sm:$0xff] %v521
          %555 = vst [vmem:[%s524 + $0x169] sm:$0xff] %v522
          %556 = vst [vmem:[%s524 + $0x171] sm:$0xff] %v523
          %v557 = vld [vmem:[#allocation2] sm:$0xff]
          %v558 = vld [vmem:[#allocation2 + $0x8] sm:$0xff]
          %v559 = vld [vmem:[#allocation2 + $0x18] sm:$0xff]
          %v560 = vld [vmem:[#allocation2 + $0x20] sm:$0xff]
          %v561 = vld [vmem:[#allocation2 + $0x30] sm:$0xff]
          %v562 = vld [vmem:[#allocation2 + $0x38] sm:$0xff]
          %v563 = vld [vmem:[#allocation2 + $0x48] sm:$0xff]
          %v564 = vld [vmem:[#allocation2 + $0x50] sm:$0xff]
          %v565 = vld [vmem:[#allocation2 + $0x60] sm:$0xff]
          %v566 = vld [vmem:[#allocation2 + $0x68] sm:$0xff]
          %v567 = vld [vmem:[#allocation2 + $0x78] sm:$0xff]
          %v568 = vld [vmem:[#allocation2 + $0x80] sm:$0xff]
          %v569 = vld [vmem:[#allocation2 + $0x90] sm:$0xff]
          %v570 = vld [vmem:[#allocation2 + $0x98] sm:$0xff]
          %v571 = vld [vmem:[#allocation2 + $0xa8] sm:$0xff]
          %v572 = vld [vmem:[#allocation2 + $0xb0] sm:$0xff]
          %v573 = vld [vmem:[#allocation2 + $0xc0] sm:$0xff]
          %v574 = vld [vmem:[#allocation2 + $0xc8] sm:$0xff]
          %v575 = vld [vmem:[#allocation2 + $0xd8] sm:$0xff]
          %v576 = vld [vmem:[#allocation2 + $0xe0] sm:$0xff]
          %v577 = vld [vmem:[#allocation2 + $0xf0] sm:$0xff]
          %v578 = vld [vmem:[#allocation2 + $0xf8] sm:$0xff]
          %v579 = vld [vmem:[#allocation2 + $0x108] sm:$0xff]
          %v580 = vld [vmem:[#allocation2 + $0x110] sm:$0xff]
          %v581 = vld [vmem:[#allocation2 + $0x120] sm:$0xff]
          %v582 = vld [vmem:[#allocation2 + $0x128] sm:$0xff]
          %v583 = vld [vmem:[#allocation2 + $0x138] sm:$0xff]
          %v584 = vld [vmem:[#allocation2 + $0x140] sm:$0xff]
          %v585 = vld [vmem:[#allocation2 + $0x150] sm:$0xff]
          %v586 = vld [vmem:[#allocation2 + $0x158] sm:$0xff]
          %v587 = vld [vmem:[#allocation2 + $0x168] sm:$0xff]
          %v588 = vld [vmem:[#allocation2 + $0x170] sm:$0xff]
          %v589 = vld [vmem:[#allocation2 + $0x180] sm:$0xff]
          %v590 = vld [vmem:[#allocation2 + $0x188] sm:$0xff]
          %v591 = vld [vmem:[#allocation2 + $0x198] sm:$0xff]
          %v592 = vld [vmem:[#allocation2 + $0x1a0] sm:$0xff]
          %s593 = smul.u32 %s326, 9
          %s594 = smul.u32 %s593, 128
          %s595 = scalar_lea.vmem [#allocation6], %s594
          %v596 = vld [vmem:[%s595] sm:$0xff]
          %v597 = vld [vmem:[%s595 + $0x8] sm:$0xff]
          %v598 = vld [vmem:[%s595 + $0x10] sm:$0xff]
          %v599 = vld [vmem:[%s595 + $0x18] sm:$0xff]
          %v600 = vld [vmem:[%s595 + $0x20] sm:$0xff]
          %v601 = vld [vmem:[%s595 + $0x28] sm:$0xff]
          %v602 = vld [vmem:[%s595 + $0x30] sm:$0xff]
          %v603 = vld [vmem:[%s595 + $0x38] sm:$0xff]
          %v604 = vld [vmem:[%s595 + $0x40] sm:$0xff]
          %v605 = vld [vmem:[%s595 + $0x48] sm:$0xff]
          %v606 = vld [vmem:[%s595 + $0x50] sm:$0xff]
          %v607 = vld [vmem:[%s595 + $0x58] sm:$0xff]
          %v608 = vld [vmem:[%s595 + $0x60] sm:$0xff]
          %v609 = vld [vmem:[%s595 + $0x68] sm:$0xff]
          %v610 = vld [vmem:[%s595 + $0x70] sm:$0xff]
          %v611 = vld [vmem:[%s595 + $0x78] sm:$0xff]
          %s612 = sadd.s32 %s593, 3
          %s613 = smul.u32 %s612, 128
          %s614 = scalar_lea.vmem [#allocation6], %s613
          %v615 = vld [vmem:[%s614] sm:$0xff]
          %v616 = vld [vmem:[%s614 + $0x8] sm:$0xff]
          %v617 = vld [vmem:[%s614 + $0x10] sm:$0xff]
          %v618 = vld [vmem:[%s614 + $0x18] sm:$0xff]
          %v619 = vld [vmem:[%s614 + $0x20] sm:$0xff]
          %v620 = vld [vmem:[%s614 + $0x28] sm:$0xff]
          %v621 = vld [vmem:[%s614 + $0x30] sm:$0xff]
          %v622 = vld [vmem:[%s614 + $0x38] sm:$0xff]
          %v623 = vld [vmem:[%s614 + $0x40] sm:$0xff]
          %v624 = vld [vmem:[%s614 + $0x48] sm:$0xff]
          %v625 = vld [vmem:[%s614 + $0x50] sm:$0xff]
          %v626 = vld [vmem:[%s614 + $0x58] sm:$0xff]
          %v627 = vld [vmem:[%s614 + $0x60] sm:$0xff]
          %v628 = vld [vmem:[%s614 + $0x68] sm:$0xff]
          %v629 = vld [vmem:[%s614 + $0x70] sm:$0xff]
          %v630 = vld [vmem:[%s614 + $0x78] sm:$0xff]
          %631 = vmatprep.subr.mxu0 0.0
          %632 = vmatpush1.msra.mxu0 %v615
          %633 = vmatprep.subr.mxu0 0.0
          %634 = vmatpush1.msra.mxu0 %v616
          %635 = vmatprep.subr.mxu0 0.0
          %636 = vmatpush1.msra.mxu0 %v617
          %637 = vmatprep.subr.mxu0 0.0
          %638 = vmatpush1.msra.mxu0 %v618
          %639 = vmatprep.subr.mxu0 0.0
          %640 = vmatpush1.msra.mxu0 %v619
          %641 = vmatprep.subr.mxu0 0.0
          %642 = vmatpush1.msra.mxu0 %v620
          %643 = vmatprep.subr.mxu0 0.0
          %644 = vmatpush1.msra.mxu0 %v621
          %645 = vmatprep.subr.mxu0 0.0
          %646 = vmatpush1.msra.mxu0 %v622
          %647 = vmatprep.subr.mxu0 0.0
          %648 = vmatpush1.msra.mxu0 %v623
          %649 = vmatprep.subr.mxu0 0.0
          %650 = vmatpush1.msra.mxu0 %v624
          %651 = vmatprep.subr.mxu0 0.0
          %652 = vmatpush1.msra.mxu0 %v625
          %653 = vmatprep.subr.mxu0 0.0
          %654 = vmatpush1.msra.mxu0 %v626
          %655 = vmatprep.subr.mxu0 0.0
          %656 = vmatpush1.msra.mxu0 %v627
          %657 = vmatprep.subr.mxu0 0.0
          %658 = vmatpush1.msra.mxu0 %v628
          %659 = vmatprep.subr.mxu0 0.0
          %660 = vmatpush1.msra.mxu0 %v629
          %661 = vmatprep.subr.mxu0 0.0
          %662 = vmatpush1.msra.mxu0 %v630
          %663 = vmatprep.subr.mxu0 0.0
          %664 = vmatpush1.msra.mxu0 0.0
          %665 = vmatprep.subr.mxu0 0.0
          %666 = vmatpush1.msra.mxu0 0.0
          %667 = vmatprep.subr.mxu0 0.0
          %668 = vmatpush1.msra.mxu0 0.0
          %669 = vmatprep.subr.mxu0 0.0
          %670 = vmatpush1.msra.mxu0 0.0
          %671 = vmatprep.subr.mxu0 0.0
          %672 = vmatpush1.msra.mxu0 0.0
          %673 = vmatprep.subr.mxu0 0.0
          %674 = vmatpush1.msra.mxu0 0.0
          %675 = vmatprep.subr.mxu0 0.0
          %676 = vmatpush1.msra.mxu0 0.0
          %677 = vmatprep.subr.mxu0 0.0
          %678 = vmatpush1.msra.mxu0 0.0
          %679 = vmatprep.subr.mxu0 0.0
          %680 = vmatpush1.msra.mxu0 0.0
          %681 = vmatprep.subr.mxu0 0.0
          %682 = vmatpush1.msra.mxu0 0.0
          %683 = vmatprep.subr.mxu0 0.0
          %684 = vmatpush1.msra.mxu0 0.0
          %685 = vmatprep.subr.mxu0 0.0
          %686 = vmatpush1.msra.mxu0 0.0
          %687 = vmatprep.subr.mxu0 0.0
          %688 = vmatpush1.msra.mxu0 0.0
          %689 = vmatprep.subr.mxu0 0.0
          %690 = vmatpush1.msra.mxu0 0.0
          %691 = vmatprep.subr.mxu0 0.0
          %692 = vmatpush1.msra.mxu0 0.0
          %693 = vmatprep.subr.mxu0 0.0
          %694 = vmatpush1.msra.mxu0 0.0
          %695 = vmatprep.mubr.f32.mxu0 0.0
          %696 = vmatmul.mubr.f32.gmra.mrb[0].mxu0 %v559
          %v697 = vpop.f32.mrb[0].mxu0
          %v698 = vadd.f32 0.0, %v697
          %v699 = vpop.f32.mrb[0].mxu0
          %700 = vmatprep.mubr.f32.mxu0 0.0
          %701 = vmatmul.mubr.f32.gmra.mrb[0].mxu0 %v560
          %v702 = vpop.f32.mrb[0].mxu0
          %v703 = vadd.f32 0.0, %v702
          %v704 = vpop.f32.mrb[0].mxu0
          %705 = vmatprep.mubr.f32.mxu0 0.0
          %706 = vmatmul.mubr.f32.gmra.mrb[0].mxu0 %v561
          %v707 = vpop.f32.mrb[0].mxu0
          %v708 = vadd.f32 0.0, %v707
          %v709 = vpop.f32.mrb[0].mxu0
          %710 = vmatprep.mubr.f32.mxu0 0.0
          %711 = vmatmul.mubr.f32.gmra.mrb[0].mxu0 %v562
          %v712 = vpop.f32.mrb[0].mxu0
          %v713 = vadd.f32 0.0, %v712
          %v714 = vpop.f32.mrb[0].mxu0
          %715 = vmatprep.mubr.f32.mxu0 0.0
          %716 = vmatmul.mubr.f32.gmra.mrb[0].mxu0 %v563
          %v717 = vpop.f32.mrb[0].mxu0
          %v718 = vadd.f32 0.0, %v717
          %v719 = vpop.f32.mrb[0].mxu0
          %720 = vmatprep.mubr.f32.mxu0 0.0
          %721 = vmatmul.mubr.f32.gmra.mrb[0].mxu0 %v564
          %v722 = vpop.f32.mrb[0].mxu0
          %v723 = vadd.f32 0.0, %v722
          %v724 = vpop.f32.mrb[0].mxu0
          %725 = vmatprep.mubr.f32.mxu0 0.0
          %726 = vmatmul.mubr.f32.gmra.mrb[0].mxu0 %v565
          %v727 = vpop.f32.mrb[0].mxu0
          %v728 = vadd.f32 0.0, %v727
          %v729 = vpop.f32.mrb[0].mxu0
          %730 = vmatprep.mubr.f32.mxu0 0.0
          %731 = vmatmul.mubr.f32.gmra.mrb[0].mxu0 %v566
          %v732 = vpop.f32.mrb[0].mxu0
          %v733 = vadd.f32 0.0, %v732
          %v734 = vpop.f32.mrb[0].mxu0
          %735 = vmatprep.mubr.f32.mxu0 0.0
          %736 = vmatmul.mubr.f32.gmra.mrb[0].mxu0 %v567
          %v737 = vpop.f32.mrb[0].mxu0
          %v738 = vadd.f32 0.0, %v737
          %v739 = vpop.f32.mrb[0].mxu0
          %740 = vmatprep.mubr.f32.mxu0 0.0
          %741 = vmatmul.mubr.f32.gmra.mrb[0].mxu0 %v568
          %v742 = vpop.f32.mrb[0].mxu0
          %v743 = vadd.f32 0.0, %v742
          %v744 = vpop.f32.mrb[0].mxu0
          %745 = vmatprep.mubr.f32.mxu0 0.0
          %746 = vmatmul.mubr.f32.gmra.mrb[0].mxu0 %v569
          %v747 = vpop.f32.mrb[0].mxu0
          %v748 = vadd.f32 0.0, %v747
          %v749 = vpop.f32.mrb[0].mxu0
          %750 = vmatprep.mubr.f32.mxu0 0.0
          %751 = vmatmul.mubr.f32.gmra.mrb[0].mxu0 %v570
          %v752 = vpop.f32.mrb[0].mxu0
          %v753 = vadd.f32 0.0, %v752
          %v754 = vpop.f32.mrb[0].mxu0
          %755 = vmatprep.mubr.f32.mxu0 0.0
          %756 = vmatmul.mubr.f32.gmra.mrb[0].mxu0 %v571
          %v757 = vpop.f32.mrb[0].mxu0
          %v758 = vadd.f32 0.0, %v757
          %v759 = vpop.f32.mrb[0].mxu0
          %760 = vmatprep.mubr.f32.mxu0 0.0
          %761 = vmatmul.mubr.f32.gmra.mrb[0].mxu0 %v572
          %v762 = vpop.f32.mrb[0].mxu0
          %v763 = vadd.f32 0.0, %v762
          %v764 = vpop.f32.mrb[0].mxu0
          %765 = vmatprep.mubr.f32.mxu0 0.0
          %766 = vmatmul.mubr.f32.gmra.mrb[0].mxu0 %v573
          %v767 = vpop.f32.mrb[0].mxu0
          %v768 = vadd.f32 0.0, %v767
          %v769 = vpop.f32.mrb[0].mxu0
          %770 = vmatprep.mubr.f32.mxu0 0.0
          %771 = vmatmul.mubr.f32.gmra.mrb[0].mxu0 %v574
          %v772 = vpop.f32.mrb[0].mxu0
          %v773 = vadd.f32 0.0, %v772
          %v774 = vpop.f32.mrb[0].mxu0
          %775 = vmatprep.mubr.f32.mxu0 0.0
          %776 = vmatmul.mubr.f32.gmra.mrb[0].mxu0 %v575
          %v777 = vpop.f32.mrb[0].mxu0
          %v778 = vadd.f32 0.0, %v777
          %v779 = vpop.f32.mrb[0].mxu0
          %780 = vmatprep.mubr.f32.mxu0 0.0
          %781 = vmatmul.mubr.f32.gmra.mrb[0].mxu0 %v576
          %v782 = vpop.f32.mrb[0].mxu0
          %v783 = vadd.f32 0.0, %v782
          %v784 = vpop.f32.mrb[0].mxu0
          %785 = vmatprep.mubr.f32.mxu0 0.0
          %786 = vmatmul.mubr.f32.gmra.mrb[0].mxu0 %v577
          %v787 = vpop.f32.mrb[0].mxu0
          %v788 = vadd.f32 0.0, %v787
          %v789 = vpop.f32.mrb[0].mxu0
          %790 = vmatprep.mubr.f32.mxu0 0.0
          %791 = vmatmul.mubr.f32.gmra.mrb[0].mxu0 %v578
          %v792 = vpop.f32.mrb[0].mxu0
          %v793 = vadd.f32 0.0, %v792
          %v794 = vpop.f32.mrb[0].mxu0
          %795 = vmatprep.mubr.f32.mxu0 0.0
          %796 = vmatmul.mubr.f32.gmra.mrb[0].mxu0 %v579
          %v797 = vpop.f32.mrb[0].mxu0
          %v798 = vadd.f32 0.0, %v797
          %v799 = vpop.f32.mrb[0].mxu0
          %800 = vmatprep.mubr.f32.mxu0 0.0
          %801 = vmatmul.mubr.f32.gmra.mrb[0].mxu0 %v580
          %v802 = vpop.f32.mrb[0].mxu0
          %v803 = vadd.f32 0.0, %v802
          %v804 = vpop.f32.mrb[0].mxu0
          %805 = vmatprep.mubr.f32.mxu0 0.0
          %806 = vmatmul.mubr.f32.gmra.mrb[0].mxu0 %v581
          %v807 = vpop.f32.mrb[0].mxu0
          %v808 = vadd.f32 0.0, %v807
          %v809 = vpop.f32.mrb[0].mxu0
          %810 = vmatprep.mubr.f32.mxu0 0.0
          %811 = vmatmul.mubr.f32.gmra.mrb[0].mxu0 %v582
          %v812 = vpop.f32.mrb[0].mxu0
          %v813 = vadd.f32 0.0, %v812
          %v814 = vpop.f32.mrb[0].mxu0
          %815 = vmatprep.mubr.f32.mxu0 0.0
          %816 = vmatmul.mubr.f32.gmra.mrb[0].mxu0 %v583
          %v817 = vpop.f32.mrb[0].mxu0
          %v818 = vadd.f32 0.0, %v817
          %v819 = vpop.f32.mrb[0].mxu0
          %820 = vmatprep.mubr.f32.mxu0 0.0
          %821 = vmatmul.mubr.f32.gmra.mrb[0].mxu0 %v584
          %v822 = vpop.f32.mrb[0].mxu0
          %v823 = vadd.f32 0.0, %v822
          %v824 = vpop.f32.mrb[0].mxu0
          %825 = vmatprep.mubr.f32.mxu0 0.0
          %826 = vmatmul.mubr.f32.gmra.mrb[0].mxu0 %v585
          %v827 = vpop.f32.mrb[0].mxu0
          %v828 = vadd.f32 0.0, %v827
          %v829 = vpop.f32.mrb[0].mxu0
          %830 = vmatprep.mubr.f32.mxu0 0.0
          %831 = vmatmul.mubr.f32.gmra.mrb[0].mxu0 %v586
          %v832 = vpop.f32.mrb[0].mxu0
          %v833 = vadd.f32 0.0, %v832
          %v834 = vpop.f32.mrb[0].mxu0
          %835 = vmatprep.mubr.f32.mxu0 0.0
          %836 = vmatmul.mubr.f32.gmra.mrb[0].mxu0 %v587
          %v837 = vpop.f32.mrb[0].mxu0
          %v838 = vadd.f32 0.0, %v837
          %v839 = vpop.f32.mrb[0].mxu0
          %840 = vmatprep.mubr.f32.mxu0 0.0
          %841 = vmatmul.mubr.f32.gmra.mrb[0].mxu0 %v588
          %v842 = vpop.f32.mrb[0].mxu0
          %v843 = vadd.f32 0.0, %v842
          %v844 = vpop.f32.mrb[0].mxu0
          %845 = vmatprep.mubr.f32.mxu0 0.0
          %846 = vmatmul.mubr.f32.gmra.mrb[0].mxu0 %v589
          %v847 = vpop.f32.mrb[0].mxu0
          %v848 = vadd.f32 0.0, %v847
          %v849 = vpop.f32.mrb[0].mxu0
          %850 = vmatprep.mubr.f32.mxu0 0.0
          %851 = vmatmul.mubr.f32.gmra.mrb[0].mxu0 %v590
          %v852 = vpop.f32.mrb[0].mxu0
          %v853 = vadd.f32 0.0, %v852
          %v854 = vpop.f32.mrb[0].mxu0
          %855 = vdwg.mxu0
          %856 = vmatprep.subr.mxu0 0.0
          %857 = vmatpush1.msra.mxu0 %v596
          %858 = vmatprep.subr.mxu0 0.0
          %859 = vmatpush1.msra.mxu0 %v597
          %860 = vmatprep.subr.mxu0 0.0
          %861 = vmatpush1.msra.mxu0 %v598
          %862 = vmatprep.subr.mxu0 0.0
          %863 = vmatpush1.msra.mxu0 %v599
          %864 = vmatprep.subr.mxu0 0.0
          %865 = vmatpush1.msra.mxu0 %v600
          %866 = vmatprep.subr.mxu0 0.0
          %867 = vmatpush1.msra.mxu0 %v601
          %868 = vmatprep.subr.mxu0 0.0
          %869 = vmatpush1.msra.mxu0 %v602
          %870 = vmatprep.subr.mxu0 0.0
          %871 = vmatpush1.msra.mxu0 %v603
          %872 = vmatprep.subr.mxu0 0.0
          %873 = vmatpush1.msra.mxu0 %v604
          %874 = vmatprep.subr.mxu0 0.0
          %875 = vmatpush1.msra.mxu0 %v605
          %876 = vmatprep.subr.mxu0 0.0
          %877 = vmatpush1.msra.mxu0 %v606
          %878 = vmatprep.subr.mxu0 0.0
          %879 = vmatpush1.msra.mxu0 %v607
          %880 = vmatprep.subr.mxu0 0.0
          %881 = vmatpush1.msra.mxu0 %v608
          %882 = vmatprep.subr.mxu0 0.0
          %883 = vmatpush1.msra.mxu0 %v609
          %884 = vmatprep.subr.mxu0 0.0
          %885 = vmatpush1.msra.mxu0 %v610
          %886 = vmatprep.subr.mxu0 0.0
          %887 = vmatpush1.msra.mxu0 %v611
          %888 = vmatprep.subr.mxu0 0.0
          %889 = vmatpush1.msra.mxu0 0.0
          %890 = vmatprep.subr.mxu0 0.0
          %891 = vmatpush1.msra.mxu0 0.0
          %892 = vmatprep.subr.mxu0 0.0
          %893 = vmatpush1.msra.mxu0 0.0
          %894 = vmatprep.subr.mxu0 0.0
          %895 = vmatpush1.msra.mxu0 0.0
          %896 = vmatprep.subr.mxu0 0.0
          %897 = vmatpush1.msra.mxu0 0.0
          %898 = vmatprep.subr.mxu0 0.0
          %899 = vmatpush1.msra.mxu0 0.0
          %900 = vmatprep.subr.mxu0 0.0
          %901 = vmatpush1.msra.mxu0 0.0
          %902 = vmatprep.subr.mxu0 0.0
          %903 = vmatpush1.msra.mxu0 0.0
          %904 = vmatprep.subr.mxu0 0.0
          %905 = vmatpush1.msra.mxu0 0.0
          %906 = vmatprep.subr.mxu0 0.0
          %907 = vmatpush1.msra.mxu0 0.0
          %908 = vmatprep.subr.mxu0 0.0
          %909 = vmatpush1.msra.mxu0 0.0
          %910 = vmatprep.subr.mxu0 0.0
          %911 = vmatpush1.msra.mxu0 0.0
          %912 = vmatprep.subr.mxu0 0.0
          %913 = vmatpush1.msra.mxu0 0.0
          %914 = vmatprep.subr.mxu0 0.0
          %915 = vmatpush1.msra.mxu0 0.0
          %916 = vmatprep.subr.mxu0 0.0
          %917 = vmatpush1.msra.mxu0 0.0
          %918 = vmatprep.subr.mxu0 0.0
          %919 = vmatpush1.msra.mxu0 0.0
          %920 = vmatprep.mubr.f32.mxu0 0.0
          %921 = vmatmul.mubr.f32.gmra.mrb[0].mxu0 %v557
          %v922 = vpop.f32.mrb[0].mxu0
          %v923 = vadd.f32 %v698, %v922
          %v924 = vpop.f32.mrb[0].mxu0
          %925 = vmatprep.mubr.f32.mxu0 0.0
          %926 = vmatmul.mubr.f32.gmra.mrb[0].mxu0 %v558
          %v927 = vpop.f32.mrb[0].mxu0
          %v928 = vadd.f32 %v703, %v927
          %v929 = vpop.f32.mrb[0].mxu0
          %930 = vmatprep.mubr.f32.mxu0 0.0
          %931 = vmatmul.mubr.f32.gmra.mrb[0].mxu0 %v559
          %v932 = vpop.f32.mrb[0].mxu0
          %v933 = vadd.f32 %v708, %v932
          %v934 = vpop.f32.mrb[0].mxu0
          %935 = vmatprep.mubr.f32.mxu0 0.0
          %936 = vmatmul.mubr.f32.gmra.mrb[0].mxu0 %v560
          %v937 = vpop.f32.mrb[0].mxu0
          %v938 = vadd.f32 %v713, %v937
          %v939 = vpop.f32.mrb[0].mxu0
          %940 = vmatprep.mubr.f32.mxu0 0.0
          %941 = vmatmul.mubr.f32.gmra.mrb[0].mxu0 %v561
          %v942 = vpop.f32.mrb[0].mxu0
          %v943 = vadd.f32 %v718, %v942
          %v944 = vpop.f32.mrb[0].mxu0
          %945 = vmatprep.mubr.f32.mxu0 0.0
          %946 = vmatmul.mubr.f32.gmra.mrb[0].mxu0 %v562
          %v947 = vpop.f32.mrb[0].mxu0
          %v948 = vadd.f32 %v723, %v947
          %v949 = vpop.f32.mrb[0].mxu0
          %950 = vmatprep.mubr.f32.mxu0 0.0
          %951 = vmatmul.mubr.f32.gmra.mrb[0].mxu0 %v563
          %v952 = vpop.f32.mrb[0].mxu0
          %v953 = vadd.f32 %v728, %v952
          %v954 = vpop.f32.mrb[0].mxu0
          %955 = vmatprep.mubr.f32.mxu0 0.0
          %956 = vmatmul.mubr.f32.gmra.mrb[0].mxu0 %v564
          %v957 = vpop.f32.mrb[0].mxu0
          %v958 = vadd.f32 %v733, %v957
          %v959 = vpop.f32.mrb[0].mxu0
          %960 = vmatprep.mubr.f32.mxu0 0.0
          %961 = vmatmul.mubr.f32.gmra.mrb[0].mxu0 %v565
          %v962 = vpop.f32.mrb[0].mxu0
          %v963 = vadd.f32 %v738, %v962
          %v964 = vpop.f32.mrb[0].mxu0
          %965 = vmatprep.mubr.f32.mxu0 0.0
          %966 = vmatmul.mubr.f32.gmra.mrb[0].mxu0 %v566
          %v967 = vpop.f32.mrb[0].mxu0
          %v968 = vadd.f32 %v743, %v967
          %v969 = vpop.f32.mrb[0].mxu0
          %970 = vmatprep.mubr.f32.mxu0 0.0
          %971 = vmatmul.mubr.f32.gmra.mrb[0].mxu0 %v567
          %v972 = vpop.f32.mrb[0].mxu0
          %v973 = vadd.f32 %v748, %v972
          %v974 = vpop.f32.mrb[0].mxu0
          %975 = vmatprep.mubr.f32.mxu0 0.0
          %976 = vmatmul.mubr.f32.gmra.mrb[0].mxu0 %v568
          %v977 = vpop.f32.mrb[0].mxu0
          %v978 = vadd.f32 %v753, %v977
          %v979 = vpop.f32.mrb[0].mxu0
          %980 = vmatprep.mubr.f32.mxu0 0.0
          %981 = vmatmul.mubr.f32.gmra.mrb[0].mxu0 %v569
          %v982 = vpop.f32.mrb[0].mxu0
          %v983 = vadd.f32 %v758, %v982
          %v984 = vpop.f32.mrb[0].mxu0
          %985 = vmatprep.mubr.f32.mxu0 0.0
          %986 = vmatmul.mubr.f32.gmra.mrb[0].mxu0 %v570
          %v987 = vpop.f32.mrb[0].mxu0
          %v988 = vadd.f32 %v763, %v987
          %v989 = vpop.f32.mrb[0].mxu0
          %990 = vmatprep.mubr.f32.mxu0 0.0
          %991 = vmatmul.mubr.f32.gmra.mrb[0].mxu0 %v571
          %v992 = vpop.f32.mrb[0].mxu0
          %v993 = vadd.f32 %v768, %v992
          %v994 = vpop.f32.mrb[0].mxu0
          %995 = vmatprep.mubr.f32.mxu0 0.0
          %996 = vmatmul.mubr.f32.gmra.mrb[0].mxu0 %v572
          %v997 = vpop.f32.mrb[0].mxu0
          %v998 = vadd.f32 %v773, %v997
          %v999 = vpop.f32.mrb[0].mxu0
          %1000 = vmatprep.mubr.f32.mxu0 0.0
          %1001 = vmatmul.mubr.f32.gmra.mrb[0].mxu0 %v573
          %v1002 = vpop.f32.mrb[0].mxu0
          %v1003 = vadd.f32 %v778, %v1002
          %v1004 = vpop.f32.mrb[0].mxu0
          %1005 = vmatprep.mubr.f32.mxu0 0.0
          %1006 = vmatmul.mubr.f32.gmra.mrb[0].mxu0 %v574
          %v1007 = vpop.f32.mrb[0].mxu0
          %v1008 = vadd.f32 %v783, %v1007
          %v1009 = vpop.f32.mrb[0].mxu0
          %1010 = vmatprep.mubr.f32.mxu0 0.0
          %1011 = vmatmul.mubr.f32.gmra.mrb[0].mxu0 %v575
          %v1012 = vpop.f32.mrb[0].mxu0
          %v1013 = vadd.f32 %v788, %v1012
          %v1014 = vpop.f32.mrb[0].mxu0
          %1015 = vmatprep.mubr.f32.mxu0 0.0
          %1016 = vmatmul.mubr.f32.gmra.mrb[0].mxu0 %v576
          %v1017 = vpop.f32.mrb[0].mxu0
          %v1018 = vadd.f32 %v793, %v1017
          %v1019 = vpop.f32.mrb[0].mxu0
          %1020 = vmatprep.mubr.f32.mxu0 0.0
          %1021 = vmatmul.mubr.f32.gmra.mrb[0].mxu0 %v577
          %v1022 = vpop.f32.mrb[0].mxu0
          %v1023 = vadd.f32 %v798, %v1022
          %v1024 = vpop.f32.mrb[0].mxu0
          %1025 = vmatprep.mubr.f32.mxu0 0.0
          %1026 = vmatmul.mubr.f32.gmra.mrb[0].mxu0 %v578
          %v1027 = vpop.f32.mrb[0].mxu0
          %v1028 = vadd.f32 %v803, %v1027
          %v1029 = vpop.f32.mrb[0].mxu0
          %1030 = vmatprep.mubr.f32.mxu0 0.0
          %1031 = vmatmul.mubr.f32.gmra.mrb[0].mxu0 %v579
          %v1032 = vpop.f32.mrb[0].mxu0
          %v1033 = vadd.f32 %v808, %v1032
          %v1034 = vpop.f32.mrb[0].mxu0
          %1035 = vmatprep.mubr.f32.mxu0 0.0
          %1036 = vmatmul.mubr.f32.gmra.mrb[0].mxu0 %v580
          %v1037 = vpop.f32.mrb[0].mxu0
          %v1038 = vadd.f32 %v813, %v1037
          %v1039 = vpop.f32.mrb[0].mxu0
          %1040 = vmatprep.mubr.f32.mxu0 0.0
          %1041 = vmatmul.mubr.f32.gmra.mrb[0].mxu0 %v581
          %v1042 = vpop.f32.mrb[0].mxu0
          %v1043 = vadd.f32 %v818, %v1042
          %v1044 = vpop.f32.mrb[0].mxu0
          %1045 = vmatprep.mubr.f32.mxu0 0.0
          %1046 = vmatmul.mubr.f32.gmra.mrb[0].mxu0 %v582
          %v1047 = vpop.f32.mrb[0].mxu0
          %v1048 = vadd.f32 %v823, %v1047
          %v1049 = vpop.f32.mrb[0].mxu0
          %1050 = vmatprep.mubr.f32.mxu0 0.0
          %1051 = vmatmul.mubr.f32.gmra.mrb[0].mxu0 %v583
          %v1052 = vpop.f32.mrb[0].mxu0
          %v1053 = vadd.f32 %v828, %v1052
          %v1054 = vpop.f32.mrb[0].mxu0
          %1055 = vmatprep.mubr.f32.mxu0 0.0
          %1056 = vmatmul.mubr.f32.gmra.mrb[0].mxu0 %v584
          %v1057 = vpop.f32.mrb[0].mxu0
          %v1058 = vadd.f32 %v833, %v1057
          %v1059 = vpop.f32.mrb[0].mxu0
          %1060 = vmatprep.mubr.f32.mxu0 0.0
          %1061 = vmatmul.mubr.f32.gmra.mrb[0].mxu0 %v585
          %v1062 = vpop.f32.mrb[0].mxu0
          %v1063 = vadd.f32 %v838, %v1062
          %v1064 = vpop.f32.mrb[0].mxu0
          %1065 = vmatprep.mubr.f32.mxu0 0.0
          %1066 = vmatmul.mubr.f32.gmra.mrb[0].mxu0 %v586
          %v1067 = vpop.f32.mrb[0].mxu0
          %v1068 = vadd.f32 %v843, %v1067
          %v1069 = vpop.f32.mrb[0].mxu0
          %1070 = vmatprep.mubr.f32.mxu0 0.0
          %1071 = vmatmul.mubr.f32.gmra.mrb[0].mxu0 %v587
          %v1072 = vpop.f32.mrb[0].mxu0
          %v1073 = vadd.f32 %v848, %v1072
          %v1074 = vpop.f32.mrb[0].mxu0
          %1075 = vmatprep.mubr.f32.mxu0 0.0
          %1076 = vmatmul.mubr.f32.gmra.mrb[0].mxu0 %v588
          %v1077 = vpop.f32.mrb[0].mxu0
          %v1078 = vadd.f32 %v853, %v1077
          %v1079 = vpop.f32.mrb[0].mxu0
          %1080 = vdwg.mxu0
          %s1081 = sadd.s32 %s593, 6
          %s1082 = smul.u32 %s1081, 128
          %s1083 = scalar_lea.vmem [#allocation6], %s1082
          %v1084 = vld [vmem:[%s1083] sm:$0xff]
          %v1085 = vld [vmem:[%s1083 + $0x8] sm:$0xff]
          %v1086 = vld [vmem:[%s1083 + $0x10] sm:$0xff]
          %v1087 = vld [vmem:[%s1083 + $0x18] sm:$0xff]
          %v1088 = vld [vmem:[%s1083 + $0x20] sm:$0xff]
          %v1089 = vld [vmem:[%s1083 + $0x28] sm:$0xff]
          %v1090 = vld [vmem:[%s1083 + $0x30] sm:$0xff]
          %v1091 = vld [vmem:[%s1083 + $0x38] sm:$0xff]
          %v1092 = vld [vmem:[%s1083 + $0x40] sm:$0xff]
          %v1093 = vld [vmem:[%s1083 + $0x48] sm:$0xff]
          %v1094 = vld [vmem:[%s1083 + $0x50] sm:$0xff]
          %v1095 = vld [vmem:[%s1083 + $0x58] sm:$0xff]
          %v1096 = vld [vmem:[%s1083 + $0x60] sm:$0xff]
          %v1097 = vld [vmem:[%s1083 + $0x68] sm:$0xff]
          %v1098 = vld [vmem:[%s1083 + $0x70] sm:$0xff]
          %v1099 = vld [vmem:[%s1083 + $0x78] sm:$0xff]
          %1100 = vmatprep.subr.mxu0 0.0
          %1101 = vmatpush1.msra.mxu0 %v1084
          %1102 = vmatprep.subr.mxu0 0.0
          %1103 = vmatpush1.msra.mxu0 %v1085
          %1104 = vmatprep.subr.mxu0 0.0
          %1105 = vmatpush1.msra.mxu0 %v1086
          %1106 = vmatprep.subr.mxu0 0.0
          %1107 = vmatpush1.msra.mxu0 %v1087
          %1108 = vmatprep.subr.mxu0 0.0
          %1109 = vmatpush1.msra.mxu0 %v1088
          %1110 = vmatprep.subr.mxu0 0.0
          %1111 = vmatpush1.msra.mxu0 %v1089
          %1112 = vmatprep.subr.mxu0 0.0
          %1113 = vmatpush1.msra.mxu0 %v1090
          %1114 = vmatprep.subr.mxu0 0.0
          %1115 = vmatpush1.msra.mxu0 %v1091
          %1116 = vmatprep.subr.mxu0 0.0
          %1117 = vmatpush1.msra.mxu0 %v1092
          %1118 = vmatprep.subr.mxu0 0.0
          %1119 = vmatpush1.msra.mxu0 %v1093
          %1120 = vmatprep.subr.mxu0 0.0
          %1121 = vmatpush1.msra.mxu0 %v1094
          %1122 = vmatprep.subr.mxu0 0.0
          %1123 = vmatpush1.msra.mxu0 %v1095
          %1124 = vmatprep.subr.mxu0 0.0
          %1125 = vmatpush1.msra.mxu0 %v1096
          %1126 = vmatprep.subr.mxu0 0.0
          %1127 = vmatpush1.msra.mxu0 %v1097
          %1128 = vmatprep.subr.mxu0 0.0
          %1129 = vmatpush1.msra.mxu0 %v1098
          %1130 = vmatprep.subr.mxu0 0.0
          %1131 = vmatpush1.msra.mxu0 %v1099
          %1132 = vmatprep.subr.mxu0 0.0
          %1133 = vmatpush1.msra.mxu0 0.0
          %1134 = vmatprep.subr.mxu0 0.0
          %1135 = vmatpush1.msra.mxu0 0.0
          %1136 = vmatprep.subr.mxu0 0.0
          %1137 = vmatpush1.msra.mxu0 0.0
          %1138 = vmatprep.subr.mxu0 0.0
          %1139 = vmatpush1.msra.mxu0 0.0
          %1140 = vmatprep.subr.mxu0 0.0
          %1141 = vmatpush1.msra.mxu0 0.0
          %1142 = vmatprep.subr.mxu0 0.0
          %1143 = vmatpush1.msra.mxu0 0.0
          %1144 = vmatprep.subr.mxu0 0.0
          %1145 = vmatpush1.msra.mxu0 0.0
          %1146 = vmatprep.subr.mxu0 0.0
          %1147 = vmatpush1.msra.mxu0 0.0
          %1148 = vmatprep.subr.mxu0 0.0
          %1149 = vmatpush1.msra.mxu0 0.0
          %1150 = vmatprep.subr.mxu0 0.0
          %1151 = vmatpush1.msra.mxu0 0.0
          %1152 = vmatprep.subr.mxu0 0.0
          %1153 = vmatpush1.msra.mxu0 0.0
          %1154 = vmatprep.subr.mxu0 0.0
          %1155 = vmatpush1.msra.mxu0 0.0
          %1156 = vmatprep.subr.mxu0 0.0
          %1157 = vmatpush1.msra.mxu0 0.0
          %1158 = vmatprep.subr.mxu0 0.0
          %1159 = vmatpush1.msra.mxu0 0.0
          %1160 = vmatprep.subr.mxu0 0.0
          %1161 = vmatpush1.msra.mxu0 0.0
          %1162 = vmatprep.subr.mxu0 0.0
          %1163 = vmatpush1.msra.mxu0 0.0
          %1164 = vmatprep.mubr.f32.mxu0 0.0
          %1165 = vmatmul.mubr.f32.gmra.mrb[0].mxu0 %v561
          %v1166 = vpop.f32.mrb[0].mxu0
          %v1167 = vadd.f32 0.0, %v1166
          %v1168 = vpop.f32.mrb[0].mxu0
          %1169 = vmatprep.mubr.f32.mxu0 0.0
          %1170 = vmatmul.mubr.f32.gmra.mrb[0].mxu0 %v562
          %v1171 = vpop.f32.mrb[0].mxu0
          %v1172 = vadd.f32 0.0, %v1171
          %v1173 = vpop.f32.mrb[0].mxu0
          %1174 = vmatprep.mubr.f32.mxu0 0.0
          %1175 = vmatmul.mubr.f32.gmra.mrb[0].mxu0 %v563
          %v1176 = vpop.f32.mrb[0].mxu0
          %v1177 = vadd.f32 0.0, %v1176
          %v1178 = vpop.f32.mrb[0].mxu0
          %1179 = vmatprep.mubr.f32.mxu0 0.0
          %1180 = vmatmul.mubr.f32.gmra.mrb[0].mxu0 %v564
          %v1181 = vpop.f32.mrb[0].mxu0
          %v1182 = vadd.f32 0.0, %v1181
          %v1183 = vpop.f32.mrb[0].mxu0
          %1184 = vmatprep.mubr.f32.mxu0 0.0
          %1185 = vmatmul.mubr.f32.gmra.mrb[0].mxu0 %v565
          %v1186 = vpop.f32.mrb[0].mxu0
          %v1187 = vadd.f32 0.0, %v1186
          %v1188 = vpop.f32.mrb[0].mxu0
          %1189 = vmatprep.mubr.f32.mxu0 0.0
          %1190 = vmatmul.mubr.f32.gmra.mrb[0].mxu0 %v566
          %v1191 = vpop.f32.mrb[0].mxu0
          %v1192 = vadd.f32 0.0, %v1191
          %v1193 = vpop.f32.mrb[0].mxu0
          %1194 = vmatprep.mubr.f32.mxu0 0.0
          %1195 = vmatmul.mubr.f32.gmra.mrb[0].mxu0 %v567
          %v1196 = vpop.f32.mrb[0].mxu0
          %v1197 = vadd.f32 0.0, %v1196
          %v1198 = vpop.f32.mrb[0].mxu0
          %1199 = vmatprep.mubr.f32.mxu0 0.0
          %1200 = vmatmul.mubr.f32.gmra.mrb[0].mxu0 %v568
          %v1201 = vpop.f32.mrb[0].mxu0
          %v1202 = vadd.f32 0.0, %v1201
          %v1203 = vpop.f32.mrb[0].mxu0
          %1204 = vmatprep.mubr.f32.mxu0 0.0
          %1205 = vmatmul.mubr.f32.gmra.mrb[0].mxu0 %v569
          %v1206 = vpop.f32.mrb[0].mxu0
          %v1207 = vadd.f32 0.0, %v1206
          %v1208 = vpop.f32.mrb[0].mxu0
          %1209 = vmatprep.mubr.f32.mxu0 0.0
          %1210 = vmatmul.mubr.f32.gmra.mrb[0].mxu0 %v570
          %v1211 = vpop.f32.mrb[0].mxu0
          %v1212 = vadd.f32 0.0, %v1211
          %v1213 = vpop.f32.mrb[0].mxu0
          %1214 = vmatprep.mubr.f32.mxu0 0.0
          %1215 = vmatmul.mubr.f32.gmra.mrb[0].mxu0 %v571
          %v1216 = vpop.f32.mrb[0].mxu0
          %v1217 = vadd.f32 0.0, %v1216
          %v1218 = vpop.f32.mrb[0].mxu0
          %1219 = vmatprep.mubr.f32.mxu0 0.0
          %1220 = vmatmul.mubr.f32.gmra.mrb[0].mxu0 %v572
          %v1221 = vpop.f32.mrb[0].mxu0
          %v1222 = vadd.f32 0.0, %v1221
          %v1223 = vpop.f32.mrb[0].mxu0
          %1224 = vmatprep.mubr.f32.mxu0 0.0
          %1225 = vmatmul.mubr.f32.gmra.mrb[0].mxu0 %v573
          %v1226 = vpop.f32.mrb[0].mxu0
          %v1227 = vadd.f32 0.0, %v1226
          %v1228 = vpop.f32.mrb[0].mxu0
          %1229 = vmatprep.mubr.f32.mxu0 0.0
          %1230 = vmatmul.mubr.f32.gmra.mrb[0].mxu0 %v574
          %v1231 = vpop.f32.mrb[0].mxu0
          %v1232 = vadd.f32 0.0, %v1231
          %v1233 = vpop.f32.mrb[0].mxu0
          %1234 = vmatprep.mubr.f32.mxu0 0.0
          %1235 = vmatmul.mubr.f32.gmra.mrb[0].mxu0 %v575
          %v1236 = vpop.f32.mrb[0].mxu0
          %v1237 = vadd.f32 0.0, %v1236
          %v1238 = vpop.f32.mrb[0].mxu0
          %1239 = vmatprep.mubr.f32.mxu0 0.0
          %1240 = vmatmul.mubr.f32.gmra.mrb[0].mxu0 %v576
          %v1241 = vpop.f32.mrb[0].mxu0
          %v1242 = vadd.f32 0.0, %v1241
          %v1243 = vpop.f32.mrb[0].mxu0
          %1244 = vmatprep.mubr.f32.mxu0 0.0
          %1245 = vmatmul.mubr.f32.gmra.mrb[0].mxu0 %v577
          %v1246 = vpop.f32.mrb[0].mxu0
          %v1247 = vadd.f32 0.0, %v1246
          %v1248 = vpop.f32.mrb[0].mxu0
          %1249 = vmatprep.mubr.f32.mxu0 0.0
          %1250 = vmatmul.mubr.f32.gmra.mrb[0].mxu0 %v578
          %v1251 = vpop.f32.mrb[0].mxu0
          %v1252 = vadd.f32 0.0, %v1251
          %v1253 = vpop.f32.mrb[0].mxu0
          %1254 = vmatprep.mubr.f32.mxu0 0.0
          %1255 = vmatmul.mubr.f32.gmra.mrb[0].mxu0 %v579
          %v1256 = vpop.f32.mrb[0].mxu0
          %v1257 = vadd.f32 0.0, %v1256
          %v1258 = vpop.f32.mrb[0].mxu0
          %1259 = vmatprep.mubr.f32.mxu0 0.0
          %1260 = vmatmul.mubr.f32.gmra.mrb[0].mxu0 %v580
          %v1261 = vpop.f32.mrb[0].mxu0
          %v1262 = vadd.f32 0.0, %v1261
          %v1263 = vpop.f32.mrb[0].mxu0
          %1264 = vmatprep.mubr.f32.mxu0 0.0
          %1265 = vmatmul.mubr.f32.gmra.mrb[0].mxu0 %v581
          %v1266 = vpop.f32.mrb[0].mxu0
          %v1267 = vadd.f32 0.0, %v1266
          %v1268 = vpop.f32.mrb[0].mxu0
          %1269 = vmatprep.mubr.f32.mxu0 0.0
          %1270 = vmatmul.mubr.f32.gmra.mrb[0].mxu0 %v582
          %v1271 = vpop.f32.mrb[0].mxu0
          %v1272 = vadd.f32 0.0, %v1271
          %v1273 = vpop.f32.mrb[0].mxu0
          %1274 = vmatprep.mubr.f32.mxu0 0.0
          %1275 = vmatmul.mubr.f32.gmra.mrb[0].mxu0 %v583
          %v1276 = vpop.f32.mrb[0].mxu0
          %v1277 = vadd.f32 0.0, %v1276
          %v1278 = vpop.f32.mrb[0].mxu0
          %1279 = vmatprep.mubr.f32.mxu0 0.0
          %1280 = vmatmul.mubr.f32.gmra.mrb[0].mxu0 %v584
          %v1281 = vpop.f32.mrb[0].mxu0
          %v1282 = vadd.f32 0.0, %v1281
          %v1283 = vpop.f32.mrb[0].mxu0
          %1284 = vmatprep.mubr.f32.mxu0 0.0
          %1285 = vmatmul.mubr.f32.gmra.mrb[0].mxu0 %v585
          %v1286 = vpop.f32.mrb[0].mxu0
          %v1287 = vadd.f32 0.0, %v1286
          %v1288 = vpop.f32.mrb[0].mxu0
          %1289 = vmatprep.mubr.f32.mxu0 0.0
          %1290 = vmatmul.mubr.f32.gmra.mrb[0].mxu0 %v586
          %v1291 = vpop.f32.mrb[0].mxu0
          %v1292 = vadd.f32 0.0, %v1291
          %v1293 = vpop.f32.mrb[0].mxu0
          %1294 = vmatprep.mubr.f32.mxu0 0.0
          %1295 = vmatmul.mubr.f32.gmra.mrb[0].mxu0 %v587
          %v1296 = vpop.f32.mrb[0].mxu0
          %v1297 = vadd.f32 0.0, %v1296
          %v1298 = vpop.f32.mrb[0].mxu0
          %1299 = vmatprep.mubr.f32.mxu0 0.0
          %1300 = vmatmul.mubr.f32.gmra.mrb[0].mxu0 %v588
          %v1301 = vpop.f32.mrb[0].mxu0
          %v1302 = vadd.f32 0.0, %v1301
          %v1303 = vpop.f32.mrb[0].mxu0
          %1304 = vmatprep.mubr.f32.mxu0 0.0
          %1305 = vmatmul.mubr.f32.gmra.mrb[0].mxu0 %v589
          %v1306 = vpop.f32.mrb[0].mxu0
          %v1307 = vadd.f32 0.0, %v1306
          %v1308 = vpop.f32.mrb[0].mxu0
          %1309 = vmatprep.mubr.f32.mxu0 0.0
          %1310 = vmatmul.mubr.f32.gmra.mrb[0].mxu0 %v590
          %v1311 = vpop.f32.mrb[0].mxu0
          %v1312 = vadd.f32 0.0, %v1311
          %v1313 = vpop.f32.mrb[0].mxu0
          %1314 = vmatprep.mubr.f32.mxu0 0.0
          %1315 = vmatmul.mubr.f32.gmra.mrb[0].mxu0 %v591
          %v1316 = vpop.f32.mrb[0].mxu0
          %v1317 = vadd.f32 0.0, %v1316
          %v1318 = vpop.f32.mrb[0].mxu0
          %1319 = vmatprep.mubr.f32.mxu0 0.0
          %1320 = vmatmul.mubr.f32.gmra.mrb[0].mxu0 %v592
          %v1321 = vpop.f32.mrb[0].mxu0
          %v1322 = vadd.f32 0.0, %v1321
          %v1323 = vpop.f32.mrb[0].mxu0
          %1324 = vdwg.mxu0
          %v1325 = vadd.f32 %v923, %v1167
          %v1326 = vadd.f32 %v928, %v1172
          %v1327 = vadd.f32 %v933, %v1177
          %v1328 = vadd.f32 %v938, %v1182
          %v1329 = vadd.f32 %v943, %v1187
          %v1330 = vadd.f32 %v948, %v1192
          %v1331 = vadd.f32 %v953, %v1197
          %v1332 = vadd.f32 %v958, %v1202
          %v1333 = vadd.f32 %v963, %v1207
          %v1334 = vadd.f32 %v968, %v1212
          %v1335 = vadd.f32 %v973, %v1217
          %v1336 = vadd.f32 %v978, %v1222
          %v1337 = vadd.f32 %v983, %v1227
          %v1338 = vadd.f32 %v988, %v1232
          %v1339 = vadd.f32 %v993, %v1237
          %v1340 = vadd.f32 %v998, %v1242
          %v1341 = vadd.f32 %v1003, %v1247
          %v1342 = vadd.f32 %v1008, %v1252
          %v1343 = vadd.f32 %v1013, %v1257
          %v1344 = vadd.f32 %v1018, %v1262
          %v1345 = vadd.f32 %v1023, %v1267
          %v1346 = vadd.f32 %v1028, %v1272
          %v1347 = vadd.f32 %v1033, %v1277
          %v1348 = vadd.f32 %v1038, %v1282
          %v1349 = vadd.f32 %v1043, %v1287
          %v1350 = vadd.f32 %v1048, %v1292
          %v1351 = vadd.f32 %v1053, %v1297
          %v1352 = vadd.f32 %v1058, %v1302
          %v1353 = vadd.f32 %v1063, %v1307
          %v1354 = vadd.f32 %v1068, %v1312
          %v1355 = vadd.f32 %v1073, %v1317
          %v1356 = vadd.f32 %v1078, %v1322
          %v1357 = vld [vmem:[#allocation2 + $0x1] sm:$0xff]
          %v1358 = vld [vmem:[#allocation2 + $0x9] sm:$0xff]
          %v1359 = vld [vmem:[#allocation2 + $0x19] sm:$0xff]
          %v1360 = vld [vmem:[#allocation2 + $0x21] sm:$0xff]
          %v1361 = vld [vmem:[#allocation2 + $0x31] sm:$0xff]
          %v1362 = vld [vmem:[#allocation2 + $0x39] sm:$0xff]
          %v1363 = vld [vmem:[#allocation2 + $0x49] sm:$0xff]
          %v1364 = vld [vmem:[#allocation2 + $0x51] sm:$0xff]
          %v1365 = vld [vmem:[#allocation2 + $0x61] sm:$0xff]
          %v1366 = vld [vmem:[#allocation2 + $0x69] sm:$0xff]
          %v1367 = vld [vmem:[#allocation2 + $0x79] sm:$0xff]
          %v1368 = vld [vmem:[#allocation2 + $0x81] sm:$0xff]
          %v1369 = vld [vmem:[#allocation2 + $0x91] sm:$0xff]
          %v1370 = vld [vmem:[#allocation2 + $0x99] sm:$0xff]
          %v1371 = vld [vmem:[#allocation2 + $0xa9] sm:$0xff]
          %v1372 = vld [vmem:[#allocation2 + $0xb1] sm:$0xff]
          %v1373 = vld [vmem:[#allocation2 + $0xc1] sm:$0xff]
          %v1374 = vld [vmem:[#allocation2 + $0xc9] sm:$0xff]
          %v1375 = vld [vmem:[#allocation2 + $0xd9] sm:$0xff]
          %v1376 = vld [vmem:[#allocation2 + $0xe1] sm:$0xff]
          %v1377 = vld [vmem:[#allocation2 + $0xf1] sm:$0xff]
          %v1378 = vld [vmem:[#allocation2 + $0xf9] sm:$0xff]
          %v1379 = vld [vmem:[#allocation2 + $0x109] sm:$0xff]
          %v1380 = vld [vmem:[#allocation2 + $0x111] sm:$0xff]
          %v1381 = vld [vmem:[#allocation2 + $0x121] sm:$0xff]
          %v1382 = vld [vmem:[#allocation2 + $0x129] sm:$0xff]
          %v1383 = vld [vmem:[#allocation2 + $0x139] sm:$0xff]
          %v1384 = vld [vmem:[#allocation2 + $0x141] sm:$0xff]
          %v1385 = vld [vmem:[#allocation2 + $0x151] sm:$0xff]
          %v1386 = vld [vmem:[#allocation2 + $0x159] sm:$0xff]
          %v1387 = vld [vmem:[#allocation2 + $0x169] sm:$0xff]
          %v1388 = vld [vmem:[#allocation2 + $0x171] sm:$0xff]
          %v1389 = vld [vmem:[#allocation2 + $0x181] sm:$0xff]
          %v1390 = vld [vmem:[#allocation2 + $0x189] sm:$0xff]
          %v1391 = vld [vmem:[#allocation2 + $0x199] sm:$0xff]
          %v1392 = vld [vmem:[#allocation2 + $0x1a1] sm:$0xff]
          %s1393 = sadd.s32 %s593, 1
          %s1394 = smul.u32 %s1393, 128
          %s1395 = scalar_lea.vmem [#allocation6], %s1394
          %v1396 = vld [vmem:[%s1395] sm:$0xff]
          %v1397 = vld [vmem:[%s1395 + $0x8] sm:$0xff]
          %v1398 = vld [vmem:[%s1395 + $0x10] sm:$0xff]
          %v1399 = vld [vmem:[%s1395 + $0x18] sm:$0xff]
          %v1400 = vld [vmem:[%s1395 + $0x20] sm:$0xff]
          %v1401 = vld [vmem:[%s1395 + $0x28] sm:$0xff]
          %v1402 = vld [vmem:[%s1395 + $0x30] sm:$0xff]
          %v1403 = vld [vmem:[%s1395 + $0x38] sm:$0xff]
          %v1404 = vld [vmem:[%s1395 + $0x40] sm:$0xff]
          %v1405 = vld [vmem:[%s1395 + $0x48] sm:$0xff]
          %v1406 = vld [vmem:[%s1395 + $0x50] sm:$0xff]
          %v1407 = vld [vmem:[%s1395 + $0x58] sm:$0xff]
          %v1408 = vld [vmem:[%s1395 + $0x60] sm:$0xff]
          %v1409 = vld [vmem:[%s1395 + $0x68] sm:$0xff]
          %v1410 = vld [vmem:[%s1395 + $0x70] sm:$0xff]
          %v1411 = vld [vmem:[%s1395 + $0x78] sm:$0xff]
          %1412 = vmatprep.subr.mxu0 0.0
          %1413 = vmatpush1.msra.mxu0 %v1396
          %1414 = vmatprep.subr.mxu0 0.0
          %1415 = vmatpush1.msra.mxu0 %v1397
          %1416 = vmatprep.subr.mxu0 0.0
          %1417 = vmatpush1.msra.mxu0 %v1398
          %1418 = vmatprep.subr.mxu0 0.0
          %1419 = vmatpush1.msra.mxu0 %v1399
          %1420 = vmatprep.subr.mxu0 0.0
          %1421 = vmatpush1.msra.mxu0 %v1400
          %1422 = vmatprep.subr.mxu0 0.0
          %1423 = vmatpush1.msra.mxu0 %v1401
          %1424 = vmatprep.subr.mxu0 0.0
          %1425 = vmatpush1.msra.mxu0 %v1402
          %1426 = vmatprep.subr.mxu0 0.0
          %1427 = vmatpush1.msra.mxu0 %v1403
          %1428 = vmatprep.subr.mxu0 0.0
          %1429 = vmatpush1.msra.mxu0 %v1404
          %1430 = vmatprep.subr.mxu0 0.0
          %1431 = vmatpush1.msra.mxu0 %v1405
          %1432 = vmatprep.subr.mxu0 0.0
          %1433 = vmatpush1.msra.mxu0 %v1406
          %1434 = vmatprep.subr.mxu0 0.0
          %1435 = vmatpush1.msra.mxu0 %v1407
          %1436 = vmatprep.subr.mxu0 0.0
          %1437 = vmatpush1.msra.mxu0 %v1408
          %1438 = vmatprep.subr.mxu0 0.0
          %1439 = vmatpush1.msra.mxu0 %v1409
          %1440 = vmatprep.subr.mxu0 0.0
          %1441 = vmatpush1.msra.mxu0 %v1410
          %1442 = vmatprep.subr.mxu0 0.0
          %1443 = vmatpush1.msra.mxu0 %v1411
          %1444 = vmatprep.subr.mxu0 0.0
          %1445 = vmatpush1.msra.mxu0 0.0
          %1446 = vmatprep.subr.mxu0 0.0
          %1447 = vmatpush1.msra.mxu0 0.0
          %1448 = vmatprep.subr.mxu0 0.0
          %1449 = vmatpush1.msra.mxu0 0.0
          %1450 = vmatprep.subr.mxu0 0.0
          %1451 = vmatpush1.msra.mxu0 0.0
          %1452 = vmatprep.subr.mxu0 0.0
          %1453 = vmatpush1.msra.mxu0 0.0
          %1454 = vmatprep.subr.mxu0 0.0
          %1455 = vmatpush1.msra.mxu0 0.0
          %1456 = vmatprep.subr.mxu0 0.0
          %1457 = vmatpush1.msra.mxu0 0.0
          %1458 = vmatprep.subr.mxu0 0.0
          %1459 = vmatpush1.msra.mxu0 0.0
          %1460 = vmatprep.subr.mxu0 0.0
          %1461 = vmatpush1.msra.mxu0 0.0
          %1462 = vmatprep.subr.mxu0 0.0
          %1463 = vmatpush1.msra.mxu0 0.0
          %1464 = vmatprep.subr.mxu0 0.0
          %1465 = vmatpush1.msra.mxu0 0.0
          %1466 = vmatprep.subr.mxu0 0.0
          %1467 = vmatpush1.msra.mxu0 0.0
          %1468 = vmatprep.subr.mxu0 0.0
          %1469 = vmatpush1.msra.mxu0 0.0
          %1470 = vmatprep.subr.mxu0 0.0
          %1471 = vmatpush1.msra.mxu0 0.0
          %1472 = vmatprep.subr.mxu0 0.0
          %1473 = vmatpush1.msra.mxu0 0.0
          %1474 = vmatprep.subr.mxu0 0.0
          %1475 = vmatpush1.msra.mxu0 0.0
          %1476 = vmatprep.mubr.f32.mxu0 0.0
          %1477 = vmatmul.mubr.f32.gmra.mrb[0].mxu0 %v1357
          %v1478 = vpop.f32.mrb[0].mxu0
          %v1479 = vadd.f32 0.0, %v1478
          %v1480 = vpop.f32.mrb[0].mxu0
          %1481 = vmatprep.mubr.f32.mxu0 0.0
          %1482 = vmatmul.mubr.f32.gmra.mrb[0].mxu0 %v1358
          %v1483 = vpop.f32.mrb[0].mxu0
          %v1484 = vadd.f32 0.0, %v1483
          %v1485 = vpop.f32.mrb[0].mxu0
          %1486 = vmatprep.mubr.f32.mxu0 0.0
          %1487 = vmatmul.mubr.f32.gmra.mrb[0].mxu0 %v1359
          %v1488 = vpop.f32.mrb[0].mxu0
          %v1489 = vadd.f32 0.0, %v1488
          %v1490 = vpop.f32.mrb[0].mxu0
          %1491 = vmatprep.mubr.f32.mxu0 0.0
          %1492 = vmatmul.mubr.f32.gmra.mrb[0].mxu0 %v1360
          %v1493 = vpop.f32.mrb[0].mxu0
          %v1494 = vadd.f32 0.0, %v1493
          %v1495 = vpop.f32.mrb[0].mxu0
          %1496 = vmatprep.mubr.f32.mxu0 0.0
          %1497 = vmatmul.mubr.f32.gmra.mrb[0].mxu0 %v1361
          %v1498 = vpop.f32.mrb[0].mxu0
          %v1499 = vadd.f32 0.0, %v1498
          %v1500 = vpop.f32.mrb[0].mxu0
          %1501 = vmatprep.mubr.f32.mxu0 0.0
          %1502 = vmatmul.mubr.f32.gmra.mrb[0].mxu0 %v1362
          %v1503 = vpop.f32.mrb[0].mxu0
          %v1504 = vadd.f32 0.0, %v1503
          %v1505 = vpop.f32.mrb[0].mxu0
          %1506 = vmatprep.mubr.f32.mxu0 0.0
          %1507 = vmatmul.mubr.f32.gmra.mrb[0].mxu0 %v1363
          %v1508 = vpop.f32.mrb[0].mxu0
          %v1509 = vadd.f32 0.0, %v1508
          %v1510 = vpop.f32.mrb[0].mxu0
          %1511 = vmatprep.mubr.f32.mxu0 0.0
          %1512 = vmatmul.mubr.f32.gmra.mrb[0].mxu0 %v1364
          %v1513 = vpop.f32.mrb[0].mxu0
          %v1514 = vadd.f32 0.0, %v1513
          %v1515 = vpop.f32.mrb[0].mxu0
          %1516 = vmatprep.mubr.f32.mxu0 0.0
          %1517 = vmatmul.mubr.f32.gmra.mrb[0].mxu0 %v1365
          %v1518 = vpop.f32.mrb[0].mxu0
          %v1519 = vadd.f32 0.0, %v1518
          %v1520 = vpop.f32.mrb[0].mxu0
          %1521 = vmatprep.mubr.f32.mxu0 0.0
          %1522 = vmatmul.mubr.f32.gmra.mrb[0].mxu0 %v1366
          %v1523 = vpop.f32.mrb[0].mxu0
          %v1524 = vadd.f32 0.0, %v1523
          %v1525 = vpop.f32.mrb[0].mxu0
          %1526 = vmatprep.mubr.f32.mxu0 0.0
          %1527 = vmatmul.mubr.f32.gmra.mrb[0].mxu0 %v1367
          %v1528 = vpop.f32.mrb[0].mxu0
          %v1529 = vadd.f32 0.0, %v1528
          %v1530 = vpop.f32.mrb[0].mxu0
          %1531 = vmatprep.mubr.f32.mxu0 0.0
          %1532 = vmatmul.mubr.f32.gmra.mrb[0].mxu0 %v1368
          %v1533 = vpop.f32.mrb[0].mxu0
          %v1534 = vadd.f32 0.0, %v1533
          %v1535 = vpop.f32.mrb[0].mxu0
          %1536 = vmatprep.mubr.f32.mxu0 0.0
          %1537 = vmatmul.mubr.f32.gmra.mrb[0].mxu0 %v1369
          %v1538 = vpop.f32.mrb[0].mxu0
          %v1539 = vadd.f32 0.0, %v1538
          %v1540 = vpop.f32.mrb[0].mxu0
          %1541 = vmatprep.mubr.f32.mxu0 0.0
          %1542 = vmatmul.mubr.f32.gmra.mrb[0].mxu0 %v1370
          %v1543 = vpop.f32.mrb[0].mxu0
          %v1544 = vadd.f32 0.0, %v1543
          %v1545 = vpop.f32.mrb[0].mxu0
          %1546 = vmatprep.mubr.f32.mxu0 0.0
          %1547 = vmatmul.mubr.f32.gmra.mrb[0].mxu0 %v1371
          %v1548 = vpop.f32.mrb[0].mxu0
          %v1549 = vadd.f32 0.0, %v1548
          %v1550 = vpop.f32.mrb[0].mxu0
          %1551 = vmatprep.mubr.f32.mxu0 0.0
          %1552 = vmatmul.mubr.f32.gmra.mrb[0].mxu0 %v1372
          %v1553 = vpop.f32.mrb[0].mxu0
          %v1554 = vadd.f32 0.0, %v1553
          %v1555 = vpop.f32.mrb[0].mxu0
          %1556 = vmatprep.mubr.f32.mxu0 0.0
          %1557 = vmatmul.mubr.f32.gmra.mrb[0].mxu0 %v1373
          %v1558 = vpop.f32.mrb[0].mxu0
          %v1559 = vadd.f32 0.0, %v1558
          %v1560 = vpop.f32.mrb[0].mxu0
          %1561 = vmatprep.mubr.f32.mxu0 0.0
          %1562 = vmatmul.mubr.f32.gmra.mrb[0].mxu0 %v1374
          %v1563 = vpop.f32.mrb[0].mxu0
          %v1564 = vadd.f32 0.0, %v1563
          %v1565 = vpop.f32.mrb[0].mxu0
          %1566 = vmatprep.mubr.f32.mxu0 0.0
          %1567 = vmatmul.mubr.f32.gmra.mrb[0].mxu0 %v1375
          %v1568 = vpop.f32.mrb[0].mxu0
          %v1569 = vadd.f32 0.0, %v1568
          %v1570 = vpop.f32.mrb[0].mxu0
          %1571 = vmatprep.mubr.f32.mxu0 0.0
          %1572 = vmatmul.mubr.f32.gmra.mrb[0].mxu0 %v1376
          %v1573 = vpop.f32.mrb[0].mxu0
          %v1574 = vadd.f32 0.0, %v1573
          %v1575 = vpop.f32.mrb[0].mxu0
          %1576 = vmatprep.mubr.f32.mxu0 0.0
          %1577 = vmatmul.mubr.f32.gmra.mrb[0].mxu0 %v1377
          %v1578 = vpop.f32.mrb[0].mxu0
          %v1579 = vadd.f32 0.0, %v1578
          %v1580 = vpop.f32.mrb[0].mxu0
          %1581 = vmatprep.mubr.f32.mxu0 0.0
          %1582 = vmatmul.mubr.f32.gmra.mrb[0].mxu0 %v1378
          %v1583 = vpop.f32.mrb[0].mxu0
          %v1584 = vadd.f32 0.0, %v1583
          %v1585 = vpop.f32.mrb[0].mxu0
          %1586 = vmatprep.mubr.f32.mxu0 0.0
          %1587 = vmatmul.mubr.f32.gmra.mrb[0].mxu0 %v1379
          %v1588 = vpop.f32.mrb[0].mxu0
          %v1589 = vadd.f32 0.0, %v1588
          %v1590 = vpop.f32.mrb[0].mxu0
          %1591 = vmatprep.mubr.f32.mxu0 0.0
          %1592 = vmatmul.mubr.f32.gmra.mrb[0].mxu0 %v1380
          %v1593 = vpop.f32.mrb[0].mxu0
          %v1594 = vadd.f32 0.0, %v1593
          %v1595 = vpop.f32.mrb[0].mxu0
          %1596 = vmatprep.mubr.f32.mxu0 0.0
          %1597 = vmatmul.mubr.f32.gmra.mrb[0].mxu0 %v1381
          %v1598 = vpop.f32.mrb[0].mxu0
          %v1599 = vadd.f32 0.0, %v1598
          %v1600 = vpop.f32.mrb[0].mxu0
          %1601 = vmatprep.mubr.f32.mxu0 0.0
          %1602 = vmatmul.mubr.f32.gmra.mrb[0].mxu0 %v1382
          %v1603 = vpop.f32.mrb[0].mxu0
          %v1604 = vadd.f32 0.0, %v1603
          %v1605 = vpop.f32.mrb[0].mxu0
          %1606 = vmatprep.mubr.f32.mxu0 0.0
          %1607 = vmatmul.mubr.f32.gmra.mrb[0].mxu0 %v1383
          %v1608 = vpop.f32.mrb[0].mxu0
          %v1609 = vadd.f32 0.0, %v1608
          %v1610 = vpop.f32.mrb[0].mxu0
          %1611 = vmatprep.mubr.f32.mxu0 0.0
          %1612 = vmatmul.mubr.f32.gmra.mrb[0].mxu0 %v1384
          %v1613 = vpop.f32.mrb[0].mxu0
          %v1614 = vadd.f32 0.0, %v1613
          %v1615 = vpop.f32.mrb[0].mxu0
          %1616 = vmatprep.mubr.f32.mxu0 0.0
          %1617 = vmatmul.mubr.f32.gmra.mrb[0].mxu0 %v1385
          %v1618 = vpop.f32.mrb[0].mxu0
          %v1619 = vadd.f32 0.0, %v1618
          %v1620 = vpop.f32.mrb[0].mxu0
          %1621 = vmatprep.mubr.f32.mxu0 0.0
          %1622 = vmatmul.mubr.f32.gmra.mrb[0].mxu0 %v1386
          %v1623 = vpop.f32.mrb[0].mxu0
          %v1624 = vadd.f32 0.0, %v1623
          %v1625 = vpop.f32.mrb[0].mxu0
          %1626 = vmatprep.mubr.f32.mxu0 0.0
          %1627 = vmatmul.mubr.f32.gmra.mrb[0].mxu0 %v1387
          %v1628 = vpop.f32.mrb[0].mxu0
          %v1629 = vadd.f32 0.0, %v1628
          %v1630 = vpop.f32.mrb[0].mxu0
          %1631 = vmatprep.mubr.f32.mxu0 0.0
          %1632 = vmatmul.mubr.f32.gmra.mrb[0].mxu0 %v1388
          %v1633 = vpop.f32.mrb[0].mxu0
          %v1634 = vadd.f32 0.0, %v1633
          %v1635 = vpop.f32.mrb[0].mxu0
          %1636 = vdwg.mxu0
          %v1637 = vadd.f32 %v1325, %v1479
          %v1638 = vadd.f32 %v1326, %v1484
          %v1639 = vadd.f32 %v1327, %v1489
          %v1640 = vadd.f32 %v1328, %v1494
          %v1641 = vadd.f32 %v1329, %v1499
          %v1642 = vadd.f32 %v1330, %v1504
          %v1643 = vadd.f32 %v1331, %v1509
          %v1644 = vadd.f32 %v1332, %v1514
          %v1645 = vadd.f32 %v1333, %v1519
          %v1646 = vadd.f32 %v1334, %v1524
          %v1647 = vadd.f32 %v1335, %v1529
          %v1648 = vadd.f32 %v1336, %v1534
          %v1649 = vadd.f32 %v1337, %v1539
          %v1650 = vadd.f32 %v1338, %v1544
          %v1651 = vadd.f32 %v1339, %v1549
          %v1652 = vadd.f32 %v1340, %v1554
          %v1653 = vadd.f32 %v1341, %v1559
          %v1654 = vadd.f32 %v1342, %v1564
          %v1655 = vadd.f32 %v1343, %v1569
          %v1656 = vadd.f32 %v1344, %v1574
          %v1657 = vadd.f32 %v1345, %v1579
          %v1658 = vadd.f32 %v1346, %v1584
          %v1659 = vadd.f32 %v1347, %v1589
          %v1660 = vadd.f32 %v1348, %v1594
          %v1661 = vadd.f32 %v1349, %v1599
          %v1662 = vadd.f32 %v1350, %v1604
          %v1663 = vadd.f32 %v1351, %v1609
          %v1664 = vadd.f32 %v1352, %v1614
          %v1665 = vadd.f32 %v1353, %v1619
          %v1666 = vadd.f32 %v1354, %v1624
          %v1667 = vadd.f32 %v1355, %v1629
          %v1668 = vadd.f32 %v1356, %v1634
          %s1669 = sadd.s32 %s593, 4
          %s1670 = smul.u32 %s1669, 128
          %s1671 = scalar_lea.vmem [#allocation6], %s1670
          %v1672 = vld [vmem:[%s1671] sm:$0xff]
          %v1673 = vld [vmem:[%s1671 + $0x8] sm:$0xff]
          %v1674 = vld [vmem:[%s1671 + $0x10] sm:$0xff]
          %v1675 = vld [vmem:[%s1671 + $0x18] sm:$0xff]
          %v1676 = vld [vmem:[%s1671 + $0x20] sm:$0xff]
          %v1677 = vld [vmem:[%s1671 + $0x28] sm:$0xff]
          %v1678 = vld [vmem:[%s1671 + $0x30] sm:$0xff]
          %v1679 = vld [vmem:[%s1671 + $0x38] sm:$0xff]
          %v1680 = vld [vmem:[%s1671 + $0x40] sm:$0xff]
          %v1681 = vld [vmem:[%s1671 + $0x48] sm:$0xff]
          %v1682 = vld [vmem:[%s1671 + $0x50] sm:$0xff]
          %v1683 = vld [vmem:[%s1671 + $0x58] sm:$0xff]
          %v1684 = vld [vmem:[%s1671 + $0x60] sm:$0xff]
          %v1685 = vld [vmem:[%s1671 + $0x68] sm:$0xff]
          %v1686 = vld [vmem:[%s1671 + $0x70] sm:$0xff]
          %v1687 = vld [vmem:[%s1671 + $0x78] sm:$0xff]
          %1688 = vmatprep.subr.mxu0 0.0
          %1689 = vmatpush1.msra.mxu0 %v1672
          %1690 = vmatprep.subr.mxu0 0.0
          %1691 = vmatpush1.msra.mxu0 %v1673
          %1692 = vmatprep.subr.mxu0 0.0
          %1693 = vmatpush1.msra.mxu0 %v1674
          %1694 = vmatprep.subr.mxu0 0.0
          %1695 = vmatpush1.msra.mxu0 %v1675
          %1696 = vmatprep.subr.mxu0 0.0
          %1697 = vmatpush1.msra.mxu0 %v1676
          %1698 = vmatprep.subr.mxu0 0.0
          %1699 = vmatpush1.msra.mxu0 %v1677
          %1700 = vmatprep.subr.mxu0 0.0
          %1701 = vmatpush1.msra.mxu0 %v1678
          %1702 = vmatprep.subr.mxu0 0.0
          %1703 = vmatpush1.msra.mxu0 %v1679
          %1704 = vmatprep.subr.mxu0 0.0
          %1705 = vmatpush1.msra.mxu0 %v1680
          %1706 = vmatprep.subr.mxu0 0.0
          %1707 = vmatpush1.msra.mxu0 %v1681
          %1708 = vmatprep.subr.mxu0 0.0
          %1709 = vmatpush1.msra.mxu0 %v1682
          %1710 = vmatprep.subr.mxu0 0.0
          %1711 = vmatpush1.msra.mxu0 %v1683
          %1712 = vmatprep.subr.mxu0 0.0
          %1713 = vmatpush1.msra.mxu0 %v1684
          %1714 = vmatprep.subr.mxu0 0.0
          %1715 = vmatpush1.msra.mxu0 %v1685
          %1716 = vmatprep.subr.mxu0 0.0
          %1717 = vmatpush1.msra.mxu0 %v1686
          %1718 = vmatprep.subr.mxu0 0.0
          %1719 = vmatpush1.msra.mxu0 %v1687
          %1720 = vmatprep.subr.mxu0 0.0
          %1721 = vmatpush1.msra.mxu0 0.0
          %1722 = vmatprep.subr.mxu0 0.0
          %1723 = vmatpush1.msra.mxu0 0.0
          %1724 = vmatprep.subr.mxu0 0.0
          %1725 = vmatpush1.msra.mxu0 0.0
          %1726 = vmatprep.subr.mxu0 0.0
          %1727 = vmatpush1.msra.mxu0 0.0
          %1728 = vmatprep.subr.mxu0 0.0
          %1729 = vmatpush1.msra.mxu0 0.0
          %1730 = vmatprep.subr.mxu0 0.0
          %1731 = vmatpush1.msra.mxu0 0.0
          %1732 = vmatprep.subr.mxu0 0.0
          %1733 = vmatpush1.msra.mxu0 0.0
          %1734 = vmatprep.subr.mxu0 0.0
          %1735 = vmatpush1.msra.mxu0 0.0
          %1736 = vmatprep.subr.mxu0 0.0
          %1737 = vmatpush1.msra.mxu0 0.0
          %1738 = vmatprep.subr.mxu0 0.0
          %1739 = vmatpush1.msra.mxu0 0.0
          %1740 = vmatprep.subr.mxu0 0.0
          %1741 = vmatpush1.msra.mxu0 0.0
          %1742 = vmatprep.subr.mxu0 0.0
          %1743 = vmatpush1.msra.mxu0 0.0
          %1744 = vmatprep.subr.mxu0 0.0
          %1745 = vmatpush1.msra.mxu0 0.0
          %1746 = vmatprep.subr.mxu0 0.0
          %1747 = vmatpush1.msra.mxu0 0.0
          %1748 = vmatprep.subr.mxu0 0.0
          %1749 = vmatpush1.msra.mxu0 0.0
          %1750 = vmatprep.subr.mxu0 0.0
          %1751 = vmatpush1.msra.mxu0 0.0
          %1752 = vmatprep.mubr.f32.mxu0 0.0
          %1753 = vmatmul.mubr.f32.gmra.mrb[0].mxu0 %v1359
          %v1754 = vpop.f32.mrb[0].mxu0
          %v1755 = vadd.f32 0.0, %v1754
          %v1756 = vpop.f32.mrb[0].mxu0
          %1757 = vmatprep.mubr.f32.mxu0 0.0
          %1758 = vmatmul.mubr.f32.gmra.mrb[0].mxu0 %v1360
          %v1759 = vpop.f32.mrb[0].mxu0
          %v1760 = vadd.f32 0.0, %v1759
          %v1761 = vpop.f32.mrb[0].mxu0
          %1762 = vmatprep.mubr.f32.mxu0 0.0
          %1763 = vmatmul.mubr.f32.gmra.mrb[0].mxu0 %v1361
          %v1764 = vpop.f32.mrb[0].mxu0
          %v1765 = vadd.f32 0.0, %v1764
          %v1766 = vpop.f32.mrb[0].mxu0
          %1767 = vmatprep.mubr.f32.mxu0 0.0
          %1768 = vmatmul.mubr.f32.gmra.mrb[0].mxu0 %v1362
          %v1769 = vpop.f32.mrb[0].mxu0
          %v1770 = vadd.f32 0.0, %v1769
          %v1771 = vpop.f32.mrb[0].mxu0
          %1772 = vmatprep.mubr.f32.mxu0 0.0
          %1773 = vmatmul.mubr.f32.gmra.mrb[0].mxu0 %v1363
          %v1774 = vpop.f32.mrb[0].mxu0
          %v1775 = vadd.f32 0.0, %v1774
          %v1776 = vpop.f32.mrb[0].mxu0
          %1777 = vmatprep.mubr.f32.mxu0 0.0
          %1778 = vmatmul.mubr.f32.gmra.mrb[0].mxu0 %v1364
          %v1779 = vpop.f32.mrb[0].mxu0
          %v1780 = vadd.f32 0.0, %v1779
          %v1781 = vpop.f32.mrb[0].mxu0
          %1782 = vmatprep.mubr.f32.mxu0 0.0
          %1783 = vmatmul.mubr.f32.gmra.mrb[0].mxu0 %v1365
          %v1784 = vpop.f32.mrb[0].mxu0
          %v1785 = vadd.f32 0.0, %v1784
          %v1786 = vpop.f32.mrb[0].mxu0
          %1787 = vmatprep.mubr.f32.mxu0 0.0
          %1788 = vmatmul.mubr.f32.gmra.mrb[0].mxu0 %v1366
          %v1789 = vpop.f32.mrb[0].mxu0
          %v1790 = vadd.f32 0.0, %v1789
          %v1791 = vpop.f32.mrb[0].mxu0
          %1792 = vmatprep.mubr.f32.mxu0 0.0
          %1793 = vmatmul.mubr.f32.gmra.mrb[0].mxu0 %v1367
          %v1794 = vpop.f32.mrb[0].mxu0
          %v1795 = vadd.f32 0.0, %v1794
          %v1796 = vpop.f32.mrb[0].mxu0
          %1797 = vmatprep.mubr.f32.mxu0 0.0
          %1798 = vmatmul.mubr.f32.gmra.mrb[0].mxu0 %v1368
          %v1799 = vpop.f32.mrb[0].mxu0
          %v1800 = vadd.f32 0.0, %v1799
          %v1801 = vpop.f32.mrb[0].mxu0
          %1802 = vmatprep.mubr.f32.mxu0 0.0
          %1803 = vmatmul.mubr.f32.gmra.mrb[0].mxu0 %v1369
          %v1804 = vpop.f32.mrb[0].mxu0
          %v1805 = vadd.f32 0.0, %v1804
          %v1806 = vpop.f32.mrb[0].mxu0
          %1807 = vmatprep.mubr.f32.mxu0 0.0
          %1808 = vmatmul.mubr.f32.gmra.mrb[0].mxu0 %v1370
          %v1809 = vpop.f32.mrb[0].mxu0
          %v1810 = vadd.f32 0.0, %v1809
          %v1811 = vpop.f32.mrb[0].mxu0
          %1812 = vmatprep.mubr.f32.mxu0 0.0
          %1813 = vmatmul.mubr.f32.gmra.mrb[0].mxu0 %v1371
          %v1814 = vpop.f32.mrb[0].mxu0
          %v1815 = vadd.f32 0.0, %v1814
          %v1816 = vpop.f32.mrb[0].mxu0
          %1817 = vmatprep.mubr.f32.mxu0 0.0
          %1818 = vmatmul.mubr.f32.gmra.mrb[0].mxu0 %v1372
          %v1819 = vpop.f32.mrb[0].mxu0
          %v1820 = vadd.f32 0.0, %v1819
          %v1821 = vpop.f32.mrb[0].mxu0
          %1822 = vmatprep.mubr.f32.mxu0 0.0
          %1823 = vmatmul.mubr.f32.gmra.mrb[0].mxu0 %v1373
          %v1824 = vpop.f32.mrb[0].mxu0
          %v1825 = vadd.f32 0.0, %v1824
          %v1826 = vpop.f32.mrb[0].mxu0
          %1827 = vmatprep.mubr.f32.mxu0 0.0
          %1828 = vmatmul.mubr.f32.gmra.mrb[0].mxu0 %v1374
          %v1829 = vpop.f32.mrb[0].mxu0
          %v1830 = vadd.f32 0.0, %v1829
          %v1831 = vpop.f32.mrb[0].mxu0
          %1832 = vmatprep.mubr.f32.mxu0 0.0
          %1833 = vmatmul.mubr.f32.gmra.mrb[0].mxu0 %v1375
          %v1834 = vpop.f32.mrb[0].mxu0
          %v1835 = vadd.f32 0.0, %v1834
          %v1836 = vpop.f32.mrb[0].mxu0
          %1837 = vmatprep.mubr.f32.mxu0 0.0
          %1838 = vmatmul.mubr.f32.gmra.mrb[0].mxu0 %v1376
          %v1839 = vpop.f32.mrb[0].mxu0
          %v1840 = vadd.f32 0.0, %v1839
          %v1841 = vpop.f32.mrb[0].mxu0
          %1842 = vmatprep.mubr.f32.mxu0 0.0
          %1843 = vmatmul.mubr.f32.gmra.mrb[0].mxu0 %v1377
          %v1844 = vpop.f32.mrb[0].mxu0
          %v1845 = vadd.f32 0.0, %v1844
          %v1846 = vpop.f32.mrb[0].mxu0
          %1847 = vmatprep.mubr.f32.mxu0 0.0
          %1848 = vmatmul.mubr.f32.gmra.mrb[0].mxu0 %v1378
          %v1849 = vpop.f32.mrb[0].mxu0
          %v1850 = vadd.f32 0.0, %v1849
          %v1851 = vpop.f32.mrb[0].mxu0
          %1852 = vmatprep.mubr.f32.mxu0 0.0
          %1853 = vmatmul.mubr.f32.gmra.mrb[0].mxu0 %v1379
          %v1854 = vpop.f32.mrb[0].mxu0
          %v1855 = vadd.f32 0.0, %v1854
          %v1856 = vpop.f32.mrb[0].mxu0
          %1857 = vmatprep.mubr.f32.mxu0 0.0
          %1858 = vmatmul.mubr.f32.gmra.mrb[0].mxu0 %v1380
          %v1859 = vpop.f32.mrb[0].mxu0
          %v1860 = vadd.f32 0.0, %v1859
          %v1861 = vpop.f32.mrb[0].mxu0
          %1862 = vmatprep.mubr.f32.mxu0 0.0
          %1863 = vmatmul.mubr.f32.gmra.mrb[0].mxu0 %v1381
          %v1864 = vpop.f32.mrb[0].mxu0
          %v1865 = vadd.f32 0.0, %v1864
          %v1866 = vpop.f32.mrb[0].mxu0
          %1867 = vmatprep.mubr.f32.mxu0 0.0
          %1868 = vmatmul.mubr.f32.gmra.mrb[0].mxu0 %v1382
          %v1869 = vpop.f32.mrb[0].mxu0
          %v1870 = vadd.f32 0.0, %v1869
          %v1871 = vpop.f32.mrb[0].mxu0
          %1872 = vmatprep.mubr.f32.mxu0 0.0
          %1873 = vmatmul.mubr.f32.gmra.mrb[0].mxu0 %v1383
          %v1874 = vpop.f32.mrb[0].mxu0
          %v1875 = vadd.f32 0.0, %v1874
          %v1876 = vpop.f32.mrb[0].mxu0
          %1877 = vmatprep.mubr.f32.mxu0 0.0
          %1878 = vmatmul.mubr.f32.gmra.mrb[0].mxu0 %v1384
          %v1879 = vpop.f32.mrb[0].mxu0
          %v1880 = vadd.f32 0.0, %v1879
          %v1881 = vpop.f32.mrb[0].mxu0
          %1882 = vmatprep.mubr.f32.mxu0 0.0
          %1883 = vmatmul.mubr.f32.gmra.mrb[0].mxu0 %v1385
          %v1884 = vpop.f32.mrb[0].mxu0
          %v1885 = vadd.f32 0.0, %v1884
          %v1886 = vpop.f32.mrb[0].mxu0
          %1887 = vmatprep.mubr.f32.mxu0 0.0
          %1888 = vmatmul.mubr.f32.gmra.mrb[0].mxu0 %v1386
          %v1889 = vpop.f32.mrb[0].mxu0
          %v1890 = vadd.f32 0.0, %v1889
          %v1891 = vpop.f32.mrb[0].mxu0
          %1892 = vmatprep.mubr.f32.mxu0 0.0
          %1893 = vmatmul.mubr.f32.gmra.mrb[0].mxu0 %v1387
          %v1894 = vpop.f32.mrb[0].mxu0
          %v1895 = vadd.f32 0.0, %v1894
          %v1896 = vpop.f32.mrb[0].mxu0
          %1897 = vmatprep.mubr.f32.mxu0 0.0
          %1898 = vmatmul.mubr.f32.gmra.mrb[0].mxu0 %v1388
          %v1899 = vpop.f32.mrb[0].mxu0
          %v1900 = vadd.f32 0.0, %v1899
          %v1901 = vpop.f32.mrb[0].mxu0
          %1902 = vmatprep.mubr.f32.mxu0 0.0
          %1903 = vmatmul.mubr.f32.gmra.mrb[0].mxu0 %v1389
          %v1904 = vpop.f32.mrb[0].mxu0
          %v1905 = vadd.f32 0.0, %v1904
          %v1906 = vpop.f32.mrb[0].mxu0
          %1907 = vmatprep.mubr.f32.mxu0 0.0
          %1908 = vmatmul.mubr.f32.gmra.mrb[0].mxu0 %v1390
          %v1909 = vpop.f32.mrb[0].mxu0
          %v1910 = vadd.f32 0.0, %v1909
          %v1911 = vpop.f32.mrb[0].mxu0
          %1912 = vdwg.mxu0
          %v1913 = vadd.f32 %v1637, %v1755
          %v1914 = vadd.f32 %v1638, %v1760
          %v1915 = vadd.f32 %v1639, %v1765
          %v1916 = vadd.f32 %v1640, %v1770
          %v1917 = vadd.f32 %v1641, %v1775
          %v1918 = vadd.f32 %v1642, %v1780
          %v1919 = vadd.f32 %v1643, %v1785
          %v1920 = vadd.f32 %v1644, %v1790
          %v1921 = vadd.f32 %v1645, %v1795
          %v1922 = vadd.f32 %v1646, %v1800
          %v1923 = vadd.f32 %v1647, %v1805
          %v1924 = vadd.f32 %v1648, %v1810
          %v1925 = vadd.f32 %v1649, %v1815
          %v1926 = vadd.f32 %v1650, %v1820
          %v1927 = vadd.f32 %v1651, %v1825
          %v1928 = vadd.f32 %v1652, %v1830
          %v1929 = vadd.f32 %v1653, %v1835
          %v1930 = vadd.f32 %v1654, %v1840
          %v1931 = vadd.f32 %v1655, %v1845
          %v1932 = vadd.f32 %v1656, %v1850
          %v1933 = vadd.f32 %v1657, %v1855
          %v1934 = vadd.f32 %v1658, %v1860
          %v1935 = vadd.f32 %v1659, %v1865
          %v1936 = vadd.f32 %v1660, %v1870
          %v1937 = vadd.f32 %v1661, %v1875
          %v1938 = vadd.f32 %v1662, %v1880
          %v1939 = vadd.f32 %v1663, %v1885
          %v1940 = vadd.f32 %v1664, %v1890
          %v1941 = vadd.f32 %v1665, %v1895
          %v1942 = vadd.f32 %v1666, %v1900
          %v1943 = vadd.f32 %v1667, %v1905
          %v1944 = vadd.f32 %v1668, %v1910
          %s1945 = sadd.s32 %s593, 7
          %s1946 = smul.u32 %s1945, 128
          %s1947 = scalar_lea.vmem [#allocation6], %s1946
          %v1948 = vld [vmem:[%s1947] sm:$0xff]
          %v1949 = vld [vmem:[%s1947 + $0x8] sm:$0xff]
          %v1950 = vld [vmem:[%s1947 + $0x10] sm:$0xff]
          %v1951 = vld [vmem:[%s1947 + $0x18] sm:$0xff]
          %v1952 = vld [vmem:[%s1947 + $0x20] sm:$0xff]
          %v1953 = vld [vmem:[%s1947 + $0x28] sm:$0xff]
          %v1954 = vld [vmem:[%s1947 + $0x30] sm:$0xff]
          %v1955 = vld [vmem:[%s1947 + $0x38] sm:$0xff]
          %v1956 = vld [vmem:[%s1947 + $0x40] sm:$0xff]
          %v1957 = vld [vmem:[%s1947 + $0x48] sm:$0xff]
          %v1958 = vld [vmem:[%s1947 + $0x50] sm:$0xff]
          %v1959 = vld [vmem:[%s1947 + $0x58] sm:$0xff]
          %v1960 = vld [vmem:[%s1947 + $0x60] sm:$0xff]
          %v1961 = vld [vmem:[%s1947 + $0x68] sm:$0xff]
          %v1962 = vld [vmem:[%s1947 + $0x70] sm:$0xff]
          %v1963 = vld [vmem:[%s1947 + $0x78] sm:$0xff]
          %1964 = vmatprep.subr.mxu0 0.0
          %1965 = vmatpush1.msra.mxu0 %v1948
          %1966 = vmatprep.subr.mxu0 0.0
          %1967 = vmatpush1.msra.mxu0 %v1949
          %1968 = vmatprep.subr.mxu0 0.0
          %1969 = vmatpush1.msra.mxu0 %v1950
          %1970 = vmatprep.subr.mxu0 0.0
          %1971 = vmatpush1.msra.mxu0 %v1951
          %1972 = vmatprep.subr.mxu0 0.0
          %1973 = vmatpush1.msra.mxu0 %v1952
          %1974 = vmatprep.subr.mxu0 0.0
          %1975 = vmatpush1.msra.mxu0 %v1953
          %1976 = vmatprep.subr.mxu0 0.0
          %1977 = vmatpush1.msra.mxu0 %v1954
          %1978 = vmatprep.subr.mxu0 0.0
          %1979 = vmatpush1.msra.mxu0 %v1955
          %1980 = vmatprep.subr.mxu0 0.0
          %1981 = vmatpush1.msra.mxu0 %v1956
          %1982 = vmatprep.subr.mxu0 0.0
          %1983 = vmatpush1.msra.mxu0 %v1957
          %1984 = vmatprep.subr.mxu0 0.0
          %1985 = vmatpush1.msra.mxu0 %v1958
          %1986 = vmatprep.subr.mxu0 0.0
          %1987 = vmatpush1.msra.mxu0 %v1959
          %1988 = vmatprep.subr.mxu0 0.0
          %1989 = vmatpush1.msra.mxu0 %v1960
          %1990 = vmatprep.subr.mxu0 0.0
          %1991 = vmatpush1.msra.mxu0 %v1961
          %1992 = vmatprep.subr.mxu0 0.0
          %1993 = vmatpush1.msra.mxu0 %v1962
          %1994 = vmatprep.subr.mxu0 0.0
          %1995 = vmatpush1.msra.mxu0 %v1963
          %1996 = vmatprep.subr.mxu0 0.0
          %1997 = vmatpush1.msra.mxu0 0.0
          %1998 = vmatprep.subr.mxu0 0.0
          %1999 = vmatpush1.msra.mxu0 0.0
          %2000 = vmatprep.subr.mxu0 0.0
          %2001 = vmatpush1.msra.mxu0 0.0
          %2002 = vmatprep.subr.mxu0 0.0
          %2003 = vmatpush1.msra.mxu0 0.0
          %2004 = vmatprep.subr.mxu0 0.0
          %2005 = vmatpush1.msra.mxu0 0.0
          %2006 = vmatprep.subr.mxu0 0.0
          %2007 = vmatpush1.msra.mxu0 0.0
          %2008 = vmatprep.subr.mxu0 0.0
          %2009 = vmatpush1.msra.mxu0 0.0
          %2010 = vmatprep.subr.mxu0 0.0
          %2011 = vmatpush1.msra.mxu0 0.0
          %2012 = vmatprep.subr.mxu0 0.0
          %2013 = vmatpush1.msra.mxu0 0.0
          %2014 = vmatprep.subr.mxu0 0.0
          %2015 = vmatpush1.msra.mxu0 0.0
          %2016 = vmatprep.subr.mxu0 0.0
          %2017 = vmatpush1.msra.mxu0 0.0
          %2018 = vmatprep.subr.mxu0 0.0
          %2019 = vmatpush1.msra.mxu0 0.0
          %2020 = vmatprep.subr.mxu0 0.0
          %2021 = vmatpush1.msra.mxu0 0.0
          %2022 = vmatprep.subr.mxu0 0.0
          %2023 = vmatpush1.msra.mxu0 0.0
          %2024 = vmatprep.subr.mxu0 0.0
          %2025 = vmatpush1.msra.mxu0 0.0
          %2026 = vmatprep.subr.mxu0 0.0
          %2027 = vmatpush1.msra.mxu0 0.0
          %2028 = vmatprep.mubr.f32.mxu0 0.0
          %2029 = vmatmul.mubr.f32.gmra.mrb[0].mxu0 %v1361
          %v2030 = vpop.f32.mrb[0].mxu0
          %v2031 = vadd.f32 0.0, %v2030
          %v2032 = vpop.f32.mrb[0].mxu0
          %2033 = vmatprep.mubr.f32.mxu0 0.0
          %2034 = vmatmul.mubr.f32.gmra.mrb[0].mxu0 %v1362
          %v2035 = vpop.f32.mrb[0].mxu0
          %v2036 = vadd.f32 0.0, %v2035
          %v2037 = vpop.f32.mrb[0].mxu0
          %2038 = vmatprep.mubr.f32.mxu0 0.0
          %2039 = vmatmul.mubr.f32.gmra.mrb[0].mxu0 %v1363
          %v2040 = vpop.f32.mrb[0].mxu0
          %v2041 = vadd.f32 0.0, %v2040
          %v2042 = vpop.f32.mrb[0].mxu0
          %2043 = vmatprep.mubr.f32.mxu0 0.0
          %2044 = vmatmul.mubr.f32.gmra.mrb[0].mxu0 %v1364
          %v2045 = vpop.f32.mrb[0].mxu0
          %v2046 = vadd.f32 0.0, %v2045
          %v2047 = vpop.f32.mrb[0].mxu0
          %2048 = vmatprep.mubr.f32.mxu0 0.0
          %2049 = vmatmul.mubr.f32.gmra.mrb[0].mxu0 %v1365
          %v2050 = vpop.f32.mrb[0].mxu0
          %v2051 = vadd.f32 0.0, %v2050
          %v2052 = vpop.f32.mrb[0].mxu0
          %2053 = vmatprep.mubr.f32.mxu0 0.0
          %2054 = vmatmul.mubr.f32.gmra.mrb[0].mxu0 %v1366
          %v2055 = vpop.f32.mrb[0].mxu0
          %v2056 = vadd.f32 0.0, %v2055
          %v2057 = vpop.f32.mrb[0].mxu0
          %2058 = vmatprep.mubr.f32.mxu0 0.0
          %2059 = vmatmul.mubr.f32.gmra.mrb[0].mxu0 %v1367
          %v2060 = vpop.f32.mrb[0].mxu0
          %v2061 = vadd.f32 0.0, %v2060
          %v2062 = vpop.f32.mrb[0].mxu0
          %2063 = vmatprep.mubr.f32.mxu0 0.0
          %2064 = vmatmul.mubr.f32.gmra.mrb[0].mxu0 %v1368
          %v2065 = vpop.f32.mrb[0].mxu0
          %v2066 = vadd.f32 0.0, %v2065
          %v2067 = vpop.f32.mrb[0].mxu0
          %2068 = vmatprep.mubr.f32.mxu0 0.0
          %2069 = vmatmul.mubr.f32.gmra.mrb[0].mxu0 %v1369
          %v2070 = vpop.f32.mrb[0].mxu0
          %v2071 = vadd.f32 0.0, %v2070
          %v2072 = vpop.f32.mrb[0].mxu0
          %2073 = vmatprep.mubr.f32.mxu0 0.0
          %2074 = vmatmul.mubr.f32.gmra.mrb[0].mxu0 %v1370
          %v2075 = vpop.f32.mrb[0].mxu0
          %v2076 = vadd.f32 0.0, %v2075
          %v2077 = vpop.f32.mrb[0].mxu0
          %2078 = vmatprep.mubr.f32.mxu0 0.0
          %2079 = vmatmul.mubr.f32.gmra.mrb[0].mxu0 %v1371
          %v2080 = vpop.f32.mrb[0].mxu0
          %v2081 = vadd.f32 0.0, %v2080
          %v2082 = vpop.f32.mrb[0].mxu0
          %2083 = vmatprep.mubr.f32.mxu0 0.0
          %2084 = vmatmul.mubr.f32.gmra.mrb[0].mxu0 %v1372
          %v2085 = vpop.f32.mrb[0].mxu0
          %v2086 = vadd.f32 0.0, %v2085
          %v2087 = vpop.f32.mrb[0].mxu0
          %2088 = vmatprep.mubr.f32.mxu0 0.0
          %2089 = vmatmul.mubr.f32.gmra.mrb[0].mxu0 %v1373
          %v2090 = vpop.f32.mrb[0].mxu0
          %v2091 = vadd.f32 0.0, %v2090
          %v2092 = vpop.f32.mrb[0].mxu0
          %2093 = vmatprep.mubr.f32.mxu0 0.0
          %2094 = vmatmul.mubr.f32.gmra.mrb[0].mxu0 %v1374
          %v2095 = vpop.f32.mrb[0].mxu0
          %v2096 = vadd.f32 0.0, %v2095
          %v2097 = vpop.f32.mrb[0].mxu0
          %2098 = vmatprep.mubr.f32.mxu0 0.0
          %2099 = vmatmul.mubr.f32.gmra.mrb[0].mxu0 %v1375
          %v2100 = vpop.f32.mrb[0].mxu0
          %v2101 = vadd.f32 0.0, %v2100
          %v2102 = vpop.f32.mrb[0].mxu0
          %2103 = vmatprep.mubr.f32.mxu0 0.0
          %2104 = vmatmul.mubr.f32.gmra.mrb[0].mxu0 %v1376
          %v2105 = vpop.f32.mrb[0].mxu0
          %v2106 = vadd.f32 0.0, %v2105
          %v2107 = vpop.f32.mrb[0].mxu0
          %2108 = vmatprep.mubr.f32.mxu0 0.0
          %2109 = vmatmul.mubr.f32.gmra.mrb[0].mxu0 %v1377
          %v2110 = vpop.f32.mrb[0].mxu0
          %v2111 = vadd.f32 0.0, %v2110
          %v2112 = vpop.f32.mrb[0].mxu0
          %2113 = vmatprep.mubr.f32.mxu0 0.0
          %2114 = vmatmul.mubr.f32.gmra.mrb[0].mxu0 %v1378
          %v2115 = vpop.f32.mrb[0].mxu0
          %v2116 = vadd.f32 0.0, %v2115
          %v2117 = vpop.f32.mrb[0].mxu0
          %2118 = vmatprep.mubr.f32.mxu0 0.0
          %2119 = vmatmul.mubr.f32.gmra.mrb[0].mxu0 %v1379
          %v2120 = vpop.f32.mrb[0].mxu0
          %v2121 = vadd.f32 0.0, %v2120
          %v2122 = vpop.f32.mrb[0].mxu0
          %2123 = vmatprep.mubr.f32.mxu0 0.0
          %2124 = vmatmul.mubr.f32.gmra.mrb[0].mxu0 %v1380
          %v2125 = vpop.f32.mrb[0].mxu0
          %v2126 = vadd.f32 0.0, %v2125
          %v2127 = vpop.f32.mrb[0].mxu0
          %2128 = vmatprep.mubr.f32.mxu0 0.0
          %2129 = vmatmul.mubr.f32.gmra.mrb[0].mxu0 %v1381
          %v2130 = vpop.f32.mrb[0].mxu0
          %v2131 = vadd.f32 0.0, %v2130
          %v2132 = vpop.f32.mrb[0].mxu0
          %2133 = vmatprep.mubr.f32.mxu0 0.0
          %2134 = vmatmul.mubr.f32.gmra.mrb[0].mxu0 %v1382
          %v2135 = vpop.f32.mrb[0].mxu0
          %v2136 = vadd.f32 0.0, %v2135
          %v2137 = vpop.f32.mrb[0].mxu0
          %2138 = vmatprep.mubr.f32.mxu0 0.0
          %2139 = vmatmul.mubr.f32.gmra.mrb[0].mxu0 %v1383
          %v2140 = vpop.f32.mrb[0].mxu0
          %v2141 = vadd.f32 0.0, %v2140
          %v2142 = vpop.f32.mrb[0].mxu0
          %2143 = vmatprep.mubr.f32.mxu0 0.0
          %2144 = vmatmul.mubr.f32.gmra.mrb[0].mxu0 %v1384
          %v2145 = vpop.f32.mrb[0].mxu0
          %v2146 = vadd.f32 0.0, %v2145
          %v2147 = vpop.f32.mrb[0].mxu0
          %2148 = vmatprep.mubr.f32.mxu0 0.0
          %2149 = vmatmul.mubr.f32.gmra.mrb[0].mxu0 %v1385
          %v2150 = vpop.f32.mrb[0].mxu0
          %v2151 = vadd.f32 0.0, %v2150
          %v2152 = vpop.f32.mrb[0].mxu0
          %2153 = vmatprep.mubr.f32.mxu0 0.0
          %2154 = vmatmul.mubr.f32.gmra.mrb[0].mxu0 %v1386
          %v2155 = vpop.f32.mrb[0].mxu0
          %v2156 = vadd.f32 0.0, %v2155
          %v2157 = vpop.f32.mrb[0].mxu0
          %2158 = vmatprep.mubr.f32.mxu0 0.0
          %2159 = vmatmul.mubr.f32.gmra.mrb[0].mxu0 %v1387
          %v2160 = vpop.f32.mrb[0].mxu0
          %v2161 = vadd.f32 0.0, %v2160
          %v2162 = vpop.f32.mrb[0].mxu0
          %2163 = vmatprep.mubr.f32.mxu0 0.0
          %2164 = vmatmul.mubr.f32.gmra.mrb[0].mxu0 %v1388
          %v2165 = vpop.f32.mrb[0].mxu0
          %v2166 = vadd.f32 0.0, %v2165
          %v2167 = vpop.f32.mrb[0].mxu0
          %2168 = vmatprep.mubr.f32.mxu0 0.0
          %2169 = vmatmul.mubr.f32.gmra.mrb[0].mxu0 %v1389
          %v2170 = vpop.f32.mrb[0].mxu0
          %v2171 = vadd.f32 0.0, %v2170
          %v2172 = vpop.f32.mrb[0].mxu0
          %2173 = vmatprep.mubr.f32.mxu0 0.0
          %2174 = vmatmul.mubr.f32.gmra.mrb[0].mxu0 %v1390
          %v2175 = vpop.f32.mrb[0].mxu0
          %v2176 = vadd.f32 0.0, %v2175
          %v2177 = vpop.f32.mrb[0].mxu0
          %2178 = vmatprep.mubr.f32.mxu0 0.0
          %2179 = vmatmul.mubr.f32.gmra.mrb[0].mxu0 %v1391
          %v2180 = vpop.f32.mrb[0].mxu0
          %v2181 = vadd.f32 0.0, %v2180
          %v2182 = vpop.f32.mrb[0].mxu0
          %2183 = vmatprep.mubr.f32.mxu0 0.0
          %2184 = vmatmul.mubr.f32.gmra.mrb[0].mxu0 %v1392
          %v2185 = vpop.f32.mrb[0].mxu0
          %v2186 = vadd.f32 0.0, %v2185
          %v2187 = vpop.f32.mrb[0].mxu0
          %2188 = vdwg.mxu0
          %v2189 = vadd.f32 %v1913, %v2031
          %v2190 = vadd.f32 %v1914, %v2036
          %v2191 = vadd.f32 %v1915, %v2041
          %v2192 = vadd.f32 %v1916, %v2046
          %v2193 = vadd.f32 %v1917, %v2051
          %v2194 = vadd.f32 %v1918, %v2056
          %v2195 = vadd.f32 %v1919, %v2061
          %v2196 = vadd.f32 %v1920, %v2066
          %v2197 = vadd.f32 %v1921, %v2071
          %v2198 = vadd.f32 %v1922, %v2076
          %v2199 = vadd.f32 %v1923, %v2081
          %v2200 = vadd.f32 %v1924, %v2086
          %v2201 = vadd.f32 %v1925, %v2091
          %v2202 = vadd.f32 %v1926, %v2096
          %v2203 = vadd.f32 %v1927, %v2101
          %v2204 = vadd.f32 %v1928, %v2106
          %v2205 = vadd.f32 %v1929, %v2111
          %v2206 = vadd.f32 %v1930, %v2116
          %v2207 = vadd.f32 %v1931, %v2121
          %v2208 = vadd.f32 %v1932, %v2126
          %v2209 = vadd.f32 %v1933, %v2131
          %v2210 = vadd.f32 %v1934, %v2136
          %v2211 = vadd.f32 %v1935, %v2141
          %v2212 = vadd.f32 %v1936, %v2146
          %v2213 = vadd.f32 %v1937, %v2151
          %v2214 = vadd.f32 %v1938, %v2156
          %v2215 = vadd.f32 %v1939, %v2161
          %v2216 = vadd.f32 %v1940, %v2166
          %v2217 = vadd.f32 %v1941, %v2171
          %v2218 = vadd.f32 %v1942, %v2176
          %v2219 = vadd.f32 %v1943, %v2181
          %v2220 = vadd.f32 %v1944, %v2186
          %v2221 = vld [vmem:[#allocation2 + $0x2] sm:$0xff]
          %v2222 = vld [vmem:[#allocation2 + $0xa] sm:$0xff]
          %v2223 = vld [vmem:[#allocation2 + $0x1a] sm:$0xff]
          %v2224 = vld [vmem:[#allocation2 + $0x22] sm:$0xff]
          %v2225 = vld [vmem:[#allocation2 + $0x32] sm:$0xff]
          %v2226 = vld [vmem:[#allocation2 + $0x3a] sm:$0xff]
          %v2227 = vld [vmem:[#allocation2 + $0x4a] sm:$0xff]
          %v2228 = vld [vmem:[#allocation2 + $0x52] sm:$0xff]
          %v2229 = vld [vmem:[#allocation2 + $0x62] sm:$0xff]
          %v2230 = vld [vmem:[#allocation2 + $0x6a] sm:$0xff]
          %v2231 = vld [vmem:[#allocation2 + $0x7a] sm:$0xff]
          %v2232 = vld [vmem:[#allocation2 + $0x82] sm:$0xff]
          %v2233 = vld [vmem:[#allocation2 + $0x92] sm:$0xff]
          %v2234 = vld [vmem:[#allocation2 + $0x9a] sm:$0xff]
          %v2235 = vld [vmem:[#allocation2 + $0xaa] sm:$0xff]
          %v2236 = vld [vmem:[#allocation2 + $0xb2] sm:$0xff]
          %v2237 = vld [vmem:[#allocation2 + $0xc2] sm:$0xff]
          %v2238 = vld [vmem:[#allocation2 + $0xca] sm:$0xff]
          %v2239 = vld [vmem:[#allocation2 + $0xda] sm:$0xff]
          %v2240 = vld [vmem:[#allocation2 + $0xe2] sm:$0xff]
          %v2241 = vld [vmem:[#allocation2 + $0xf2] sm:$0xff]
          %v2242 = vld [vmem:[#allocation2 + $0xfa] sm:$0xff]
          %v2243 = vld [vmem:[#allocation2 + $0x10a] sm:$0xff]
          %v2244 = vld [vmem:[#allocation2 + $0x112] sm:$0xff]
          %v2245 = vld [vmem:[#allocation2 + $0x122] sm:$0xff]
          %v2246 = vld [vmem:[#allocation2 + $0x12a] sm:$0xff]
          %v2247 = vld [vmem:[#allocation2 + $0x13a] sm:$0xff]
          %v2248 = vld [vmem:[#allocation2 + $0x142] sm:$0xff]
          %v2249 = vld [vmem:[#allocation2 + $0x152] sm:$0xff]
          %v2250 = vld [vmem:[#allocation2 + $0x15a] sm:$0xff]
          %v2251 = vld [vmem:[#allocation2 + $0x16a] sm:$0xff]
          %v2252 = vld [vmem:[#allocation2 + $0x172] sm:$0xff]
          %v2253 = vld [vmem:[#allocation2 + $0x182] sm:$0xff]
          %v2254 = vld [vmem:[#allocation2 + $0x18a] sm:$0xff]
          %v2255 = vld [vmem:[#allocation2 + $0x19a] sm:$0xff]
          %v2256 = vld [vmem:[#allocation2 + $0x1a2] sm:$0xff]
          %s2257 = sadd.s32 %s593, 2
          %s2258 = smul.u32 %s2257, 128
          %s2259 = scalar_lea.vmem [#allocation6], %s2258
          %v2260 = vld [vmem:[%s2259] sm:$0xff]
          %v2261 = vld [vmem:[%s2259 + $0x8] sm:$0xff]
          %v2262 = vld [vmem:[%s2259 + $0x10] sm:$0xff]
          %v2263 = vld [vmem:[%s2259 + $0x18] sm:$0xff]
          %v2264 = vld [vmem:[%s2259 + $0x20] sm:$0xff]
          %v2265 = vld [vmem:[%s2259 + $0x28] sm:$0xff]
          %v2266 = vld [vmem:[%s2259 + $0x30] sm:$0xff]
          %v2267 = vld [vmem:[%s2259 + $0x38] sm:$0xff]
          %v2268 = vld [vmem:[%s2259 + $0x40] sm:$0xff]
          %v2269 = vld [vmem:[%s2259 + $0x48] sm:$0xff]
          %v2270 = vld [vmem:[%s2259 + $0x50] sm:$0xff]
          %v2271 = vld [vmem:[%s2259 + $0x58] sm:$0xff]
          %v2272 = vld [vmem:[%s2259 + $0x60] sm:$0xff]
          %v2273 = vld [vmem:[%s2259 + $0x68] sm:$0xff]
          %v2274 = vld [vmem:[%s2259 + $0x70] sm:$0xff]
          %v2275 = vld [vmem:[%s2259 + $0x78] sm:$0xff]
          %2276 = vmatprep.subr.mxu0 0.0
          %2277 = vmatpush1.msra.mxu0 %v2260
          %2278 = vmatprep.subr.mxu0 0.0
          %2279 = vmatpush1.msra.mxu0 %v2261
          %2280 = vmatprep.subr.mxu0 0.0
          %2281 = vmatpush1.msra.mxu0 %v2262
          %2282 = vmatprep.subr.mxu0 0.0
          %2283 = vmatpush1.msra.mxu0 %v2263
          %2284 = vmatprep.subr.mxu0 0.0
          %2285 = vmatpush1.msra.mxu0 %v2264
          %2286 = vmatprep.subr.mxu0 0.0
          %2287 = vmatpush1.msra.mxu0 %v2265
          %2288 = vmatprep.subr.mxu0 0.0
          %2289 = vmatpush1.msra.mxu0 %v2266
          %2290 = vmatprep.subr.mxu0 0.0
          %2291 = vmatpush1.msra.mxu0 %v2267
          %2292 = vmatprep.subr.mxu0 0.0
          %2293 = vmatpush1.msra.mxu0 %v2268
          %2294 = vmatprep.subr.mxu0 0.0
          %2295 = vmatpush1.msra.mxu0 %v2269
          %2296 = vmatprep.subr.mxu0 0.0
          %2297 = vmatpush1.msra.mxu0 %v2270
          %2298 = vmatprep.subr.mxu0 0.0
          %2299 = vmatpush1.msra.mxu0 %v2271
          %2300 = vmatprep.subr.mxu0 0.0
          %2301 = vmatpush1.msra.mxu0 %v2272
          %2302 = vmatprep.subr.mxu0 0.0
          %2303 = vmatpush1.msra.mxu0 %v2273
          %2304 = vmatprep.subr.mxu0 0.0
          %2305 = vmatpush1.msra.mxu0 %v2274
          %2306 = vmatprep.subr.mxu0 0.0
          %2307 = vmatpush1.msra.mxu0 %v2275
          %2308 = vmatprep.subr.mxu0 0.0
          %2309 = vmatpush1.msra.mxu0 0.0
          %2310 = vmatprep.subr.mxu0 0.0
          %2311 = vmatpush1.msra.mxu0 0.0
          %2312 = vmatprep.subr.mxu0 0.0
          %2313 = vmatpush1.msra.mxu0 0.0
          %2314 = vmatprep.subr.mxu0 0.0
          %2315 = vmatpush1.msra.mxu0 0.0
          %2316 = vmatprep.subr.mxu0 0.0
          %2317 = vmatpush1.msra.mxu0 0.0
          %2318 = vmatprep.subr.mxu0 0.0
          %2319 = vmatpush1.msra.mxu0 0.0
          %2320 = vmatprep.subr.mxu0 0.0
          %2321 = vmatpush1.msra.mxu0 0.0
          %2322 = vmatprep.subr.mxu0 0.0
          %2323 = vmatpush1.msra.mxu0 0.0
          %2324 = vmatprep.subr.mxu0 0.0
          %2325 = vmatpush1.msra.mxu0 0.0
          %2326 = vmatprep.subr.mxu0 0.0
          %2327 = vmatpush1.msra.mxu0 0.0
          %2328 = vmatprep.subr.mxu0 0.0
          %2329 = vmatpush1.msra.mxu0 0.0
          %2330 = vmatprep.subr.mxu0 0.0
          %2331 = vmatpush1.msra.mxu0 0.0
          %2332 = vmatprep.subr.mxu0 0.0
          %2333 = vmatpush1.msra.mxu0 0.0
          %2334 = vmatprep.subr.mxu0 0.0
          %2335 = vmatpush1.msra.mxu0 0.0
          %2336 = vmatprep.subr.mxu0 0.0
          %2337 = vmatpush1.msra.mxu0 0.0
          %2338 = vmatprep.subr.mxu0 0.0
          %2339 = vmatpush1.msra.mxu0 0.0
          %2340 = vmatprep.mubr.f32.mxu0 0.0
          %2341 = vmatmul.mubr.f32.gmra.mrb[0].mxu0 %v2221
          %v2342 = vpop.f32.mrb[0].mxu0
          %v2343 = vadd.f32 0.0, %v2342
          %v2344 = vpop.f32.mrb[0].mxu0
          %2345 = vmatprep.mubr.f32.mxu0 0.0
          %2346 = vmatmul.mubr.f32.gmra.mrb[0].mxu0 %v2222
          %v2347 = vpop.f32.mrb[0].mxu0
          %v2348 = vadd.f32 0.0, %v2347
          %v2349 = vpop.f32.mrb[0].mxu0
          %2350 = vmatprep.mubr.f32.mxu0 0.0
          %2351 = vmatmul.mubr.f32.gmra.mrb[0].mxu0 %v2223
          %v2352 = vpop.f32.mrb[0].mxu0
          %v2353 = vadd.f32 0.0, %v2352
          %v2354 = vpop.f32.mrb[0].mxu0
          %2355 = vmatprep.mubr.f32.mxu0 0.0
          %2356 = vmatmul.mubr.f32.gmra.mrb[0].mxu0 %v2224
          %v2357 = vpop.f32.mrb[0].mxu0
          %v2358 = vadd.f32 0.0, %v2357
          %v2359 = vpop.f32.mrb[0].mxu0
          %2360 = vmatprep.mubr.f32.mxu0 0.0
          %2361 = vmatmul.mubr.f32.gmra.mrb[0].mxu0 %v2225
          %v2362 = vpop.f32.mrb[0].mxu0
          %v2363 = vadd.f32 0.0, %v2362
          %v2364 = vpop.f32.mrb[0].mxu0
          %2365 = vmatprep.mubr.f32.mxu0 0.0
          %2366 = vmatmul.mubr.f32.gmra.mrb[0].mxu0 %v2226
          %v2367 = vpop.f32.mrb[0].mxu0
          %v2368 = vadd.f32 0.0, %v2367
          %v2369 = vpop.f32.mrb[0].mxu0
          %2370 = vmatprep.mubr.f32.mxu0 0.0
          %2371 = vmatmul.mubr.f32.gmra.mrb[0].mxu0 %v2227
          %v2372 = vpop.f32.mrb[0].mxu0
          %v2373 = vadd.f32 0.0, %v2372
          %v2374 = vpop.f32.mrb[0].mxu0
          %2375 = vmatprep.mubr.f32.mxu0 0.0
          %2376 = vmatmul.mubr.f32.gmra.mrb[0].mxu0 %v2228
          %v2377 = vpop.f32.mrb[0].mxu0
          %v2378 = vadd.f32 0.0, %v2377
          %v2379 = vpop.f32.mrb[0].mxu0
          %2380 = vmatprep.mubr.f32.mxu0 0.0
          %2381 = vmatmul.mubr.f32.gmra.mrb[0].mxu0 %v2229
          %v2382 = vpop.f32.mrb[0].mxu0
          %v2383 = vadd.f32 0.0, %v2382
          %v2384 = vpop.f32.mrb[0].mxu0
          %2385 = vmatprep.mubr.f32.mxu0 0.0
          %2386 = vmatmul.mubr.f32.gmra.mrb[0].mxu0 %v2230
          %v2387 = vpop.f32.mrb[0].mxu0
          %v2388 = vadd.f32 0.0, %v2387
          %v2389 = vpop.f32.mrb[0].mxu0
          %2390 = vmatprep.mubr.f32.mxu0 0.0
          %2391 = vmatmul.mubr.f32.gmra.mrb[0].mxu0 %v2231
          %v2392 = vpop.f32.mrb[0].mxu0
          %v2393 = vadd.f32 0.0, %v2392
          %v2394 = vpop.f32.mrb[0].mxu0
          %2395 = vmatprep.mubr.f32.mxu0 0.0
          %2396 = vmatmul.mubr.f32.gmra.mrb[0].mxu0 %v2232
          %v2397 = vpop.f32.mrb[0].mxu0
          %v2398 = vadd.f32 0.0, %v2397
          %v2399 = vpop.f32.mrb[0].mxu0
          %2400 = vmatprep.mubr.f32.mxu0 0.0
          %2401 = vmatmul.mubr.f32.gmra.mrb[0].mxu0 %v2233
          %v2402 = vpop.f32.mrb[0].mxu0
          %v2403 = vadd.f32 0.0, %v2402
          %v2404 = vpop.f32.mrb[0].mxu0
          %2405 = vmatprep.mubr.f32.mxu0 0.0
          %2406 = vmatmul.mubr.f32.gmra.mrb[0].mxu0 %v2234
          %v2407 = vpop.f32.mrb[0].mxu0
          %v2408 = vadd.f32 0.0, %v2407
          %v2409 = vpop.f32.mrb[0].mxu0
          %2410 = vmatprep.mubr.f32.mxu0 0.0
          %2411 = vmatmul.mubr.f32.gmra.mrb[0].mxu0 %v2235
          %v2412 = vpop.f32.mrb[0].mxu0
          %v2413 = vadd.f32 0.0, %v2412
          %v2414 = vpop.f32.mrb[0].mxu0
          %2415 = vmatprep.mubr.f32.mxu0 0.0
          %2416 = vmatmul.mubr.f32.gmra.mrb[0].mxu0 %v2236
          %v2417 = vpop.f32.mrb[0].mxu0
          %v2418 = vadd.f32 0.0, %v2417
          %v2419 = vpop.f32.mrb[0].mxu0
          %2420 = vmatprep.mubr.f32.mxu0 0.0
          %2421 = vmatmul.mubr.f32.gmra.mrb[0].mxu0 %v2237
          %v2422 = vpop.f32.mrb[0].mxu0
          %v2423 = vadd.f32 0.0, %v2422
          %v2424 = vpop.f32.mrb[0].mxu0
          %2425 = vmatprep.mubr.f32.mxu0 0.0
          %2426 = vmatmul.mubr.f32.gmra.mrb[0].mxu0 %v2238
          %v2427 = vpop.f32.mrb[0].mxu0
          %v2428 = vadd.f32 0.0, %v2427
          %v2429 = vpop.f32.mrb[0].mxu0
          %2430 = vmatprep.mubr.f32.mxu0 0.0
          %2431 = vmatmul.mubr.f32.gmra.mrb[0].mxu0 %v2239
          %v2432 = vpop.f32.mrb[0].mxu0
          %v2433 = vadd.f32 0.0, %v2432
          %v2434 = vpop.f32.mrb[0].mxu0
          %2435 = vmatprep.mubr.f32.mxu0 0.0
          %2436 = vmatmul.mubr.f32.gmra.mrb[0].mxu0 %v2240
          %v2437 = vpop.f32.mrb[0].mxu0
          %v2438 = vadd.f32 0.0, %v2437
          %v2439 = vpop.f32.mrb[0].mxu0
          %2440 = vmatprep.mubr.f32.mxu0 0.0
          %2441 = vmatmul.mubr.f32.gmra.mrb[0].mxu0 %v2241
          %v2442 = vpop.f32.mrb[0].mxu0
          %v2443 = vadd.f32 0.0, %v2442
          %v2444 = vpop.f32.mrb[0].mxu0
          %2445 = vmatprep.mubr.f32.mxu0 0.0
          %2446 = vmatmul.mubr.f32.gmra.mrb[0].mxu0 %v2242
          %v2447 = vpop.f32.mrb[0].mxu0
          %v2448 = vadd.f32 0.0, %v2447
          %v2449 = vpop.f32.mrb[0].mxu0
          %2450 = vmatprep.mubr.f32.mxu0 0.0
          %2451 = vmatmul.mubr.f32.gmra.mrb[0].mxu0 %v2243
          %v2452 = vpop.f32.mrb[0].mxu0
          %v2453 = vadd.f32 0.0, %v2452
          %v2454 = vpop.f32.mrb[0].mxu0
          %2455 = vmatprep.mubr.f32.mxu0 0.0
          %2456 = vmatmul.mubr.f32.gmra.mrb[0].mxu0 %v2244
          %v2457 = vpop.f32.mrb[0].mxu0
          %v2458 = vadd.f32 0.0, %v2457
          %v2459 = vpop.f32.mrb[0].mxu0
          %2460 = vmatprep.mubr.f32.mxu0 0.0
          %2461 = vmatmul.mubr.f32.gmra.mrb[0].mxu0 %v2245
          %v2462 = vpop.f32.mrb[0].mxu0
          %v2463 = vadd.f32 0.0, %v2462
          %v2464 = vpop.f32.mrb[0].mxu0
          %2465 = vmatprep.mubr.f32.mxu0 0.0
          %2466 = vmatmul.mubr.f32.gmra.mrb[0].mxu0 %v2246
          %v2467 = vpop.f32.mrb[0].mxu0
          %v2468 = vadd.f32 0.0, %v2467
          %v2469 = vpop.f32.mrb[0].mxu0
          %2470 = vmatprep.mubr.f32.mxu0 0.0
          %2471 = vmatmul.mubr.f32.gmra.mrb[0].mxu0 %v2247
          %v2472 = vpop.f32.mrb[0].mxu0
          %v2473 = vadd.f32 0.0, %v2472
          %v2474 = vpop.f32.mrb[0].mxu0
          %2475 = vmatprep.mubr.f32.mxu0 0.0
          %2476 = vmatmul.mubr.f32.gmra.mrb[0].mxu0 %v2248
          %v2477 = vpop.f32.mrb[0].mxu0
          %v2478 = vadd.f32 0.0, %v2477
          %v2479 = vpop.f32.mrb[0].mxu0
          %2480 = vmatprep.mubr.f32.mxu0 0.0
          %2481 = vmatmul.mubr.f32.gmra.mrb[0].mxu0 %v2249
          %v2482 = vpop.f32.mrb[0].mxu0
          %v2483 = vadd.f32 0.0, %v2482
          %v2484 = vpop.f32.mrb[0].mxu0
          %2485 = vmatprep.mubr.f32.mxu0 0.0
          %2486 = vmatmul.mubr.f32.gmra.mrb[0].mxu0 %v2250
          %v2487 = vpop.f32.mrb[0].mxu0
          %v2488 = vadd.f32 0.0, %v2487
          %v2489 = vpop.f32.mrb[0].mxu0
          %2490 = vmatprep.mubr.f32.mxu0 0.0
          %2491 = vmatmul.mubr.f32.gmra.mrb[0].mxu0 %v2251
          %v2492 = vpop.f32.mrb[0].mxu0
          %v2493 = vadd.f32 0.0, %v2492
          %v2494 = vpop.f32.mrb[0].mxu0
          %2495 = vmatprep.mubr.f32.mxu0 0.0
          %2496 = vmatmul.mubr.f32.gmra.mrb[0].mxu0 %v2252
          %v2497 = vpop.f32.mrb[0].mxu0
          %v2498 = vadd.f32 0.0, %v2497
          %v2499 = vpop.f32.mrb[0].mxu0
          %2500 = vdwg.mxu0
          %v2501 = vadd.f32 %v2189, %v2343
          %v2502 = vadd.f32 %v2190, %v2348
          %v2503 = vadd.f32 %v2191, %v2353
          %v2504 = vadd.f32 %v2192, %v2358
          %v2505 = vadd.f32 %v2193, %v2363
          %v2506 = vadd.f32 %v2194, %v2368
          %v2507 = vadd.f32 %v2195, %v2373
          %v2508 = vadd.f32 %v2196, %v2378
          %v2509 = vadd.f32 %v2197, %v2383
          %v2510 = vadd.f32 %v2198, %v2388
          %v2511 = vadd.f32 %v2199, %v2393
          %v2512 = vadd.f32 %v2200, %v2398
          %v2513 = vadd.f32 %v2201, %v2403
          %v2514 = vadd.f32 %v2202, %v2408
          %v2515 = vadd.f32 %v2203, %v2413
          %v2516 = vadd.f32 %v2204, %v2418
          %v2517 = vadd.f32 %v2205, %v2423
          %v2518 = vadd.f32 %v2206, %v2428
          %v2519 = vadd.f32 %v2207, %v2433
          %v2520 = vadd.f32 %v2208, %v2438
          %v2521 = vadd.f32 %v2209, %v2443
          %v2522 = vadd.f32 %v2210, %v2448
          %v2523 = vadd.f32 %v2211, %v2453
          %v2524 = vadd.f32 %v2212, %v2458
          %v2525 = vadd.f32 %v2213, %v2463
          %v2526 = vadd.f32 %v2214, %v2468
          %v2527 = vadd.f32 %v2215, %v2473
          %v2528 = vadd.f32 %v2216, %v2478
          %v2529 = vadd.f32 %v2217, %v2483
          %v2530 = vadd.f32 %v2218, %v2488
          %v2531 = vadd.f32 %v2219, %v2493
          %v2532 = vadd.f32 %v2220, %v2498
          %s2533 = sadd.s32 %s593, 5
          %s2534 = smul.u32 %s2533, 128
          %s2535 = scalar_lea.vmem [#allocation6], %s2534
          %v2536 = vld [vmem:[%s2535] sm:$0xff]
          %v2537 = vld [vmem:[%s2535 + $0x8] sm:$0xff]
          %v2538 = vld [vmem:[%s2535 + $0x10] sm:$0xff]
          %v2539 = vld [vmem:[%s2535 + $0x18] sm:$0xff]
          %v2540 = vld [vmem:[%s2535 + $0x20] sm:$0xff]
          %v2541 = vld [vmem:[%s2535 + $0x28] sm:$0xff]
          %v2542 = vld [vmem:[%s2535 + $0x30] sm:$0xff]
          %v2543 = vld [vmem:[%s2535 + $0x38] sm:$0xff]
          %v2544 = vld [vmem:[%s2535 + $0x40] sm:$0xff]
          %v2545 = vld [vmem:[%s2535 + $0x48] sm:$0xff]
          %v2546 = vld [vmem:[%s2535 + $0x50] sm:$0xff]
          %v2547 = vld [vmem:[%s2535 + $0x58] sm:$0xff]
          %v2548 = vld [vmem:[%s2535 + $0x60] sm:$0xff]
          %v2549 = vld [vmem:[%s2535 + $0x68] sm:$0xff]
          %v2550 = vld [vmem:[%s2535 + $0x70] sm:$0xff]
          %v2551 = vld [vmem:[%s2535 + $0x78] sm:$0xff]
          %2552 = vmatprep.subr.mxu0 0.0
          %2553 = vmatpush1.msra.mxu0 %v2536
          %2554 = vmatprep.subr.mxu0 0.0
          %2555 = vmatpush1.msra.mxu0 %v2537
          %2556 = vmatprep.subr.mxu0 0.0
          %2557 = vmatpush1.msra.mxu0 %v2538
          %2558 = vmatprep.subr.mxu0 0.0
          %2559 = vmatpush1.msra.mxu0 %v2539
          %2560 = vmatprep.subr.mxu0 0.0
          %2561 = vmatpush1.msra.mxu0 %v2540
          %2562 = vmatprep.subr.mxu0 0.0
          %2563 = vmatpush1.msra.mxu0 %v2541
          %2564 = vmatprep.subr.mxu0 0.0
          %2565 = vmatpush1.msra.mxu0 %v2542
          %2566 = vmatprep.subr.mxu0 0.0
          %2567 = vmatpush1.msra.mxu0 %v2543
          %2568 = vmatprep.subr.mxu0 0.0
          %2569 = vmatpush1.msra.mxu0 %v2544
          %2570 = vmatprep.subr.mxu0 0.0
          %2571 = vmatpush1.msra.mxu0 %v2545
          %2572 = vmatprep.subr.mxu0 0.0
          %2573 = vmatpush1.msra.mxu0 %v2546
          %2574 = vmatprep.subr.mxu0 0.0
          %2575 = vmatpush1.msra.mxu0 %v2547
          %2576 = vmatprep.subr.mxu0 0.0
          %2577 = vmatpush1.msra.mxu0 %v2548
          %2578 = vmatprep.subr.mxu0 0.0
          %2579 = vmatpush1.msra.mxu0 %v2549
          %2580 = vmatprep.subr.mxu0 0.0
          %2581 = vmatpush1.msra.mxu0 %v2550
          %2582 = vmatprep.subr.mxu0 0.0
          %2583 = vmatpush1.msra.mxu0 %v2551
          %2584 = vmatprep.subr.mxu0 0.0
          %2585 = vmatpush1.msra.mxu0 0.0
          %2586 = vmatprep.subr.mxu0 0.0
          %2587 = vmatpush1.msra.mxu0 0.0
          %2588 = vmatprep.subr.mxu0 0.0
          %2589 = vmatpush1.msra.mxu0 0.0
          %2590 = vmatprep.subr.mxu0 0.0
          %2591 = vmatpush1.msra.mxu0 0.0
          %2592 = vmatprep.subr.mxu0 0.0
          %2593 = vmatpush1.msra.mxu0 0.0
          %2594 = vmatprep.subr.mxu0 0.0
          %2595 = vmatpush1.msra.mxu0 0.0
          %2596 = vmatprep.subr.mxu0 0.0
          %2597 = vmatpush1.msra.mxu0 0.0
          %2598 = vmatprep.subr.mxu0 0.0
          %2599 = vmatpush1.msra.mxu0 0.0
          %2600 = vmatprep.subr.mxu0 0.0
          %2601 = vmatpush1.msra.mxu0 0.0
          %2602 = vmatprep.subr.mxu0 0.0
          %2603 = vmatpush1.msra.mxu0 0.0
          %2604 = vmatprep.subr.mxu0 0.0
          %2605 = vmatpush1.msra.mxu0 0.0
          %2606 = vmatprep.subr.mxu0 0.0
          %2607 = vmatpush1.msra.mxu0 0.0
          %2608 = vmatprep.subr.mxu0 0.0
          %2609 = vmatpush1.msra.mxu0 0.0
          %2610 = vmatprep.subr.mxu0 0.0
          %2611 = vmatpush1.msra.mxu0 0.0
          %2612 = vmatprep.subr.mxu0 0.0
          %2613 = vmatpush1.msra.mxu0 0.0
          %2614 = vmatprep.subr.mxu0 0.0
          %2615 = vmatpush1.msra.mxu0 0.0
          %2616 = vmatprep.mubr.f32.mxu0 0.0
          %2617 = vmatmul.mubr.f32.gmra.mrb[0].mxu0 %v2223
          %v2618 = vpop.f32.mrb[0].mxu0
          %v2619 = vadd.f32 0.0, %v2618
          %v2620 = vpop.f32.mrb[0].mxu0
          %2621 = vmatprep.mubr.f32.mxu0 0.0
          %2622 = vmatmul.mubr.f32.gmra.mrb[0].mxu0 %v2224
          %v2623 = vpop.f32.mrb[0].mxu0
          %v2624 = vadd.f32 0.0, %v2623
          %v2625 = vpop.f32.mrb[0].mxu0
          %2626 = vmatprep.mubr.f32.mxu0 0.0
          %2627 = vmatmul.mubr.f32.gmra.mrb[0].mxu0 %v2225
          %v2628 = vpop.f32.mrb[0].mxu0
          %v2629 = vadd.f32 0.0, %v2628
          %v2630 = vpop.f32.mrb[0].mxu0
          %2631 = vmatprep.mubr.f32.mxu0 0.0
          %2632 = vmatmul.mubr.f32.gmra.mrb[0].mxu0 %v2226
          %v2633 = vpop.f32.mrb[0].mxu0
          %v2634 = vadd.f32 0.0, %v2633
          %v2635 = vpop.f32.mrb[0].mxu0
          %2636 = vmatprep.mubr.f32.mxu0 0.0
          %2637 = vmatmul.mubr.f32.gmra.mrb[0].mxu0 %v2227
          %v2638 = vpop.f32.mrb[0].mxu0
          %v2639 = vadd.f32 0.0, %v2638
          %v2640 = vpop.f32.mrb[0].mxu0
          %2641 = vmatprep.mubr.f32.mxu0 0.0
          %2642 = vmatmul.mubr.f32.gmra.mrb[0].mxu0 %v2228
          %v2643 = vpop.f32.mrb[0].mxu0
          %v2644 = vadd.f32 0.0, %v2643
          %v2645 = vpop.f32.mrb[0].mxu0
          %2646 = vmatprep.mubr.f32.mxu0 0.0
          %2647 = vmatmul.mubr.f32.gmra.mrb[0].mxu0 %v2229
          %v2648 = vpop.f32.mrb[0].mxu0
          %v2649 = vadd.f32 0.0, %v2648
          %v2650 = vpop.f32.mrb[0].mxu0
          %2651 = vmatprep.mubr.f32.mxu0 0.0
          %2652 = vmatmul.mubr.f32.gmra.mrb[0].mxu0 %v2230
          %v2653 = vpop.f32.mrb[0].mxu0
          %v2654 = vadd.f32 0.0, %v2653
          %v2655 = vpop.f32.mrb[0].mxu0
          %2656 = vmatprep.mubr.f32.mxu0 0.0
          %2657 = vmatmul.mubr.f32.gmra.mrb[0].mxu0 %v2231
          %v2658 = vpop.f32.mrb[0].mxu0
          %v2659 = vadd.f32 0.0, %v2658
          %v2660 = vpop.f32.mrb[0].mxu0
          %2661 = vmatprep.mubr.f32.mxu0 0.0
          %2662 = vmatmul.mubr.f32.gmra.mrb[0].mxu0 %v2232
          %v2663 = vpop.f32.mrb[0].mxu0
          %v2664 = vadd.f32 0.0, %v2663
          %v2665 = vpop.f32.mrb[0].mxu0
          %2666 = vmatprep.mubr.f32.mxu0 0.0
          %2667 = vmatmul.mubr.f32.gmra.mrb[0].mxu0 %v2233
          %v2668 = vpop.f32.mrb[0].mxu0
          %v2669 = vadd.f32 0.0, %v2668
          %v2670 = vpop.f32.mrb[0].mxu0
          %2671 = vmatprep.mubr.f32.mxu0 0.0
          %2672 = vmatmul.mubr.f32.gmra.mrb[0].mxu0 %v2234
          %v2673 = vpop.f32.mrb[0].mxu0
          %v2674 = vadd.f32 0.0, %v2673
          %v2675 = vpop.f32.mrb[0].mxu0
          %2676 = vmatprep.mubr.f32.mxu0 0.0
          %2677 = vmatmul.mubr.f32.gmra.mrb[0].mxu0 %v2235
          %v2678 = vpop.f32.mrb[0].mxu0
          %v2679 = vadd.f32 0.0, %v2678
          %v2680 = vpop.f32.mrb[0].mxu0
          %2681 = vmatprep.mubr.f32.mxu0 0.0
          %2682 = vmatmul.mubr.f32.gmra.mrb[0].mxu0 %v2236
          %v2683 = vpop.f32.mrb[0].mxu0
          %v2684 = vadd.f32 0.0, %v2683
          %v2685 = vpop.f32.mrb[0].mxu0
          %2686 = vmatprep.mubr.f32.mxu0 0.0
          %2687 = vmatmul.mubr.f32.gmra.mrb[0].mxu0 %v2237
          %v2688 = vpop.f32.mrb[0].mxu0
          %v2689 = vadd.f32 0.0, %v2688
          %v2690 = vpop.f32.mrb[0].mxu0
          %2691 = vmatprep.mubr.f32.mxu0 0.0
          %2692 = vmatmul.mubr.f32.gmra.mrb[0].mxu0 %v2238
          %v2693 = vpop.f32.mrb[0].mxu0
          %v2694 = vadd.f32 0.0, %v2693
          %v2695 = vpop.f32.mrb[0].mxu0
          %2696 = vmatprep.mubr.f32.mxu0 0.0
          %2697 = vmatmul.mubr.f32.gmra.mrb[0].mxu0 %v2239
          %v2698 = vpop.f32.mrb[0].mxu0
          %v2699 = vadd.f32 0.0, %v2698
          %v2700 = vpop.f32.mrb[0].mxu0
          %2701 = vmatprep.mubr.f32.mxu0 0.0
          %2702 = vmatmul.mubr.f32.gmra.mrb[0].mxu0 %v2240
          %v2703 = vpop.f32.mrb[0].mxu0
          %v2704 = vadd.f32 0.0, %v2703
          %v2705 = vpop.f32.mrb[0].mxu0
          %2706 = vmatprep.mubr.f32.mxu0 0.0
          %2707 = vmatmul.mubr.f32.gmra.mrb[0].mxu0 %v2241
          %v2708 = vpop.f32.mrb[0].mxu0
          %v2709 = vadd.f32 0.0, %v2708
          %v2710 = vpop.f32.mrb[0].mxu0
          %2711 = vmatprep.mubr.f32.mxu0 0.0
          %2712 = vmatmul.mubr.f32.gmra.mrb[0].mxu0 %v2242
          %v2713 = vpop.f32.mrb[0].mxu0
          %v2714 = vadd.f32 0.0, %v2713
          %v2715 = vpop.f32.mrb[0].mxu0
          %2716 = vmatprep.mubr.f32.mxu0 0.0
          %2717 = vmatmul.mubr.f32.gmra.mrb[0].mxu0 %v2243
          %v2718 = vpop.f32.mrb[0].mxu0
          %v2719 = vadd.f32 0.0, %v2718
          %v2720 = vpop.f32.mrb[0].mxu0
          %2721 = vmatprep.mubr.f32.mxu0 0.0
          %2722 = vmatmul.mubr.f32.gmra.mrb[0].mxu0 %v2244
          %v2723 = vpop.f32.mrb[0].mxu0
          %v2724 = vadd.f32 0.0, %v2723
          %v2725 = vpop.f32.mrb[0].mxu0
          %2726 = vmatprep.mubr.f32.mxu0 0.0
          %2727 = vmatmul.mubr.f32.gmra.mrb[0].mxu0 %v2245
          %v2728 = vpop.f32.mrb[0].mxu0
          %v2729 = vadd.f32 0.0, %v2728
          %v2730 = vpop.f32.mrb[0].mxu0
          %2731 = vmatprep.mubr.f32.mxu0 0.0
          %2732 = vmatmul.mubr.f32.gmra.mrb[0].mxu0 %v2246
          %v2733 = vpop.f32.mrb[0].mxu0
          %v2734 = vadd.f32 0.0, %v2733
          %v2735 = vpop.f32.mrb[0].mxu0
          %2736 = vmatprep.mubr.f32.mxu0 0.0
          %2737 = vmatmul.mubr.f32.gmra.mrb[0].mxu0 %v2247
          %v2738 = vpop.f32.mrb[0].mxu0
          %v2739 = vadd.f32 0.0, %v2738
          %v2740 = vpop.f32.mrb[0].mxu0
          %2741 = vmatprep.mubr.f32.mxu0 0.0
          %2742 = vmatmul.mubr.f32.gmra.mrb[0].mxu0 %v2248
          %v2743 = vpop.f32.mrb[0].mxu0
          %v2744 = vadd.f32 0.0, %v2743
          %v2745 = vpop.f32.mrb[0].mxu0
          %2746 = vmatprep.mubr.f32.mxu0 0.0
          %2747 = vmatmul.mubr.f32.gmra.mrb[0].mxu0 %v2249
          %v2748 = vpop.f32.mrb[0].mxu0
          %v2749 = vadd.f32 0.0, %v2748
          %v2750 = vpop.f32.mrb[0].mxu0
          %2751 = vmatprep.mubr.f32.mxu0 0.0
          %2752 = vmatmul.mubr.f32.gmra.mrb[0].mxu0 %v2250
          %v2753 = vpop.f32.mrb[0].mxu0
          %v2754 = vadd.f32 0.0, %v2753
          %v2755 = vpop.f32.mrb[0].mxu0
          %2756 = vmatprep.mubr.f32.mxu0 0.0
          %2757 = vmatmul.mubr.f32.gmra.mrb[0].mxu0 %v2251
          %v2758 = vpop.f32.mrb[0].mxu0
          %v2759 = vadd.f32 0.0, %v2758
          %v2760 = vpop.f32.mrb[0].mxu0
          %2761 = vmatprep.mubr.f32.mxu0 0.0
          %2762 = vmatmul.mubr.f32.gmra.mrb[0].mxu0 %v2252
          %v2763 = vpop.f32.mrb[0].mxu0
          %v2764 = vadd.f32 0.0, %v2763
          %v2765 = vpop.f32.mrb[0].mxu0
          %2766 = vmatprep.mubr.f32.mxu0 0.0
          %2767 = vmatmul.mubr.f32.gmra.mrb[0].mxu0 %v2253
          %v2768 = vpop.f32.mrb[0].mxu0
          %v2769 = vadd.f32 0.0, %v2768
          %v2770 = vpop.f32.mrb[0].mxu0
          %2771 = vmatprep.mubr.f32.mxu0 0.0
          %2772 = vmatmul.mubr.f32.gmra.mrb[0].mxu0 %v2254
          %v2773 = vpop.f32.mrb[0].mxu0
          %v2774 = vadd.f32 0.0, %v2773
          %v2775 = vpop.f32.mrb[0].mxu0
          %2776 = vdwg.mxu0
          %v2777 = vadd.f32 %v2501, %v2619
          %v2778 = vadd.f32 %v2502, %v2624
          %v2779 = vadd.f32 %v2503, %v2629
          %v2780 = vadd.f32 %v2504, %v2634
          %v2781 = vadd.f32 %v2505, %v2639
          %v2782 = vadd.f32 %v2506, %v2644
          %v2783 = vadd.f32 %v2507, %v2649
          %v2784 = vadd.f32 %v2508, %v2654
          %v2785 = vadd.f32 %v2509, %v2659
          %v2786 = vadd.f32 %v2510, %v2664
          %v2787 = vadd.f32 %v2511, %v2669
          %v2788 = vadd.f32 %v2512, %v2674
          %v2789 = vadd.f32 %v2513, %v2679
          %v2790 = vadd.f32 %v2514, %v2684
          %v2791 = vadd.f32 %v2515, %v2689
          %v2792 = vadd.f32 %v2516, %v2694
          %v2793 = vadd.f32 %v2517, %v2699
          %v2794 = vadd.f32 %v2518, %v2704
          %v2795 = vadd.f32 %v2519, %v2709
          %v2796 = vadd.f32 %v2520, %v2714
          %v2797 = vadd.f32 %v2521, %v2719
          %v2798 = vadd.f32 %v2522, %v2724
          %v2799 = vadd.f32 %v2523, %v2729
          %v2800 = vadd.f32 %v2524, %v2734
          %v2801 = vadd.f32 %v2525, %v2739
          %v2802 = vadd.f32 %v2526, %v2744
          %v2803 = vadd.f32 %v2527, %v2749
          %v2804 = vadd.f32 %v2528, %v2754
          %v2805 = vadd.f32 %v2529, %v2759
          %v2806 = vadd.f32 %v2530, %v2764
          %v2807 = vadd.f32 %v2531, %v2769
          %v2808 = vadd.f32 %v2532, %v2774
          %s2809 = sadd.s32 %s593, 8
          %s2810 = smul.u32 %s2809, 128
          %s2811 = scalar_lea.vmem [#allocation6], %s2810
          %v2812 = vld [vmem:[%s2811] sm:$0xff]
          %v2813 = vld [vmem:[%s2811 + $0x8] sm:$0xff]
          %v2814 = vld [vmem:[%s2811 + $0x10] sm:$0xff]
          %v2815 = vld [vmem:[%s2811 + $0x18] sm:$0xff]
          %v2816 = vld [vmem:[%s2811 + $0x20] sm:$0xff]
          %v2817 = vld [vmem:[%s2811 + $0x28] sm:$0xff]
          %v2818 = vld [vmem:[%s2811 + $0x30] sm:$0xff]
          %v2819 = vld [vmem:[%s2811 + $0x38] sm:$0xff]
          %v2820 = vld [vmem:[%s2811 + $0x40] sm:$0xff]
          %v2821 = vld [vmem:[%s2811 + $0x48] sm:$0xff]
          %v2822 = vld [vmem:[%s2811 + $0x50] sm:$0xff]
          %v2823 = vld [vmem:[%s2811 + $0x58] sm:$0xff]
          %v2824 = vld [vmem:[%s2811 + $0x60] sm:$0xff]
          %v2825 = vld [vmem:[%s2811 + $0x68] sm:$0xff]
          %v2826 = vld [vmem:[%s2811 + $0x70] sm:$0xff]
          %v2827 = vld [vmem:[%s2811 + $0x78] sm:$0xff]
          %2828 = vmatprep.subr.mxu0 0.0
          %2829 = vmatpush1.msra.mxu0 %v2812
          %2830 = vmatprep.subr.mxu0 0.0
          %2831 = vmatpush1.msra.mxu0 %v2813
          %2832 = vmatprep.subr.mxu0 0.0
          %2833 = vmatpush1.msra.mxu0 %v2814
          %2834 = vmatprep.subr.mxu0 0.0
          %2835 = vmatpush1.msra.mxu0 %v2815
          %2836 = vmatprep.subr.mxu0 0.0
          %2837 = vmatpush1.msra.mxu0 %v2816
          %2838 = vmatprep.subr.mxu0 0.0
          %2839 = vmatpush1.msra.mxu0 %v2817
          %2840 = vmatprep.subr.mxu0 0.0
          %2841 = vmatpush1.msra.mxu0 %v2818
          %2842 = vmatprep.subr.mxu0 0.0
          %2843 = vmatpush1.msra.mxu0 %v2819
          %2844 = vmatprep.subr.mxu0 0.0
          %2845 = vmatpush1.msra.mxu0 %v2820
          %2846 = vmatprep.subr.mxu0 0.0
          %2847 = vmatpush1.msra.mxu0 %v2821
          %2848 = vmatprep.subr.mxu0 0.0
          %2849 = vmatpush1.msra.mxu0 %v2822
          %2850 = vmatprep.subr.mxu0 0.0
          %2851 = vmatpush1.msra.mxu0 %v2823
          %2852 = vmatprep.subr.mxu0 0.0
          %2853 = vmatpush1.msra.mxu0 %v2824
          %2854 = vmatprep.subr.mxu0 0.0
          %2855 = vmatpush1.msra.mxu0 %v2825
          %2856 = vmatprep.subr.mxu0 0.0
          %2857 = vmatpush1.msra.mxu0 %v2826
          %2858 = vmatprep.subr.mxu0 0.0
          %2859 = vmatpush1.msra.mxu0 %v2827
          %2860 = vmatprep.subr.mxu0 0.0
          %2861 = vmatpush1.msra.mxu0 0.0
          %2862 = vmatprep.subr.mxu0 0.0
          %2863 = vmatpush1.msra.mxu0 0.0
          %2864 = vmatprep.subr.mxu0 0.0
          %2865 = vmatpush1.msra.mxu0 0.0
          %2866 = vmatprep.subr.mxu0 0.0
          %2867 = vmatpush1.msra.mxu0 0.0
          %2868 = vmatprep.subr.mxu0 0.0
          %2869 = vmatpush1.msra.mxu0 0.0
          %2870 = vmatprep.subr.mxu0 0.0
          %2871 = vmatpush1.msra.mxu0 0.0
          %2872 = vmatprep.subr.mxu0 0.0
          %2873 = vmatpush1.msra.mxu0 0.0
          %2874 = vmatprep.subr.mxu0 0.0
          %2875 = vmatpush1.msra.mxu0 0.0
          %2876 = vmatprep.subr.mxu0 0.0
          %2877 = vmatpush1.msra.mxu0 0.0
          %2878 = vmatprep.subr.mxu0 0.0
          %2879 = vmatpush1.msra.mxu0 0.0
          %2880 = vmatprep.subr.mxu0 0.0
          %2881 = vmatpush1.msra.mxu0 0.0
          %2882 = vmatprep.subr.mxu0 0.0
          %2883 = vmatpush1.msra.mxu0 0.0
          %2884 = vmatprep.subr.mxu0 0.0
          %2885 = vmatpush1.msra.mxu0 0.0
          %2886 = vmatprep.subr.mxu0 0.0
          %2887 = vmatpush1.msra.mxu0 0.0
          %2888 = vmatprep.subr.mxu0 0.0
          %2889 = vmatpush1.msra.mxu0 0.0
          %2890 = vmatprep.subr.mxu0 0.0
          %2891 = vmatpush1.msra.mxu0 0.0
          %2892 = vmatprep.mubr.f32.mxu0 0.0
          %2893 = vmatmul.mubr.f32.gmra.mrb[0].mxu0 %v2225
          %v2894 = vpop.f32.mrb[0].mxu0
          %v2895 = vadd.f32 0.0, %v2894
          %v2896 = vpop.f32.mrb[0].mxu0
          %2897 = vmatprep.mubr.f32.mxu0 0.0
          %2898 = vmatmul.mubr.f32.gmra.mrb[0].mxu0 %v2226
          %v2899 = vpop.f32.mrb[0].mxu0
          %v2900 = vadd.f32 0.0, %v2899
          %v2901 = vpop.f32.mrb[0].mxu0
          %2902 = vmatprep.mubr.f32.mxu0 0.0
          %2903 = vmatmul.mubr.f32.gmra.mrb[0].mxu0 %v2227
          %v2904 = vpop.f32.mrb[0].mxu0
          %v2905 = vadd.f32 0.0, %v2904
          %v2906 = vpop.f32.mrb[0].mxu0
          %2907 = vmatprep.mubr.f32.mxu0 0.0
          %2908 = vmatmul.mubr.f32.gmra.mrb[0].mxu0 %v2228
          %v2909 = vpop.f32.mrb[0].mxu0
          %v2910 = vadd.f32 0.0, %v2909
          %v2911 = vpop.f32.mrb[0].mxu0
          %2912 = vmatprep.mubr.f32.mxu0 0.0
          %2913 = vmatmul.mubr.f32.gmra.mrb[0].mxu0 %v2229
          %v2914 = vpop.f32.mrb[0].mxu0
          %v2915 = vadd.f32 0.0, %v2914
          %v2916 = vpop.f32.mrb[0].mxu0
          %2917 = vmatprep.mubr.f32.mxu0 0.0
          %2918 = vmatmul.mubr.f32.gmra.mrb[0].mxu0 %v2230
          %v2919 = vpop.f32.mrb[0].mxu0
          %v2920 = vadd.f32 0.0, %v2919
          %v2921 = vpop.f32.mrb[0].mxu0
          %2922 = vmatprep.mubr.f32.mxu0 0.0
          %2923 = vmatmul.mubr.f32.gmra.mrb[0].mxu0 %v2231
          %v2924 = vpop.f32.mrb[0].mxu0
          %v2925 = vadd.f32 0.0, %v2924
          %v2926 = vpop.f32.mrb[0].mxu0
          %2927 = vmatprep.mubr.f32.mxu0 0.0
          %2928 = vmatmul.mubr.f32.gmra.mrb[0].mxu0 %v2232
          %v2929 = vpop.f32.mrb[0].mxu0
          %v2930 = vadd.f32 0.0, %v2929
          %v2931 = vpop.f32.mrb[0].mxu0
          %2932 = vmatprep.mubr.f32.mxu0 0.0
          %2933 = vmatmul.mubr.f32.gmra.mrb[0].mxu0 %v2233
          %v2934 = vpop.f32.mrb[0].mxu0
          %v2935 = vadd.f32 0.0, %v2934
          %v2936 = vpop.f32.mrb[0].mxu0
          %2937 = vmatprep.mubr.f32.mxu0 0.0
          %2938 = vmatmul.mubr.f32.gmra.mrb[0].mxu0 %v2234
          %v2939 = vpop.f32.mrb[0].mxu0
          %v2940 = vadd.f32 0.0, %v2939
          %v2941 = vpop.f32.mrb[0].mxu0
          %2942 = vmatprep.mubr.f32.mxu0 0.0
          %2943 = vmatmul.mubr.f32.gmra.mrb[0].mxu0 %v2235
          %v2944 = vpop.f32.mrb[0].mxu0
          %v2945 = vadd.f32 0.0, %v2944
          %v2946 = vpop.f32.mrb[0].mxu0
          %2947 = vmatprep.mubr.f32.mxu0 0.0
          %2948 = vmatmul.mubr.f32.gmra.mrb[0].mxu0 %v2236
          %v2949 = vpop.f32.mrb[0].mxu0
          %v2950 = vadd.f32 0.0, %v2949
          %v2951 = vpop.f32.mrb[0].mxu0
          %2952 = vmatprep.mubr.f32.mxu0 0.0
          %2953 = vmatmul.mubr.f32.gmra.mrb[0].mxu0 %v2237
          %v2954 = vpop.f32.mrb[0].mxu0
          %v2955 = vadd.f32 0.0, %v2954
          %v2956 = vpop.f32.mrb[0].mxu0
          %2957 = vmatprep.mubr.f32.mxu0 0.0
          %2958 = vmatmul.mubr.f32.gmra.mrb[0].mxu0 %v2238
          %v2959 = vpop.f32.mrb[0].mxu0
          %v2960 = vadd.f32 0.0, %v2959
          %v2961 = vpop.f32.mrb[0].mxu0
          %2962 = vmatprep.mubr.f32.mxu0 0.0
          %2963 = vmatmul.mubr.f32.gmra.mrb[0].mxu0 %v2239
          %v2964 = vpop.f32.mrb[0].mxu0
          %v2965 = vadd.f32 0.0, %v2964
          %v2966 = vpop.f32.mrb[0].mxu0
          %2967 = vmatprep.mubr.f32.mxu0 0.0
          %2968 = vmatmul.mubr.f32.gmra.mrb[0].mxu0 %v2240
          %v2969 = vpop.f32.mrb[0].mxu0
          %v2970 = vadd.f32 0.0, %v2969
          %v2971 = vpop.f32.mrb[0].mxu0
          %2972 = vmatprep.mubr.f32.mxu0 0.0
          %2973 = vmatmul.mubr.f32.gmra.mrb[0].mxu0 %v2241
          %v2974 = vpop.f32.mrb[0].mxu0
          %v2975 = vadd.f32 0.0, %v2974
          %v2976 = vpop.f32.mrb[0].mxu0
          %2977 = vmatprep.mubr.f32.mxu0 0.0
          %2978 = vmatmul.mubr.f32.gmra.mrb[0].mxu0 %v2242
          %v2979 = vpop.f32.mrb[0].mxu0
          %v2980 = vadd.f32 0.0, %v2979
          %v2981 = vpop.f32.mrb[0].mxu0
          %2982 = vmatprep.mubr.f32.mxu0 0.0
          %2983 = vmatmul.mubr.f32.gmra.mrb[0].mxu0 %v2243
          %v2984 = vpop.f32.mrb[0].mxu0
          %v2985 = vadd.f32 0.0, %v2984
          %v2986 = vpop.f32.mrb[0].mxu0
          %2987 = vmatprep.mubr.f32.mxu0 0.0
          %2988 = vmatmul.mubr.f32.gmra.mrb[0].mxu0 %v2244
          %v2989 = vpop.f32.mrb[0].mxu0
          %v2990 = vadd.f32 0.0, %v2989
          %v2991 = vpop.f32.mrb[0].mxu0
          %2992 = vmatprep.mubr.f32.mxu0 0.0
          %2993 = vmatmul.mubr.f32.gmra.mrb[0].mxu0 %v2245
          %v2994 = vpop.f32.mrb[0].mxu0
          %v2995 = vadd.f32 0.0, %v2994
          %v2996 = vpop.f32.mrb[0].mxu0
          %2997 = vmatprep.mubr.f32.mxu0 0.0
          %2998 = vmatmul.mubr.f32.gmra.mrb[0].mxu0 %v2246
          %v2999 = vpop.f32.mrb[0].mxu0
          %v3000 = vadd.f32 0.0, %v2999
          %v3001 = vpop.f32.mrb[0].mxu0
          %3002 = vmatprep.mubr.f32.mxu0 0.0
          %3003 = vmatmul.mubr.f32.gmra.mrb[0].mxu0 %v2247
          %v3004 = vpop.f32.mrb[0].mxu0
          %v3005 = vadd.f32 0.0, %v3004
          %v3006 = vpop.f32.mrb[0].mxu0
          %3007 = vmatprep.mubr.f32.mxu0 0.0
          %3008 = vmatmul.mubr.f32.gmra.mrb[0].mxu0 %v2248
          %v3009 = vpop.f32.mrb[0].mxu0
          %v3010 = vadd.f32 0.0, %v3009
          %v3011 = vpop.f32.mrb[0].mxu0
          %3012 = vmatprep.mubr.f32.mxu0 0.0
          %3013 = vmatmul.mubr.f32.gmra.mrb[0].mxu0 %v2249
          %v3014 = vpop.f32.mrb[0].mxu0
          %v3015 = vadd.f32 0.0, %v3014
          %v3016 = vpop.f32.mrb[0].mxu0
          %3017 = vmatprep.mubr.f32.mxu0 0.0
          %3018 = vmatmul.mubr.f32.gmra.mrb[0].mxu0 %v2250
          %v3019 = vpop.f32.mrb[0].mxu0
          %v3020 = vadd.f32 0.0, %v3019
          %v3021 = vpop.f32.mrb[0].mxu0
          %3022 = vmatprep.mubr.f32.mxu0 0.0
          %3023 = vmatmul.mubr.f32.gmra.mrb[0].mxu0 %v2251
          %v3024 = vpop.f32.mrb[0].mxu0
          %v3025 = vadd.f32 0.0, %v3024
          %v3026 = vpop.f32.mrb[0].mxu0
          %3027 = vmatprep.mubr.f32.mxu0 0.0
          %3028 = vmatmul.mubr.f32.gmra.mrb[0].mxu0 %v2252
          %v3029 = vpop.f32.mrb[0].mxu0
          %v3030 = vadd.f32 0.0, %v3029
          %v3031 = vpop.f32.mrb[0].mxu0
          %3032 = vmatprep.mubr.f32.mxu0 0.0
          %3033 = vmatmul.mubr.f32.gmra.mrb[0].mxu0 %v2253
          %v3034 = vpop.f32.mrb[0].mxu0
          %v3035 = vadd.f32 0.0, %v3034
          %v3036 = vpop.f32.mrb[0].mxu0
          %3037 = vmatprep.mubr.f32.mxu0 0.0
          %3038 = vmatmul.mubr.f32.gmra.mrb[0].mxu0 %v2254
          %v3039 = vpop.f32.mrb[0].mxu0
          %v3040 = vadd.f32 0.0, %v3039
          %v3041 = vpop.f32.mrb[0].mxu0
          %3042 = vmatprep.mubr.f32.mxu0 0.0
          %3043 = vmatmul.mubr.f32.gmra.mrb[0].mxu0 %v2255
          %v3044 = vpop.f32.mrb[0].mxu0
          %v3045 = vadd.f32 0.0, %v3044
          %v3046 = vpop.f32.mrb[0].mxu0
          %3047 = vmatprep.mubr.f32.mxu0 0.0
          %3048 = vmatmul.mubr.f32.gmra.mrb[0].mxu0 %v2256
          %v3049 = vpop.f32.mrb[0].mxu0
          %v3050 = vadd.f32 0.0, %v3049
          %v3051 = vpop.f32.mrb[0].mxu0
          %3052 = vdwg.mxu0
          %v3053 = vadd.f32 %v2777, %v2895
          %v3054 = vadd.f32 %v2778, %v2900
          %v3055 = vadd.f32 %v2779, %v2905
          %v3056 = vadd.f32 %v2780, %v2910
          %v3057 = vadd.f32 %v2781, %v2915
          %v3058 = vadd.f32 %v2782, %v2920
          %v3059 = vadd.f32 %v2783, %v2925
          %v3060 = vadd.f32 %v2784, %v2930
          %v3061 = vadd.f32 %v2785, %v2935
          %v3062 = vadd.f32 %v2786, %v2940
          %v3063 = vadd.f32 %v2787, %v2945
          %v3064 = vadd.f32 %v2788, %v2950
          %v3065 = vadd.f32 %v2789, %v2955
          %v3066 = vadd.f32 %v2790, %v2960
          %v3067 = vadd.f32 %v2791, %v2965
          %v3068 = vadd.f32 %v2792, %v2970
          %v3069 = vadd.f32 %v2793, %v2975
          %v3070 = vadd.f32 %v2794, %v2980
          %v3071 = vadd.f32 %v2795, %v2985
          %v3072 = vadd.f32 %v2796, %v2990
          %v3073 = vadd.f32 %v2797, %v2995
          %v3074 = vadd.f32 %v2798, %v3000
          %v3075 = vadd.f32 %v2799, %v3005
          %v3076 = vadd.f32 %v2800, %v3010
          %v3077 = vadd.f32 %v2801, %v3015
          %v3078 = vadd.f32 %v2802, %v3020
          %v3079 = vadd.f32 %v2803, %v3025
          %v3080 = vadd.f32 %v2804, %v3030
          %v3081 = vadd.f32 %v2805, %v3035
          %v3082 = vadd.f32 %v2806, %v3040
          %v3083 = vadd.f32 %v2807, %v3045
          %v3084 = vadd.f32 %v2808, %v3050
          %v3085 = vmul.f32 %v3053, 0.5
          %v3086 = vmul.f32 %v3054, 0.5
          %v3087 = vmul.f32 %v3055, 0.5
          %v3088 = vmul.f32 %v3056, 0.5
          %v3089 = vmul.f32 %v3057, 0.5
          %v3090 = vmul.f32 %v3058, 0.5
          %v3091 = vmul.f32 %v3059, 0.5
          %v3092 = vmul.f32 %v3060, 0.5
          %v3093 = vmul.f32 %v3061, 0.5
          %v3094 = vmul.f32 %v3062, 0.5
          %v3095 = vmul.f32 %v3063, 0.5
          %v3096 = vmul.f32 %v3064, 0.5
          %v3097 = vmul.f32 %v3065, 0.5
          %v3098 = vmul.f32 %v3066, 0.5
          %v3099 = vmul.f32 %v3067, 0.5
          %v3100 = vmul.f32 %v3068, 0.5
          %v3101 = vmul.f32 %v3069, 0.5
          %v3102 = vmul.f32 %v3070, 0.5
          %v3103 = vmul.f32 %v3071, 0.5
          %v3104 = vmul.f32 %v3072, 0.5
          %v3105 = vmul.f32 %v3073, 0.5
          %v3106 = vmul.f32 %v3074, 0.5
          %v3107 = vmul.f32 %v3075, 0.5
          %v3108 = vmul.f32 %v3076, 0.5
          %v3109 = vmul.f32 %v3077, 0.5
          %v3110 = vmul.f32 %v3078, 0.5
          %v3111 = vmul.f32 %v3079, 0.5
          %v3112 = vmul.f32 %v3080, 0.5
          %v3113 = vmul.f32 %v3081, 0.5
          %v3114 = vmul.f32 %v3082, 0.5
          %v3115 = vmul.f32 %v3083, 0.5
          %v3116 = vmul.f32 %v3084, 0.5
          %v3117 = vmul.f32 %v3053, %v395
          %v3118 = vmul.f32 %v3054, %v395
          %v3119 = vmul.f32 %v3055, %v395
          %v3120 = vmul.f32 %v3056, %v395
          %v3121 = vmul.f32 %v3057, %v395
          %v3122 = vmul.f32 %v3058, %v395
          %v3123 = vmul.f32 %v3059, %v395
          %v3124 = vmul.f32 %v3060, %v395
          %v3125 = vmul.f32 %v3061, %v395
          %v3126 = vmul.f32 %v3062, %v395
          %v3127 = vmul.f32 %v3063, %v395
          %v3128 = vmul.f32 %v3064, %v395
          %v3129 = vmul.f32 %v3065, %v395
          %v3130 = vmul.f32 %v3066, %v395
          %v3131 = vmul.f32 %v3067, %v395
          %v3132 = vmul.f32 %v3068, %v395
          %v3133 = vmul.f32 %v3069, %v395
          %v3134 = vmul.f32 %v3070, %v395
          %v3135 = vmul.f32 %v3071, %v395
          %v3136 = vmul.f32 %v3072, %v395
          %v3137 = vmul.f32 %v3073, %v395
          %v3138 = vmul.f32 %v3074, %v395
          %v3139 = vmul.f32 %v3075, %v395
          %v3140 = vmul.f32 %v3076, %v395
          %v3141 = vmul.f32 %v3077, %v395
          %v3142 = vmul.f32 %v3078, %v395
          %v3143 = vmul.f32 %v3079, %v395
          %v3144 = vmul.f32 %v3080, %v395
          %v3145 = vmul.f32 %v3081, %v395
          %v3146 = vmul.f32 %v3082, %v395
          %v3147 = vmul.f32 %v3083, %v395
          %v3148 = vmul.f32 %v3084, %v395
          %v3149 = verf.f32.pop %v3117
          %v3150 = verf.f32.pop %v3118
          %v3151 = verf.f32.pop %v3119
          %v3152 = verf.f32.pop %v3120
          %v3153 = verf.f32.pop %v3121
          %v3154 = verf.f32.pop %v3122
          %v3155 = verf.f32.pop %v3123
          %v3156 = verf.f32.pop %v3124
          %v3157 = verf.f32.pop %v3125
          %v3158 = verf.f32.pop %v3126
          %v3159 = verf.f32.pop %v3127
          %v3160 = verf.f32.pop %v3128
          %v3161 = verf.f32.pop %v3129
          %v3162 = verf.f32.pop %v3130
          %v3163 = verf.f32.pop %v3131
          %v3164 = verf.f32.pop %v3132
          %v3165 = verf.f32.pop %v3133
          %v3166 = verf.f32.pop %v3134
          %v3167 = verf.f32.pop %v3135
          %v3168 = verf.f32.pop %v3136
          %v3169 = verf.f32.pop %v3137
          %v3170 = verf.f32.pop %v3138
          %v3171 = verf.f32.pop %v3139
          %v3172 = verf.f32.pop %v3140
          %v3173 = verf.f32.pop %v3141
          %v3174 = verf.f32.pop %v3142
          %v3175 = verf.f32.pop %v3143
          %v3176 = verf.f32.pop %v3144
          %v3177 = verf.f32.pop %v3145
          %v3178 = verf.f32.pop %v3146
          %v3179 = verf.f32.pop %v3147
          %v3180 = verf.f32.pop %v3148
          %v3181 = vadd.f32 %v3149, 1.0
          %v3182 = vadd.f32 %v3150, 1.0
          %v3183 = vadd.f32 %v3151, 1.0
          %v3184 = vadd.f32 %v3152, 1.0
          %v3185 = vadd.f32 %v3153, 1.0
          %v3186 = vadd.f32 %v3154, 1.0
          %v3187 = vadd.f32 %v3155, 1.0
          %v3188 = vadd.f32 %v3156, 1.0
          %v3189 = vadd.f32 %v3157, 1.0
          %v3190 = vadd.f32 %v3158, 1.0
          %v3191 = vadd.f32 %v3159, 1.0
          %v3192 = vadd.f32 %v3160, 1.0
          %v3193 = vadd.f32 %v3161, 1.0
          %v3194 = vadd.f32 %v3162, 1.0
          %v3195 = vadd.f32 %v3163, 1.0
          %v3196 = vadd.f32 %v3164, 1.0
          %v3197 = vadd.f32 %v3165, 1.0
          %v3198 = vadd.f32 %v3166, 1.0
          %v3199 = vadd.f32 %v3167, 1.0
          %v3200 = vadd.f32 %v3168, 1.0
          %v3201 = vadd.f32 %v3169, 1.0
          %v3202 = vadd.f32 %v3170, 1.0
          %v3203 = vadd.f32 %v3171, 1.0
          %v3204 = vadd.f32 %v3172, 1.0
          %v3205 = vadd.f32 %v3173, 1.0
          %v3206 = vadd.f32 %v3174, 1.0
          %v3207 = vadd.f32 %v3175, 1.0
          %v3208 = vadd.f32 %v3176, 1.0
          %v3209 = vadd.f32 %v3177, 1.0
          %v3210 = vadd.f32 %v3178, 1.0
          %v3211 = vadd.f32 %v3179, 1.0
          %v3212 = vadd.f32 %v3180, 1.0
          %v3213 = vmul.f32 %v3085, %v3181
          %v3214 = vmul.f32 %v3086, %v3182
          %v3215 = vmul.f32 %v3087, %v3183
          %v3216 = vmul.f32 %v3088, %v3184
          %v3217 = vmul.f32 %v3089, %v3185
          %v3218 = vmul.f32 %v3090, %v3186
          %v3219 = vmul.f32 %v3091, %v3187
          %v3220 = vmul.f32 %v3092, %v3188
          %v3221 = vmul.f32 %v3093, %v3189
          %v3222 = vmul.f32 %v3094, %v3190
          %v3223 = vmul.f32 %v3095, %v3191
          %v3224 = vmul.f32 %v3096, %v3192
          %v3225 = vmul.f32 %v3097, %v3193
          %v3226 = vmul.f32 %v3098, %v3194
          %v3227 = vmul.f32 %v3099, %v3195
          %v3228 = vmul.f32 %v3100, %v3196
          %v3229 = vmul.f32 %v3101, %v3197
          %v3230 = vmul.f32 %v3102, %v3198
          %v3231 = vmul.f32 %v3103, %v3199
          %v3232 = vmul.f32 %v3104, %v3200
          %v3233 = vmul.f32 %v3105, %v3201
          %v3234 = vmul.f32 %v3106, %v3202
          %v3235 = vmul.f32 %v3107, %v3203
          %v3236 = vmul.f32 %v3108, %v3204
          %v3237 = vmul.f32 %v3109, %v3205
          %v3238 = vmul.f32 %v3110, %v3206
          %v3239 = vmul.f32 %v3111, %v3207
          %v3240 = vmul.f32 %v3112, %v3208
          %v3241 = vmul.f32 %v3113, %v3209
          %v3242 = vmul.f32 %v3114, %v3210
          %v3243 = vmul.f32 %v3115, %v3211
          %v3244 = vmul.f32 %v3116, %v3212
          %s3245 = smul.u32 %s326, 128
          %s3246 = scalar_lea.vmem [#allocation8], %s3245
          %v3247 = vld [vmem:[%s3246] sm:$0xff]
          %v3248 = vld [vmem:[%s3246 + $0x8] sm:$0xff]
          %v3249 = vld [vmem:[%s3246 + $0x10] sm:$0xff]
          %v3250 = vld [vmem:[%s3246 + $0x18] sm:$0xff]
          %v3251 = vld [vmem:[%s3246 + $0x20] sm:$0xff]
          %v3252 = vld [vmem:[%s3246 + $0x28] sm:$0xff]
          %v3253 = vld [vmem:[%s3246 + $0x30] sm:$0xff]
          %v3254 = vld [vmem:[%s3246 + $0x38] sm:$0xff]
          %v3255 = vld [vmem:[%s3246 + $0x40] sm:$0xff]
          %v3256 = vld [vmem:[%s3246 + $0x48] sm:$0xff]
          %v3257 = vld [vmem:[%s3246 + $0x50] sm:$0xff]
          %v3258 = vld [vmem:[%s3246 + $0x58] sm:$0xff]
          %v3259 = vld [vmem:[%s3246 + $0x60] sm:$0xff]
          %v3260 = vld [vmem:[%s3246 + $0x68] sm:$0xff]
          %v3261 = vld [vmem:[%s3246 + $0x70] sm:$0xff]
          %v3262 = vld [vmem:[%s3246 + $0x78] sm:$0xff]
          %3263 = vmatprep.subr.mxu0 0.0
          %3264 = vmatpush1.msra.mxu0 %v3247
          %3265 = vmatprep.subr.mxu0 0.0
          %3266 = vmatpush1.msra.mxu0 %v3248
          %3267 = vmatprep.subr.mxu0 0.0
          %3268 = vmatpush1.msra.mxu0 %v3249
          %3269 = vmatprep.subr.mxu0 0.0
          %3270 = vmatpush1.msra.mxu0 %v3250
          %3271 = vmatprep.subr.mxu0 0.0
          %3272 = vmatpush1.msra.mxu0 %v3251
          %3273 = vmatprep.subr.mxu0 0.0
          %3274 = vmatpush1.msra.mxu0 %v3252
          %3275 = vmatprep.subr.mxu0 0.0
          %3276 = vmatpush1.msra.mxu0 %v3253
          %3277 = vmatprep.subr.mxu0 0.0
          %3278 = vmatpush1.msra.mxu0 %v3254
          %3279 = vmatprep.subr.mxu0 0.0
          %3280 = vmatpush1.msra.mxu0 %v3255
          %3281 = vmatprep.subr.mxu0 0.0
          %3282 = vmatpush1.msra.mxu0 %v3256
          %3283 = vmatprep.subr.mxu0 0.0
          %3284 = vmatpush1.msra.mxu0 %v3257
          %3285 = vmatprep.subr.mxu0 0.0
          %3286 = vmatpush1.msra.mxu0 %v3258
          %3287 = vmatprep.subr.mxu0 0.0
          %3288 = vmatpush1.msra.mxu0 %v3259
          %3289 = vmatprep.subr.mxu0 0.0
          %3290 = vmatpush1.msra.mxu0 %v3260
          %3291 = vmatprep.subr.mxu0 0.0
          %3292 = vmatpush1.msra.mxu0 %v3261
          %3293 = vmatprep.subr.mxu0 0.0
          %3294 = vmatpush1.msra.mxu0 %v3262
          %3295 = vmatprep.subr.mxu0 0.0
          %3296 = vmatpush1.msra.mxu0 0.0
          %3297 = vmatprep.subr.mxu0 0.0
          %3298 = vmatpush1.msra.mxu0 0.0
          %3299 = vmatprep.subr.mxu0 0.0
          %3300 = vmatpush1.msra.mxu0 0.0
          %3301 = vmatprep.subr.mxu0 0.0
          %3302 = vmatpush1.msra.mxu0 0.0
          %3303 = vmatprep.subr.mxu0 0.0
          %3304 = vmatpush1.msra.mxu0 0.0
          %3305 = vmatprep.subr.mxu0 0.0
          %3306 = vmatpush1.msra.mxu0 0.0
          %3307 = vmatprep.subr.mxu0 0.0
          %3308 = vmatpush1.msra.mxu0 0.0
          %3309 = vmatprep.subr.mxu0 0.0
          %3310 = vmatpush1.msra.mxu0 0.0
          %3311 = vmatprep.subr.mxu0 0.0
          %3312 = vmatpush1.msra.mxu0 0.0
          %3313 = vmatprep.subr.mxu0 0.0
          %3314 = vmatpush1.msra.mxu0 0.0
          %3315 = vmatprep.subr.mxu0 0.0
          %3316 = vmatpush1.msra.mxu0 0.0
          %3317 = vmatprep.subr.mxu0 0.0
          %3318 = vmatpush1.msra.mxu0 0.0
          %3319 = vmatprep.subr.mxu0 0.0
          %3320 = vmatpush1.msra.mxu0 0.0
          %3321 = vmatprep.subr.mxu0 0.0
          %3322 = vmatpush1.msra.mxu0 0.0
          %3323 = vmatprep.subr.mxu0 0.0
          %3324 = vmatpush1.msra.mxu0 0.0
          %3325 = vmatprep.subr.mxu0 0.0
          %3326 = vmatpush1.msra.mxu0 0.0
          %3327 = vmatprep.mubr.f32.mxu0 0.0
          %3328 = vmatmul.mubr.f32.gmra.mrb[0].mxu0 %v3213
          %v3329 = vpop.f32.mrb[0].mxu0
          %v3330 = vadd.f32 0.0, %v3329
          %v3331 = vpop.f32.mrb[0].mxu0
          %3332 = vmatprep.mubr.f32.mxu0 0.0
          %3333 = vmatmul.mubr.f32.gmra.mrb[0].mxu0 %v3214
          %v3334 = vpop.f32.mrb[0].mxu0
          %v3335 = vadd.f32 0.0, %v3334
          %v3336 = vpop.f32.mrb[0].mxu0
          %3337 = vmatprep.mubr.f32.mxu0 0.0
          %3338 = vmatmul.mubr.f32.gmra.mrb[0].mxu0 %v3215
          %v3339 = vpop.f32.mrb[0].mxu0
          %v3340 = vadd.f32 0.0, %v3339
          %v3341 = vpop.f32.mrb[0].mxu0
          %3342 = vmatprep.mubr.f32.mxu0 0.0
          %3343 = vmatmul.mubr.f32.gmra.mrb[0].mxu0 %v3216
          %v3344 = vpop.f32.mrb[0].mxu0
          %v3345 = vadd.f32 0.0, %v3344
          %v3346 = vpop.f32.mrb[0].mxu0
          %3347 = vmatprep.mubr.f32.mxu0 0.0
          %3348 = vmatmul.mubr.f32.gmra.mrb[0].mxu0 %v3217
          %v3349 = vpop.f32.mrb[0].mxu0
          %v3350 = vadd.f32 0.0, %v3349
          %v3351 = vpop.f32.mrb[0].mxu0
          %3352 = vmatprep.mubr.f32.mxu0 0.0
          %3353 = vmatmul.mubr.f32.gmra.mrb[0].mxu0 %v3218
          %v3354 = vpop.f32.mrb[0].mxu0
          %v3355 = vadd.f32 0.0, %v3354
          %v3356 = vpop.f32.mrb[0].mxu0
          %3357 = vmatprep.mubr.f32.mxu0 0.0
          %3358 = vmatmul.mubr.f32.gmra.mrb[0].mxu0 %v3219
          %v3359 = vpop.f32.mrb[0].mxu0
          %v3360 = vadd.f32 0.0, %v3359
          %v3361 = vpop.f32.mrb[0].mxu0
          %3362 = vmatprep.mubr.f32.mxu0 0.0
          %3363 = vmatmul.mubr.f32.gmra.mrb[0].mxu0 %v3220
          %v3364 = vpop.f32.mrb[0].mxu0
          %v3365 = vadd.f32 0.0, %v3364
          %v3366 = vpop.f32.mrb[0].mxu0
          %3367 = vmatprep.mubr.f32.mxu0 0.0
          %3368 = vmatmul.mubr.f32.gmra.mrb[0].mxu0 %v3221
          %v3369 = vpop.f32.mrb[0].mxu0
          %v3370 = vadd.f32 0.0, %v3369
          %v3371 = vpop.f32.mrb[0].mxu0
          %3372 = vmatprep.mubr.f32.mxu0 0.0
          %3373 = vmatmul.mubr.f32.gmra.mrb[0].mxu0 %v3222
          %v3374 = vpop.f32.mrb[0].mxu0
          %v3375 = vadd.f32 0.0, %v3374
          %v3376 = vpop.f32.mrb[0].mxu0
          %3377 = vmatprep.mubr.f32.mxu0 0.0
          %3378 = vmatmul.mubr.f32.gmra.mrb[0].mxu0 %v3223
          %v3379 = vpop.f32.mrb[0].mxu0
          %v3380 = vadd.f32 0.0, %v3379
          %v3381 = vpop.f32.mrb[0].mxu0
          %3382 = vmatprep.mubr.f32.mxu0 0.0
          %3383 = vmatmul.mubr.f32.gmra.mrb[0].mxu0 %v3224
          %v3384 = vpop.f32.mrb[0].mxu0
          %v3385 = vadd.f32 0.0, %v3384
          %v3386 = vpop.f32.mrb[0].mxu0
          %3387 = vmatprep.mubr.f32.mxu0 0.0
          %3388 = vmatmul.mubr.f32.gmra.mrb[0].mxu0 %v3225
          %v3389 = vpop.f32.mrb[0].mxu0
          %v3390 = vadd.f32 0.0, %v3389
          %v3391 = vpop.f32.mrb[0].mxu0
          %3392 = vmatprep.mubr.f32.mxu0 0.0
          %3393 = vmatmul.mubr.f32.gmra.mrb[0].mxu0 %v3226
          %v3394 = vpop.f32.mrb[0].mxu0
          %v3395 = vadd.f32 0.0, %v3394
          %v3396 = vpop.f32.mrb[0].mxu0
          %3397 = vmatprep.mubr.f32.mxu0 0.0
          %3398 = vmatmul.mubr.f32.gmra.mrb[0].mxu0 %v3227
          %v3399 = vpop.f32.mrb[0].mxu0
          %v3400 = vadd.f32 0.0, %v3399
          %v3401 = vpop.f32.mrb[0].mxu0
          %3402 = vmatprep.mubr.f32.mxu0 0.0
          %3403 = vmatmul.mubr.f32.gmra.mrb[0].mxu0 %v3228
          %v3404 = vpop.f32.mrb[0].mxu0
          %v3405 = vadd.f32 0.0, %v3404
          %v3406 = vpop.f32.mrb[0].mxu0
          %3407 = vmatprep.mubr.f32.mxu0 0.0
          %3408 = vmatmul.mubr.f32.gmra.mrb[0].mxu0 %v3229
          %v3409 = vpop.f32.mrb[0].mxu0
          %v3410 = vadd.f32 0.0, %v3409
          %v3411 = vpop.f32.mrb[0].mxu0
          %3412 = vmatprep.mubr.f32.mxu0 0.0
          %3413 = vmatmul.mubr.f32.gmra.mrb[0].mxu0 %v3230
          %v3414 = vpop.f32.mrb[0].mxu0
          %v3415 = vadd.f32 0.0, %v3414
          %v3416 = vpop.f32.mrb[0].mxu0
          %3417 = vmatprep.mubr.f32.mxu0 0.0
          %3418 = vmatmul.mubr.f32.gmra.mrb[0].mxu0 %v3231
          %v3419 = vpop.f32.mrb[0].mxu0
          %v3420 = vadd.f32 0.0, %v3419
          %v3421 = vpop.f32.mrb[0].mxu0
          %3422 = vmatprep.mubr.f32.mxu0 0.0
          %3423 = vmatmul.mubr.f32.gmra.mrb[0].mxu0 %v3232
          %v3424 = vpop.f32.mrb[0].mxu0
          %v3425 = vadd.f32 0.0, %v3424
          %v3426 = vpop.f32.mrb[0].mxu0
          %3427 = vmatprep.mubr.f32.mxu0 0.0
          %3428 = vmatmul.mubr.f32.gmra.mrb[0].mxu0 %v3233
          %v3429 = vpop.f32.mrb[0].mxu0
          %v3430 = vadd.f32 0.0, %v3429
          %v3431 = vpop.f32.mrb[0].mxu0
          %3432 = vmatprep.mubr.f32.mxu0 0.0
          %3433 = vmatmul.mubr.f32.gmra.mrb[0].mxu0 %v3234
          %v3434 = vpop.f32.mrb[0].mxu0
          %v3435 = vadd.f32 0.0, %v3434
          %v3436 = vpop.f32.mrb[0].mxu0
          %3437 = vmatprep.mubr.f32.mxu0 0.0
          %3438 = vmatmul.mubr.f32.gmra.mrb[0].mxu0 %v3235
          %v3439 = vpop.f32.mrb[0].mxu0
          %v3440 = vadd.f32 0.0, %v3439
          %v3441 = vpop.f32.mrb[0].mxu0
          %3442 = vmatprep.mubr.f32.mxu0 0.0
          %3443 = vmatmul.mubr.f32.gmra.mrb[0].mxu0 %v3236
          %v3444 = vpop.f32.mrb[0].mxu0
          %v3445 = vadd.f32 0.0, %v3444
          %v3446 = vpop.f32.mrb[0].mxu0
          %3447 = vmatprep.mubr.f32.mxu0 0.0
          %3448 = vmatmul.mubr.f32.gmra.mrb[0].mxu0 %v3237
          %v3449 = vpop.f32.mrb[0].mxu0
          %v3450 = vadd.f32 0.0, %v3449
          %v3451 = vpop.f32.mrb[0].mxu0
          %3452 = vmatprep.mubr.f32.mxu0 0.0
          %3453 = vmatmul.mubr.f32.gmra.mrb[0].mxu0 %v3238
          %v3454 = vpop.f32.mrb[0].mxu0
          %v3455 = vadd.f32 0.0, %v3454
          %v3456 = vpop.f32.mrb[0].mxu0
          %3457 = vmatprep.mubr.f32.mxu0 0.0
          %3458 = vmatmul.mubr.f32.gmra.mrb[0].mxu0 %v3239
          %v3459 = vpop.f32.mrb[0].mxu0
          %v3460 = vadd.f32 0.0, %v3459
          %v3461 = vpop.f32.mrb[0].mxu0
          %3462 = vmatprep.mubr.f32.mxu0 0.0
          %3463 = vmatmul.mubr.f32.gmra.mrb[0].mxu0 %v3240
          %v3464 = vpop.f32.mrb[0].mxu0
          %v3465 = vadd.f32 0.0, %v3464
          %v3466 = vpop.f32.mrb[0].mxu0
          %3467 = vmatprep.mubr.f32.mxu0 0.0
          %3468 = vmatmul.mubr.f32.gmra.mrb[0].mxu0 %v3241
          %v3469 = vpop.f32.mrb[0].mxu0
          %v3470 = vadd.f32 0.0, %v3469
          %v3471 = vpop.f32.mrb[0].mxu0
          %3472 = vmatprep.mubr.f32.mxu0 0.0
          %3473 = vmatmul.mubr.f32.gmra.mrb[0].mxu0 %v3242
          %v3474 = vpop.f32.mrb[0].mxu0
          %v3475 = vadd.f32 0.0, %v3474
          %v3476 = vpop.f32.mrb[0].mxu0
          %3477 = vmatprep.mubr.f32.mxu0 0.0
          %3478 = vmatmul.mubr.f32.gmra.mrb[0].mxu0 %v3243
          %v3479 = vpop.f32.mrb[0].mxu0
          %v3480 = vadd.f32 0.0, %v3479
          %v3481 = vpop.f32.mrb[0].mxu0
          %3482 = vmatprep.mubr.f32.mxu0 0.0
          %3483 = vmatmul.mubr.f32.gmra.mrb[0].mxu0 %v3244
          %v3484 = vpop.f32.mrb[0].mxu0
          %v3485 = vadd.f32 0.0, %v3484
          %v3486 = vpop.f32.mrb[0].mxu0
          %3487 = vdwg.mxu0
          %v3488 = vld [vmem:[%s217] sm:$0xff]
          %v3489 = vld [vmem:[%s217 + $0x8] sm:$0xff]
          %v3490 = vld [vmem:[%s217 + $0x10] sm:$0xff]
          %v3491 = vld [vmem:[%s217 + $0x18] sm:$0xff]
          %v3492 = vld [vmem:[%s217 + $0x20] sm:$0xff]
          %v3493 = vld [vmem:[%s217 + $0x28] sm:$0xff]
          %v3494 = vld [vmem:[%s217 + $0x30] sm:$0xff]
          %v3495 = vld [vmem:[%s217 + $0x38] sm:$0xff]
          %v3496 = vld [vmem:[%s217 + $0x40] sm:$0xff]
          %v3497 = vld [vmem:[%s217 + $0x48] sm:$0xff]
          %v3498 = vld [vmem:[%s217 + $0x50] sm:$0xff]
          %v3499 = vld [vmem:[%s217 + $0x58] sm:$0xff]
          %v3500 = vld [vmem:[%s217 + $0x60] sm:$0xff]
          %v3501 = vld [vmem:[%s217 + $0x68] sm:$0xff]
          %v3502 = vld [vmem:[%s217 + $0x70] sm:$0xff]
          %v3503 = vld [vmem:[%s217 + $0x78] sm:$0xff]
          %v3504 = vld [vmem:[%s217 + $0x80] sm:$0xff]
          %v3505 = vld [vmem:[%s217 + $0x88] sm:$0xff]
          %v3506 = vld [vmem:[%s217 + $0x90] sm:$0xff]
          %v3507 = vld [vmem:[%s217 + $0x98] sm:$0xff]
          %v3508 = vld [vmem:[%s217 + $0xa0] sm:$0xff]
          %v3509 = vld [vmem:[%s217 + $0xa8] sm:$0xff]
          %v3510 = vld [vmem:[%s217 + $0xb0] sm:$0xff]
          %v3511 = vld [vmem:[%s217 + $0xb8] sm:$0xff]
          %v3512 = vld [vmem:[%s217 + $0xc0] sm:$0xff]
          %v3513 = vld [vmem:[%s217 + $0xc8] sm:$0xff]
          %v3514 = vld [vmem:[%s217 + $0xd0] sm:$0xff]
          %v3515 = vld [vmem:[%s217 + $0xd8] sm:$0xff]
          %v3516 = vld [vmem:[%s217 + $0xe0] sm:$0xff]
          %v3517 = vld [vmem:[%s217 + $0xe8] sm:$0xff]
          %v3518 = vld [vmem:[%s217 + $0xf0] sm:$0xff]
          %v3519 = vld [vmem:[%s217 + $0xf8] sm:$0xff]
          %v3520 = vadd.f32 %v3488, %v3330
          %v3521 = vadd.f32 %v3489, %v3335
          %v3522 = vadd.f32 %v3490, %v3340
          %v3523 = vadd.f32 %v3491, %v3345
          %v3524 = vadd.f32 %v3492, %v3350
          %v3525 = vadd.f32 %v3493, %v3355
          %v3526 = vadd.f32 %v3494, %v3360
          %v3527 = vadd.f32 %v3495, %v3365
          %v3528 = vadd.f32 %v3496, %v3370
          %v3529 = vadd.f32 %v3497, %v3375
          %v3530 = vadd.f32 %v3498, %v3380
          %v3531 = vadd.f32 %v3499, %v3385
          %v3532 = vadd.f32 %v3500, %v3390
          %v3533 = vadd.f32 %v3501, %v3395
          %v3534 = vadd.f32 %v3502, %v3400
          %v3535 = vadd.f32 %v3503, %v3405
          %v3536 = vadd.f32 %v3504, %v3410
          %v3537 = vadd.f32 %v3505, %v3415
          %v3538 = vadd.f32 %v3506, %v3420
          %v3539 = vadd.f32 %v3507, %v3425
          %v3540 = vadd.f32 %v3508, %v3430
          %v3541 = vadd.f32 %v3509, %v3435
          %v3542 = vadd.f32 %v3510, %v3440
          %v3543 = vadd.f32 %v3511, %v3445
          %v3544 = vadd.f32 %v3512, %v3450
          %v3545 = vadd.f32 %v3513, %v3455
          %v3546 = vadd.f32 %v3514, %v3460
          %v3547 = vadd.f32 %v3515, %v3465
          %v3548 = vadd.f32 %v3516, %v3470
          %v3549 = vadd.f32 %v3517, %v3475
          %v3550 = vadd.f32 %v3518, %v3480
          %v3551 = vadd.f32 %v3519, %v3485
          %3552 = vst [vmem:[%s217] sm:$0xff] %v3520
          %3553 = vst [vmem:[%s217 + $0x8] sm:$0xff] %v3521
          %3554 = vst [vmem:[%s217 + $0x10] sm:$0xff] %v3522
          %3555 = vst [vmem:[%s217 + $0x18] sm:$0xff] %v3523
          %3556 = vst [vmem:[%s217 + $0x20] sm:$0xff] %v3524
          %3557 = vst [vmem:[%s217 + $0x28] sm:$0xff] %v3525
          %3558 = vst [vmem:[%s217 + $0x30] sm:$0xff] %v3526
          %3559 = vst [vmem:[%s217 + $0x38] sm:$0xff] %v3527
          %3560 = vst [vmem:[%s217 + $0x40] sm:$0xff] %v3528
          %3561 = vst [vmem:[%s217 + $0x48] sm:$0xff] %v3529
          %3562 = vst [vmem:[%s217 + $0x50] sm:$0xff] %v3530
          %3563 = vst [vmem:[%s217 + $0x58] sm:$0xff] %v3531
          %3564 = vst [vmem:[%s217 + $0x60] sm:$0xff] %v3532
          %3565 = vst [vmem:[%s217 + $0x68] sm:$0xff] %v3533
          %3566 = vst [vmem:[%s217 + $0x70] sm:$0xff] %v3534
          %3567 = vst [vmem:[%s217 + $0x78] sm:$0xff] %v3535
          %3568 = vst [vmem:[%s217 + $0x80] sm:$0xff] %v3536
          %3569 = vst [vmem:[%s217 + $0x88] sm:$0xff] %v3537
          %3570 = vst [vmem:[%s217 + $0x90] sm:$0xff] %v3538
          %3571 = vst [vmem:[%s217 + $0x98] sm:$0xff] %v3539
          %3572 = vst [vmem:[%s217 + $0xa0] sm:$0xff] %v3540
          %3573 = vst [vmem:[%s217 + $0xa8] sm:$0xff] %v3541
          %3574 = vst [vmem:[%s217 + $0xb0] sm:$0xff] %v3542
          %3575 = vst [vmem:[%s217 + $0xb8] sm:$0xff] %v3543
          %3576 = vst [vmem:[%s217 + $0xc0] sm:$0xff] %v3544
          %3577 = vst [vmem:[%s217 + $0xc8] sm:$0xff] %v3545
          %3578 = vst [vmem:[%s217 + $0xd0] sm:$0xff] %v3546
          %3579 = vst [vmem:[%s217 + $0xd8] sm:$0xff] %v3547
          %3580 = vst [vmem:[%s217 + $0xe0] sm:$0xff] %v3548
          %3581 = vst [vmem:[%s217 + $0xe8] sm:$0xff] %v3549
          %3582 = vst [vmem:[%s217 + $0xf0] sm:$0xff] %v3550
          %3583 = vst [vmem:[%s217 + $0xf8] sm:$0xff] %v3551
        $region49: #{tpu_custom_call.1} parent=31 // loop_footer
          %s330 = sadd.s32 1, %s326
        $region50: #{tpu_custom_call.1} parent=31 // loop_footer_branch
          %325 = sbr.rel target = $region46
        $region51: #{tpu_custom_call.1} parent=31 // loop_exit
          _
        %v3584 = vld [vmem:[%s217] sm:$0xff]
        %v3585 = vld [vmem:[%s217 + $0x8] sm:$0xff]
        %v3586 = vld [vmem:[%s217 + $0x10] sm:$0xff]
        %v3587 = vld [vmem:[%s217 + $0x18] sm:$0xff]
        %v3588 = vld [vmem:[%s217 + $0x20] sm:$0xff]
        %v3589 = vld [vmem:[%s217 + $0x28] sm:$0xff]
        %v3590 = vld [vmem:[%s217 + $0x30] sm:$0xff]
        %v3591 = vld [vmem:[%s217 + $0x38] sm:$0xff]
        %v3592 = vld [vmem:[%s217 + $0x40] sm:$0xff]
        %v3593 = vld [vmem:[%s217 + $0x48] sm:$0xff]
        %v3594 = vld [vmem:[%s217 + $0x50] sm:$0xff]
        %v3595 = vld [vmem:[%s217 + $0x58] sm:$0xff]
        %v3596 = vld [vmem:[%s217 + $0x60] sm:$0xff]
        %v3597 = vld [vmem:[%s217 + $0x68] sm:$0xff]
        %v3598 = vld [vmem:[%s217 + $0x70] sm:$0xff]
        %v3599 = vld [vmem:[%s217 + $0x78] sm:$0xff]
        %v3600 = vld [vmem:[%s217 + $0x80] sm:$0xff]
        %v3601 = vld [vmem:[%s217 + $0x88] sm:$0xff]
        %v3602 = vld [vmem:[%s217 + $0x90] sm:$0xff]
        %v3603 = vld [vmem:[%s217 + $0x98] sm:$0xff]
        %v3604 = vld [vmem:[%s217 + $0xa0] sm:$0xff]
        %v3605 = vld [vmem:[%s217 + $0xa8] sm:$0xff]
        %v3606 = vld [vmem:[%s217 + $0xb0] sm:$0xff]
        %v3607 = vld [vmem:[%s217 + $0xb8] sm:$0xff]
        %v3608 = vld [vmem:[%s217 + $0xc0] sm:$0xff]
        %v3609 = vld [vmem:[%s217 + $0xc8] sm:$0xff]
        %v3610 = vld [vmem:[%s217 + $0xd0] sm:$0xff]
        %v3611 = vld [vmem:[%s217 + $0xd8] sm:$0xff]
        %v3612 = vld [vmem:[%s217 + $0xe0] sm:$0xff]
        %v3613 = vld [vmem:[%s217 + $0xe8] sm:$0xff]
        %v3614 = vld [vmem:[%s217 + $0xf0] sm:$0xff]
        %v3615 = vld [vmem:[%s217 + $0xf8] sm:$0xff]
        %v3616 = vmul.f32 %v3584, 0.5
        %v3617 = vmul.f32 %v3585, 0.5
        %v3618 = vmul.f32 %v3586, 0.5
        %v3619 = vmul.f32 %v3587, 0.5
        %v3620 = vmul.f32 %v3588, 0.5
        %v3621 = vmul.f32 %v3589, 0.5
        %v3622 = vmul.f32 %v3590, 0.5
        %v3623 = vmul.f32 %v3591, 0.5
        %v3624 = vmul.f32 %v3592, 0.5
        %v3625 = vmul.f32 %v3593, 0.5
        %v3626 = vmul.f32 %v3594, 0.5
        %v3627 = vmul.f32 %v3595, 0.5
        %v3628 = vmul.f32 %v3596, 0.5
        %v3629 = vmul.f32 %v3597, 0.5
        %v3630 = vmul.f32 %v3598, 0.5
        %v3631 = vmul.f32 %v3599, 0.5
        %v3632 = vmul.f32 %v3600, 0.5
        %v3633 = vmul.f32 %v3601, 0.5
        %v3634 = vmul.f32 %v3602, 0.5
        %v3635 = vmul.f32 %v3603, 0.5
        %v3636 = vmul.f32 %v3604, 0.5
        %v3637 = vmul.f32 %v3605, 0.5
        %v3638 = vmul.f32 %v3606, 0.5
        %v3639 = vmul.f32 %v3607, 0.5
        %v3640 = vmul.f32 %v3608, 0.5
        %v3641 = vmul.f32 %v3609, 0.5
        %v3642 = vmul.f32 %v3610, 0.5
        %v3643 = vmul.f32 %v3611, 0.5
        %v3644 = vmul.f32 %v3612, 0.5
        %v3645 = vmul.f32 %v3613, 0.5
        %v3646 = vmul.f32 %v3614, 0.5
        %v3647 = vmul.f32 %v3615, 0.5
        %v3648 = vrcp.pop 1.4142135
        %v3649 = vmul.f32 %v3584, %v3648
        %v3650 = vmul.f32 %v3585, %v3648
        %v3651 = vmul.f32 %v3586, %v3648
        %v3652 = vmul.f32 %v3587, %v3648
        %v3653 = vmul.f32 %v3588, %v3648
        %v3654 = vmul.f32 %v3589, %v3648
        %v3655 = vmul.f32 %v3590, %v3648
        %v3656 = vmul.f32 %v3591, %v3648
        %v3657 = vmul.f32 %v3592, %v3648
        %v3658 = vmul.f32 %v3593, %v3648
        %v3659 = vmul.f32 %v3594, %v3648
        %v3660 = vmul.f32 %v3595, %v3648
        %v3661 = vmul.f32 %v3596, %v3648
        %v3662 = vmul.f32 %v3597, %v3648
        %v3663 = vmul.f32 %v3598, %v3648
        %v3664 = vmul.f32 %v3599, %v3648
        %v3665 = vmul.f32 %v3600, %v3648
        %v3666 = vmul.f32 %v3601, %v3648
        %v3667 = vmul.f32 %v3602, %v3648
        %v3668 = vmul.f32 %v3603, %v3648
        %v3669 = vmul.f32 %v3604, %v3648
        %v3670 = vmul.f32 %v3605, %v3648
        %v3671 = vmul.f32 %v3606, %v3648
        %v3672 = vmul.f32 %v3607, %v3648
        %v3673 = vmul.f32 %v3608, %v3648
        %v3674 = vmul.f32 %v3609, %v3648
        %v3675 = vmul.f32 %v3610, %v3648
        %v3676 = vmul.f32 %v3611, %v3648
        %v3677 = vmul.f32 %v3612, %v3648
        %v3678 = vmul.f32 %v3613, %v3648
        %v3679 = vmul.f32 %v3614, %v3648
        %v3680 = vmul.f32 %v3615, %v3648
        %v3681 = verf.f32.pop %v3649
        %v3682 = verf.f32.pop %v3650
        %v3683 = verf.f32.pop %v3651
        %v3684 = verf.f32.pop %v3652
        %v3685 = verf.f32.pop %v3653
        %v3686 = verf.f32.pop %v3654
        %v3687 = verf.f32.pop %v3655
        %v3688 = verf.f32.pop %v3656
        %v3689 = verf.f32.pop %v3657
        %v3690 = verf.f32.pop %v3658
        %v3691 = verf.f32.pop %v3659
        %v3692 = verf.f32.pop %v3660
        %v3693 = verf.f32.pop %v3661
        %v3694 = verf.f32.pop %v3662
        %v3695 = verf.f32.pop %v3663
        %v3696 = verf.f32.pop %v3664
        %v3697 = verf.f32.pop %v3665
        %v3698 = verf.f32.pop %v3666
        %v3699 = verf.f32.pop %v3667
        %v3700 = verf.f32.pop %v3668
        %v3701 = verf.f32.pop %v3669
        %v3702 = verf.f32.pop %v3670
        %v3703 = verf.f32.pop %v3671
        %v3704 = verf.f32.pop %v3672
        %v3705 = verf.f32.pop %v3673
        %v3706 = verf.f32.pop %v3674
        %v3707 = verf.f32.pop %v3675
        %v3708 = verf.f32.pop %v3676
        %v3709 = verf.f32.pop %v3677
        %v3710 = verf.f32.pop %v3678
        %v3711 = verf.f32.pop %v3679
        %v3712 = verf.f32.pop %v3680
        %v3713 = vadd.f32 %v3681, 1.0
        %v3714 = vadd.f32 %v3682, 1.0
        %v3715 = vadd.f32 %v3683, 1.0
        %v3716 = vadd.f32 %v3684, 1.0
        %v3717 = vadd.f32 %v3685, 1.0
        %v3718 = vadd.f32 %v3686, 1.0
        %v3719 = vadd.f32 %v3687, 1.0
        %v3720 = vadd.f32 %v3688, 1.0
        %v3721 = vadd.f32 %v3689, 1.0
        %v3722 = vadd.f32 %v3690, 1.0
        %v3723 = vadd.f32 %v3691, 1.0
        %v3724 = vadd.f32 %v3692, 1.0
        %v3725 = vadd.f32 %v3693, 1.0
        %v3726 = vadd.f32 %v3694, 1.0
        %v3727 = vadd.f32 %v3695, 1.0
        %v3728 = vadd.f32 %v3696, 1.0
        %v3729 = vadd.f32 %v3697, 1.0
        %v3730 = vadd.f32 %v3698, 1.0
        %v3731 = vadd.f32 %v3699, 1.0
        %v3732 = vadd.f32 %v3700, 1.0
        %v3733 = vadd.f32 %v3701, 1.0
        %v3734 = vadd.f32 %v3702, 1.0
        %v3735 = vadd.f32 %v3703, 1.0
        %v3736 = vadd.f32 %v3704, 1.0
        %v3737 = vadd.f32 %v3705, 1.0
        %v3738 = vadd.f32 %v3706, 1.0
        %v3739 = vadd.f32 %v3707, 1.0
        %v3740 = vadd.f32 %v3708, 1.0
        %v3741 = vadd.f32 %v3709, 1.0
        %v3742 = vadd.f32 %v3710, 1.0
        %v3743 = vadd.f32 %v3711, 1.0
        %v3744 = vadd.f32 %v3712, 1.0
        %v3745 = vmul.f32 %v3616, %v3713
        %v3746 = vmul.f32 %v3617, %v3714
        %v3747 = vmul.f32 %v3618, %v3715
        %v3748 = vmul.f32 %v3619, %v3716
        %v3749 = vmul.f32 %v3620, %v3717
        %v3750 = vmul.f32 %v3621, %v3718
        %v3751 = vmul.f32 %v3622, %v3719
        %v3752 = vmul.f32 %v3623, %v3720
        %v3753 = vmul.f32 %v3624, %v3721
        %v3754 = vmul.f32 %v3625, %v3722
        %v3755 = vmul.f32 %v3626, %v3723
        %v3756 = vmul.f32 %v3627, %v3724
        %v3757 = vmul.f32 %v3628, %v3725
        %v3758 = vmul.f32 %v3629, %v3726
        %v3759 = vmul.f32 %v3630, %v3727
        %v3760 = vmul.f32 %v3631, %v3728
        %v3761 = vmul.f32 %v3632, %v3729
        %v3762 = vmul.f32 %v3633, %v3730
        %v3763 = vmul.f32 %v3634, %v3731
        %v3764 = vmul.f32 %v3635, %v3732
        %v3765 = vmul.f32 %v3636, %v3733
        %v3766 = vmul.f32 %v3637, %v3734
        %v3767 = vmul.f32 %v3638, %v3735
        %v3768 = vmul.f32 %v3639, %v3736
        %v3769 = vmul.f32 %v3640, %v3737
        %v3770 = vmul.f32 %v3641, %v3738
        %v3771 = vmul.f32 %v3642, %v3739
        %v3772 = vmul.f32 %v3643, %v3740
        %v3773 = vmul.f32 %v3644, %v3741
        %v3774 = vmul.f32 %v3645, %v3742
        %v3775 = vmul.f32 %v3646, %v3743
        %v3776 = vmul.f32 %v3647, %v3744
        %3777 = vst [vmem:[%s217] sm:$0xff] %v3745
        %3778 = vst [vmem:[%s217 + $0x8] sm:$0xff] %v3746
        %3779 = vst [vmem:[%s217 + $0x10] sm:$0xff] %v3747
        %3780 = vst [vmem:[%s217 + $0x18] sm:$0xff] %v3748
        %3781 = vst [vmem:[%s217 + $0x20] sm:$0xff] %v3749
        %3782 = vst [vmem:[%s217 + $0x28] sm:$0xff] %v3750
        %3783 = vst [vmem:[%s217 + $0x30] sm:$0xff] %v3751
        %3784 = vst [vmem:[%s217 + $0x38] sm:$0xff] %v3752
        %3785 = vst [vmem:[%s217 + $0x40] sm:$0xff] %v3753
        %3786 = vst [vmem:[%s217 + $0x48] sm:$0xff] %v3754
        %3787 = vst [vmem:[%s217 + $0x50] sm:$0xff] %v3755
        %3788 = vst [vmem:[%s217 + $0x58] sm:$0xff] %v3756
        %3789 = vst [vmem:[%s217 + $0x60] sm:$0xff] %v3757
        %3790 = vst [vmem:[%s217 + $0x68] sm:$0xff] %v3758
        %3791 = vst [vmem:[%s217 + $0x70] sm:$0xff] %v3759
        %3792 = vst [vmem:[%s217 + $0x78] sm:$0xff] %v3760
        %3793 = vst [vmem:[%s217 + $0x80] sm:$0xff] %v3761
        %3794 = vst [vmem:[%s217 + $0x88] sm:$0xff] %v3762
        %3795 = vst [vmem:[%s217 + $0x90] sm:$0xff] %v3763
        %3796 = vst [vmem:[%s217 + $0x98] sm:$0xff] %v3764
        %3797 = vst [vmem:[%s217 + $0xa0] sm:$0xff] %v3765
        %3798 = vst [vmem:[%s217 + $0xa8] sm:$0xff] %v3766
        %3799 = vst [vmem:[%s217 + $0xb0] sm:$0xff] %v3767
        %3800 = vst [vmem:[%s217 + $0xb8] sm:$0xff] %v3768
        %3801 = vst [vmem:[%s217 + $0xc0] sm:$0xff] %v3769
        %3802 = vst [vmem:[%s217 + $0xc8] sm:$0xff] %v3770
        %3803 = vst [vmem:[%s217 + $0xd0] sm:$0xff] %v3771
        %3804 = vst [vmem:[%s217 + $0xd8] sm:$0xff] %v3772
        %3805 = vst [vmem:[%s217 + $0xe0] sm:$0xff] %v3773
        %3806 = vst [vmem:[%s217 + $0xe8] sm:$0xff] %v3774
        %3807 = vst [vmem:[%s217 + $0xf0] sm:$0xff] %v3775
        %3808 = vst [vmem:[%s217 + $0xf8] sm:$0xff] %v3776
        %s3809 = sand.u32 %s97, 1
        %s3810 = scalar_lea.sflag [#allocation5], %s3809
        %s3811 = sand.u32 %s97, 1
        %s3812 = smul.addr %s3811, 256
        %s3813 = scalar_lea.vmem [#allocation9], %s3812
        // Predicated region
        $region52: #{tpu_custom_call.1} parent=31 // pred_check
          %p3814 = pneg %p107
        $region53: #{tpu_custom_call.1} parent=31 // pred_check_branch
          %3816 = sbr.rel (%p3814) target = $region55
        $region54: #{tpu_custom_call.1} parent=31 // pred_region
          %s3818 = ssub.s32 4096, 4096
          %3819 = vsyncadd %s3810, %s3818
          %s3820 = smul.addr %s21, 32
          %s3821 = smul.addr %s3820, 128
          %s3822 = scalar_lea.hbm %s3, %s3821
          %s3823 = sshll.u32 %s3813, 4
          %s3824 = int_to_ptr.vmem [resolvable:$true] %s3823
          %3829 = dma.vmem_to_hbm [thread:$0]  %s3824, 4096, %s3822, %s3810, 128, 128, 8
        $region55: #{tpu_custom_call.1} parent=31 // pred_fallthru
          _
      $region32: #{tpu_custom_call.1} parent=5 // pred_fallthru
        _
      %p3830 = scmp.le.s32.totalorder 2, %s16
      // Predicated region
      $region56: #{tpu_custom_call.1} parent=5 // pred_check
        %p3831 = pneg %p3830
      $region57: #{tpu_custom_call.1} parent=5 // pred_check_branch
        %3833 = sbr.rel (%p3831) target = $region59
      $region58: #{tpu_custom_call.1} parent=5 // pred_region
        %s3834 = ssub.s32 %s16, 2
        // Predicated region
        $region60: #{tpu_custom_call.1} parent=58 // pred_check
          %p3835 = pneg %p113
        $region61: #{tpu_custom_call.1} parent=58 // pred_check_branch
          %3837 = sbr.rel (%p3835) target = $region63
        $region62: #{tpu_custom_call.1} parent=58 // pred_region
          %s3838 = sand.u32 %s98, 1
          %s3839 = scalar_lea.sflag [#allocation5], %s3838
          %s3840 = sand.u32 %s98, 1
          %s3841 = smul.addr %s3840, 256
          %s3842 = scalar_lea.vmem [#allocation9], %s3841
          %3843 = dma.done %s3839, 4096
        $region63: #{tpu_custom_call.1} parent=58 // pred_fallthru
          _
      $region59: #{tpu_custom_call.1} parent=5 // pred_fallthru
        _
    $region6: #{tpu_custom_call.1} parent=1 // loop_footer
      %s20 = sadd.s32 1, %s16
    $region7: #{tpu_custom_call.1} parent=1 // loop_footer_branch
      %15 = sbr.rel target = $region3
    $region8: #{tpu_custom_call.1} parent=1 // loop_exit
      _
    %3844 = vsyncpa [#allocation4], 1
    %s3845 = scalar_lea.sflag [#allocation4], 1
    %3846 = vsyncpa %s3845, 1
    %3847 = vsyncpa [#allocation7], 1
    %3848 = vsyncpa [#allocation5], 1
    %s3849 = scalar_lea.sflag [#allocation5], 1
    %3850 = vsyncpa %s3849, 1

</llo_original>
